<compile_context>
chip_gen: v7x
topology: tpu7x:2x2x1
jax: 0.10.0
libtpu: 0.0.40
codegen_flags: <defaults>
</compile_context>

<pallas_src>
import functools
import math

import numpy as np

import jax
import jax.numpy as jnp
from jax.experimental import pallas as pl
from jax.experimental.pallas import tpu as pltpu

# ----------------------------- model dimensions -----------------------------
IMG = 32            # encoder input resolution (SAM: 1024)
PATCH = 8           # patch size (SAM: 16)
GRID = IMG // PATCH            # 4
NP = GRID * GRID               # 16 image tokens
ENC_D = 128         # ViT embed dim (SAM ViT-H: 1280) -- a full TPU lane width
EMB_C = 32          # prompt / mask-decoder embedding dim (SAM: 256)

_F32 = jnp.float32
_BF16 = jnp.bfloat16


# ------------------------- shared in-kernel helpers -------------------------
def _ln_op(x, g, b, eps=1e-6):
    # one-pass LayerNorm: sum(x) and sum(x*x) are independent reductions, so they
    # can overlap on the XLU instead of chaining mean -> centered -> variance.
    inv_n = 1.0 / x.shape[-1]
    mu = jnp.sum(x, axis=-1, keepdims=True) * inv_n
    ex2 = jnp.sum(x * x, axis=-1, keepdims=True) * inv_n
    var = jnp.maximum(ex2 - mu * mu, 0.0)
    return (x - mu) * jax.lax.rsqrt(var + eps) * g + b


def _mm(a, w_bf16):
    # bf16 x bf16 MXU matmul with f32 accumulation
    return jnp.dot(a.astype(_BF16), w_bf16, preferred_element_type=_F32)


def _sdpa_op(q, k, v, scale):
    s = jax.lax.dot_general(q.astype(_BF16), k.astype(_BF16),
                            (((1,), (1,)), ((), ())),
                            preferred_element_type=_F32) * scale
    m = jnp.max(s, axis=-1, keepdims=True)
    p = jnp.exp(s - m)
    l = jnp.sum(p, axis=-1, keepdims=True)
    o = jnp.dot(p.astype(_BF16), v.astype(_BF16), preferred_element_type=_F32)
    return o * pl.reciprocal(l, approx=True)


# --------------------- the single fused SAM forward kernel ---------------------
def _sam_kernel(
        # ---- image encoder inputs ----
        patch_ref, mean_ref, istd_ref,
        pw_ref, pb_ref, pos_ref,
        ln1g_ref, ln1b_ref, wqkv_ref, bqkv_ref, wo_ref, bo_ref,
        ln2g_ref, ln2b_ref, mw1_ref, mb1_ref, mw2_ref, mb2_ref,
        neck1_ref, nln1g_ref, nln1b_ref, shifts_ref, neck2_ref,
        nln2g_ref, nln2b_ref,
        # ---- prompt encoder / mask decoder inputs ----
        gt_ref, ycoord_ref, xcoord_ref,
        grid_coords_ref, gauss_ref, box_emb_ref, no_mask_ref,
        tok_base_ref, tok_sel_ref,
        attn_w_ref, attn_b_ref, dln_g_ref, dln_b_ref,
        dmw1_ref, dmb1_ref, dmw2_ref, dmb2_ref,
        s1_ref, up1w_ref, up1b_ref, uplg_ref, uplb_ref,
        s2_ref, up2w_ref, up2b_ref,
        hw1_ref, hb1_ref, hw2_ref, hb2_ref, hw3_ref, hb3_ref,
        kt_hbm_ref,
        # ---- output ----
        o_ref,
        # ---- scratch ----
        kt_vmem, kt_sem,
        *, box_scale, pe_size, orig_h, orig_w):
    D, C = ENC_D, EMB_C
    two_pi = 2.0 * math.pi

    # kt is only consumed by the very last matmul: fetch it manually so its HBM
    # transfer overlaps the entire encoder/decoder compute instead of gating
    # kernel start, and so it is not double-buffered on this single-step grid.
    kt_copy = pltpu.make_async_copy(kt_hbm_ref, kt_vmem, kt_sem)
    kt_copy.start()

    # ---------------- preprocess + patch embed + positional embed ----------------
    x = (patch_ref[...] - mean_ref[...]) * istd_ref[...]
    t = _mm(x, pw_ref[...]) + pb_ref[...] + pos_ref[...]

    # ---------------- transformer block (pre-LN, fused lane-aligned QKV) ----------------
    h = _ln_op(t, ln1g_ref[...], ln1b_ref[...])
    qkv = _mm(h, wqkv_ref[...]) + bqkv_ref[...]
    q = qkv[:, 0:D]                       # ENC_D=128 -> all splits 128-lane aligned
    k = qkv[:, D:2 * D]
    v = qkv[:, 2 * D:3 * D]
    a = _sdpa_op(q, k, v, 1.0 / math.sqrt(D))
    t = t + _mm(a, wo_ref[...]) + bo_ref[...]
    h = _ln_op(t, ln2g_ref[...], ln2b_ref[...])
    # TODO(synk): PyTorch SAM uses exact GELU; tanh approximation kept for the EUP path.
    hmid = jax.nn.gelu(_mm(h, mw1_ref[...]) + mb1_ref[...], approximate=True)
    t = t + _mm(hmid, mw2_ref[...]) + mb2_ref[...]

    # ---- neck: 1x1 conv + LN + 3x3 conv as TWO matmuls (gather + fused taps) + LN ----
    n = _ln_op(_mm(t, neck1_ref[...]), nln1g_ref[...], nln1b_ref[...])
    # (9*NP, NP) tap-major 0/1 gather matrix -> all 9 shifted copies in one push
    g_all = jnp.dot(shifts_ref[...], n.astype(_BF16), preferred_element_type=_F32)
    # im2col rows via free (tile-aligned) sublane slices + one lane concat
    h9 = jnp.concatenate([g_all[kk * NP:(kk + 1) * NP, :] for kk in range(9)],
                         axis=-1)                                   # (NP, 9*C)
    img_emb = _ln_op(jnp.dot(h9.astype(_BF16), neck2_ref[...],
                             preferred_element_type=_F32),
                     nln2g_ref[...], nln2b_ref[...])                # (NP, C)

    # ---------------- prompt encoder: bbox from the gt mask ----------------
    m = gt_ref[...]                       # (H*W/128, 128) lane-dense mask view
    hit = m == 1.0                        # matches torch.where(gt_mask == 1) semantics
    yy = ycoord_ref[...]
    xx = xcoord_ref[...]
    big = float(orig_h * orig_w)

    def _rmin(vv):
        return jnp.min(jnp.min(vv, axis=1, keepdims=True), axis=0, keepdims=True)

    def _rmax(vv):
        return jnp.max(jnp.max(vv, axis=1, keepdims=True), axis=0, keepdims=True)

    x_min = _rmin(jnp.where(hit, xx, big))
    y_min = _rmin(jnp.where(hit, yy, big))
    x_max = _rmax(jnp.where(hit, xx, -1.0))
    y_max = _rmax(jnp.where(hit, yy, -1.0))
    has = _rmax(jnp.where(hit, 1.0, 0.0))
    # empty-mask guard: fall back to a full-image box instead of an inverted one
    x_min = jnp.where(has > 0.0, x_min, 0.0)
    y_min = jnp.where(has > 0.0, y_min, 0.0)
    x_max = jnp.where(has > 0.0, x_max, orig_w - 1.0)
    y_max = jnp.where(has > 0.0, y_max, orig_h - 1.0)

    # box corners: ResizeLongestSide.apply_boxes + random-Fourier positional encoding
    g0 = gauss_ref[0:1, :]
    g1 = gauss_ref[1:2, :]

    def _norm(vv):                        # original-image coords -> [-1, 1]
        return 2.0 * ((vv * box_scale + 0.5) / pe_size) - 1.0

    def _corner_pe(cx, cy):
        ang = (_norm(cx) * g0 + _norm(cy) * g1) * two_pi            # (1, C//2)
        return jnp.concatenate([jnp.sin(ang), jnp.cos(ang)], axis=-1)

    sparse0 = _corner_pe(x_min, y_min) + box_emb_ref[0:1, :]        # (1, C)
    sparse1 = _corner_pe(x_max, y_max) + box_emb_ref[1:2, :]        # (1, C)

    # dense positional encoding over the feature grid (get_dense_pe)
    cg = 2.0 * grid_coords_ref[...] - 1.0                           # (NP, 2)
    ang = (cg[:, 0:1] * g0 + cg[:, 1:2] * g1) * two_pi
    dense_pe = jnp.concatenate([jnp.sin(ang), jnp.cos(ang)], axis=-1)   # (NP, C)

    # ---------------- mask decoder (two-way transformer, depth 1) ----------------
    sel = tok_sel_ref[...]                                          # (7, 2) 0/1 selector
    tokens = tok_base_ref[...] + sel[:, 0:1] * sparse0 + sel[:, 1:2] * sparse1  # (7, C)
    queries = tokens
    point_pe = tokens
    keys = img_emb + no_mask_ref[...]                               # + dense no-mask embedding
    key_pe = dense_pe
    inv_sqrt_c = 1.0 / math.sqrt(C)

    dln_g = dln_g_ref[...]
    dln_b = dln_b_ref[...]

    def _dln(xv, idx):
        return _ln_op(xv, dln_g[idx:idx + 1, :], dln_b[idx:idx + 1, :])

    def _attn(layer, q_in, k_in, v_in):
        # per-projection weights indexed on the leading dim: no slice ever cuts
        # inside a 128-lane tile (C=32 column slicing would force lane relayouts).
        base = 4 * layer
        qq = _mm(q_in, attn_w_ref[base + 0]) + attn_b_ref[base + 0:base + 1, :]
        kk = _mm(k_in, attn_w_ref[base + 1]) + attn_b_ref[base + 1:base + 2, :]
        vv = _mm(v_in, attn_w_ref[base + 2]) + attn_b_ref[base + 2:base + 3, :]
        oo = _sdpa_op(qq, kk, vv, inv_sqrt_c)
        return _mm(oo, attn_w_ref[base + 3]) + attn_b_ref[base + 3:base + 4, :]

    # layer 0 (skip_first_layer_pe=True): self-attention on the tokens
    queries = _dln(_attn(0, queries, queries, queries), 0)
    # token -> image cross attention
    q = queries + point_pe
    k = keys + key_pe
    queries = _dln(queries + _attn(1, q, k, keys), 1)
    # MLP on the tokens
    hmid = jnp.maximum(_mm(queries, dmw1_ref[...]) + dmb1_ref[...], 0.0)
    queries = _dln(queries + _mm(hmid, dmw2_ref[...]) + dmb2_ref[...], 2)
    # image -> token cross attention
    q = queries + point_pe
    k = keys + key_pe
    keys = _dln(keys + _attn(2, k, q, queries), 3)
    # final token -> image attention
    q = queries + point_pe
    k = keys + key_pe
    queries = _dln(queries + _attn(3, q, k, keys), 4)

    # ------- output upscaling: each stride-2 transposed conv is now 2 MXU matmuls -------
    c4, c8 = C // 4, C // 8
    n1 = 4 * NP          # 8x8
    n2 = 16 * NP         # 16x16
    # stage 1: full-width projection, quadrant stack (slices + major-dim concat,
    # no reshape), one combined 0/1 scatter matmul
    y1 = _mm(keys, up1w_ref[...])                                    # (NP, 4*c4)
    y1_stack = jnp.concatenate(
        [y1[:, qi * c4:(qi + 1) * c4] for qi in range(4)], axis=0)   # (4*NP, c4)
    u1 = jnp.dot(s1_ref[...], y1_stack.astype(_BF16),
                 preferred_element_type=_F32)                        # (n1, c4)
    u1 = jax.nn.gelu(_ln_op(u1 + up1b_ref[...], uplg_ref[...], uplb_ref[...]),
                     approximate=True)
    # stage 2
    y2 = _mm(u1, up2w_ref[...])                                      # (n1, 4*c8)
    y2_stack = jnp.concatenate(
        [y2[:, qi * c8:(qi + 1) * c8] for qi in range(4)], axis=0)   # (4*n1, c8)
    u2 = jax.nn.gelu(jnp.dot(s2_ref[...], y2_stack.astype(_BF16),
                             preferred_element_type=_F32) + up2b_ref[...],
                     approximate=True)                               # (n2, c8)

    # ---------------- hypernetwork MLP + mask synthesis ----------------
    mask_tok = queries[1:2, :]                                       # the single-mask token
    hyp = jnp.maximum(_mm(mask_tok, hw1_ref[...]) + hb1_ref[...], 0.0)
    hyp = jnp.maximum(_mm(hyp, hw2_ref[...]) + hb2_ref[...], 0.0)
    hyp = _mm(hyp, hw3_ref[...]) + hb3_ref[...]                      # (1, C//8)
    # low-res mask kept flat and lane-dense: contraction on the existing last dim
    m_row = jax.lax.dot_general(hyp.astype(_BF16), u2.astype(_BF16),
                                (((1,), (1,)), ((), ())),
                                preferred_element_type=_F32)         # (1, n2)

    # ------- postprocess_masks (composed bilinear resizes) + threshold + normalize -------
    kt_copy.wait()                        # kt DMA has been in flight since kernel entry
    up = jnp.dot(m_row.astype(_BF16), kt_vmem[...],
                 preferred_element_type=_F32)                        # (1, H*W), lane-dense
    # threshold(., 0, 0) followed by F.normalize over a size-1 dim == binarize
    # TODO(synk): a (8, H*W/8) sublane-dense output slab would avoid 8 sublane-masked
    # stores, but the required lane->sublane reshape is not worth the lowering risk here.
    o_ref[...] = jnp.where(up > 0.0, 1.0, 0.0)


# --------------------------- pallas_call plumbing ---------------------------
def _full_spec(shape):
    return pl.BlockSpec(shape, lambda i: (0,) * len(shape))


# ------------------------------ constant builders ------------------------------
def _neck_shift_matrices(g):
    """(9*g*g, g*g) tap-major 0/1 matrices: rows [k*n:(k+1)*n] shift the flattened
    feature map by the k-th 3x3 offset (zero padded)."""
    n = g * g
    s = np.zeros((9 * n, n), np.float32)
    kk = 0
    for di in (-1, 0, 1):
        for dj in (-1, 0, 1):
            for y in range(g):
                for x in range(g):
                    yy, xx = y + di, x + dj
                    if 0 <= yy < g and 0 <= xx < g:
                        s[kk * n + y * g + x, yy * g + xx] = 1.0
            kk += 1
    return s


def _upsample_scatter(g):
    """Combined (4g^2, 4g^2) 0/1 scatter for a stride-2 transposed conv: column
    block q*g^2+src routes quadrant q of source pixel src to its (2g,2g) output row."""
    n_in = g * g
    n_out = 4 * n_in
    s = np.zeros((n_out, 4 * n_in), np.float32)
    for y in range(g):
        for x in range(g):
            for di in range(2):
                for dj in range(2):
                    qq = di * 2 + dj
                    t_out = (2 * y + di) * (2 * g) + (2 * x + dj)
                    s[t_out, qq * n_in + y * g + x] = 1.0
    return s


def _bilinear_matrix(out_size, in_size):
    m = np.zeros((out_size, in_size), np.float32)
    for i in range(out_size):
        src = (i + 0.5) * in_size / out_size - 0.5
        src = min(max(src, 0.0), in_size - 1.0)
        i0 = int(np.floor(src))
        i1 = min(i0 + 1, in_size - 1)
        w1 = src - i0
        m[i, i0] += 1.0 - w1
        m[i, i1] += w1
    return m


# ------------------------------ parameter init ------------------------------
class _KeyGen:
    def __init__(self, seed):
        self.key = jax.random.PRNGKey(seed)

    def __call__(self):
        self.key, k = jax.random.split(self.key)
        return k


def _dense(key, shape, scale=0.02):
    return (scale * jax.random.normal(key, shape)).astype(jnp.float32)


def _dense_bf16(key, shape, scale=0.02):
    return _dense(key, shape, scale).astype(_BF16)


def _ln_params(c):
    return (jnp.ones((1, c), jnp.float32), jnp.zeros((1, c), jnp.float32))


def init_params(seed=0):
    kg = _KeyGen(seed)
    D, C = ENC_D, EMB_C
    c4, c8 = C // 4, C // 8
    p = {}
    # ---- image encoder ----
    p["patch_w"] = _dense_bf16(kg(), (3 * PATCH * PATCH, D))
    p["patch_b"] = jnp.zeros((1, D), jnp.float32)
    p["pos_embed"] = _dense(kg(), (NP, D))
    p["enc_ln1_g"], p["enc_ln1_b"] = _ln_params(D)
    p["enc_wqkv"] = _dense_bf16(kg(), (D, 3 * D))          # fused QKV projection
    p["enc_bqkv"] = jnp.zeros((1, 3 * D), jnp.float32)
    p["enc_wo"] = _dense_bf16(kg(), (D, D))
    p["enc_bo"] = jnp.zeros((1, D), jnp.float32)
    p["enc_ln2_g"], p["enc_ln2_b"] = _ln_params(D)
    p["enc_mlp_w1"] = _dense_bf16(kg(), (D, 4 * D))
    p["enc_mlp_b1"] = jnp.zeros((1, 4 * D), jnp.float32)
    p["enc_mlp_w2"] = _dense_bf16(kg(), (4 * D, D))
    p["enc_mlp_b2"] = jnp.zeros((1, D), jnp.float32)
    p["neck1_w"] = _dense_bf16(kg(), (D, C))
    p["neck_ln1_g"], p["neck_ln1_b"] = _ln_params(C)
    p["neck2_w"] = _dense_bf16(kg(), (9 * C, C))           # 3x3 conv weight (9 taps)
    p["neck_ln2_g"], p["neck_ln2_b"] = _ln_params(C)
    # preprocess constants, expanded per patch-embed column (channel-major columns)
    mean = np.repeat(np.array([123.675, 116.28, 103.53], np.float32), PATCH * PATCH)
    std = np.repeat(np.array([58.395, 57.12, 57.375], np.float32), PATCH * PATCH)
    p["pix_mean"] = jnp.asarray(mean[None, :])
    p["pix_istd"] = jnp.asarray((1.0 / std)[None, :])
    p["neck_shifts"] = jnp.asarray(_neck_shift_matrices(GRID), _BF16)
    # ---- prompt encoder ----
    p["pe_gauss"] = jax.random.normal(kg(), (2, C // 2)).astype(jnp.float32)
    p["point_emb"] = _dense(kg(), (4, C))                  # rows 2,3 = box corners
    p["no_mask_emb"] = _dense(kg(), (1, C))
    gy, gx = np.meshgrid((np.arange(GRID) + 0.5) / GRID,
                         (np.arange(GRID) + 0.5) / GRID, indexing="ij")
    p["grid_coords"] = jnp.asarray(
        np.stack([gx.reshape(-1), gy.reshape(-1)], axis=-1).astype(np.float32))
    # ---- mask decoder ----
    iou_token = _dense(kg(), (1, C))
    mask_tokens = _dense(kg(), (4, C))
    p["tok_base"] = jnp.concatenate(
        [iou_token, mask_tokens, jnp.zeros((2, C), jnp.float32)], axis=0)  # (7, C)
    sel = np.zeros((7, 2), np.float32)
    sel[5, 0] = 1.0
    sel[6, 1] = 1.0
    p["tok_sel"] = jnp.asarray(sel)                        # routes the 2 box-corner embeds
    # per-projection attention weights, leading-dim indexed: (4 layers * 4 proj, C, C)
    p["dec_attn_w"] = jnp.stack(
        [_dense(kg(), (C, C)) for _ in range(16)], axis=0).astype(_BF16)   # (16, C, C)
    p["dec_attn_b"] = jnp.zeros((16, C), jnp.float32)
    p["dec_ln_g"] = jnp.ones((5, C), jnp.float32)
    p["dec_ln_b"] = jnp.zeros((5, C), jnp.float32)
    p["dec_mlp_w1"] = _dense_bf16(kg(), (C, 2 * C))
    p["dec_mlp_b1"] = jnp.zeros((1, 2 * C), jnp.float32)
    p["dec_mlp_w2"] = _dense_bf16(kg(), (2 * C, C))
    p["dec_mlp_b2"] = jnp.zeros((1, C), jnp.float32)
    # output upscaling: ConvTranspose(C, C/4, 2, 2) + LN + GELU + ConvTranspose(C/4, C/8, 2, 2) + GELU
    p["up1_w"] = _dense_bf16(kg(), (C, 4 * c4))            # column block q = quadrant q weights
    p["up1_b"] = jnp.zeros((1, c4), jnp.float32)
    p["up_ln_g"], p["up_ln_b"] = _ln_params(c4)
    p["up2_w"] = _dense_bf16(kg(), (c4, 4 * c8))
    p["up2_b"] = jnp.zeros((1, c8), jnp.float32)
    p["up1_scatter"] = jnp.asarray(_upsample_scatter(GRID), _BF16)       # (64, 64)
    p["up2_scatter"] = jnp.asarray(_upsample_scatter(2 * GRID), _BF16)   # (256, 256)
    # hypernetwork MLP for the single-mask token: C -> C -> C//8
    p["hyp_w1"] = _dense_bf16(kg(), (C, C)); p["hyp_b1"] = jnp.zeros((1, C), jnp.float32)
    p["hyp_w2"] = _dense_bf16(kg(), (C, C)); p["hyp_b2"] = jnp.zeros((1, C), jnp.float32)
    p["hyp_w3"] = _dense_bf16(kg(), (C, c8)); p["hyp_b3"] = jnp.zeros((1, c8), jnp.float32)
    return p


# ------------------------------ SAMWrapper.forward ------------------------------
def sam_forward(params, X, gt_mask):
    H, W, _ = X.shape
    original_size = (H, W)
    # TODO(synk): ResizeLongestSide.apply_image (cv2 resize of the raw image) has no clean
    # Pallas equivalent; inputs are assumed pre-resized to the encoder resolution.
    assert (H, W) == (IMG, IMG)
    input_size = (IMG, IMG)

    # glue: patchify the raw image (channel-major patch columns); the per-channel
    # mean/std preprocess is applied inside the kernel.
    x_chw = jnp.transpose(X, (2, 0, 1)).astype(jnp.float32)
    patches = (x_chw.reshape(3, GRID, PATCH, GRID, PATCH)
               .transpose(1, 3, 0, 2, 4).reshape(NP, 3 * PATCH * PATCH))

    if gt_mask is None:
        # TODO(synk): avg_bbox / resize_bbox fallback is host-side bookkeeping; only the
        # gt_mask path is implemented.
        raise NotImplementedError("avg_bbox path not implemented")
    gt = gt_mask[..., 2].astype(jnp.float32) / 255.0                    # (H, W)
    assert (H * W) % 128 == 0
    gt_flat = gt.reshape((H * W) // 128, 128)                           # lane-dense view
    yyc, xxc = np.meshgrid(np.arange(H, dtype=np.float32),
                           np.arange(W, dtype=np.float32), indexing="ij")
    ycoord = jnp.asarray(yyc.reshape((H * W) // 128, 128))
    xcoord = jnp.asarray(xxc.reshape((H * W) // 128, 128))

    box_scale = IMG / max(original_size)                                # apply_boxes scale

    # compose postprocess_masks (low-res -> img_size crop -> original_size bilinear
    # resizes) into one (16*16, H*W) matrix applied to the flattened low-res mask.
    # Stored in bf16: it is the dominant DMA of the kernel and the output is thresholded.
    r1 = _bilinear_matrix(IMG, 4 * GRID)
    r2 = _bilinear_matrix(original_size[0], input_size[0])
    r3 = _bilinear_matrix(original_size[1], input_size[1])
    r_row = r2 @ r1[: input_size[0], :]
    r_col = r3 @ r1[: input_size[1], :]
    kt = jnp.asarray(np.kron(r_row, r_col).T.astype(np.float32)).astype(_BF16)

    args = (
        patches, params["pix_mean"], params["pix_istd"],
        params["patch_w"], params["patch_b"], params["pos_embed"],
        params["enc_ln1_g"], params["enc_ln1_b"],
        params["enc_wqkv"], params["enc_bqkv"], params["enc_wo"], params["enc_bo"],
        params["enc_ln2_g"], params["enc_ln2_b"],
        params["enc_mlp_w1"], params["enc_mlp_b1"],
        params["enc_mlp_w2"], params["enc_mlp_b2"],
        params["neck1_w"], params["neck_ln1_g"], params["neck_ln1_b"],
        params["neck_shifts"], params["neck2_w"],
        params["neck_ln2_g"], params["neck_ln2_b"],
        gt_flat, ycoord, xcoord,
        params["grid_coords"], params["pe_gauss"],
        params["point_emb"][2:4], params["no_mask_emb"],
        params["tok_base"], params["tok_sel"],
        params["dec_attn_w"], params["dec_attn_b"],
        params["dec_ln_g"], params["dec_ln_b"],
        params["dec_mlp_w1"], params["dec_mlp_b1"],
        params["dec_mlp_w2"], params["dec_mlp_b2"],
        params["up1_scatter"], params["up1_w"], params["up1_b"],
        params["up_ln_g"], params["up_ln_b"],
        params["up2_scatter"], params["up2_w"], params["up2_b"],
        params["hyp_w1"], params["hyp_b1"], params["hyp_w2"], params["hyp_b2"],
        params["hyp_w3"], params["hyp_b3"],
        kt,
    )

    in_specs = ([_full_spec(a.shape) for a in args[:-1]]
                + [pl.BlockSpec(memory_space=pl.ANY)])     # kt: raw HBM ref, manual DMA

    out_row = pl.pallas_call(
        functools.partial(_sam_kernel, box_scale=float(box_scale),
                          pe_size=float(IMG), orig_h=float(H), orig_w=float(W)),
        out_shape=jax.ShapeDtypeStruct((1, H * W), jnp.float32),
        grid=(1,),
        in_specs=in_specs,
        out_specs=_full_spec((1, H * W)),
        scratch_shapes=[pltpu.VMEM((16 * NP, H * W), _BF16),        # kt landing buffer
                        pltpu.SemaphoreType.DMA(())],
        compiler_params=pltpu.CompilerParams(dimension_semantics=("arbitrary",)),
    )(*args)
    # TODO(synk): iou_prediction_head is computed by SAM but unused by SAMWrapper's
    # return value, so it is omitted.

    binary_mask = out_row.reshape(1, 1, original_size[0], original_size[1])
    return gt, binary_mask


# ------------------------------------ main ------------------------------------
if __name__ == "__main__":
    key = jax.random.PRNGKey(0)
    kx, _ = jax.random.split(key)
    # synthetic "image" (H, W, 3) in 0..255 and a gt mask image with a rectangle
    X = jax.random.uniform(kx, (IMG, IMG, 3), minval=0.0, maxval=255.0, dtype=jnp.float32)
    gt_mask_img = jnp.zeros((IMG, IMG, 3), jnp.float32).at[8:20, 6:24, 2].set(255.0)

    params = init_params(seed=0)
    fwd = jax.jit(sam_forward)
    gt_out, binary_mask = fwd(params, X, gt_mask_img)
    gt_out = jax.block_until_ready(gt_out)
    binary_mask = jax.block_until_ready(binary_mask)

    assert gt_out.shape == (IMG, IMG)
    assert binary_mask.shape == (1, 1, IMG, IMG)
    assert bool(jnp.all(jnp.isfinite(binary_mask)))
    print("KERNEL_OK")
</pallas_src>

<mosaic_0001>
module attributes {stable_mosaic.version = 11 : i64} {
  func.func @_sam_kernel(%arg0: i32, %arg1: memref<16x192xf32, #tpu.memory_space<vmem>>, %arg2: memref<1x192xf32, #tpu.memory_space<vmem>>, %arg3: memref<1x192xf32, #tpu.memory_space<vmem>>, %arg4: memref<192x128xbf16, #tpu.memory_space<vmem>>, %arg5: memref<1x128xf32, #tpu.memory_space<vmem>>, %arg6: memref<16x128xf32, #tpu.memory_space<vmem>>, %arg7: memref<1x128xf32, #tpu.memory_space<vmem>>, %arg8: memref<1x128xf32, #tpu.memory_space<vmem>>, %arg9: memref<128x384xbf16, #tpu.memory_space<vmem>>, %arg10: memref<1x384xf32, #tpu.memory_space<vmem>>, %arg11: memref<128x128xbf16, #tpu.memory_space<vmem>>, %arg12: memref<1x128xf32, #tpu.memory_space<vmem>>, %arg13: memref<1x128xf32, #tpu.memory_space<vmem>>, %arg14: memref<1x128xf32, #tpu.memory_space<vmem>>, %arg15: memref<128x512xbf16, #tpu.memory_space<vmem>>, %arg16: memref<1x512xf32, #tpu.memory_space<vmem>>, %arg17: memref<512x128xbf16, #tpu.memory_space<vmem>>, %arg18: memref<1x128xf32, #tpu.memory_space<vmem>>, %arg19: memref<128x32xbf16, #tpu.memory_space<vmem>>, %arg20: memref<1x32xf32, #tpu.memory_space<vmem>>, %arg21: memref<1x32xf32, #tpu.memory_space<vmem>>, %arg22: memref<144x16xbf16, #tpu.memory_space<vmem>>, %arg23: memref<288x32xbf16, #tpu.memory_space<vmem>>, %arg24: memref<1x32xf32, #tpu.memory_space<vmem>>, %arg25: memref<1x32xf32, #tpu.memory_space<vmem>>, %arg26: memref<8x128xf32, #tpu.memory_space<vmem>>, %arg27: memref<8x128xf32, #tpu.memory_space<vmem>>, %arg28: memref<8x128xf32, #tpu.memory_space<vmem>>, %arg29: memref<16x2xf32, #tpu.memory_space<vmem>>, %arg30: memref<2x16xf32, #tpu.memory_space<vmem>>, %arg31: memref<2x32xf32, #tpu.memory_space<vmem>>, %arg32: memref<1x32xf32, #tpu.memory_space<vmem>>, %arg33: memref<7x32xf32, #tpu.memory_space<vmem>>, %arg34: memref<7x2xf32, #tpu.memory_space<vmem>>, %arg35: memref<16x32x32xbf16, #tpu.memory_space<vmem>>, %arg36: memref<16x32xf32, #tpu.memory_space<vmem>>, %arg37: memref<5x32xf32, #tpu.memory_space<vmem>>, %arg38: memref<5x32xf32, #tpu.memory_space<vmem>>, %arg39: memref<32x64xbf16, #tpu.memory_space<vmem>>, %arg40: memref<1x64xf32, #tpu.memory_space<vmem>>, %arg41: memref<64x32xbf16, #tpu.memory_space<vmem>>, %arg42: memref<1x32xf32, #tpu.memory_space<vmem>>, %arg43: memref<64x64xbf16, #tpu.memory_space<vmem>>, %arg44: memref<32x32xbf16, #tpu.memory_space<vmem>>, %arg45: memref<1x8xf32, #tpu.memory_space<vmem>>, %arg46: memref<1x8xf32, #tpu.memory_space<vmem>>, %arg47: memref<1x8xf32, #tpu.memory_space<vmem>>, %arg48: memref<256x256xbf16, #tpu.memory_space<vmem>>, %arg49: memref<8x16xbf16, #tpu.memory_space<vmem>>, %arg50: memref<1x4xf32, #tpu.memory_space<vmem>>, %arg51: memref<32x32xbf16, #tpu.memory_space<vmem>>, %arg52: memref<1x32xf32, #tpu.memory_space<vmem>>, %arg53: memref<32x32xbf16, #tpu.memory_space<vmem>>, %arg54: memref<1x32xf32, #tpu.memory_space<vmem>>, %arg55: memref<32x4xbf16, #tpu.memory_space<vmem>>, %arg56: memref<1x4xf32, #tpu.memory_space<vmem>>, %arg57: memref<256x1024xbf16, #tpu.memory_space<any>>, %arg58: memref<1x1024xf32, #tpu.memory_space<vmem>>, %arg59: memref<256x1024xbf16, #tpu.memory_space<vmem>>, %arg60: memref<!tpu.dma_semaphore, #tpu.memory_space<semaphore_mem>>) attributes {dimension_semantics = [#tpu.dimension_semantics<arbitrary>], iteration_bounds = array<i64: 1>, scalar_prefetch = 0 : i64, scratch_operands = 2 : i64, tpu.core_type = #tpu.core_type<tc>, window_params = [{pipeline_mode = #tpu.pipeline_mode<synchronous>, transform_indices = @transform_0, window_bounds = array<i64: 16, 192>}, {pipeline_mode = #tpu.pipeline_mode<synchronous>, transform_indices = @transform_1, window_bounds = array<i64: 1, 192>}, {pipeline_mode = #tpu.pipeline_mode<synchronous>, transform_indices = @transform_2, window_bounds = array<i64: 1, 192>}, {pipeline_mode = #tpu.pipeline_mode<synchronous>, transform_indices = @transform_3, window_bounds = array<i64: 192, 128>}, {pipeline_mode = #tpu.pipeline_mode<synchronous>, transform_indices = @transform_4, window_bounds = array<i64: 1, 128>}, {pipeline_mode = #tpu.pipeline_mode<synchronous>, transform_indices = @transform_5, window_bounds = array<i64: 16, 128>}, {pipeline_mode = #tpu.pipeline_mode<synchronous>, transform_indices = @transform_6, window_bounds = array<i64: 1, 128>}, {pipeline_mode = #tpu.pipeline_mode<synchronous>, transform_indices = @transform_7, window_bounds = array<i64: 1, 128>}, {pipeline_mode = #tpu.pipeline_mode<synchronous>, transform_indices = @transform_8, window_bounds = array<i64: 128, 384>}, {pipeline_mode = #tpu.pipeline_mode<synchronous>, transform_indices = @transform_9, window_bounds = array<i64: 1, 384>}, {pipeline_mode = #tpu.pipeline_mode<synchronous>, transform_indices = @transform_10, window_bounds = array<i64: 128, 128>}, {pipeline_mode = #tpu.pipeline_mode<synchronous>, transform_indices = @transform_11, window_bounds = array<i64: 1, 128>}, {pipeline_mode = #tpu.pipeline_mode<synchronous>, transform_indices = @transform_12, window_bounds = array<i64: 1, 128>}, {pipeline_mode = #tpu.pipeline_mode<synchronous>, transform_indices = @transform_13, window_bounds = array<i64: 1, 128>}, {pipeline_mode = #tpu.pipeline_mode<synchronous>, transform_indices = @transform_14, window_bounds = array<i64: 128, 512>}, {pipeline_mode = #tpu.pipeline_mode<synchronous>, transform_indices = @transform_15, window_bounds = array<i64: 1, 512>}, {pipeline_mode = #tpu.pipeline_mode<synchronous>, transform_indices = @transform_16, window_bounds = array<i64: 512, 128>}, {pipeline_mode = #tpu.pipeline_mode<synchronous>, transform_indices = @transform_17, window_bounds = array<i64: 1, 128>}, {pipeline_mode = #tpu.pipeline_mode<synchronous>, transform_indices = @transform_18, window_bounds = array<i64: 128, 32>}, {pipeline_mode = #tpu.pipeline_mode<synchronous>, transform_indices = @transform_19, window_bounds = array<i64: 1, 32>}, {pipeline_mode = #tpu.pipeline_mode<synchronous>, transform_indices = @transform_20, window_bounds = array<i64: 1, 32>}, {pipeline_mode = #tpu.pipeline_mode<synchronous>, transform_indices = @transform_21, window_bounds = array<i64: 144, 16>}, {pipeline_mode = #tpu.pipeline_mode<synchronous>, transform_indices = @transform_22, window_bounds = array<i64: 288, 32>}, {pipeline_mode = #tpu.pipeline_mode<synchronous>, transform_indices = @transform_23, window_bounds = array<i64: 1, 32>}, {pipeline_mode = #tpu.pipeline_mode<synchronous>, transform_indices = @transform_24, window_bounds = array<i64: 1, 32>}, {pipeline_mode = #tpu.pipeline_mode<synchronous>, transform_indices = @transform_25, window_bounds = array<i64: 8, 128>}, {pipeline_mode = #tpu.pipeline_mode<synchronous>, transform_indices = @transform_26, window_bounds = array<i64: 8, 128>}, {pipeline_mode = #tpu.pipeline_mode<synchronous>, transform_indices = @transform_27, window_bounds = array<i64: 8, 128>}, {pipeline_mode = #tpu.pipeline_mode<synchronous>, transform_indices = @transform_28, window_bounds = array<i64: 16, 2>}, {pipeline_mode = #tpu.pipeline_mode<synchronous>, transform_indices = @transform_29, window_bounds = array<i64: 2, 16>}, {pipeline_mode = #tpu.pipeline_mode<synchronous>, transform_indices = @transform_30, window_bounds = array<i64: 2, 32>}, {pipeline_mode = #tpu.pipeline_mode<synchronous>, transform_indices = @transform_31, window_bounds = array<i64: 1, 32>}, {pipeline_mode = #tpu.pipeline_mode<synchronous>, transform_indices = @transform_32, window_bounds = array<i64: 7, 32>}, {pipeline_mode = #tpu.pipeline_mode<synchronous>, transform_indices = @transform_33, window_bounds = array<i64: 7, 2>}, {pipeline_mode = #tpu.pipeline_mode<synchronous>, transform_indices = @transform_34, window_bounds = array<i64: 16, 32, 32>}, {pipeline_mode = #tpu.pipeline_mode<synchronous>, transform_indices = @transform_35, window_bounds = array<i64: 16, 32>}, {pipeline_mode = #tpu.pipeline_mode<synchronous>, transform_indices = @transform_36, window_bounds = array<i64: 5, 32>}, {pipeline_mode = #tpu.pipeline_mode<synchronous>, transform_indices = @transform_37, window_bounds = array<i64: 5, 32>}, {pipeline_mode = #tpu.pipeline_mode<synchronous>, transform_indices = @transform_38, window_bounds = array<i64: 32, 64>}, {pipeline_mode = #tpu.pipeline_mode<synchronous>, transform_indices = @transform_39, window_bounds = array<i64: 1, 64>}, {pipeline_mode = #tpu.pipeline_mode<synchronous>, transform_indices = @transform_40, window_bounds = array<i64: 64, 32>}, {pipeline_mode = #tpu.pipeline_mode<synchronous>, transform_indices = @transform_41, window_bounds = array<i64: 1, 32>}, {pipeline_mode = #tpu.pipeline_mode<synchronous>, transform_indices = @transform_42, window_bounds = array<i64: 64, 64>}, {pipeline_mode = #tpu.pipeline_mode<synchronous>, transform_indices = @transform_43, window_bounds = array<i64: 32, 32>}, {pipeline_mode = #tpu.pipeline_mode<synchronous>, transform_indices = @transform_44, window_bounds = array<i64: 1, 8>}, {pipeline_mode = #tpu.pipeline_mode<synchronous>, transform_indices = @transform_45, window_bounds = array<i64: 1, 8>}, {pipeline_mode = #tpu.pipeline_mode<synchronous>, transform_indices = @transform_46, window_bounds = array<i64: 1, 8>}, {pipeline_mode = #tpu.pipeline_mode<synchronous>, transform_indices = @transform_47, window_bounds = array<i64: 256, 256>}, {pipeline_mode = #tpu.pipeline_mode<synchronous>, transform_indices = @transform_48, window_bounds = array<i64: 8, 16>}, {pipeline_mode = #tpu.pipeline_mode<synchronous>, transform_indices = @transform_49, window_bounds = array<i64: 1, 4>}, {pipeline_mode = #tpu.pipeline_mode<synchronous>, transform_indices = @transform_50, window_bounds = array<i64: 32, 32>}, {pipeline_mode = #tpu.pipeline_mode<synchronous>, transform_indices = @transform_51, window_bounds = array<i64: 1, 32>}, {pipeline_mode = #tpu.pipeline_mode<synchronous>, transform_indices = @transform_52, window_bounds = array<i64: 32, 32>}, {pipeline_mode = #tpu.pipeline_mode<synchronous>, transform_indices = @transform_53, window_bounds = array<i64: 1, 32>}, {pipeline_mode = #tpu.pipeline_mode<synchronous>, transform_indices = @transform_54, window_bounds = array<i64: 32, 4>}, {pipeline_mode = #tpu.pipeline_mode<synchronous>, transform_indices = @transform_55, window_bounds = array<i64: 1, 4>}, {}, {pipeline_mode = #tpu.pipeline_mode<synchronous>, transform_indices = @transform_57, window_bounds = array<i64: 1, 1024>}]} {
    tpu.enqueue_dma source(%arg57 : memref<256x1024xbf16, #tpu.memory_space<any>>) target(%arg59 : memref<256x1024xbf16, #tpu.memory_space<vmem>>) target_semaphore(%arg60 : memref<!tpu.dma_semaphore, #tpu.memory_space<semaphore_mem>>)
    %c0 = arith.constant 0 : index
    %c0_0 = arith.constant 0 : index
    %0 = vector.load %arg1[%c0, %c0_0] : memref<16x192xf32, #tpu.memory_space<vmem>>, vector<16x192xf32>
    %c0_1 = arith.constant 0 : index
    %c0_2 = arith.constant 0 : index
    %1 = vector.load %arg2[%c0_1, %c0_2] : memref<1x192xf32, #tpu.memory_space<vmem>>, vector<1x192xf32>
    %2 = vector.broadcast %1 : vector<1x192xf32> to vector<16x192xf32>
    %3 = arith.subf %0, %2 : vector<16x192xf32>
    %c0_3 = arith.constant 0 : index
    %c0_4 = arith.constant 0 : index
    %4 = vector.load %arg3[%c0_3, %c0_4] : memref<1x192xf32, #tpu.memory_space<vmem>>, vector<1x192xf32>
    %5 = vector.broadcast %4 : vector<1x192xf32> to vector<16x192xf32>
    %6 = arith.mulf %3, %5 : vector<16x192xf32>
    %c0_5 = arith.constant 0 : index
    %c0_6 = arith.constant 0 : index
    %7 = vector.load %arg4[%c0_5, %c0_6] : memref<192x128xbf16, #tpu.memory_space<vmem>>, vector<192x128xbf16>
    %8 = arith.truncf %6 : vector<16x192xf32> to vector<16x192xbf16>
    %cst = arith.constant dense<0.000000e+00> : vector<16x128xf32>
    %9 = tpu.matmul %8, %7, %cst {dimension_numbers = #tpu.dot_dimension_numbers<[1], [0], [0], [1], [0, 0, 1, 1], [], []>} : vector<16x192xbf16>, vector<192x128xbf16>, vector<16x128xf32> -> vector<16x128xf32>
    %c0_7 = arith.constant 0 : index
    %c0_8 = arith.constant 0 : index
    %10 = vector.load %arg5[%c0_7, %c0_8] : memref<1x128xf32, #tpu.memory_space<vmem>>, vector<1x128xf32>
    %11 = vector.broadcast %10 : vector<1x128xf32> to vector<16x128xf32>
    %12 = arith.addf %9, %11 : vector<16x128xf32>
    %c0_9 = arith.constant 0 : index
    %c0_10 = arith.constant 0 : index
    %13 = vector.load %arg6[%c0_9, %c0_10] : memref<16x128xf32, #tpu.memory_space<vmem>>, vector<16x128xf32>
    %14 = arith.addf %12, %13 : vector<16x128xf32>
    %c0_11 = arith.constant 0 : index
    %c0_12 = arith.constant 0 : index
    %15 = vector.load %arg7[%c0_11, %c0_12] : memref<1x128xf32, #tpu.memory_space<vmem>>, vector<1x128xf32>
    %c0_13 = arith.constant 0 : index
    %c0_14 = arith.constant 0 : index
    %16 = vector.load %arg8[%c0_13, %c0_14] : memref<1x128xf32, #tpu.memory_space<vmem>>, vector<1x128xf32>
    %cst_15 = arith.constant dense<0.000000e+00> : vector<16xf32>
    %17 = vector.multi_reduction <add>, %14, %cst_15 [1] : vector<16x128xf32> to vector<16xf32>
    %18 = vector.shape_cast %17 : vector<16xf32> to vector<16x1xf32>
    %cst_16 = arith.constant 7.812500e-03 : f32
    %19 = vector.broadcast %cst_16 : f32 to vector<16x1xf32>
    %20 = arith.mulf %18, %19 : vector<16x1xf32>
    %21 = arith.mulf %14, %14 : vector<16x128xf32>
    %cst_17 = arith.constant dense<0.000000e+00> : vector<16xf32>
    %22 = vector.multi_reduction <add>, %21, %cst_17 [1] : vector<16x128xf32> to vector<16xf32>
    %23 = vector.shape_cast %22 : vector<16xf32> to vector<16x1xf32>
    %cst_18 = arith.constant 7.812500e-03 : f32
    %24 = vector.broadcast %cst_18 : f32 to vector<16x1xf32>
    %25 = arith.mulf %23, %24 : vector<16x1xf32>
    %26 = arith.mulf %20, %20 : vector<16x1xf32>
    %27 = arith.subf %25, %26 : vector<16x1xf32>
    %cst_19 = arith.constant 0.000000e+00 : f32
    %28 = vector.broadcast %cst_19 : f32 to vector<16x1xf32>
    %29 = arith.maximumf %27, %28 : vector<16x1xf32>
    %30 = vector.broadcast %20 : vector<16x1xf32> to vector<16x128xf32>
    %31 = arith.subf %14, %30 : vector<16x128xf32>
    %cst_20 = arith.constant 9.99999997E-7 : f32
    %32 = vector.broadcast %cst_20 : f32 to vector<16x1xf32>
    %33 = arith.addf %29, %32 : vector<16x1xf32>
    %34 = math.rsqrt %33 : vector<16x1xf32>
    %35 = vector.broadcast %34 : vector<16x1xf32> to vector<16x128xf32>
    %36 = arith.mulf %31, %35 : vector<16x128xf32>
    %37 = vector.broadcast %15 : vector<1x128xf32> to vector<16x128xf32>
    %38 = arith.mulf %36, %37 : vector<16x128xf32>
    %39 = vector.broadcast %16 : vector<1x128xf32> to vector<16x128xf32>
    %40 = arith.addf %38, %39 : vector<16x128xf32>
    %c0_21 = arith.constant 0 : index
    %c0_22 = arith.constant 0 : index
    %41 = vector.load %arg9[%c0_21, %c0_22] : memref<128x384xbf16, #tpu.memory_space<vmem>>, vector<128x384xbf16>
    %42 = arith.truncf %40 : vector<16x128xf32> to vector<16x128xbf16>
    %cst_23 = arith.constant dense<0.000000e+00> : vector<16x384xf32>
    %43 = tpu.matmul %42, %41, %cst_23 {dimension_numbers = #tpu.dot_dimension_numbers<[1], [0], [0], [1], [0, 0, 1, 1], [], []>} : vector<16x128xbf16>, vector<128x384xbf16>, vector<16x384xf32> -> vector<16x384xf32>
    %c0_24 = arith.constant 0 : index
    %c0_25 = arith.constant 0 : index
    %44 = vector.load %arg10[%c0_24, %c0_25] : memref<1x384xf32, #tpu.memory_space<vmem>>, vector<1x384xf32>
    %45 = vector.broadcast %44 : vector<1x384xf32> to vector<16x384xf32>
    %46 = arith.addf %43, %45 : vector<16x384xf32>
    %47 = vector.extract_strided_slice %46 {offsets = [0, 0], sizes = [16, 128], strides = [1, 1]} : vector<16x384xf32> to vector<16x128xf32>
    %48 = vector.extract_strided_slice %46 {offsets = [0, 128], sizes = [16, 128], strides = [1, 1]} : vector<16x384xf32> to vector<16x128xf32>
    %49 = vector.extract_strided_slice %46 {offsets = [0, 256], sizes = [16, 128], strides = [1, 1]} : vector<16x384xf32> to vector<16x128xf32>
    %50 = arith.truncf %47 : vector<16x128xf32> to vector<16x128xbf16>
    %51 = arith.truncf %48 : vector<16x128xf32> to vector<16x128xbf16>
    %cst_26 = arith.constant dense<0.000000e+00> : vector<16x16xf32>
    %52 = tpu.matmul %50, %51, %cst_26 {dimension_numbers = #tpu.dot_dimension_numbers<[1], [1], [0], [0], [0, 0, 1, 0], [], []>} : vector<16x128xbf16>, vector<16x128xbf16>, vector<16x16xf32> -> vector<16x16xf32>
    %cst_27 = arith.constant 0.0883883461 : f32
    %53 = vector.broadcast %cst_27 : f32 to vector<16x16xf32>
    %54 = arith.mulf %52, %53 : vector<16x16xf32>
    %cst_28 = arith.constant dense<0xFF800000> : vector<16xf32>
    %55 = vector.multi_reduction <maximumf>, %54, %cst_28 [1] : vector<16x16xf32> to vector<16xf32>
    %56 = vector.shape_cast %55 : vector<16xf32> to vector<16x1xf32>
    %57 = vector.broadcast %56 : vector<16x1xf32> to vector<16x16xf32>
    %58 = arith.subf %54, %57 : vector<16x16xf32>
    %59 = math.exp %58 : vector<16x16xf32>
    %cst_29 = arith.constant dense<0.000000e+00> : vector<16xf32>
    %60 = vector.multi_reduction <add>, %59, %cst_29 [1] : vector<16x16xf32> to vector<16xf32>
    %61 = vector.shape_cast %60 : vector<16xf32> to vector<16x1xf32>
    %62 = arith.truncf %59 : vector<16x16xf32> to vector<16x16xbf16>
    %63 = arith.truncf %49 : vector<16x128xf32> to vector<16x128xbf16>
    %cst_30 = arith.constant dense<0.000000e+00> : vector<16x128xf32>
    %64 = tpu.matmul %62, %63, %cst_30 {dimension_numbers = #tpu.dot_dimension_numbers<[1], [0], [0], [1], [0, 0, 1, 1], [], []>} : vector<16x16xbf16>, vector<16x128xbf16>, vector<16x128xf32> -> vector<16x128xf32>
    %65 = tpu.reciprocal %61 {approx = true} : vector<16x1xf32> -> vector<16x1xf32>
    %66 = vector.broadcast %65 : vector<16x1xf32> to vector<16x128xf32>
    %67 = arith.mulf %64, %66 : vector<16x128xf32>
    %c0_31 = arith.constant 0 : index
    %c0_32 = arith.constant 0 : index
    %68 = vector.load %arg11[%c0_31, %c0_32] : memref<128x128xbf16, #tpu.memory_space<vmem>>, vector<128x128xbf16>
    %69 = arith.truncf %67 : vector<16x128xf32> to vector<16x128xbf16>
    %cst_33 = arith.constant dense<0.000000e+00> : vector<16x128xf32>
    %70 = tpu.matmul %69, %68, %cst_33 {dimension_numbers = #tpu.dot_dimension_numbers<[1], [0], [0], [1], [0, 0, 1, 1], [], []>} : vector<16x128xbf16>, vector<128x128xbf16>, vector<16x128xf32> -> vector<16x128xf32>
    %71 = arith.addf %14, %70 : vector<16x128xf32>
    %c0_34 = arith.constant 0 : index
    %c0_35 = arith.constant 0 : index
    %72 = vector.load %arg12[%c0_34, %c0_35] : memref<1x128xf32, #tpu.memory_space<vmem>>, vector<1x128xf32>
    %73 = vector.broadcast %72 : vector<1x128xf32> to vector<16x128xf32>
    %74 = arith.addf %71, %73 : vector<16x128xf32>
    %c0_36 = arith.constant 0 : index
    %c0_37 = arith.constant 0 : index
    %75 = vector.load %arg13[%c0_36, %c0_37] : memref<1x128xf32, #tpu.memory_space<vmem>>, vector<1x128xf32>
    %c0_38 = arith.constant 0 : index
    %c0_39 = arith.constant 0 : index
    %76 = vector.load %arg14[%c0_38, %c0_39] : memref<1x128xf32, #tpu.memory_space<vmem>>, vector<1x128xf32>
    %cst_40 = arith.constant dense<0.000000e+00> : vector<16xf32>
    %77 = vector.multi_reduction <add>, %74, %cst_40 [1] : vector<16x128xf32> to vector<16xf32>
    %78 = vector.shape_cast %77 : vector<16xf32> to vector<16x1xf32>
    %cst_41 = arith.constant 7.812500e-03 : f32
    %79 = vector.broadcast %cst_41 : f32 to vector<16x1xf32>
    %80 = arith.mulf %78, %79 : vector<16x1xf32>
    %81 = arith.mulf %74, %74 : vector<16x128xf32>
    %cst_42 = arith.constant dense<0.000000e+00> : vector<16xf32>
    %82 = vector.multi_reduction <add>, %81, %cst_42 [1] : vector<16x128xf32> to vector<16xf32>
    %83 = vector.shape_cast %82 : vector<16xf32> to vector<16x1xf32>
    %cst_43 = arith.constant 7.812500e-03 : f32
    %84 = vector.broadcast %cst_43 : f32 to vector<16x1xf32>
    %85 = arith.mulf %83, %84 : vector<16x1xf32>
    %86 = arith.mulf %80, %80 : vector<16x1xf32>
    %87 = arith.subf %85, %86 : vector<16x1xf32>
    %cst_44 = arith.constant 0.000000e+00 : f32
    %88 = vector.broadcast %cst_44 : f32 to vector<16x1xf32>
    %89 = arith.maximumf %87, %88 : vector<16x1xf32>
    %90 = vector.broadcast %80 : vector<16x1xf32> to vector<16x128xf32>
    %91 = arith.subf %74, %90 : vector<16x128xf32>
    %cst_45 = arith.constant 9.99999997E-7 : f32
    %92 = vector.broadcast %cst_45 : f32 to vector<16x1xf32>
    %93 = arith.addf %89, %92 : vector<16x1xf32>
    %94 = math.rsqrt %93 : vector<16x1xf32>
    %95 = vector.broadcast %94 : vector<16x1xf32> to vector<16x128xf32>
    %96 = arith.mulf %91, %95 : vector<16x128xf32>
    %97 = vector.broadcast %75 : vector<1x128xf32> to vector<16x128xf32>
    %98 = arith.mulf %96, %97 : vector<16x128xf32>
    %99 = vector.broadcast %76 : vector<1x128xf32> to vector<16x128xf32>
    %100 = arith.addf %98, %99 : vector<16x128xf32>
    %c0_46 = arith.constant 0 : index
    %c0_47 = arith.constant 0 : index
    %101 = vector.load %arg15[%c0_46, %c0_47] : memref<128x512xbf16, #tpu.memory_space<vmem>>, vector<128x512xbf16>
    %102 = arith.truncf %100 : vector<16x128xf32> to vector<16x128xbf16>
    %cst_48 = arith.constant dense<0.000000e+00> : vector<16x512xf32>
    %103 = tpu.matmul %102, %101, %cst_48 {dimension_numbers = #tpu.dot_dimension_numbers<[1], [0], [0], [1], [0, 0, 1, 1], [], []>} : vector<16x128xbf16>, vector<128x512xbf16>, vector<16x512xf32> -> vector<16x512xf32>
    %c0_49 = arith.constant 0 : index
    %c0_50 = arith.constant 0 : index
    %104 = vector.load %arg16[%c0_49, %c0_50] : memref<1x512xf32, #tpu.memory_space<vmem>>, vector<1x512xf32>
    %105 = vector.broadcast %104 : vector<1x512xf32> to vector<16x512xf32>
    %106 = arith.addf %103, %105 : vector<16x512xf32>
    %107 = arith.mulf %106, %106 : vector<16x512xf32>
    %108 = arith.mulf %106, %107 : vector<16x512xf32>
    %cst_51 = arith.constant 4.471500e-02 : f32
    %109 = vector.broadcast %cst_51 : f32 to vector<16x512xf32>
    %110 = arith.mulf %109, %108 : vector<16x512xf32>
    %111 = arith.addf %106, %110 : vector<16x512xf32>
    %cst_52 = arith.constant 0.797884583 : f32
    %112 = vector.broadcast %cst_52 : f32 to vector<16x512xf32>
    %113 = arith.mulf %112, %111 : vector<16x512xf32>
    %114 = math.tanh %113 : vector<16x512xf32>
    %cst_53 = arith.constant 1.000000e+00 : f32
    %115 = vector.broadcast %cst_53 : f32 to vector<16x512xf32>
    %116 = arith.addf %115, %114 : vector<16x512xf32>
    %cst_54 = arith.constant 5.000000e-01 : f32
    %117 = vector.broadcast %cst_54 : f32 to vector<16x512xf32>
    %118 = arith.mulf %117, %116 : vector<16x512xf32>
    %119 = arith.mulf %106, %118 : vector<16x512xf32>
    %c0_55 = arith.constant 0 : index
    %c0_56 = arith.constant 0 : index
    %120 = vector.load %arg17[%c0_55, %c0_56] : memref<512x128xbf16, #tpu.memory_space<vmem>>, vector<512x128xbf16>
    %121 = arith.truncf %119 : vector<16x512xf32> to vector<16x512xbf16>
    %cst_57 = arith.constant dense<0.000000e+00> : vector<16x128xf32>
    %122 = tpu.matmul %121, %120, %cst_57 {dimension_numbers = #tpu.dot_dimension_numbers<[1], [0], [0], [1], [0, 0, 1, 1], [], []>} : vector<16x512xbf16>, vector<512x128xbf16>, vector<16x128xf32> -> vector<16x128xf32>
    %123 = arith.addf %74, %122 : vector<16x128xf32>
    %c0_58 = arith.constant 0 : index
    %c0_59 = arith.constant 0 : index
    %124 = vector.load %arg18[%c0_58, %c0_59] : memref<1x128xf32, #tpu.memory_space<vmem>>, vector<1x128xf32>
    %125 = vector.broadcast %124 : vector<1x128xf32> to vector<16x128xf32>
    %126 = arith.addf %123, %125 : vector<16x128xf32>
    %c0_60 = arith.constant 0 : index
    %c0_61 = arith.constant 0 : index
    %127 = vector.load %arg19[%c0_60, %c0_61] : memref<128x32xbf16, #tpu.memory_space<vmem>>, vector<128x32xbf16>
    %128 = arith.truncf %126 : vector<16x128xf32> to vector<16x128xbf16>
    %cst_62 = arith.constant dense<0.000000e+00> : vector<16x32xf32>
    %129 = tpu.matmul %128, %127, %cst_62 {dimension_numbers = #tpu.dot_dimension_numbers<[1], [0], [0], [1], [0, 0, 1, 1], [], []>} : vector<16x128xbf16>, vector<128x32xbf16>, vector<16x32xf32> -> vector<16x32xf32>
    %c0_63 = arith.constant 0 : index
    %c0_64 = arith.constant 0 : index
    %130 = vector.load %arg20[%c0_63, %c0_64] : memref<1x32xf32, #tpu.memory_space<vmem>>, vector<1x32xf32>
    %c0_65 = arith.constant 0 : index
    %c0_66 = arith.constant 0 : index
    %131 = vector.load %arg21[%c0_65, %c0_66] : memref<1x32xf32, #tpu.memory_space<vmem>>, vector<1x32xf32>
    %cst_67 = arith.constant dense<0.000000e+00> : vector<16xf32>
    %132 = vector.multi_reduction <add>, %129, %cst_67 [1] : vector<16x32xf32> to vector<16xf32>
    %133 = vector.shape_cast %132 : vector<16xf32> to vector<16x1xf32>
    %cst_68 = arith.constant 3.125000e-02 : f32
    %134 = vector.broadcast %cst_68 : f32 to vector<16x1xf32>
    %135 = arith.mulf %133, %134 : vector<16x1xf32>
    %136 = arith.mulf %129, %129 : vector<16x32xf32>
    %cst_69 = arith.constant dense<0.000000e+00> : vector<16xf32>
    %137 = vector.multi_reduction <add>, %136, %cst_69 [1] : vector<16x32xf32> to vector<16xf32>
    %138 = vector.shape_cast %137 : vector<16xf32> to vector<16x1xf32>
    %cst_70 = arith.constant 3.125000e-02 : f32
    %139 = vector.broadcast %cst_70 : f32 to vector<16x1xf32>
    %140 = arith.mulf %138, %139 : vector<16x1xf32>
    %141 = arith.mulf %135, %135 : vector<16x1xf32>
    %142 = arith.subf %140, %141 : vector<16x1xf32>
    %cst_71 = arith.constant 0.000000e+00 : f32
    %143 = vector.broadcast %cst_71 : f32 to vector<16x1xf32>
    %144 = arith.maximumf %142, %143 : vector<16x1xf32>
    %145 = vector.broadcast %135 : vector<16x1xf32> to vector<16x32xf32>
    %146 = arith.subf %129, %145 : vector<16x32xf32>
    %cst_72 = arith.constant 9.99999997E-7 : f32
    %147 = vector.broadcast %cst_72 : f32 to vector<16x1xf32>
    %148 = arith.addf %144, %147 : vector<16x1xf32>
    %149 = math.rsqrt %148 : vector<16x1xf32>
    %150 = vector.broadcast %149 : vector<16x1xf32> to vector<16x32xf32>
    %151 = arith.mulf %146, %150 : vector<16x32xf32>
    %152 = vector.broadcast %130 : vector<1x32xf32> to vector<16x32xf32>
    %153 = arith.mulf %151, %152 : vector<16x32xf32>
    %154 = vector.broadcast %131 : vector<1x32xf32> to vector<16x32xf32>
    %155 = arith.addf %153, %154 : vector<16x32xf32>
    %c0_73 = arith.constant 0 : index
    %c0_74 = arith.constant 0 : index
    %156 = vector.load %arg22[%c0_73, %c0_74] : memref<144x16xbf16, #tpu.memory_space<vmem>>, vector<144x16xbf16>
    %157 = arith.truncf %155 : vector<16x32xf32> to vector<16x32xbf16>
    %cst_75 = arith.constant dense<0.000000e+00> : vector<144x32xf32>
    %158 = tpu.matmul %156, %157, %cst_75 {dimension_numbers = #tpu.dot_dimension_numbers<[1], [0], [0], [1], [0, 0, 1, 1], [], []>} : vector<144x16xbf16>, vector<16x32xbf16>, vector<144x32xf32> -> vector<144x32xf32>
    %159 = vector.extract_strided_slice %158 {offsets = [0, 0], sizes = [16, 32], strides = [1, 1]} : vector<144x32xf32> to vector<16x32xf32>
    %160 = vector.extract_strided_slice %158 {offsets = [16, 0], sizes = [16, 32], strides = [1, 1]} : vector<144x32xf32> to vector<16x32xf32>
    %161 = vector.extract_strided_slice %158 {offsets = [32, 0], sizes = [16, 32], strides = [1, 1]} : vector<144x32xf32> to vector<16x32xf32>
    %162 = vector.extract_strided_slice %158 {offsets = [48, 0], sizes = [16, 32], strides = [1, 1]} : vector<144x32xf32> to vector<16x32xf32>
    %163 = vector.extract_strided_slice %158 {offsets = [64, 0], sizes = [16, 32], strides = [1, 1]} : vector<144x32xf32> to vector<16x32xf32>
    %164 = vector.extract_strided_slice %158 {offsets = [80, 0], sizes = [16, 32], strides = [1, 1]} : vector<144x32xf32> to vector<16x32xf32>
    %165 = vector.extract_strided_slice %158 {offsets = [96, 0], sizes = [16, 32], strides = [1, 1]} : vector<144x32xf32> to vector<16x32xf32>
    %166 = vector.extract_strided_slice %158 {offsets = [112, 0], sizes = [16, 32], strides = [1, 1]} : vector<144x32xf32> to vector<16x32xf32>
    %167 = vector.extract_strided_slice %158 {offsets = [128, 0], sizes = [16, 32], strides = [1, 1]} : vector<144x32xf32> to vector<16x32xf32>
    %168 = tpu.concatenate %159, %160, %161, %162, %163, %164, %165, %166, %167 in 1 : vector<16x32xf32>, vector<16x32xf32>, vector<16x32xf32>, vector<16x32xf32>, vector<16x32xf32>, vector<16x32xf32>, vector<16x32xf32>, vector<16x32xf32>, vector<16x32xf32> -> vector<16x288xf32>
    %169 = arith.truncf %168 : vector<16x288xf32> to vector<16x288xbf16>
    %c0_76 = arith.constant 0 : index
    %c0_77 = arith.constant 0 : index
    %170 = vector.load %arg23[%c0_76, %c0_77] : memref<288x32xbf16, #tpu.memory_space<vmem>>, vector<288x32xbf16>
    %cst_78 = arith.constant dense<0.000000e+00> : vector<16x32xf32>
    %171 = tpu.matmul %169, %170, %cst_78 {dimension_numbers = #tpu.dot_dimension_numbers<[1], [0], [0], [1], [0, 0, 1, 1], [], []>} : vector<16x288xbf16>, vector<288x32xbf16>, vector<16x32xf32> -> vector<16x32xf32>
    %c0_79 = arith.constant 0 : index
    %c0_80 = arith.constant 0 : index
    %172 = vector.load %arg24[%c0_79, %c0_80] : memref<1x32xf32, #tpu.memory_space<vmem>>, vector<1x32xf32>
    %c0_81 = arith.constant 0 : index
    %c0_82 = arith.constant 0 : index
    %173 = vector.load %arg25[%c0_81, %c0_82] : memref<1x32xf32, #tpu.memory_space<vmem>>, vector<1x32xf32>
    %cst_83 = arith.constant dense<0.000000e+00> : vector<16xf32>
    %174 = vector.multi_reduction <add>, %171, %cst_83 [1] : vector<16x32xf32> to vector<16xf32>
    %175 = vector.shape_cast %174 : vector<16xf32> to vector<16x1xf32>
    %cst_84 = arith.constant 3.125000e-02 : f32
    %176 = vector.broadcast %cst_84 : f32 to vector<16x1xf32>
    %177 = arith.mulf %175, %176 : vector<16x1xf32>
    %178 = arith.mulf %171, %171 : vector<16x32xf32>
    %cst_85 = arith.constant dense<0.000000e+00> : vector<16xf32>
    %179 = vector.multi_reduction <add>, %178, %cst_85 [1] : vector<16x32xf32> to vector<16xf32>
    %180 = vector.shape_cast %179 : vector<16xf32> to vector<16x1xf32>
    %cst_86 = arith.constant 3.125000e-02 : f32
    %181 = vector.broadcast %cst_86 : f32 to vector<16x1xf32>
    %182 = arith.mulf %180, %181 : vector<16x1xf32>
    %183 = arith.mulf %177, %177 : vector<16x1xf32>
    %184 = arith.subf %182, %183 : vector<16x1xf32>
    %cst_87 = arith.constant 0.000000e+00 : f32
    %185 = vector.broadcast %cst_87 : f32 to vector<16x1xf32>
    %186 = arith.maximumf %184, %185 : vector<16x1xf32>
    %187 = vector.broadcast %177 : vector<16x1xf32> to vector<16x32xf32>
    %188 = arith.subf %171, %187 : vector<16x32xf32>
    %cst_88 = arith.constant 9.99999997E-7 : f32
    %189 = vector.broadcast %cst_88 : f32 to vector<16x1xf32>
    %190 = arith.addf %186, %189 : vector<16x1xf32>
    %191 = math.rsqrt %190 : vector<16x1xf32>
    %192 = vector.broadcast %191 : vector<16x1xf32> to vector<16x32xf32>
    %193 = arith.mulf %188, %192 : vector<16x32xf32>
    %194 = vector.broadcast %172 : vector<1x32xf32> to vector<16x32xf32>
    %195 = arith.mulf %193, %194 : vector<16x32xf32>
    %196 = vector.broadcast %173 : vector<1x32xf32> to vector<16x32xf32>
    %197 = arith.addf %195, %196 : vector<16x32xf32>
    %c0_89 = arith.constant 0 : index
    %c0_90 = arith.constant 0 : index
    %198 = vector.load %arg26[%c0_89, %c0_90] : memref<8x128xf32, #tpu.memory_space<vmem>>, vector<8x128xf32>
    %cst_91 = arith.constant 1.000000e+00 : f32
    %199 = vector.broadcast %cst_91 : f32 to vector<8x128xf32>
    %200 = arith.cmpf oeq, %198, %199 : vector<8x128xf32>
    %c0_92 = arith.constant 0 : index
    %c0_93 = arith.constant 0 : index
    %201 = vector.load %arg27[%c0_92, %c0_93] : memref<8x128xf32, #tpu.memory_space<vmem>>, vector<8x128xf32>
    %c0_94 = arith.constant 0 : index
    %c0_95 = arith.constant 0 : index
    %202 = vector.load %arg28[%c0_94, %c0_95] : memref<8x128xf32, #tpu.memory_space<vmem>>, vector<8x128xf32>
    %cst_96 = arith.constant 1.024000e+03 : f32
    %203 = vector.broadcast %cst_96 : f32 to vector<8x128xf32>
    %204 = arith.select %200, %202, %203 : vector<8x128xi1>, vector<8x128xf32>
    %cst_97 = arith.constant dense<0x7F800000> : vector<8xf32>
    %205 = vector.multi_reduction <minimumf>, %204, %cst_97 [1] : vector<8x128xf32> to vector<8xf32>
    %206 = vector.shape_cast %205 : vector<8xf32> to vector<8x1xf32>
    %cst_98 = arith.constant dense<0x7F800000> : vector<1xf32>
    %207 = vector.multi_reduction <minimumf>, %206, %cst_98 [0] : vector<8x1xf32> to vector<1xf32>
    %208 = vector.shape_cast %207 : vector<1xf32> to vector<1x1xf32>
    %cst_99 = arith.constant 1.024000e+03 : f32
    %209 = vector.broadcast %cst_99 : f32 to vector<8x128xf32>
    %210 = arith.select %200, %201, %209 : vector<8x128xi1>, vector<8x128xf32>
    %cst_100 = arith.constant dense<0x7F800000> : vector<8xf32>
    %211 = vector.multi_reduction <minimumf>, %210, %cst_100 [1] : vector<8x128xf32> to vector<8xf32>
    %212 = vector.shape_cast %211 : vector<8xf32> to vector<8x1xf32>
    %cst_101 = arith.constant dense<0x7F800000> : vector<1xf32>
    %213 = vector.multi_reduction <minimumf>, %212, %cst_101 [0] : vector<8x1xf32> to vector<1xf32>
    %214 = vector.shape_cast %213 : vector<1xf32> to vector<1x1xf32>
    %cst_102 = arith.constant -1.000000e+00 : f32
    %215 = vector.broadcast %cst_102 : f32 to vector<8x128xf32>
    %216 = arith.select %200, %202, %215 : vector<8x128xi1>, vector<8x128xf32>
    %cst_103 = arith.constant dense<0xFF800000> : vector<8xf32>
    %217 = vector.multi_reduction <maximumf>, %216, %cst_103 [1] : vector<8x128xf32> to vector<8xf32>
    %218 = vector.shape_cast %217 : vector<8xf32> to vector<8x1xf32>
    %cst_104 = arith.constant dense<0xFF800000> : vector<1xf32>
    %219 = vector.multi_reduction <maximumf>, %218, %cst_104 [0] : vector<8x1xf32> to vector<1xf32>
    %220 = vector.shape_cast %219 : vector<1xf32> to vector<1x1xf32>
    %cst_105 = arith.constant -1.000000e+00 : f32
    %221 = vector.broadcast %cst_105 : f32 to vector<8x128xf32>
    %222 = arith.select %200, %201, %221 : vector<8x128xi1>, vector<8x128xf32>
    %cst_106 = arith.constant dense<0xFF800000> : vector<8xf32>
    %223 = vector.multi_reduction <maximumf>, %222, %cst_106 [1] : vector<8x128xf32> to vector<8xf32>
    %224 = vector.shape_cast %223 : vector<8xf32> to vector<8x1xf32>
    %cst_107 = arith.constant dense<0xFF800000> : vector<1xf32>
    %225 = vector.multi_reduction <maximumf>, %224, %cst_107 [0] : vector<8x1xf32> to vector<1xf32>
    %226 = vector.shape_cast %225 : vector<1xf32> to vector<1x1xf32>
    %cst_108 = arith.constant 1.000000e+00 : f32
    %cst_109 = arith.constant 0.000000e+00 : f32
    %227 = vector.broadcast %cst_108 : f32 to vector<8x128xf32>
    %228 = vector.broadcast %cst_109 : f32 to vector<8x128xf32>
    %229 = arith.select %200, %227, %228 : vector<8x128xi1>, vector<8x128xf32>
    %cst_110 = arith.constant dense<0xFF800000> : vector<8xf32>
    %230 = vector.multi_reduction <maximumf>, %229, %cst_110 [1] : vector<8x128xf32> to vector<8xf32>
    %231 = vector.shape_cast %230 : vector<8xf32> to vector<8x1xf32>
    %cst_111 = arith.constant dense<0xFF800000> : vector<1xf32>
    %232 = vector.multi_reduction <maximumf>, %231, %cst_111 [0] : vector<8x1xf32> to vector<1xf32>
    %233 = vector.shape_cast %232 : vector<1xf32> to vector<1x1xf32>
    %cst_112 = arith.constant 0.000000e+00 : f32
    %234 = vector.broadcast %cst_112 : f32 to vector<1x1xf32>
    %235 = arith.cmpf ogt, %233, %234 : vector<1x1xf32>
    %cst_113 = arith.constant 0.000000e+00 : f32
    %236 = vector.broadcast %cst_113 : f32 to vector<1x1xf32>
    %237 = arith.select %235, %208, %236 : vector<1x1xi1>, vector<1x1xf32>
    %cst_114 = arith.constant 0.000000e+00 : f32
    %238 = vector.broadcast %cst_114 : f32 to vector<1x1xf32>
    %239 = arith.cmpf ogt, %233, %238 : vector<1x1xf32>
    %cst_115 = arith.constant 0.000000e+00 : f32
    %240 = vector.broadcast %cst_115 : f32 to vector<1x1xf32>
    %241 = arith.select %239, %214, %240 : vector<1x1xi1>, vector<1x1xf32>
    %cst_116 = arith.constant 0.000000e+00 : f32
    %242 = vector.broadcast %cst_116 : f32 to vector<1x1xf32>
    %243 = arith.cmpf ogt, %233, %242 : vector<1x1xf32>
    %cst_117 = arith.constant 3.100000e+01 : f32
    %244 = vector.broadcast %cst_117 : f32 to vector<1x1xf32>
    %245 = arith.select %243, %220, %244 : vector<1x1xi1>, vector<1x1xf32>
    %cst_118 = arith.constant 0.000000e+00 : f32
    %246 = vector.broadcast %cst_118 : f32 to vector<1x1xf32>
    %247 = arith.cmpf ogt, %233, %246 : vector<1x1xf32>
    %cst_119 = arith.constant 3.100000e+01 : f32
    %248 = vector.broadcast %cst_119 : f32 to vector<1x1xf32>
    %249 = arith.select %247, %226, %248 : vector<1x1xi1>, vector<1x1xf32>
    %c0_120 = arith.constant 0 : index
    %c0_121 = arith.constant 0 : index
    %250 = vector.load %arg30[%c0_120, %c0_121] : memref<2x16xf32, #tpu.memory_space<vmem>>, vector<1x16xf32>
    %c1 = arith.constant 1 : index
    %c0_122 = arith.constant 0 : index
    %251 = vector.load %arg30[%c1, %c0_122] : memref<2x16xf32, #tpu.memory_space<vmem>>, vector<1x16xf32>
    %cst_123 = arith.constant 1.000000e+00 : f32
    %252 = vector.broadcast %cst_123 : f32 to vector<1x1xf32>
    %253 = arith.mulf %237, %252 : vector<1x1xf32>
    %cst_124 = arith.constant 5.000000e-01 : f32
    %254 = vector.broadcast %cst_124 : f32 to vector<1x1xf32>
    %255 = arith.addf %253, %254 : vector<1x1xf32>
    %cst_125 = arith.constant 3.200000e+01 : f32
    %256 = vector.broadcast %cst_125 : f32 to vector<1x1xf32>
    %257 = arith.divf %255, %256 : vector<1x1xf32>
    %cst_126 = arith.constant 2.000000e+00 : f32
    %258 = vector.broadcast %cst_126 : f32 to vector<1x1xf32>
    %259 = arith.mulf %258, %257 : vector<1x1xf32>
    %cst_127 = arith.constant 1.000000e+00 : f32
    %260 = vector.broadcast %cst_127 : f32 to vector<1x1xf32>
    %261 = arith.subf %259, %260 : vector<1x1xf32>
    %262 = vector.broadcast %261 : vector<1x1xf32> to vector<1x16xf32>
    %263 = arith.mulf %262, %250 : vector<1x16xf32>
    %cst_128 = arith.constant 1.000000e+00 : f32
    %264 = vector.broadcast %cst_128 : f32 to vector<1x1xf32>
    %265 = arith.mulf %241, %264 : vector<1x1xf32>
    %cst_129 = arith.constant 5.000000e-01 : f32
    %266 = vector.broadcast %cst_129 : f32 to vector<1x1xf32>
    %267 = arith.addf %265, %266 : vector<1x1xf32>
    %cst_130 = arith.constant 3.200000e+01 : f32
    %268 = vector.broadcast %cst_130 : f32 to vector<1x1xf32>
    %269 = arith.divf %267, %268 : vector<1x1xf32>
    %cst_131 = arith.constant 2.000000e+00 : f32
    %270 = vector.broadcast %cst_131 : f32 to vector<1x1xf32>
    %271 = arith.mulf %270, %269 : vector<1x1xf32>
    %cst_132 = arith.constant 1.000000e+00 : f32
    %272 = vector.broadcast %cst_132 : f32 to vector<1x1xf32>
    %273 = arith.subf %271, %272 : vector<1x1xf32>
    %274 = vector.broadcast %273 : vector<1x1xf32> to vector<1x16xf32>
    %275 = arith.mulf %274, %251 : vector<1x16xf32>
    %276 = arith.addf %263, %275 : vector<1x16xf32>
    %cst_133 = arith.constant 6.28318548 : f32
    %277 = vector.broadcast %cst_133 : f32 to vector<1x16xf32>
    %278 = arith.mulf %276, %277 : vector<1x16xf32>
    %279 = math.sin %278 : vector<1x16xf32>
    %280 = math.cos %278 : vector<1x16xf32>
    %281 = tpu.concatenate %279, %280 in 1 : vector<1x16xf32>, vector<1x16xf32> -> vector<1x32xf32>
    %c0_134 = arith.constant 0 : index
    %c0_135 = arith.constant 0 : index
    %282 = vector.load %arg31[%c0_134, %c0_135] : memref<2x32xf32, #tpu.memory_space<vmem>>, vector<1x32xf32>
    %283 = arith.addf %281, %282 : vector<1x32xf32>
    %cst_136 = arith.constant 1.000000e+00 : f32
    %284 = vector.broadcast %cst_136 : f32 to vector<1x1xf32>
    %285 = arith.mulf %245, %284 : vector<1x1xf32>
    %cst_137 = arith.constant 5.000000e-01 : f32
    %286 = vector.broadcast %cst_137 : f32 to vector<1x1xf32>
    %287 = arith.addf %285, %286 : vector<1x1xf32>
    %cst_138 = arith.constant 3.200000e+01 : f32
    %288 = vector.broadcast %cst_138 : f32 to vector<1x1xf32>
    %289 = arith.divf %287, %288 : vector<1x1xf32>
    %cst_139 = arith.constant 2.000000e+00 : f32
    %290 = vector.broadcast %cst_139 : f32 to vector<1x1xf32>
    %291 = arith.mulf %290, %289 : vector<1x1xf32>
    %cst_140 = arith.constant 1.000000e+00 : f32
    %292 = vector.broadcast %cst_140 : f32 to vector<1x1xf32>
    %293 = arith.subf %291, %292 : vector<1x1xf32>
    %294 = vector.broadcast %293 : vector<1x1xf32> to vector<1x16xf32>
    %295 = arith.mulf %294, %250 : vector<1x16xf32>
    %cst_141 = arith.constant 1.000000e+00 : f32
    %296 = vector.broadcast %cst_141 : f32 to vector<1x1xf32>
    %297 = arith.mulf %249, %296 : vector<1x1xf32>
    %cst_142 = arith.constant 5.000000e-01 : f32
    %298 = vector.broadcast %cst_142 : f32 to vector<1x1xf32>
    %299 = arith.addf %297, %298 : vector<1x1xf32>
    %cst_143 = arith.constant 3.200000e+01 : f32
    %300 = vector.broadcast %cst_143 : f32 to vector<1x1xf32>
    %301 = arith.divf %299, %300 : vector<1x1xf32>
    %cst_144 = arith.constant 2.000000e+00 : f32
    %302 = vector.broadcast %cst_144 : f32 to vector<1x1xf32>
    %303 = arith.mulf %302, %301 : vector<1x1xf32>
    %cst_145 = arith.constant 1.000000e+00 : f32
    %304 = vector.broadcast %cst_145 : f32 to vector<1x1xf32>
    %305 = arith.subf %303, %304 : vector<1x1xf32>
    %306 = vector.broadcast %305 : vector<1x1xf32> to vector<1x16xf32>
    %307 = arith.mulf %306, %251 : vector<1x16xf32>
    %308 = arith.addf %295, %307 : vector<1x16xf32>
    %cst_146 = arith.constant 6.28318548 : f32
    %309 = vector.broadcast %cst_146 : f32 to vector<1x16xf32>
    %310 = arith.mulf %308, %309 : vector<1x16xf32>
    %311 = math.sin %310 : vector<1x16xf32>
    %312 = math.cos %310 : vector<1x16xf32>
    %313 = tpu.concatenate %311, %312 in 1 : vector<1x16xf32>, vector<1x16xf32> -> vector<1x32xf32>
    %c1_147 = arith.constant 1 : index
    %c0_148 = arith.constant 0 : index
    %314 = vector.load %arg31[%c1_147, %c0_148] : memref<2x32xf32, #tpu.memory_space<vmem>>, vector<1x32xf32>
    %315 = arith.addf %313, %314 : vector<1x32xf32>
    %c0_149 = arith.constant 0 : index
    %c0_150 = arith.constant 0 : index
    %316 = vector.load %arg29[%c0_149, %c0_150] : memref<16x2xf32, #tpu.memory_space<vmem>>, vector<16x2xf32>
    %cst_151 = arith.constant 2.000000e+00 : f32
    %317 = vector.broadcast %cst_151 : f32 to vector<16x2xf32>
    %318 = arith.mulf %317, %316 : vector<16x2xf32>
    %cst_152 = arith.constant 1.000000e+00 : f32
    %319 = vector.broadcast %cst_152 : f32 to vector<16x2xf32>
    %320 = arith.subf %318, %319 : vector<16x2xf32>
    %321 = vector.extract_strided_slice %320 {offsets = [0, 0], sizes = [16, 1], strides = [1, 1]} : vector<16x2xf32> to vector<16x1xf32>
    %322 = vector.broadcast %321 : vector<16x1xf32> to vector<16x16xf32>
    %323 = vector.broadcast %250 : vector<1x16xf32> to vector<16x16xf32>
    %324 = arith.mulf %322, %323 : vector<16x16xf32>
    %325 = vector.extract_strided_slice %320 {offsets = [0, 1], sizes = [16, 1], strides = [1, 1]} : vector<16x2xf32> to vector<16x1xf32>
    %326 = vector.broadcast %325 : vector<16x1xf32> to vector<16x16xf32>
    %327 = vector.broadcast %251 : vector<1x16xf32> to vector<16x16xf32>
    %328 = arith.mulf %326, %327 : vector<16x16xf32>
    %329 = arith.addf %324, %328 : vector<16x16xf32>
    %cst_153 = arith.constant 6.28318548 : f32
    %330 = vector.broadcast %cst_153 : f32 to vector<16x16xf32>
    %331 = arith.mulf %329, %330 : vector<16x16xf32>
    %332 = math.sin %331 : vector<16x16xf32>
    %333 = math.cos %331 : vector<16x16xf32>
    %334 = tpu.concatenate %332, %333 in 1 : vector<16x16xf32>, vector<16x16xf32> -> vector<16x32xf32>
    %c0_154 = arith.constant 0 : index
    %c0_155 = arith.constant 0 : index
    %335 = vector.load %arg34[%c0_154, %c0_155] : memref<7x2xf32, #tpu.memory_space<vmem>>, vector<7x2xf32>
    %c0_156 = arith.constant 0 : index
    %c0_157 = arith.constant 0 : index
    %336 = vector.load %arg33[%c0_156, %c0_157] : memref<7x32xf32, #tpu.memory_space<vmem>>, vector<7x32xf32>
    %337 = vector.extract_strided_slice %335 {offsets = [0, 0], sizes = [7, 1], strides = [1, 1]} : vector<7x2xf32> to vector<7x1xf32>
    %338 = vector.broadcast %337 : vector<7x1xf32> to vector<7x32xf32>
    %339 = vector.broadcast %283 : vector<1x32xf32> to vector<7x32xf32>
    %340 = arith.mulf %338, %339 : vector<7x32xf32>
    %341 = arith.addf %336, %340 : vector<7x32xf32>
    %342 = vector.extract_strided_slice %335 {offsets = [0, 1], sizes = [7, 1], strides = [1, 1]} : vector<7x2xf32> to vector<7x1xf32>
    %343 = vector.broadcast %342 : vector<7x1xf32> to vector<7x32xf32>
    %344 = vector.broadcast %315 : vector<1x32xf32> to vector<7x32xf32>
    %345 = arith.mulf %343, %344 : vector<7x32xf32>
    %346 = arith.addf %341, %345 : vector<7x32xf32>
    %c0_158 = arith.constant 0 : index
    %c0_159 = arith.constant 0 : index
    %347 = vector.load %arg32[%c0_158, %c0_159] : memref<1x32xf32, #tpu.memory_space<vmem>>, vector<1x32xf32>
    %348 = vector.broadcast %347 : vector<1x32xf32> to vector<16x32xf32>
    %349 = arith.addf %197, %348 : vector<16x32xf32>
    %c0_160 = arith.constant 0 : index
    %c0_161 = arith.constant 0 : index
    %350 = vector.load %arg37[%c0_160, %c0_161] : memref<5x32xf32, #tpu.memory_space<vmem>>, vector<5x32xf32>
    %c0_162 = arith.constant 0 : index
    %c0_163 = arith.constant 0 : index
    %351 = vector.load %arg38[%c0_162, %c0_163] : memref<5x32xf32, #tpu.memory_space<vmem>>, vector<5x32xf32>
    %c0_164 = arith.constant 0 : index
    %c0_165 = arith.constant 0 : index
    %c0_166 = arith.constant 0 : index
    %352 = vector.load %arg35[%c0_164, %c0_165, %c0_166] : memref<16x32x32xbf16, #tpu.memory_space<vmem>>, vector<1x32x32xbf16>
    %353 = vector.shape_cast %352 : vector<1x32x32xbf16> to vector<32x32xbf16>
    %354 = arith.truncf %346 : vector<7x32xf32> to vector<7x32xbf16>
    %cst_167 = arith.constant dense<0.000000e+00> : vector<7x32xf32>
    %355 = tpu.matmul %354, %353, %cst_167 {dimension_numbers = #tpu.dot_dimension_numbers<[1], [0], [0], [1], [0, 0, 1, 1], [], []>} : vector<7x32xbf16>, vector<32x32xbf16>, vector<7x32xf32> -> vector<7x32xf32>
    %c0_168 = arith.constant 0 : index
    %c0_169 = arith.constant 0 : index
    %356 = vector.load %arg36[%c0_168, %c0_169] : memref<16x32xf32, #tpu.memory_space<vmem>>, vector<1x32xf32>
    %357 = vector.broadcast %356 : vector<1x32xf32> to vector<7x32xf32>
    %358 = arith.addf %355, %357 : vector<7x32xf32>
    %c1_170 = arith.constant 1 : index
    %c0_171 = arith.constant 0 : index
    %c0_172 = arith.constant 0 : index
    %359 = vector.load %arg35[%c1_170, %c0_171, %c0_172] : memref<16x32x32xbf16, #tpu.memory_space<vmem>>, vector<1x32x32xbf16>
    %360 = vector.shape_cast %359 : vector<1x32x32xbf16> to vector<32x32xbf16>
    %361 = arith.truncf %346 : vector<7x32xf32> to vector<7x32xbf16>
    %cst_173 = arith.constant dense<0.000000e+00> : vector<7x32xf32>
    %362 = tpu.matmul %361, %360, %cst_173 {dimension_numbers = #tpu.dot_dimension_numbers<[1], [0], [0], [1], [0, 0, 1, 1], [], []>} : vector<7x32xbf16>, vector<32x32xbf16>, vector<7x32xf32> -> vector<7x32xf32>
    %c1_174 = arith.constant 1 : index
    %c0_175 = arith.constant 0 : index
    %363 = vector.load %arg36[%c1_174, %c0_175] : memref<16x32xf32, #tpu.memory_space<vmem>>, vector<1x32xf32>
    %364 = vector.broadcast %363 : vector<1x32xf32> to vector<7x32xf32>
    %365 = arith.addf %362, %364 : vector<7x32xf32>
    %c2 = arith.constant 2 : index
    %c0_176 = arith.constant 0 : index
    %c0_177 = arith.constant 0 : index
    %366 = vector.load %arg35[%c2, %c0_176, %c0_177] : memref<16x32x32xbf16, #tpu.memory_space<vmem>>, vector<1x32x32xbf16>
    %367 = vector.shape_cast %366 : vector<1x32x32xbf16> to vector<32x32xbf16>
    %368 = arith.truncf %346 : vector<7x32xf32> to vector<7x32xbf16>
    %cst_178 = arith.constant dense<0.000000e+00> : vector<7x32xf32>
    %369 = tpu.matmul %368, %367, %cst_178 {dimension_numbers = #tpu.dot_dimension_numbers<[1], [0], [0], [1], [0, 0, 1, 1], [], []>} : vector<7x32xbf16>, vector<32x32xbf16>, vector<7x32xf32> -> vector<7x32xf32>
    %c2_179 = arith.constant 2 : index
    %c0_180 = arith.constant 0 : index
    %370 = vector.load %arg36[%c2_179, %c0_180] : memref<16x32xf32, #tpu.memory_space<vmem>>, vector<1x32xf32>
    %371 = vector.broadcast %370 : vector<1x32xf32> to vector<7x32xf32>
    %372 = arith.addf %369, %371 : vector<7x32xf32>
    %373 = arith.truncf %358 : vector<7x32xf32> to vector<7x32xbf16>
    %374 = arith.truncf %365 : vector<7x32xf32> to vector<7x32xbf16>
    %cst_181 = arith.constant dense<0.000000e+00> : vector<7x7xf32>
    %375 = tpu.matmul %373, %374, %cst_181 {dimension_numbers = #tpu.dot_dimension_numbers<[1], [1], [0], [0], [0, 0, 1, 0], [], []>} : vector<7x32xbf16>, vector<7x32xbf16>, vector<7x7xf32> -> vector<7x7xf32>
    %cst_182 = arith.constant 0.176776692 : f32
    %376 = vector.broadcast %cst_182 : f32 to vector<7x7xf32>
    %377 = arith.mulf %375, %376 : vector<7x7xf32>
    %cst_183 = arith.constant dense<0xFF800000> : vector<7xf32>
    %378 = vector.multi_reduction <maximumf>, %377, %cst_183 [1] : vector<7x7xf32> to vector<7xf32>
    %379 = vector.shape_cast %378 : vector<7xf32> to vector<7x1xf32>
    %380 = vector.broadcast %379 : vector<7x1xf32> to vector<7x7xf32>
    %381 = arith.subf %377, %380 : vector<7x7xf32>
    %382 = math.exp %381 : vector<7x7xf32>
    %cst_184 = arith.constant dense<0.000000e+00> : vector<7xf32>
    %383 = vector.multi_reduction <add>, %382, %cst_184 [1] : vector<7x7xf32> to vector<7xf32>
    %384 = vector.shape_cast %383 : vector<7xf32> to vector<7x1xf32>
    %385 = arith.truncf %382 : vector<7x7xf32> to vector<7x7xbf16>
    %386 = arith.truncf %372 : vector<7x32xf32> to vector<7x32xbf16>
    %cst_185 = arith.constant dense<0.000000e+00> : vector<7x32xf32>
    %387 = tpu.matmul %385, %386, %cst_185 {dimension_numbers = #tpu.dot_dimension_numbers<[1], [0], [0], [1], [0, 0, 1, 1], [], []>} : vector<7x7xbf16>, vector<7x32xbf16>, vector<7x32xf32> -> vector<7x32xf32>
    %388 = tpu.reciprocal %384 {approx = true} : vector<7x1xf32> -> vector<7x1xf32>
    %389 = vector.broadcast %388 : vector<7x1xf32> to vector<7x32xf32>
    %390 = arith.mulf %387, %389 : vector<7x32xf32>
    %c3 = arith.constant 3 : index
    %c0_186 = arith.constant 0 : index
    %c0_187 = arith.constant 0 : index
    %391 = vector.load %arg35[%c3, %c0_186, %c0_187] : memref<16x32x32xbf16, #tpu.memory_space<vmem>>, vector<1x32x32xbf16>
    %392 = vector.shape_cast %391 : vector<1x32x32xbf16> to vector<32x32xbf16>
    %393 = arith.truncf %390 : vector<7x32xf32> to vector<7x32xbf16>
    %cst_188 = arith.constant dense<0.000000e+00> : vector<7x32xf32>
    %394 = tpu.matmul %393, %392, %cst_188 {dimension_numbers = #tpu.dot_dimension_numbers<[1], [0], [0], [1], [0, 0, 1, 1], [], []>} : vector<7x32xbf16>, vector<32x32xbf16>, vector<7x32xf32> -> vector<7x32xf32>
    %c3_189 = arith.constant 3 : index
    %c0_190 = arith.constant 0 : index
    %395 = vector.load %arg36[%c3_189, %c0_190] : memref<16x32xf32, #tpu.memory_space<vmem>>, vector<1x32xf32>
    %396 = vector.broadcast %395 : vector<1x32xf32> to vector<7x32xf32>
    %397 = arith.addf %394, %396 : vector<7x32xf32>
    %398 = vector.extract_strided_slice %350 {offsets = [0, 0], sizes = [1, 32], strides = [1, 1]} : vector<5x32xf32> to vector<1x32xf32>
    %399 = vector.extract_strided_slice %351 {offsets = [0, 0], sizes = [1, 32], strides = [1, 1]} : vector<5x32xf32> to vector<1x32xf32>
    %cst_191 = arith.constant dense<0.000000e+00> : vector<7xf32>
    %400 = vector.multi_reduction <add>, %397, %cst_191 [1] : vector<7x32xf32> to vector<7xf32>
    %401 = vector.shape_cast %400 : vector<7xf32> to vector<7x1xf32>
    %cst_192 = arith.constant 3.125000e-02 : f32
    %402 = vector.broadcast %cst_192 : f32 to vector<7x1xf32>
    %403 = arith.mulf %401, %402 : vector<7x1xf32>
    %404 = arith.mulf %397, %397 : vector<7x32xf32>
    %cst_193 = arith.constant dense<0.000000e+00> : vector<7xf32>
    %405 = vector.multi_reduction <add>, %404, %cst_193 [1] : vector<7x32xf32> to vector<7xf32>
    %406 = vector.shape_cast %405 : vector<7xf32> to vector<7x1xf32>
    %cst_194 = arith.constant 3.125000e-02 : f32
    %407 = vector.broadcast %cst_194 : f32 to vector<7x1xf32>
    %408 = arith.mulf %406, %407 : vector<7x1xf32>
    %409 = arith.mulf %403, %403 : vector<7x1xf32>
    %410 = arith.subf %408, %409 : vector<7x1xf32>
    %cst_195 = arith.constant 0.000000e+00 : f32
    %411 = vector.broadcast %cst_195 : f32 to vector<7x1xf32>
    %412 = arith.maximumf %410, %411 : vector<7x1xf32>
    %413 = vector.broadcast %403 : vector<7x1xf32> to vector<7x32xf32>
    %414 = arith.subf %397, %413 : vector<7x32xf32>
    %cst_196 = arith.constant 9.99999997E-7 : f32
    %415 = vector.broadcast %cst_196 : f32 to vector<7x1xf32>
    %416 = arith.addf %412, %415 : vector<7x1xf32>
    %417 = math.rsqrt %416 : vector<7x1xf32>
    %418 = vector.broadcast %417 : vector<7x1xf32> to vector<7x32xf32>
    %419 = arith.mulf %414, %418 : vector<7x32xf32>
    %420 = vector.broadcast %398 : vector<1x32xf32> to vector<7x32xf32>
    %421 = arith.mulf %419, %420 : vector<7x32xf32>
    %422 = vector.broadcast %399 : vector<1x32xf32> to vector<7x32xf32>
    %423 = arith.addf %421, %422 : vector<7x32xf32>
    %424 = arith.addf %423, %346 : vector<7x32xf32>
    %425 = arith.addf %349, %334 : vector<16x32xf32>
    %c4 = arith.constant 4 : index
    %c0_197 = arith.constant 0 : index
    %c0_198 = arith.constant 0 : index
    %426 = vector.load %arg35[%c4, %c0_197, %c0_198] : memref<16x32x32xbf16, #tpu.memory_space<vmem>>, vector<1x32x32xbf16>
    %427 = vector.shape_cast %426 : vector<1x32x32xbf16> to vector<32x32xbf16>
    %428 = arith.truncf %424 : vector<7x32xf32> to vector<7x32xbf16>
    %cst_199 = arith.constant dense<0.000000e+00> : vector<7x32xf32>
    %429 = tpu.matmul %428, %427, %cst_199 {dimension_numbers = #tpu.dot_dimension_numbers<[1], [0], [0], [1], [0, 0, 1, 1], [], []>} : vector<7x32xbf16>, vector<32x32xbf16>, vector<7x32xf32> -> vector<7x32xf32>
    %c4_200 = arith.constant 4 : index
    %c0_201 = arith.constant 0 : index
    %430 = vector.load %arg36[%c4_200, %c0_201] : memref<16x32xf32, #tpu.memory_space<vmem>>, vector<1x32xf32>
    %431 = vector.broadcast %430 : vector<1x32xf32> to vector<7x32xf32>
    %432 = arith.addf %429, %431 : vector<7x32xf32>
    %c5 = arith.constant 5 : index
    %c0_202 = arith.constant 0 : index
    %c0_203 = arith.constant 0 : index
    %433 = vector.load %arg35[%c5, %c0_202, %c0_203] : memref<16x32x32xbf16, #tpu.memory_space<vmem>>, vector<1x32x32xbf16>
    %434 = vector.shape_cast %433 : vector<1x32x32xbf16> to vector<32x32xbf16>
    %435 = arith.truncf %425 : vector<16x32xf32> to vector<16x32xbf16>
    %cst_204 = arith.constant dense<0.000000e+00> : vector<16x32xf32>
    %436 = tpu.matmul %435, %434, %cst_204 {dimension_numbers = #tpu.dot_dimension_numbers<[1], [0], [0], [1], [0, 0, 1, 1], [], []>} : vector<16x32xbf16>, vector<32x32xbf16>, vector<16x32xf32> -> vector<16x32xf32>
    %c5_205 = arith.constant 5 : index
    %c0_206 = arith.constant 0 : index
    %437 = vector.load %arg36[%c5_205, %c0_206] : memref<16x32xf32, #tpu.memory_space<vmem>>, vector<1x32xf32>
    %438 = vector.broadcast %437 : vector<1x32xf32> to vector<16x32xf32>
    %439 = arith.addf %436, %438 : vector<16x32xf32>
    %c6 = arith.constant 6 : index
    %c0_207 = arith.constant 0 : index
    %c0_208 = arith.constant 0 : index
    %440 = vector.load %arg35[%c6, %c0_207, %c0_208] : memref<16x32x32xbf16, #tpu.memory_space<vmem>>, vector<1x32x32xbf16>
    %441 = vector.shape_cast %440 : vector<1x32x32xbf16> to vector<32x32xbf16>
    %442 = arith.truncf %349 : vector<16x32xf32> to vector<16x32xbf16>
    %cst_209 = arith.constant dense<0.000000e+00> : vector<16x32xf32>
    %443 = tpu.matmul %442, %441, %cst_209 {dimension_numbers = #tpu.dot_dimension_numbers<[1], [0], [0], [1], [0, 0, 1, 1], [], []>} : vector<16x32xbf16>, vector<32x32xbf16>, vector<16x32xf32> -> vector<16x32xf32>
    %c6_210 = arith.constant 6 : index
    %c0_211 = arith.constant 0 : index
    %444 = vector.load %arg36[%c6_210, %c0_211] : memref<16x32xf32, #tpu.memory_space<vmem>>, vector<1x32xf32>
    %445 = vector.broadcast %444 : vector<1x32xf32> to vector<16x32xf32>
    %446 = arith.addf %443, %445 : vector<16x32xf32>
    %447 = arith.truncf %432 : vector<7x32xf32> to vector<7x32xbf16>
    %448 = arith.truncf %439 : vector<16x32xf32> to vector<16x32xbf16>
    %cst_212 = arith.constant dense<0.000000e+00> : vector<7x16xf32>
    %449 = tpu.matmul %447, %448, %cst_212 {dimension_numbers = #tpu.dot_dimension_numbers<[1], [1], [0], [0], [0, 0, 1, 0], [], []>} : vector<7x32xbf16>, vector<16x32xbf16>, vector<7x16xf32> -> vector<7x16xf32>
    %cst_213 = arith.constant 0.176776692 : f32
    %450 = vector.broadcast %cst_213 : f32 to vector<7x16xf32>
    %451 = arith.mulf %449, %450 : vector<7x16xf32>
    %cst_214 = arith.constant dense<0xFF800000> : vector<7xf32>
    %452 = vector.multi_reduction <maximumf>, %451, %cst_214 [1] : vector<7x16xf32> to vector<7xf32>
    %453 = vector.shape_cast %452 : vector<7xf32> to vector<7x1xf32>
    %454 = vector.broadcast %453 : vector<7x1xf32> to vector<7x16xf32>
    %455 = arith.subf %451, %454 : vector<7x16xf32>
    %456 = math.exp %455 : vector<7x16xf32>
    %cst_215 = arith.constant dense<0.000000e+00> : vector<7xf32>
    %457 = vector.multi_reduction <add>, %456, %cst_215 [1] : vector<7x16xf32> to vector<7xf32>
    %458 = vector.shape_cast %457 : vector<7xf32> to vector<7x1xf32>
    %459 = arith.truncf %456 : vector<7x16xf32> to vector<7x16xbf16>
    %460 = arith.truncf %446 : vector<16x32xf32> to vector<16x32xbf16>
    %cst_216 = arith.constant dense<0.000000e+00> : vector<7x32xf32>
    %461 = tpu.matmul %459, %460, %cst_216 {dimension_numbers = #tpu.dot_dimension_numbers<[1], [0], [0], [1], [0, 0, 1, 1], [], []>} : vector<7x16xbf16>, vector<16x32xbf16>, vector<7x32xf32> -> vector<7x32xf32>
    %462 = tpu.reciprocal %458 {approx = true} : vector<7x1xf32> -> vector<7x1xf32>
    %463 = vector.broadcast %462 : vector<7x1xf32> to vector<7x32xf32>
    %464 = arith.mulf %461, %463 : vector<7x32xf32>
    %c7 = arith.constant 7 : index
    %c0_217 = arith.constant 0 : index
    %c0_218 = arith.constant 0 : index
    %465 = vector.load %arg35[%c7, %c0_217, %c0_218] : memref<16x32x32xbf16, #tpu.memory_space<vmem>>, vector<1x32x32xbf16>
    %466 = vector.shape_cast %465 : vector<1x32x32xbf16> to vector<32x32xbf16>
    %467 = arith.truncf %464 : vector<7x32xf32> to vector<7x32xbf16>
    %cst_219 = arith.constant dense<0.000000e+00> : vector<7x32xf32>
    %468 = tpu.matmul %467, %466, %cst_219 {dimension_numbers = #tpu.dot_dimension_numbers<[1], [0], [0], [1], [0, 0, 1, 1], [], []>} : vector<7x32xbf16>, vector<32x32xbf16>, vector<7x32xf32> -> vector<7x32xf32>
    %c7_220 = arith.constant 7 : index
    %c0_221 = arith.constant 0 : index
    %469 = vector.load %arg36[%c7_220, %c0_221] : memref<16x32xf32, #tpu.memory_space<vmem>>, vector<1x32xf32>
    %470 = vector.broadcast %469 : vector<1x32xf32> to vector<7x32xf32>
    %471 = arith.addf %468, %470 : vector<7x32xf32>
    %472 = arith.addf %423, %471 : vector<7x32xf32>
    %473 = vector.extract_strided_slice %350 {offsets = [1, 0], sizes = [1, 32], strides = [1, 1]} : vector<5x32xf32> to vector<1x32xf32>
    %474 = vector.extract_strided_slice %351 {offsets = [1, 0], sizes = [1, 32], strides = [1, 1]} : vector<5x32xf32> to vector<1x32xf32>
    %cst_222 = arith.constant dense<0.000000e+00> : vector<7xf32>
    %475 = vector.multi_reduction <add>, %472, %cst_222 [1] : vector<7x32xf32> to vector<7xf32>
    %476 = vector.shape_cast %475 : vector<7xf32> to vector<7x1xf32>
    %cst_223 = arith.constant 3.125000e-02 : f32
    %477 = vector.broadcast %cst_223 : f32 to vector<7x1xf32>
    %478 = arith.mulf %476, %477 : vector<7x1xf32>
    %479 = arith.mulf %472, %472 : vector<7x32xf32>
    %cst_224 = arith.constant dense<0.000000e+00> : vector<7xf32>
    %480 = vector.multi_reduction <add>, %479, %cst_224 [1] : vector<7x32xf32> to vector<7xf32>
    %481 = vector.shape_cast %480 : vector<7xf32> to vector<7x1xf32>
    %cst_225 = arith.constant 3.125000e-02 : f32
    %482 = vector.broadcast %cst_225 : f32 to vector<7x1xf32>
    %483 = arith.mulf %481, %482 : vector<7x1xf32>
    %484 = arith.mulf %478, %478 : vector<7x1xf32>
    %485 = arith.subf %483, %484 : vector<7x1xf32>
    %cst_226 = arith.constant 0.000000e+00 : f32
    %486 = vector.broadcast %cst_226 : f32 to vector<7x1xf32>
    %487 = arith.maximumf %485, %486 : vector<7x1xf32>
    %488 = vector.broadcast %478 : vector<7x1xf32> to vector<7x32xf32>
    %489 = arith.subf %472, %488 : vector<7x32xf32>
    %cst_227 = arith.constant 9.99999997E-7 : f32
    %490 = vector.broadcast %cst_227 : f32 to vector<7x1xf32>
    %491 = arith.addf %487, %490 : vector<7x1xf32>
    %492 = math.rsqrt %491 : vector<7x1xf32>
    %493 = vector.broadcast %492 : vector<7x1xf32> to vector<7x32xf32>
    %494 = arith.mulf %489, %493 : vector<7x32xf32>
    %495 = vector.broadcast %473 : vector<1x32xf32> to vector<7x32xf32>
    %496 = arith.mulf %494, %495 : vector<7x32xf32>
    %497 = vector.broadcast %474 : vector<1x32xf32> to vector<7x32xf32>
    %498 = arith.addf %496, %497 : vector<7x32xf32>
    %c0_228 = arith.constant 0 : index
    %c0_229 = arith.constant 0 : index
    %499 = vector.load %arg39[%c0_228, %c0_229] : memref<32x64xbf16, #tpu.memory_space<vmem>>, vector<32x64xbf16>
    %500 = arith.truncf %498 : vector<7x32xf32> to vector<7x32xbf16>
    %cst_230 = arith.constant dense<0.000000e+00> : vector<7x64xf32>
    %501 = tpu.matmul %500, %499, %cst_230 {dimension_numbers = #tpu.dot_dimension_numbers<[1], [0], [0], [1], [0, 0, 1, 1], [], []>} : vector<7x32xbf16>, vector<32x64xbf16>, vector<7x64xf32> -> vector<7x64xf32>
    %c0_231 = arith.constant 0 : index
    %c0_232 = arith.constant 0 : index
    %502 = vector.load %arg40[%c0_231, %c0_232] : memref<1x64xf32, #tpu.memory_space<vmem>>, vector<1x64xf32>
    %503 = vector.broadcast %502 : vector<1x64xf32> to vector<7x64xf32>
    %504 = arith.addf %501, %503 : vector<7x64xf32>
    %cst_233 = arith.constant 0.000000e+00 : f32
    %505 = vector.broadcast %cst_233 : f32 to vector<7x64xf32>
    %506 = arith.maximumf %504, %505 : vector<7x64xf32>
    %c0_234 = arith.constant 0 : index
    %c0_235 = arith.constant 0 : index
    %507 = vector.load %arg41[%c0_234, %c0_235] : memref<64x32xbf16, #tpu.memory_space<vmem>>, vector<64x32xbf16>
    %508 = arith.truncf %506 : vector<7x64xf32> to vector<7x64xbf16>
    %cst_236 = arith.constant dense<0.000000e+00> : vector<7x32xf32>
    %509 = tpu.matmul %508, %507, %cst_236 {dimension_numbers = #tpu.dot_dimension_numbers<[1], [0], [0], [1], [0, 0, 1, 1], [], []>} : vector<7x64xbf16>, vector<64x32xbf16>, vector<7x32xf32> -> vector<7x32xf32>
    %510 = arith.addf %498, %509 : vector<7x32xf32>
    %c0_237 = arith.constant 0 : index
    %c0_238 = arith.constant 0 : index
    %511 = vector.load %arg42[%c0_237, %c0_238] : memref<1x32xf32, #tpu.memory_space<vmem>>, vector<1x32xf32>
    %512 = vector.broadcast %511 : vector<1x32xf32> to vector<7x32xf32>
    %513 = arith.addf %510, %512 : vector<7x32xf32>
    %514 = vector.extract_strided_slice %350 {offsets = [2, 0], sizes = [1, 32], strides = [1, 1]} : vector<5x32xf32> to vector<1x32xf32>
    %515 = vector.extract_strided_slice %351 {offsets = [2, 0], sizes = [1, 32], strides = [1, 1]} : vector<5x32xf32> to vector<1x32xf32>
    %cst_239 = arith.constant dense<0.000000e+00> : vector<7xf32>
    %516 = vector.multi_reduction <add>, %513, %cst_239 [1] : vector<7x32xf32> to vector<7xf32>
    %517 = vector.shape_cast %516 : vector<7xf32> to vector<7x1xf32>
    %cst_240 = arith.constant 3.125000e-02 : f32
    %518 = vector.broadcast %cst_240 : f32 to vector<7x1xf32>
    %519 = arith.mulf %517, %518 : vector<7x1xf32>
    %520 = arith.mulf %513, %513 : vector<7x32xf32>
    %cst_241 = arith.constant dense<0.000000e+00> : vector<7xf32>
    %521 = vector.multi_reduction <add>, %520, %cst_241 [1] : vector<7x32xf32> to vector<7xf32>
    %522 = vector.shape_cast %521 : vector<7xf32> to vector<7x1xf32>
    %cst_242 = arith.constant 3.125000e-02 : f32
    %523 = vector.broadcast %cst_242 : f32 to vector<7x1xf32>
    %524 = arith.mulf %522, %523 : vector<7x1xf32>
    %525 = arith.mulf %519, %519 : vector<7x1xf32>
    %526 = arith.subf %524, %525 : vector<7x1xf32>
    %cst_243 = arith.constant 0.000000e+00 : f32
    %527 = vector.broadcast %cst_243 : f32 to vector<7x1xf32>
    %528 = arith.maximumf %526, %527 : vector<7x1xf32>
    %529 = vector.broadcast %519 : vector<7x1xf32> to vector<7x32xf32>
    %530 = arith.subf %513, %529 : vector<7x32xf32>
    %cst_244 = arith.constant 9.99999997E-7 : f32
    %531 = vector.broadcast %cst_244 : f32 to vector<7x1xf32>
    %532 = arith.addf %528, %531 : vector<7x1xf32>
    %533 = math.rsqrt %532 : vector<7x1xf32>
    %534 = vector.broadcast %533 : vector<7x1xf32> to vector<7x32xf32>
    %535 = arith.mulf %530, %534 : vector<7x32xf32>
    %536 = vector.broadcast %514 : vector<1x32xf32> to vector<7x32xf32>
    %537 = arith.mulf %535, %536 : vector<7x32xf32>
    %538 = vector.broadcast %515 : vector<1x32xf32> to vector<7x32xf32>
    %539 = arith.addf %537, %538 : vector<7x32xf32>
    %540 = arith.addf %539, %346 : vector<7x32xf32>
    %541 = arith.addf %349, %334 : vector<16x32xf32>
    %c8 = arith.constant 8 : index
    %c0_245 = arith.constant 0 : index
    %c0_246 = arith.constant 0 : index
    %542 = vector.load %arg35[%c8, %c0_245, %c0_246] : memref<16x32x32xbf16, #tpu.memory_space<vmem>>, vector<1x32x32xbf16>
    %543 = vector.shape_cast %542 : vector<1x32x32xbf16> to vector<32x32xbf16>
    %544 = arith.truncf %541 : vector<16x32xf32> to vector<16x32xbf16>
    %cst_247 = arith.constant dense<0.000000e+00> : vector<16x32xf32>
    %545 = tpu.matmul %544, %543, %cst_247 {dimension_numbers = #tpu.dot_dimension_numbers<[1], [0], [0], [1], [0, 0, 1, 1], [], []>} : vector<16x32xbf16>, vector<32x32xbf16>, vector<16x32xf32> -> vector<16x32xf32>
    %c8_248 = arith.constant 8 : index
    %c0_249 = arith.constant 0 : index
    %546 = vector.load %arg36[%c8_248, %c0_249] : memref<16x32xf32, #tpu.memory_space<vmem>>, vector<1x32xf32>
    %547 = vector.broadcast %546 : vector<1x32xf32> to vector<16x32xf32>
    %548 = arith.addf %545, %547 : vector<16x32xf32>
    %c9 = arith.constant 9 : index
    %c0_250 = arith.constant 0 : index
    %c0_251 = arith.constant 0 : index
    %549 = vector.load %arg35[%c9, %c0_250, %c0_251] : memref<16x32x32xbf16, #tpu.memory_space<vmem>>, vector<1x32x32xbf16>
    %550 = vector.shape_cast %549 : vector<1x32x32xbf16> to vector<32x32xbf16>
    %551 = arith.truncf %540 : vector<7x32xf32> to vector<7x32xbf16>
    %cst_252 = arith.constant dense<0.000000e+00> : vector<7x32xf32>
    %552 = tpu.matmul %551, %550, %cst_252 {dimension_numbers = #tpu.dot_dimension_numbers<[1], [0], [0], [1], [0, 0, 1, 1], [], []>} : vector<7x32xbf16>, vector<32x32xbf16>, vector<7x32xf32> -> vector<7x32xf32>
    %c9_253 = arith.constant 9 : index
    %c0_254 = arith.constant 0 : index
    %553 = vector.load %arg36[%c9_253, %c0_254] : memref<16x32xf32, #tpu.memory_space<vmem>>, vector<1x32xf32>
    %554 = vector.broadcast %553 : vector<1x32xf32> to vector<7x32xf32>
    %555 = arith.addf %552, %554 : vector<7x32xf32>
    %c10 = arith.constant 10 : index
    %c0_255 = arith.constant 0 : index
    %c0_256 = arith.constant 0 : index
    %556 = vector.load %arg35[%c10, %c0_255, %c0_256] : memref<16x32x32xbf16, #tpu.memory_space<vmem>>, vector<1x32x32xbf16>
    %557 = vector.shape_cast %556 : vector<1x32x32xbf16> to vector<32x32xbf16>
    %558 = arith.truncf %539 : vector<7x32xf32> to vector<7x32xbf16>
    %cst_257 = arith.constant dense<0.000000e+00> : vector<7x32xf32>
    %559 = tpu.matmul %558, %557, %cst_257 {dimension_numbers = #tpu.dot_dimension_numbers<[1], [0], [0], [1], [0, 0, 1, 1], [], []>} : vector<7x32xbf16>, vector<32x32xbf16>, vector<7x32xf32> -> vector<7x32xf32>
    %c10_258 = arith.constant 10 : index
    %c0_259 = arith.constant 0 : index
    %560 = vector.load %arg36[%c10_258, %c0_259] : memref<16x32xf32, #tpu.memory_space<vmem>>, vector<1x32xf32>
    %561 = vector.broadcast %560 : vector<1x32xf32> to vector<7x32xf32>
    %562 = arith.addf %559, %561 : vector<7x32xf32>
    %563 = arith.truncf %548 : vector<16x32xf32> to vector<16x32xbf16>
    %564 = arith.truncf %555 : vector<7x32xf32> to vector<7x32xbf16>
    %cst_260 = arith.constant dense<0.000000e+00> : vector<16x7xf32>
    %565 = tpu.matmul %563, %564, %cst_260 {dimension_numbers = #tpu.dot_dimension_numbers<[1], [1], [0], [0], [0, 0, 1, 0], [], []>} : vector<16x32xbf16>, vector<7x32xbf16>, vector<16x7xf32> -> vector<16x7xf32>
    %cst_261 = arith.constant 0.176776692 : f32
    %566 = vector.broadcast %cst_261 : f32 to vector<16x7xf32>
    %567 = arith.mulf %565, %566 : vector<16x7xf32>
    %cst_262 = arith.constant dense<0xFF800000> : vector<16xf32>
    %568 = vector.multi_reduction <maximumf>, %567, %cst_262 [1] : vector<16x7xf32> to vector<16xf32>
    %569 = vector.shape_cast %568 : vector<16xf32> to vector<16x1xf32>
    %570 = vector.broadcast %569 : vector<16x1xf32> to vector<16x7xf32>
    %571 = arith.subf %567, %570 : vector<16x7xf32>
    %572 = math.exp %571 : vector<16x7xf32>
    %cst_263 = arith.constant dense<0.000000e+00> : vector<16xf32>
    %573 = vector.multi_reduction <add>, %572, %cst_263 [1] : vector<16x7xf32> to vector<16xf32>
    %574 = vector.shape_cast %573 : vector<16xf32> to vector<16x1xf32>
    %575 = arith.truncf %572 : vector<16x7xf32> to vector<16x7xbf16>
    %576 = arith.truncf %562 : vector<7x32xf32> to vector<7x32xbf16>
    %cst_264 = arith.constant dense<0.000000e+00> : vector<16x32xf32>
    %577 = tpu.matmul %575, %576, %cst_264 {dimension_numbers = #tpu.dot_dimension_numbers<[1], [0], [0], [1], [0, 0, 1, 1], [], []>} : vector<16x7xbf16>, vector<7x32xbf16>, vector<16x32xf32> -> vector<16x32xf32>
    %578 = tpu.reciprocal %574 {approx = true} : vector<16x1xf32> -> vector<16x1xf32>
    %579 = vector.broadcast %578 : vector<16x1xf32> to vector<16x32xf32>
    %580 = arith.mulf %577, %579 : vector<16x32xf32>
    %c11 = arith.constant 11 : index
    %c0_265 = arith.constant 0 : index
    %c0_266 = arith.constant 0 : index
    %581 = vector.load %arg35[%c11, %c0_265, %c0_266] : memref<16x32x32xbf16, #tpu.memory_space<vmem>>, vector<1x32x32xbf16>
    %582 = vector.shape_cast %581 : vector<1x32x32xbf16> to vector<32x32xbf16>
    %583 = arith.truncf %580 : vector<16x32xf32> to vector<16x32xbf16>
    %cst_267 = arith.constant dense<0.000000e+00> : vector<16x32xf32>
    %584 = tpu.matmul %583, %582, %cst_267 {dimension_numbers = #tpu.dot_dimension_numbers<[1], [0], [0], [1], [0, 0, 1, 1], [], []>} : vector<16x32xbf16>, vector<32x32xbf16>, vector<16x32xf32> -> vector<16x32xf32>
    %c11_268 = arith.constant 11 : index
    %c0_269 = arith.constant 0 : index
    %585 = vector.load %arg36[%c11_268, %c0_269] : memref<16x32xf32, #tpu.memory_space<vmem>>, vector<1x32xf32>
    %586 = vector.broadcast %585 : vector<1x32xf32> to vector<16x32xf32>
    %587 = arith.addf %584, %586 : vector<16x32xf32>
    %588 = arith.addf %349, %587 : vector<16x32xf32>
    %589 = vector.extract_strided_slice %350 {offsets = [3, 0], sizes = [1, 32], strides = [1, 1]} : vector<5x32xf32> to vector<1x32xf32>
    %590 = vector.extract_strided_slice %351 {offsets = [3, 0], sizes = [1, 32], strides = [1, 1]} : vector<5x32xf32> to vector<1x32xf32>
    %cst_270 = arith.constant dense<0.000000e+00> : vector<16xf32>
    %591 = vector.multi_reduction <add>, %588, %cst_270 [1] : vector<16x32xf32> to vector<16xf32>
    %592 = vector.shape_cast %591 : vector<16xf32> to vector<16x1xf32>
    %cst_271 = arith.constant 3.125000e-02 : f32
    %593 = vector.broadcast %cst_271 : f32 to vector<16x1xf32>
    %594 = arith.mulf %592, %593 : vector<16x1xf32>
    %595 = arith.mulf %588, %588 : vector<16x32xf32>
    %cst_272 = arith.constant dense<0.000000e+00> : vector<16xf32>
    %596 = vector.multi_reduction <add>, %595, %cst_272 [1] : vector<16x32xf32> to vector<16xf32>
    %597 = vector.shape_cast %596 : vector<16xf32> to vector<16x1xf32>
    %cst_273 = arith.constant 3.125000e-02 : f32
    %598 = vector.broadcast %cst_273 : f32 to vector<16x1xf32>
    %599 = arith.mulf %597, %598 : vector<16x1xf32>
    %600 = arith.mulf %594, %594 : vector<16x1xf32>
    %601 = arith.subf %599, %600 : vector<16x1xf32>
    %cst_274 = arith.constant 0.000000e+00 : f32
    %602 = vector.broadcast %cst_274 : f32 to vector<16x1xf32>
    %603 = arith.maximumf %601, %602 : vector<16x1xf32>
    %604 = vector.broadcast %594 : vector<16x1xf32> to vector<16x32xf32>
    %605 = arith.subf %588, %604 : vector<16x32xf32>
    %cst_275 = arith.constant 9.99999997E-7 : f32
    %606 = vector.broadcast %cst_275 : f32 to vector<16x1xf32>
    %607 = arith.addf %603, %606 : vector<16x1xf32>
    %608 = math.rsqrt %607 : vector<16x1xf32>
    %609 = vector.broadcast %608 : vector<16x1xf32> to vector<16x32xf32>
    %610 = arith.mulf %605, %609 : vector<16x32xf32>
    %611 = vector.broadcast %589 : vector<1x32xf32> to vector<16x32xf32>
    %612 = arith.mulf %610, %611 : vector<16x32xf32>
    %613 = vector.broadcast %590 : vector<1x32xf32> to vector<16x32xf32>
    %614 = arith.addf %612, %613 : vector<16x32xf32>
    %615 = arith.addf %539, %346 : vector<7x32xf32>
    %616 = arith.addf %614, %334 : vector<16x32xf32>
    %c12 = arith.constant 12 : index
    %c0_276 = arith.constant 0 : index
    %c0_277 = arith.constant 0 : index
    %617 = vector.load %arg35[%c12, %c0_276, %c0_277] : memref<16x32x32xbf16, #tpu.memory_space<vmem>>, vector<1x32x32xbf16>
    %618 = vector.shape_cast %617 : vector<1x32x32xbf16> to vector<32x32xbf16>
    %619 = arith.truncf %615 : vector<7x32xf32> to vector<7x32xbf16>
    %cst_278 = arith.constant dense<0.000000e+00> : vector<7x32xf32>
    %620 = tpu.matmul %619, %618, %cst_278 {dimension_numbers = #tpu.dot_dimension_numbers<[1], [0], [0], [1], [0, 0, 1, 1], [], []>} : vector<7x32xbf16>, vector<32x32xbf16>, vector<7x32xf32> -> vector<7x32xf32>
    %c12_279 = arith.constant 12 : index
    %c0_280 = arith.constant 0 : index
    %621 = vector.load %arg36[%c12_279, %c0_280] : memref<16x32xf32, #tpu.memory_space<vmem>>, vector<1x32xf32>
    %622 = vector.broadcast %621 : vector<1x32xf32> to vector<7x32xf32>
    %623 = arith.addf %620, %622 : vector<7x32xf32>
    %c13 = arith.constant 13 : index
    %c0_281 = arith.constant 0 : index
    %c0_282 = arith.constant 0 : index
    %624 = vector.load %arg35[%c13, %c0_281, %c0_282] : memref<16x32x32xbf16, #tpu.memory_space<vmem>>, vector<1x32x32xbf16>
    %625 = vector.shape_cast %624 : vector<1x32x32xbf16> to vector<32x32xbf16>
    %626 = arith.truncf %616 : vector<16x32xf32> to vector<16x32xbf16>
    %cst_283 = arith.constant dense<0.000000e+00> : vector<16x32xf32>
    %627 = tpu.matmul %626, %625, %cst_283 {dimension_numbers = #tpu.dot_dimension_numbers<[1], [0], [0], [1], [0, 0, 1, 1], [], []>} : vector<16x32xbf16>, vector<32x32xbf16>, vector<16x32xf32> -> vector<16x32xf32>
    %c13_284 = arith.constant 13 : index
    %c0_285 = arith.constant 0 : index
    %628 = vector.load %arg36[%c13_284, %c0_285] : memref<16x32xf32, #tpu.memory_space<vmem>>, vector<1x32xf32>
    %629 = vector.broadcast %628 : vector<1x32xf32> to vector<16x32xf32>
    %630 = arith.addf %627, %629 : vector<16x32xf32>
    %c14 = arith.constant 14 : index
    %c0_286 = arith.constant 0 : index
    %c0_287 = arith.constant 0 : index
    %631 = vector.load %arg35[%c14, %c0_286, %c0_287] : memref<16x32x32xbf16, #tpu.memory_space<vmem>>, vector<1x32x32xbf16>
    %632 = vector.shape_cast %631 : vector<1x32x32xbf16> to vector<32x32xbf16>
    %633 = arith.truncf %614 : vector<16x32xf32> to vector<16x32xbf16>
    %cst_288 = arith.constant dense<0.000000e+00> : vector<16x32xf32>
    %634 = tpu.matmul %633, %632, %cst_288 {dimension_numbers = #tpu.dot_dimension_numbers<[1], [0], [0], [1], [0, 0, 1, 1], [], []>} : vector<16x32xbf16>, vector<32x32xbf16>, vector<16x32xf32> -> vector<16x32xf32>
    %c14_289 = arith.constant 14 : index
    %c0_290 = arith.constant 0 : index
    %635 = vector.load %arg36[%c14_289, %c0_290] : memref<16x32xf32, #tpu.memory_space<vmem>>, vector<1x32xf32>
    %636 = vector.broadcast %635 : vector<1x32xf32> to vector<16x32xf32>
    %637 = arith.addf %634, %636 : vector<16x32xf32>
    %638 = arith.truncf %623 : vector<7x32xf32> to vector<7x32xbf16>
    %639 = arith.truncf %630 : vector<16x32xf32> to vector<16x32xbf16>
    %cst_291 = arith.constant dense<0.000000e+00> : vector<7x16xf32>
    %640 = tpu.matmul %638, %639, %cst_291 {dimension_numbers = #tpu.dot_dimension_numbers<[1], [1], [0], [0], [0, 0, 1, 0], [], []>} : vector<7x32xbf16>, vector<16x32xbf16>, vector<7x16xf32> -> vector<7x16xf32>
    %cst_292 = arith.constant 0.176776692 : f32
    %641 = vector.broadcast %cst_292 : f32 to vector<7x16xf32>
    %642 = arith.mulf %640, %641 : vector<7x16xf32>
    %cst_293 = arith.constant dense<0xFF800000> : vector<7xf32>
    %643 = vector.multi_reduction <maximumf>, %642, %cst_293 [1] : vector<7x16xf32> to vector<7xf32>
    %644 = vector.shape_cast %643 : vector<7xf32> to vector<7x1xf32>
    %645 = vector.broadcast %644 : vector<7x1xf32> to vector<7x16xf32>
    %646 = arith.subf %642, %645 : vector<7x16xf32>
    %647 = math.exp %646 : vector<7x16xf32>
    %cst_294 = arith.constant dense<0.000000e+00> : vector<7xf32>
    %648 = vector.multi_reduction <add>, %647, %cst_294 [1] : vector<7x16xf32> to vector<7xf32>
    %649 = vector.shape_cast %648 : vector<7xf32> to vector<7x1xf32>
    %650 = arith.truncf %647 : vector<7x16xf32> to vector<7x16xbf16>
    %651 = arith.truncf %637 : vector<16x32xf32> to vector<16x32xbf16>
    %cst_295 = arith.constant dense<0.000000e+00> : vector<7x32xf32>
    %652 = tpu.matmul %650, %651, %cst_295 {dimension_numbers = #tpu.dot_dimension_numbers<[1], [0], [0], [1], [0, 0, 1, 1], [], []>} : vector<7x16xbf16>, vector<16x32xbf16>, vector<7x32xf32> -> vector<7x32xf32>
    %653 = tpu.reciprocal %649 {approx = true} : vector<7x1xf32> -> vector<7x1xf32>
    %654 = vector.broadcast %653 : vector<7x1xf32> to vector<7x32xf32>
    %655 = arith.mulf %652, %654 : vector<7x32xf32>
    %c15 = arith.constant 15 : index
    %c0_296 = arith.constant 0 : index
    %c0_297 = arith.constant 0 : index
    %656 = vector.load %arg35[%c15, %c0_296, %c0_297] : memref<16x32x32xbf16, #tpu.memory_space<vmem>>, vector<1x32x32xbf16>
    %657 = vector.shape_cast %656 : vector<1x32x32xbf16> to vector<32x32xbf16>
    %658 = arith.truncf %655 : vector<7x32xf32> to vector<7x32xbf16>
    %cst_298 = arith.constant dense<0.000000e+00> : vector<7x32xf32>
    %659 = tpu.matmul %658, %657, %cst_298 {dimension_numbers = #tpu.dot_dimension_numbers<[1], [0], [0], [1], [0, 0, 1, 1], [], []>} : vector<7x32xbf16>, vector<32x32xbf16>, vector<7x32xf32> -> vector<7x32xf32>
    %c15_299 = arith.constant 15 : index
    %c0_300 = arith.constant 0 : index
    %660 = vector.load %arg36[%c15_299, %c0_300] : memref<16x32xf32, #tpu.memory_space<vmem>>, vector<1x32xf32>
    %661 = vector.broadcast %660 : vector<1x32xf32> to vector<7x32xf32>
    %662 = arith.addf %659, %661 : vector<7x32xf32>
    %663 = arith.addf %539, %662 : vector<7x32xf32>
    %664 = vector.extract_strided_slice %350 {offsets = [4, 0], sizes = [1, 32], strides = [1, 1]} : vector<5x32xf32> to vector<1x32xf32>
    %665 = vector.extract_strided_slice %351 {offsets = [4, 0], sizes = [1, 32], strides = [1, 1]} : vector<5x32xf32> to vector<1x32xf32>
    %cst_301 = arith.constant dense<0.000000e+00> : vector<7xf32>
    %666 = vector.multi_reduction <add>, %663, %cst_301 [1] : vector<7x32xf32> to vector<7xf32>
    %667 = vector.shape_cast %666 : vector<7xf32> to vector<7x1xf32>
    %cst_302 = arith.constant 3.125000e-02 : f32
    %668 = vector.broadcast %cst_302 : f32 to vector<7x1xf32>
    %669 = arith.mulf %667, %668 : vector<7x1xf32>
    %670 = arith.mulf %663, %663 : vector<7x32xf32>
    %cst_303 = arith.constant dense<0.000000e+00> : vector<7xf32>
    %671 = vector.multi_reduction <add>, %670, %cst_303 [1] : vector<7x32xf32> to vector<7xf32>
    %672 = vector.shape_cast %671 : vector<7xf32> to vector<7x1xf32>
    %cst_304 = arith.constant 3.125000e-02 : f32
    %673 = vector.broadcast %cst_304 : f32 to vector<7x1xf32>
    %674 = arith.mulf %672, %673 : vector<7x1xf32>
    %675 = arith.mulf %669, %669 : vector<7x1xf32>
    %676 = arith.subf %674, %675 : vector<7x1xf32>
    %cst_305 = arith.constant 0.000000e+00 : f32
    %677 = vector.broadcast %cst_305 : f32 to vector<7x1xf32>
    %678 = arith.maximumf %676, %677 : vector<7x1xf32>
    %679 = vector.broadcast %669 : vector<7x1xf32> to vector<7x32xf32>
    %680 = arith.subf %663, %679 : vector<7x32xf32>
    %cst_306 = arith.constant 9.99999997E-7 : f32
    %681 = vector.broadcast %cst_306 : f32 to vector<7x1xf32>
    %682 = arith.addf %678, %681 : vector<7x1xf32>
    %683 = math.rsqrt %682 : vector<7x1xf32>
    %684 = vector.broadcast %683 : vector<7x1xf32> to vector<7x32xf32>
    %685 = arith.mulf %680, %684 : vector<7x32xf32>
    %686 = vector.broadcast %664 : vector<1x32xf32> to vector<7x32xf32>
    %687 = arith.mulf %685, %686 : vector<7x32xf32>
    %688 = vector.broadcast %665 : vector<1x32xf32> to vector<7x32xf32>
    %689 = arith.addf %687, %688 : vector<7x32xf32>
    %c0_307 = arith.constant 0 : index
    %c0_308 = arith.constant 0 : index
    %690 = vector.load %arg44[%c0_307, %c0_308] : memref<32x32xbf16, #tpu.memory_space<vmem>>, vector<32x32xbf16>
    %691 = arith.truncf %614 : vector<16x32xf32> to vector<16x32xbf16>
    %cst_309 = arith.constant dense<0.000000e+00> : vector<16x32xf32>
    %692 = tpu.matmul %691, %690, %cst_309 {dimension_numbers = #tpu.dot_dimension_numbers<[1], [0], [0], [1], [0, 0, 1, 1], [], []>} : vector<16x32xbf16>, vector<32x32xbf16>, vector<16x32xf32> -> vector<16x32xf32>
    %693 = vector.extract_strided_slice %692 {offsets = [0, 0], sizes = [16, 8], strides = [1, 1]} : vector<16x32xf32> to vector<16x8xf32>
    %694 = vector.extract_strided_slice %692 {offsets = [0, 8], sizes = [16, 8], strides = [1, 1]} : vector<16x32xf32> to vector<16x8xf32>
    %695 = vector.extract_strided_slice %692 {offsets = [0, 16], sizes = [16, 8], strides = [1, 1]} : vector<16x32xf32> to vector<16x8xf32>
    %696 = vector.extract_strided_slice %692 {offsets = [0, 24], sizes = [16, 8], strides = [1, 1]} : vector<16x32xf32> to vector<16x8xf32>
    %697 = tpu.concatenate %693, %694, %695, %696 in 0 : vector<16x8xf32>, vector<16x8xf32>, vector<16x8xf32>, vector<16x8xf32> -> vector<64x8xf32>
    %c0_310 = arith.constant 0 : index
    %c0_311 = arith.constant 0 : index
    %698 = vector.load %arg43[%c0_310, %c0_311] : memref<64x64xbf16, #tpu.memory_space<vmem>>, vector<64x64xbf16>
    %699 = arith.truncf %697 : vector<64x8xf32> to vector<64x8xbf16>
    %cst_312 = arith.constant dense<0.000000e+00> : vector<64x8xf32>
    %700 = tpu.matmul %698, %699, %cst_312 {dimension_numbers = #tpu.dot_dimension_numbers<[1], [0], [0], [1], [0, 0, 1, 1], [], []>} : vector<64x64xbf16>, vector<64x8xbf16>, vector<64x8xf32> -> vector<64x8xf32>
    %c0_313 = arith.constant 0 : index
    %c0_314 = arith.constant 0 : index
    %701 = vector.load %arg45[%c0_313, %c0_314] : memref<1x8xf32, #tpu.memory_space<vmem>>, vector<1x8xf32>
    %702 = vector.broadcast %701 : vector<1x8xf32> to vector<64x8xf32>
    %703 = arith.addf %700, %702 : vector<64x8xf32>
    %c0_315 = arith.constant 0 : index
    %c0_316 = arith.constant 0 : index
    %704 = vector.load %arg46[%c0_315, %c0_316] : memref<1x8xf32, #tpu.memory_space<vmem>>, vector<1x8xf32>
    %c0_317 = arith.constant 0 : index
    %c0_318 = arith.constant 0 : index
    %705 = vector.load %arg47[%c0_317, %c0_318] : memref<1x8xf32, #tpu.memory_space<vmem>>, vector<1x8xf32>
    %cst_319 = arith.constant dense<0.000000e+00> : vector<64xf32>
    %706 = vector.multi_reduction <add>, %703, %cst_319 [1] : vector<64x8xf32> to vector<64xf32>
    %707 = vector.shape_cast %706 : vector<64xf32> to vector<64x1xf32>
    %cst_320 = arith.constant 1.250000e-01 : f32
    %708 = vector.broadcast %cst_320 : f32 to vector<64x1xf32>
    %709 = arith.mulf %707, %708 : vector<64x1xf32>
    %710 = arith.mulf %703, %703 : vector<64x8xf32>
    %cst_321 = arith.constant dense<0.000000e+00> : vector<64xf32>
    %711 = vector.multi_reduction <add>, %710, %cst_321 [1] : vector<64x8xf32> to vector<64xf32>
    %712 = vector.shape_cast %711 : vector<64xf32> to vector<64x1xf32>
    %cst_322 = arith.constant 1.250000e-01 : f32
    %713 = vector.broadcast %cst_322 : f32 to vector<64x1xf32>
    %714 = arith.mulf %712, %713 : vector<64x1xf32>
    %715 = arith.mulf %709, %709 : vector<64x1xf32>
    %716 = arith.subf %714, %715 : vector<64x1xf32>
    %cst_323 = arith.constant 0.000000e+00 : f32
    %717 = vector.broadcast %cst_323 : f32 to vector<64x1xf32>
    %718 = arith.maximumf %716, %717 : vector<64x1xf32>
    %719 = vector.broadcast %709 : vector<64x1xf32> to vector<64x8xf32>
    %720 = arith.subf %703, %719 : vector<64x8xf32>
    %cst_324 = arith.constant 9.99999997E-7 : f32
    %721 = vector.broadcast %cst_324 : f32 to vector<64x1xf32>
    %722 = arith.addf %718, %721 : vector<64x1xf32>
    %723 = math.rsqrt %722 : vector<64x1xf32>
    %724 = vector.broadcast %723 : vector<64x1xf32> to vector<64x8xf32>
    %725 = arith.mulf %720, %724 : vector<64x8xf32>
    %726 = vector.broadcast %704 : vector<1x8xf32> to vector<64x8xf32>
    %727 = arith.mulf %725, %726 : vector<64x8xf32>
    %728 = vector.broadcast %705 : vector<1x8xf32> to vector<64x8xf32>
    %729 = arith.addf %727, %728 : vector<64x8xf32>
    %730 = arith.mulf %729, %729 : vector<64x8xf32>
    %731 = arith.mulf %729, %730 : vector<64x8xf32>
    %cst_325 = arith.constant 4.471500e-02 : f32
    %732 = vector.broadcast %cst_325 : f32 to vector<64x8xf32>
    %733 = arith.mulf %732, %731 : vector<64x8xf32>
    %734 = arith.addf %729, %733 : vector<64x8xf32>
    %cst_326 = arith.constant 0.797884583 : f32
    %735 = vector.broadcast %cst_326 : f32 to vector<64x8xf32>
    %736 = arith.mulf %735, %734 : vector<64x8xf32>
    %737 = math.tanh %736 : vector<64x8xf32>
    %cst_327 = arith.constant 1.000000e+00 : f32
    %738 = vector.broadcast %cst_327 : f32 to vector<64x8xf32>
    %739 = arith.addf %738, %737 : vector<64x8xf32>
    %cst_328 = arith.constant 5.000000e-01 : f32
    %740 = vector.broadcast %cst_328 : f32 to vector<64x8xf32>
    %741 = arith.mulf %740, %739 : vector<64x8xf32>
    %742 = arith.mulf %729, %741 : vector<64x8xf32>
    %c0_329 = arith.constant 0 : index
    %c0_330 = arith.constant 0 : index
    %743 = vector.load %arg49[%c0_329, %c0_330] : memref<8x16xbf16, #tpu.memory_space<vmem>>, vector<8x16xbf16>
    %744 = arith.truncf %742 : vector<64x8xf32> to vector<64x8xbf16>
    %cst_331 = arith.constant dense<0.000000e+00> : vector<64x16xf32>
    %745 = tpu.matmul %744, %743, %cst_331 {dimension_numbers = #tpu.dot_dimension_numbers<[1], [0], [0], [1], [0, 0, 1, 1], [], []>} : vector<64x8xbf16>, vector<8x16xbf16>, vector<64x16xf32> -> vector<64x16xf32>
    %746 = vector.extract_strided_slice %745 {offsets = [0, 0], sizes = [64, 4], strides = [1, 1]} : vector<64x16xf32> to vector<64x4xf32>
    %747 = vector.extract_strided_slice %745 {offsets = [0, 4], sizes = [64, 4], strides = [1, 1]} : vector<64x16xf32> to vector<64x4xf32>
    %748 = vector.extract_strided_slice %745 {offsets = [0, 8], sizes = [64, 4], strides = [1, 1]} : vector<64x16xf32> to vector<64x4xf32>
    %749 = vector.extract_strided_slice %745 {offsets = [0, 12], sizes = [64, 4], strides = [1, 1]} : vector<64x16xf32> to vector<64x4xf32>
    %750 = tpu.concatenate %746, %747, %748, %749 in 0 : vector<64x4xf32>, vector<64x4xf32>, vector<64x4xf32>, vector<64x4xf32> -> vector<256x4xf32>
    %c0_332 = arith.constant 0 : index
    %c0_333 = arith.constant 0 : index
    %751 = vector.load %arg48[%c0_332, %c0_333] : memref<256x256xbf16, #tpu.memory_space<vmem>>, vector<256x256xbf16>
    %752 = arith.truncf %750 : vector<256x4xf32> to vector<256x4xbf16>
    %cst_334 = arith.constant dense<0.000000e+00> : vector<256x4xf32>
    %753 = tpu.matmul %751, %752, %cst_334 {dimension_numbers = #tpu.dot_dimension_numbers<[1], [0], [0], [1], [0, 0, 1, 1], [], []>} : vector<256x256xbf16>, vector<256x4xbf16>, vector<256x4xf32> -> vector<256x4xf32>
    %c0_335 = arith.constant 0 : index
    %c0_336 = arith.constant 0 : index
    %754 = vector.load %arg50[%c0_335, %c0_336] : memref<1x4xf32, #tpu.memory_space<vmem>>, vector<1x4xf32>
    %755 = vector.broadcast %754 : vector<1x4xf32> to vector<256x4xf32>
    %756 = arith.addf %753, %755 : vector<256x4xf32>
    %757 = arith.mulf %756, %756 : vector<256x4xf32>
    %758 = arith.mulf %756, %757 : vector<256x4xf32>
    %cst_337 = arith.constant 4.471500e-02 : f32
    %759 = vector.broadcast %cst_337 : f32 to vector<256x4xf32>
    %760 = arith.mulf %759, %758 : vector<256x4xf32>
    %761 = arith.addf %756, %760 : vector<256x4xf32>
    %cst_338 = arith.constant 0.797884583 : f32
    %762 = vector.broadcast %cst_338 : f32 to vector<256x4xf32>
    %763 = arith.mulf %762, %761 : vector<256x4xf32>
    %764 = math.tanh %763 : vector<256x4xf32>
    %cst_339 = arith.constant 1.000000e+00 : f32
    %765 = vector.broadcast %cst_339 : f32 to vector<256x4xf32>
    %766 = arith.addf %765, %764 : vector<256x4xf32>
    %cst_340 = arith.constant 5.000000e-01 : f32
    %767 = vector.broadcast %cst_340 : f32 to vector<256x4xf32>
    %768 = arith.mulf %767, %766 : vector<256x4xf32>
    %769 = arith.mulf %756, %768 : vector<256x4xf32>
    %770 = vector.extract_strided_slice %689 {offsets = [1, 0], sizes = [1, 32], strides = [1, 1]} : vector<7x32xf32> to vector<1x32xf32>
    %c0_341 = arith.constant 0 : index
    %c0_342 = arith.constant 0 : index
    %771 = vector.load %arg51[%c0_341, %c0_342] : memref<32x32xbf16, #tpu.memory_space<vmem>>, vector<32x32xbf16>
    %772 = arith.truncf %770 : vector<1x32xf32> to vector<1x32xbf16>
    %cst_343 = arith.constant dense<0.000000e+00> : vector<1x32xf32>
    %773 = tpu.matmul %772, %771, %cst_343 {dimension_numbers = #tpu.dot_dimension_numbers<[1], [0], [0], [1], [0, 0, 1, 1], [], []>} : vector<1x32xbf16>, vector<32x32xbf16>, vector<1x32xf32> -> vector<1x32xf32>
    %c0_344 = arith.constant 0 : index
    %c0_345 = arith.constant 0 : index
    %774 = vector.load %arg52[%c0_344, %c0_345] : memref<1x32xf32, #tpu.memory_space<vmem>>, vector<1x32xf32>
    %775 = arith.addf %773, %774 : vector<1x32xf32>
    %cst_346 = arith.constant 0.000000e+00 : f32
    %776 = vector.broadcast %cst_346 : f32 to vector<1x32xf32>
    %777 = arith.maximumf %775, %776 : vector<1x32xf32>
    %c0_347 = arith.constant 0 : index
    %c0_348 = arith.constant 0 : index
    %778 = vector.load %arg53[%c0_347, %c0_348] : memref<32x32xbf16, #tpu.memory_space<vmem>>, vector<32x32xbf16>
    %779 = arith.truncf %777 : vector<1x32xf32> to vector<1x32xbf16>
    %cst_349 = arith.constant dense<0.000000e+00> : vector<1x32xf32>
    %780 = tpu.matmul %779, %778, %cst_349 {dimension_numbers = #tpu.dot_dimension_numbers<[1], [0], [0], [1], [0, 0, 1, 1], [], []>} : vector<1x32xbf16>, vector<32x32xbf16>, vector<1x32xf32> -> vector<1x32xf32>
    %c0_350 = arith.constant 0 : index
    %c0_351 = arith.constant 0 : index
    %781 = vector.load %arg54[%c0_350, %c0_351] : memref<1x32xf32, #tpu.memory_space<vmem>>, vector<1x32xf32>
    %782 = arith.addf %780, %781 : vector<1x32xf32>
    %cst_352 = arith.constant 0.000000e+00 : f32
    %783 = vector.broadcast %cst_352 : f32 to vector<1x32xf32>
    %784 = arith.maximumf %782, %783 : vector<1x32xf32>
    %c0_353 = arith.constant 0 : index
    %c0_354 = arith.constant 0 : index
    %785 = vector.load %arg55[%c0_353, %c0_354] : memref<32x4xbf16, #tpu.memory_space<vmem>>, vector<32x4xbf16>
    %786 = arith.truncf %784 : vector<1x32xf32> to vector<1x32xbf16>
    %cst_355 = arith.constant dense<0.000000e+00> : vector<1x4xf32>
    %787 = tpu.matmul %786, %785, %cst_355 {dimension_numbers = #tpu.dot_dimension_numbers<[1], [0], [0], [1], [0, 0, 1, 1], [], []>} : vector<1x32xbf16>, vector<32x4xbf16>, vector<1x4xf32> -> vector<1x4xf32>
    %c0_356 = arith.constant 0 : index
    %c0_357 = arith.constant 0 : index
    %788 = vector.load %arg56[%c0_356, %c0_357] : memref<1x4xf32, #tpu.memory_space<vmem>>, vector<1x4xf32>
    %789 = arith.addf %787, %788 : vector<1x4xf32>
    %790 = arith.truncf %789 : vector<1x4xf32> to vector<1x4xbf16>
    %791 = arith.truncf %769 : vector<256x4xf32> to vector<256x4xbf16>
    %cst_358 = arith.constant dense<0.000000e+00> : vector<1x256xf32>
    %792 = tpu.matmul %790, %791, %cst_358 {dimension_numbers = #tpu.dot_dimension_numbers<[1], [1], [0], [0], [0, 0, 1, 0], [], []>} : vector<1x4xbf16>, vector<256x4xbf16>, vector<1x256xf32> -> vector<1x256xf32>
    tpu.wait_dma2 semaphore(%arg60 : memref<!tpu.dma_semaphore, #tpu.memory_space<semaphore_mem>>) src(%arg57 : memref<256x1024xbf16, #tpu.memory_space<any>>) dst(%arg59 : memref<256x1024xbf16, #tpu.memory_space<vmem>>)
    %793 = arith.truncf %792 : vector<1x256xf32> to vector<1x256xbf16>
    %c0_359 = arith.constant 0 : index
    %c0_360 = arith.constant 0 : index
    %794 = vector.load %arg59[%c0_359, %c0_360] : memref<256x1024xbf16, #tpu.memory_space<vmem>>, vector<256x1024xbf16>
    %cst_361 = arith.constant dense<0.000000e+00> : vector<1x1024xf32>
    %795 = tpu.matmul %793, %794, %cst_361 {dimension_numbers = #tpu.dot_dimension_numbers<[1], [0], [0], [1], [0, 0, 1, 1], [], []>} : vector<1x256xbf16>, vector<256x1024xbf16>, vector<1x1024xf32> -> vector<1x1024xf32>
    %cst_362 = arith.constant 0.000000e+00 : f32
    %796 = vector.broadcast %cst_362 : f32 to vector<1x1024xf32>
    %797 = arith.cmpf ogt, %795, %796 : vector<1x1024xf32>
    %cst_363 = arith.constant 1.000000e+00 : f32
    %cst_364 = arith.constant 0.000000e+00 : f32
    %798 = vector.broadcast %cst_363 : f32 to vector<1x1024xf32>
    %799 = vector.broadcast %cst_364 : f32 to vector<1x1024xf32>
    %800 = arith.select %797, %798, %799 : vector<1x1024xi1>, vector<1x1024xf32>
    %c0_365 = arith.constant 0 : index
    %c0_366 = arith.constant 0 : index
    %801 = vector.load %arg58[%c0_365, %c0_366] : memref<1x1024xf32, #tpu.memory_space<vmem>>, vector<1x1024xf32>
    tpu.vector_store %arg58[%c0_365, %c0_366], %800 {strides = array<i32>} : memref<1x1024xf32, #tpu.memory_space<vmem>>, vector<1x1024xf32>,
    return
  }
  func.func @transform_0(%arg0: i32) -> (i32, i32) {
    %c0_i32 = arith.constant 0 : i32
    %c0_i32_0 = arith.constant 0 : i32
    %c0_i32_1 = arith.constant 0 : i32
    return %c0_i32, %c0_i32_0 : i32, i32
  }
  func.func @transform_1(%arg0: i32) -> (i32, i32) {
    %c0_i32 = arith.constant 0 : i32
    %c0_i32_0 = arith.constant 0 : i32
    %c0_i32_1 = arith.constant 0 : i32
    return %c0_i32, %c0_i32_0 : i32, i32
  }
  func.func @transform_2(%arg0: i32) -> (i32, i32) {
    %c0_i32 = arith.constant 0 : i32
    %c0_i32_0 = arith.constant 0 : i32
    %c0_i32_1 = arith.constant 0 : i32
    return %c0_i32, %c0_i32_0 : i32, i32
  }
  func.func @transform_3(%arg0: i32) -> (i32, i32) {
    %c0_i32 = arith.constant 0 : i32
    %c0_i32_0 = arith.constant 0 : i32
    %c0_i32_1 = arith.constant 0 : i32
    return %c0_i32, %c0_i32_0 : i32, i32
  }
  func.func @transform_4(%arg0: i32) -> (i32, i32) {
    %c0_i32 = arith.constant 0 : i32
    %c0_i32_0 = arith.constant 0 : i32
    %c0_i32_1 = arith.constant 0 : i32
    return %c0_i32, %c0_i32_0 : i32, i32
  }
  func.func @transform_5(%arg0: i32) -> (i32, i32) {
    %c0_i32 = arith.constant 0 : i32
    %c0_i32_0 = arith.constant 0 : i32
    %c0_i32_1 = arith.constant 0 : i32
    return %c0_i32, %c0_i32_0 : i32, i32
  }
  func.func @transform_6(%arg0: i32) -> (i32, i32) {
    %c0_i32 = arith.constant 0 : i32
    %c0_i32_0 = arith.constant 0 : i32
    %c0_i32_1 = arith.constant 0 : i32
    return %c0_i32, %c0_i32_0 : i32, i32
  }
  func.func @transform_7(%arg0: i32) -> (i32, i32) {
    %c0_i32 = arith.constant 0 : i32
    %c0_i32_0 = arith.constant 0 : i32
    %c0_i32_1 = arith.constant 0 : i32
    return %c0_i32, %c0_i32_0 : i32, i32
  }
  func.func @transform_8(%arg0: i32) -> (i32, i32) {
    %c0_i32 = arith.constant 0 : i32
    %c0_i32_0 = arith.constant 0 : i32
    %c0_i32_1 = arith.constant 0 : i32
    return %c0_i32, %c0_i32_0 : i32, i32
  }
  func.func @transform_9(%arg0: i32) -> (i32, i32) {
    %c0_i32 = arith.constant 0 : i32
    %c0_i32_0 = arith.constant 0 : i32
    %c0_i32_1 = arith.constant 0 : i32
    return %c0_i32, %c0_i32_0 : i32, i32
  }
  func.func @transform_10(%arg0: i32) -> (i32, i32) {
    %c0_i32 = arith.constant 0 : i32
    %c0_i32_0 = arith.constant 0 : i32
    %c0_i32_1 = arith.constant 0 : i32
    return %c0_i32, %c0_i32_0 : i32, i32
  }
  func.func @transform_11(%arg0: i32) -> (i32, i32) {
    %c0_i32 = arith.constant 0 : i32
    %c0_i32_0 = arith.constant 0 : i32
    %c0_i32_1 = arith.constant 0 : i32
    return %c0_i32, %c0_i32_0 : i32, i32
  }
  func.func @transform_12(%arg0: i32) -> (i32, i32) {
    %c0_i32 = arith.constant 0 : i32
    %c0_i32_0 = arith.constant 0 : i32
    %c0_i32_1 = arith.constant 0 : i32
    return %c0_i32, %c0_i32_0 : i32, i32
  }
  func.func @transform_13(%arg0: i32) -> (i32, i32) {
    %c0_i32 = arith.constant 0 : i32
    %c0_i32_0 = arith.constant 0 : i32
    %c0_i32_1 = arith.constant 0 : i32
    return %c0_i32, %c0_i32_0 : i32, i32
  }
  func.func @transform_14(%arg0: i32) -> (i32, i32) {
    %c0_i32 = arith.constant 0 : i32
    %c0_i32_0 = arith.constant 0 : i32
    %c0_i32_1 = arith.constant 0 : i32
    return %c0_i32, %c0_i32_0 : i32, i32
  }
  func.func @transform_15(%arg0: i32) -> (i32, i32) {
    %c0_i32 = arith.constant 0 : i32
    %c0_i32_0 = arith.constant 0 : i32
    %c0_i32_1 = arith.constant 0 : i32
    return %c0_i32, %c0_i32_0 : i32, i32
  }
  func.func @transform_16(%arg0: i32) -> (i32, i32) {
    %c0_i32 = arith.constant 0 : i32
    %c0_i32_0 = arith.constant 0 : i32
    %c0_i32_1 = arith.constant 0 : i32
    return %c0_i32, %c0_i32_0 : i32, i32
  }
  func.func @transform_17(%arg0: i32) -> (i32, i32) {
    %c0_i32 = arith.constant 0 : i32
    %c0_i32_0 = arith.constant 0 : i32
    %c0_i32_1 = arith.constant 0 : i32
    return %c0_i32, %c0_i32_0 : i32, i32
  }
  func.func @transform_18(%arg0: i32) -> (i32, i32) {
    %c0_i32 = arith.constant 0 : i32
    %c0_i32_0 = arith.constant 0 : i32
    %c0_i32_1 = arith.constant 0 : i32
    return %c0_i32, %c0_i32_0 : i32, i32
  }
  func.func @transform_19(%arg0: i32) -> (i32, i32) {
    %c0_i32 = arith.constant 0 : i32
    %c0_i32_0 = arith.constant 0 : i32
    %c0_i32_1 = arith.constant 0 : i32
    return %c0_i32, %c0_i32_0 : i32, i32
  }
  func.func @transform_20(%arg0: i32) -> (i32, i32) {
    %c0_i32 = arith.constant 0 : i32
    %c0_i32_0 = arith.constant 0 : i32
    %c0_i32_1 = arith.constant 0 : i32
    return %c0_i32, %c0_i32_0 : i32, i32
  }
  func.func @transform_21(%arg0: i32) -> (i32, i32) {
    %c0_i32 = arith.constant 0 : i32
    %c0_i32_0 = arith.constant 0 : i32
    %c0_i32_1 = arith.constant 0 : i32
    return %c0_i32, %c0_i32_0 : i32, i32
  }
  func.func @transform_22(%arg0: i32) -> (i32, i32) {
    %c0_i32 = arith.constant 0 : i32
    %c0_i32_0 = arith.constant 0 : i32
    %c0_i32_1 = arith.constant 0 : i32
    return %c0_i32, %c0_i32_0 : i32, i32
  }
  func.func @transform_23(%arg0: i32) -> (i32, i32) {
    %c0_i32 = arith.constant 0 : i32
    %c0_i32_0 = arith.constant 0 : i32
    %c0_i32_1 = arith.constant 0 : i32
    return %c0_i32, %c0_i32_0 : i32, i32
  }
  func.func @transform_24(%arg0: i32) -> (i32, i32) {
    %c0_i32 = arith.constant 0 : i32
    %c0_i32_0 = arith.constant 0 : i32
    %c0_i32_1 = arith.constant 0 : i32
    return %c0_i32, %c0_i32_0 : i32, i32
  }
  func.func @transform_25(%arg0: i32) -> (i32, i32) {
    %c0_i32 = arith.constant 0 : i32
    %c0_i32_0 = arith.constant 0 : i32
    %c0_i32_1 = arith.constant 0 : i32
    return %c0_i32, %c0_i32_0 : i32, i32
  }
  func.func @transform_26(%arg0: i32) -> (i32, i32) {
    %c0_i32 = arith.constant 0 : i32
    %c0_i32_0 = arith.constant 0 : i32
    %c0_i32_1 = arith.constant 0 : i32
    return %c0_i32, %c0_i32_0 : i32, i32
  }
  func.func @transform_27(%arg0: i32) -> (i32, i32) {
    %c0_i32 = arith.constant 0 : i32
    %c0_i32_0 = arith.constant 0 : i32
    %c0_i32_1 = arith.constant 0 : i32
    return %c0_i32, %c0_i32_0 : i32, i32
  }
  func.func @transform_28(%arg0: i32) -> (i32, i32) {
    %c0_i32 = arith.constant 0 : i32
    %c0_i32_0 = arith.constant 0 : i32
    %c0_i32_1 = arith.constant 0 : i32
    return %c0_i32, %c0_i32_0 : i32, i32
  }
  func.func @transform_29(%arg0: i32) -> (i32, i32) {
    %c0_i32 = arith.constant 0 : i32
    %c0_i32_0 = arith.constant 0 : i32
    %c0_i32_1 = arith.constant 0 : i32
    return %c0_i32, %c0_i32_0 : i32, i32
  }
  func.func @transform_30(%arg0: i32) -> (i32, i32) {
    %c0_i32 = arith.constant 0 : i32
    %c0_i32_0 = arith.constant 0 : i32
    %c0_i32_1 = arith.constant 0 : i32
    return %c0_i32, %c0_i32_0 : i32, i32
  }
  func.func @transform_31(%arg0: i32) -> (i32, i32) {
    %c0_i32 = arith.constant 0 : i32
    %c0_i32_0 = arith.constant 0 : i32
    %c0_i32_1 = arith.constant 0 : i32
    return %c0_i32, %c0_i32_0 : i32, i32
  }
  func.func @transform_32(%arg0: i32) -> (i32, i32) {
    %c0_i32 = arith.constant 0 : i32
    %c0_i32_0 = arith.constant 0 : i32
    %c0_i32_1 = arith.constant 0 : i32
    return %c0_i32, %c0_i32_0 : i32, i32
  }
  func.func @transform_33(%arg0: i32) -> (i32, i32) {
    %c0_i32 = arith.constant 0 : i32
    %c0_i32_0 = arith.constant 0 : i32
    %c0_i32_1 = arith.constant 0 : i32
    return %c0_i32, %c0_i32_0 : i32, i32
  }
  func.func @transform_34(%arg0: i32) -> (i32, i32, i32) {
    %c0_i32 = arith.constant 0 : i32
    %c0_i32_0 = arith.constant 0 : i32
    %c0_i32_1 = arith.constant 0 : i32
    %c0_i32_2 = arith.constant 0 : i32
    return %c0_i32, %c0_i32_0, %c0_i32_1 : i32, i32, i32
  }
  func.func @transform_35(%arg0: i32) -> (i32, i32) {
    %c0_i32 = arith.constant 0 : i32
    %c0_i32_0 = arith.constant 0 : i32
    %c0_i32_1 = arith.constant 0 : i32
    return %c0_i32, %c0_i32_0 : i32, i32
  }
  func.func @transform_36(%arg0: i32) -> (i32, i32) {
    %c0_i32 = arith.constant 0 : i32
    %c0_i32_0 = arith.constant 0 : i32
    %c0_i32_1 = arith.constant 0 : i32
    return %c0_i32, %c0_i32_0 : i32, i32
  }
  func.func @transform_37(%arg0: i32) -> (i32, i32) {
    %c0_i32 = arith.constant 0 : i32
    %c0_i32_0 = arith.constant 0 : i32
    %c0_i32_1 = arith.constant 0 : i32
    return %c0_i32, %c0_i32_0 : i32, i32
  }
  func.func @transform_38(%arg0: i32) -> (i32, i32) {
    %c0_i32 = arith.constant 0 : i32
    %c0_i32_0 = arith.constant 0 : i32
    %c0_i32_1 = arith.constant 0 : i32
    return %c0_i32, %c0_i32_0 : i32, i32
  }
  func.func @transform_39(%arg0: i32) -> (i32, i32) {
    %c0_i32 = arith.constant 0 : i32
    %c0_i32_0 = arith.constant 0 : i32
    %c0_i32_1 = arith.constant 0 : i32
    return %c0_i32, %c0_i32_0 : i32, i32
  }
  func.func @transform_40(%arg0: i32) -> (i32, i32) {
    %c0_i32 = arith.constant 0 : i32
    %c0_i32_0 = arith.constant 0 : i32
    %c0_i32_1 = arith.constant 0 : i32
    return %c0_i32, %c0_i32_0 : i32, i32
  }
  func.func @transform_41(%arg0: i32) -> (i32, i32) {
    %c0_i32 = arith.constant 0 : i32
    %c0_i32_0 = arith.constant 0 : i32
    %c0_i32_1 = arith.constant 0 : i32
    return %c0_i32, %c0_i32_0 : i32, i32
  }
  func.func @transform_42(%arg0: i32) -> (i32, i32) {
    %c0_i32 = arith.constant 0 : i32
    %c0_i32_0 = arith.constant 0 : i32
    %c0_i32_1 = arith.constant 0 : i32
    return %c0_i32, %c0_i32_0 : i32, i32
  }
  func.func @transform_43(%arg0: i32) -> (i32, i32) {
    %c0_i32 = arith.constant 0 : i32
    %c0_i32_0 = arith.constant 0 : i32
    %c0_i32_1 = arith.constant 0 : i32
    return %c0_i32, %c0_i32_0 : i32, i32
  }
  func.func @transform_44(%arg0: i32) -> (i32, i32) {
    %c0_i32 = arith.constant 0 : i32
    %c0_i32_0 = arith.constant 0 : i32
    %c0_i32_1 = arith.constant 0 : i32
    return %c0_i32, %c0_i32_0 : i32, i32
  }
  func.func @transform_45(%arg0: i32) -> (i32, i32) {
    %c0_i32 = arith.constant 0 : i32
    %c0_i32_0 = arith.constant 0 : i32
    %c0_i32_1 = arith.constant 0 : i32
    return %c0_i32, %c0_i32_0 : i32, i32
  }
  func.func @transform_46(%arg0: i32) -> (i32, i32) {
    %c0_i32 = arith.constant 0 : i32
    %c0_i32_0 = arith.constant 0 : i32
    %c0_i32_1 = arith.constant 0 : i32
    return %c0_i32, %c0_i32_0 : i32, i32
  }
  func.func @transform_47(%arg0: i32) -> (i32, i32) {
    %c0_i32 = arith.constant 0 : i32
    %c0_i32_0 = arith.constant 0 : i32
    %c0_i32_1 = arith.constant 0 : i32
    return %c0_i32, %c0_i32_0 : i32, i32
  }
  func.func @transform_48(%arg0: i32) -> (i32, i32) {
    %c0_i32 = arith.constant 0 : i32
    %c0_i32_0 = arith.constant 0 : i32
    %c0_i32_1 = arith.constant 0 : i32
    return %c0_i32, %c0_i32_0 : i32, i32
  }
  func.func @transform_49(%arg0: i32) -> (i32, i32) {
    %c0_i32 = arith.constant 0 : i32
    %c0_i32_0 = arith.constant 0 : i32
    %c0_i32_1 = arith.constant 0 : i32
    return %c0_i32, %c0_i32_0 : i32, i32
  }
  func.func @transform_50(%arg0: i32) -> (i32, i32) {
    %c0_i32 = arith.constant 0 : i32
    %c0_i32_0 = arith.constant 0 : i32
    %c0_i32_1 = arith.constant 0 : i32
    return %c0_i32, %c0_i32_0 : i32, i32
  }
  func.func @transform_51(%arg0: i32) -> (i32, i32) {
    %c0_i32 = arith.constant 0 : i32
    %c0_i32_0 = arith.constant 0 : i32
    %c0_i32_1 = arith.constant 0 : i32
    return %c0_i32, %c0_i32_0 : i32, i32
  }
  func.func @transform_52(%arg0: i32) -> (i32, i32) {
    %c0_i32 = arith.constant 0 : i32
    %c0_i32_0 = arith.constant 0 : i32
    %c0_i32_1 = arith.constant 0 : i32
    return %c0_i32, %c0_i32_0 : i32, i32
  }
  func.func @transform_53(%arg0: i32) -> (i32, i32) {
    %c0_i32 = arith.constant 0 : i32
    %c0_i32_0 = arith.constant 0 : i32
    %c0_i32_1 = arith.constant 0 : i32
    return %c0_i32, %c0_i32_0 : i32, i32
  }
  func.func @transform_54(%arg0: i32) -> (i32, i32) {
    %c0_i32 = arith.constant 0 : i32
    %c0_i32_0 = arith.constant 0 : i32
    %c0_i32_1 = arith.constant 0 : i32
    return %c0_i32, %c0_i32_0 : i32, i32
  }
  func.func @transform_55(%arg0: i32) -> (i32, i32) {
    %c0_i32 = arith.constant 0 : i32
    %c0_i32_0 = arith.constant 0 : i32
    %c0_i32_1 = arith.constant 0 : i32
    return %c0_i32, %c0_i32_0 : i32, i32
  }
  func.func @transform_57(%arg0: i32) -> (i32, i32) {
    %c0_i32 = arith.constant 0 : i32
    %c0_i32_0 = arith.constant 0 : i32
    %c0_i32_1 = arith.constant 0 : i32
    return %c0_i32, %c0_i32_0 : i32, i32
  }
}

</mosaic_0001>

<llo_original>
// kernel: sam_forward.1
$region0: #{sam_forward.1}
  #allocation0 [shape = 'u32[]', space=smem, size = 0x4, offset = 0x4, fixed_abs, tag = 'smem constant byte address 0x4 - core index']
  #allocation1 [shape = 'u32[144,128]{1,0:T(1,128)}', space=vmem, size = 0x12000, scoped, tag = 'internal scratch']
  #allocation2 [shape = 'bf16[256,1024]{1,0:T(16,128)(2,1)}', space=vmem, size = 0x80000, scoped, tag = 'scratch operand']
  #allocation3 [shape = 's32[1]{0}', space=sflag, size = 0x4, scoped, tag = 'scratch operand']
  #allocation17 [shape = 's32[]', space=sflag, size = 0x4, offset = 0, fixed_abs, tag = 'sflag constant byte address 0x0 - dummy sync flag']
  %s0 = inlined_call_operand.smem [shape: u32[58], index: -1, kind: input, shape index: {}]
  %s1 = sld [smem:[%s0]]
  %s2 = scalar_lea.smem %s0, 1
  %s3 = sld [smem:[%s2]]
  %s4 = scalar_lea.smem %s0, 2
  %s5 = sld [smem:[%s4]]
  %s6 = scalar_lea.smem %s0, 3
  %s7 = sld [smem:[%s6]]
  %s8 = scalar_lea.smem %s0, 4
  %s9 = sld [smem:[%s8]]
  %s10 = scalar_lea.smem %s0, 5
  %s11 = sld [smem:[%s10]]
  %s12 = scalar_lea.smem %s0, 6
  %s13 = sld [smem:[%s12]]
  %s14 = scalar_lea.smem %s0, 7
  %s15 = sld [smem:[%s14]]
  %s16 = scalar_lea.smem %s0, 8
  %s17 = sld [smem:[%s16]]
  %s18 = scalar_lea.smem %s0, 9
  %s19 = sld [smem:[%s18]]
  %s20 = scalar_lea.smem %s0, 10
  %s21 = sld [smem:[%s20]]
  %s22 = scalar_lea.smem %s0, 11
  %s23 = sld [smem:[%s22]]
  %s24 = scalar_lea.smem %s0, 12
  %s25 = sld [smem:[%s24]]
  %s26 = scalar_lea.smem %s0, 13
  %s27 = sld [smem:[%s26]]
  %s28 = scalar_lea.smem %s0, 14
  %s29 = sld [smem:[%s28]]
  %s30 = scalar_lea.smem %s0, 15
  %s31 = sld [smem:[%s30]]
  %s32 = scalar_lea.smem %s0, 16
  %s33 = sld [smem:[%s32]]
  %s34 = scalar_lea.smem %s0, 17
  %s35 = sld [smem:[%s34]]
  %s36 = scalar_lea.smem %s0, 18
  %s37 = sld [smem:[%s36]]
  %s38 = scalar_lea.smem %s0, 19
  %s39 = sld [smem:[%s38]]
  %s40 = scalar_lea.smem %s0, 20
  %s41 = sld [smem:[%s40]]
  %s42 = scalar_lea.smem %s0, 21
  %s43 = sld [smem:[%s42]]
  %s44 = scalar_lea.smem %s0, 22
  %s45 = sld [smem:[%s44]]
  %s46 = scalar_lea.smem %s0, 23
  %s47 = sld [smem:[%s46]]
  %s48 = scalar_lea.smem %s0, 24
  %s49 = sld [smem:[%s48]]
  %s50 = scalar_lea.smem %s0, 25
  %s51 = sld [smem:[%s50]]
  %s52 = scalar_lea.smem %s0, 26
  %s53 = sld [smem:[%s52]]
  %s54 = scalar_lea.smem %s0, 27
  %s55 = sld [smem:[%s54]]
  %s56 = scalar_lea.smem %s0, 28
  %s57 = sld [smem:[%s56]]
  %s58 = scalar_lea.smem %s0, 29
  %s59 = sld [smem:[%s58]]
  %s60 = scalar_lea.smem %s0, 30
  %s61 = sld [smem:[%s60]]
  %s62 = scalar_lea.smem %s0, 31
  %s63 = sld [smem:[%s62]]
  %s64 = scalar_lea.smem %s0, 32
  %s65 = sld [smem:[%s64]]
  %s66 = scalar_lea.smem %s0, 33
  %s67 = sld [smem:[%s66]]
  %s68 = scalar_lea.smem %s0, 34
  %s69 = sld [smem:[%s68]]
  %s70 = scalar_lea.smem %s0, 35
  %s71 = sld [smem:[%s70]]
  %s72 = scalar_lea.smem %s0, 36
  %s73 = sld [smem:[%s72]]
  %s74 = scalar_lea.smem %s0, 37
  %s75 = sld [smem:[%s74]]
  %s76 = scalar_lea.smem %s0, 38
  %s77 = sld [smem:[%s76]]
  %s78 = scalar_lea.smem %s0, 39
  %s79 = sld [smem:[%s78]]
  %s80 = scalar_lea.smem %s0, 40
  %s81 = sld [smem:[%s80]]
  %s82 = scalar_lea.smem %s0, 41
  %s83 = sld [smem:[%s82]]
  %s84 = scalar_lea.smem %s0, 42
  %s85 = sld [smem:[%s84]]
  %s86 = scalar_lea.smem %s0, 43
  %s87 = sld [smem:[%s86]]
  %s88 = scalar_lea.smem %s0, 44
  %s89 = sld [smem:[%s88]]
  %s90 = scalar_lea.smem %s0, 45
  %s91 = sld [smem:[%s90]]
  %s92 = scalar_lea.smem %s0, 46
  %s93 = sld [smem:[%s92]]
  %s94 = scalar_lea.smem %s0, 47
  %s95 = sld [smem:[%s94]]
  %s96 = scalar_lea.smem %s0, 48
  %s97 = sld [smem:[%s96]]
  %s98 = scalar_lea.smem %s0, 49
  %s99 = sld [smem:[%s98]]
  %s100 = scalar_lea.smem %s0, 50
  %s101 = sld [smem:[%s100]]
  %s102 = scalar_lea.smem %s0, 51
  %s103 = sld [smem:[%s102]]
  %s104 = scalar_lea.smem %s0, 52
  %s105 = sld [smem:[%s104]]
  %s106 = scalar_lea.smem %s0, 53
  %s107 = sld [smem:[%s106]]
  %s108 = scalar_lea.smem %s0, 54
  %s109 = sld [smem:[%s108]]
  %s110 = scalar_lea.smem %s0, 55
  %s111 = sld [smem:[%s110]]
  %s112 = scalar_lea.smem %s0, 56
  %s113 = sld [smem:[%s112]]
  %s114 = scalar_lea.smem %s0, 57
  %s115 = sld [smem:[%s114]]
  %s116 = sld [smem:[#allocation0]]
  $region303: #{sam_forward.1} parent=0
    _
  %s118 = ssub.s32 1, %s116
  %s119 = scalar_select 0, %s118, %s116
  $region1: #{sam_forward.1} parent=0
    #allocation4 [shape = 'u8[512]{0}', space=vmem, size = 0x400, scoped, tag = 'input window, operand 41, single buffered']
    #allocation5 [shape = 's32[1]{0}', space=sflag, size = 0x4, scoped, tag = 'scoped memory for sam_forward.1']
    #allocation6 [shape = 'u8[512]{0}', space=vmem, size = 0x400, scoped, tag = 'input window, operand 44, single buffered']
    #allocation7 [shape = 's32[1]{0}', space=sflag, size = 0x4, scoped, tag = 'scoped memory for sam_forward.1']
    #allocation8 [shape = 'u8[512]{0}', space=vmem, size = 0x400, scoped, tag = 'input window, operand 45, single buffered']
    #allocation9 [shape = 'u8[512]{0}', space=vmem, size = 0x400, scoped, tag = 'input window, operand 46, single buffered']
    #allocation10 [shape = 's32[1]{0}', space=sflag, size = 0x4, scoped, tag = 'scoped memory for sam_forward.1']
    #allocation11 [shape = 'u8[512]{0}', space=vmem, size = 0x400, scoped, tag = 'input window, operand 49, single buffered']
    #allocation12 [shape = 'u8[512]{0}', space=vmem, size = 0x400, scoped, tag = 'input window, operand 51, single buffered']
    #allocation13 [shape = 's32[1]{0}', space=sflag, size = 0x4, scoped, tag = 'scoped memory for sam_forward.1']
    #allocation14 [shape = 'u8[512]{0}', space=vmem, size = 0x400, scoped, tag = 'input window, operand 53, single buffered']
    #allocation15 [shape = 'u8[512]{0}', space=vmem, size = 0x400, scoped, tag = 'input window, operand 55, single buffered']
    #allocation16 [shape = 's32[1]{0}', space=sflag, size = 0x4, scoped, tag = 'scoped memory for sam_forward.1']
    %120 = vsyncpa [#allocation5], 0
    %121 = vsyncpa [#allocation7], 0
    %122 = vsyncpa [#allocation10], 0
    %123 = vsyncpa [#allocation13], 0
    %124 = vsyncpa [#allocation16], 0
    // Predicated region
    $region2: #{sam_forward.1} parent=1 // pred_check
      _
    $region3: #{sam_forward.1} parent=1 // pred_check_branch
      %126 = sbr.rel (0) target = $region5
    $region4: #{sam_forward.1} parent=1 // pred_region
      _
    $region5: #{sam_forward.1} parent=1 // pred_fallthru
      _
    // Predicated region
    $region6: #{sam_forward.1} parent=1 // pred_check
      _
    $region7: #{sam_forward.1} parent=1 // pred_check_branch
      %128 = sbr.rel (0) target = $region9
    $region8: #{sam_forward.1} parent=1 // pred_region
      _
    $region9: #{sam_forward.1} parent=1 // pred_fallthru
      _
    // Predicated region
    $region10: #{sam_forward.1} parent=1 // pred_check
      _
    $region11: #{sam_forward.1} parent=1 // pred_check_branch
      %130 = sbr.rel (0) target = $region13
    $region12: #{sam_forward.1} parent=1 // pred_region
      _
    $region13: #{sam_forward.1} parent=1 // pred_fallthru
      _
    // Predicated region
    $region14: #{sam_forward.1} parent=1 // pred_check
      _
    $region15: #{sam_forward.1} parent=1 // pred_check_branch
      %132 = sbr.rel (0) target = $region17
    $region16: #{sam_forward.1} parent=1 // pred_region
      _
    $region17: #{sam_forward.1} parent=1 // pred_fallthru
      _
    // Predicated region
    $region18: #{sam_forward.1} parent=1 // pred_check
      _
    $region19: #{sam_forward.1} parent=1 // pred_check_branch
      %134 = sbr.rel (0) target = $region21
    $region20: #{sam_forward.1} parent=1 // pred_region
      _
    $region21: #{sam_forward.1} parent=1 // pred_fallthru
      _
    // Predicated region
    $region22: #{sam_forward.1} parent=1 // pred_check
      _
    $region23: #{sam_forward.1} parent=1 // pred_check_branch
      %136 = sbr.rel (0) target = $region25
    $region24: #{sam_forward.1} parent=1 // pred_region
      _
    $region25: #{sam_forward.1} parent=1 // pred_fallthru
      _
    // Predicated region
    $region26: #{sam_forward.1} parent=1 // pred_check
      _
    $region27: #{sam_forward.1} parent=1 // pred_check_branch
      %138 = sbr.rel (0) target = $region29
    $region28: #{sam_forward.1} parent=1 // pred_region
      _
    $region29: #{sam_forward.1} parent=1 // pred_fallthru
      _
    // Predicated region
    $region30: #{sam_forward.1} parent=1 // pred_check
      _
    $region31: #{sam_forward.1} parent=1 // pred_check_branch
      %140 = sbr.rel (0) target = $region33
    $region32: #{sam_forward.1} parent=1 // pred_region
      _
    $region33: #{sam_forward.1} parent=1 // pred_fallthru
      _
    // Predicated region
    $region34: #{sam_forward.1} parent=1 // pred_check
      _
    $region35: #{sam_forward.1} parent=1 // pred_check_branch
      %142 = sbr.rel (0) target = $region37
    $region36: #{sam_forward.1} parent=1 // pred_region
      _
    $region37: #{sam_forward.1} parent=1 // pred_fallthru
      _
    // Predicated region
    $region38: #{sam_forward.1} parent=1 // pred_check
      _
    $region39: #{sam_forward.1} parent=1 // pred_check_branch
      %144 = sbr.rel (0) target = $region41
    $region40: #{sam_forward.1} parent=1 // pred_region
      _
    $region41: #{sam_forward.1} parent=1 // pred_fallthru
      _
    // Predicated region
    $region42: #{sam_forward.1} parent=1 // pred_check
      _
    $region43: #{sam_forward.1} parent=1 // pred_check_branch
      %146 = sbr.rel (0) target = $region45
    $region44: #{sam_forward.1} parent=1 // pred_region
      _
    $region45: #{sam_forward.1} parent=1 // pred_fallthru
      _
    // Predicated region
    $region46: #{sam_forward.1} parent=1 // pred_check
      _
    $region47: #{sam_forward.1} parent=1 // pred_check_branch
      %148 = sbr.rel (0) target = $region49
    $region48: #{sam_forward.1} parent=1 // pred_region
      _
    $region49: #{sam_forward.1} parent=1 // pred_fallthru
      _
    // Predicated region
    $region50: #{sam_forward.1} parent=1 // pred_check
      _
    $region51: #{sam_forward.1} parent=1 // pred_check_branch
      %150 = sbr.rel (0) target = $region53
    $region52: #{sam_forward.1} parent=1 // pred_region
      _
    $region53: #{sam_forward.1} parent=1 // pred_fallthru
      _
    // Predicated region
    $region54: #{sam_forward.1} parent=1 // pred_check
      _
    $region55: #{sam_forward.1} parent=1 // pred_check_branch
      %152 = sbr.rel (0) target = $region57
    $region56: #{sam_forward.1} parent=1 // pred_region
      _
    $region57: #{sam_forward.1} parent=1 // pred_fallthru
      _
    // Predicated region
    $region58: #{sam_forward.1} parent=1 // pred_check
      _
    $region59: #{sam_forward.1} parent=1 // pred_check_branch
      %154 = sbr.rel (0) target = $region61
    $region60: #{sam_forward.1} parent=1 // pred_region
      _
    $region61: #{sam_forward.1} parent=1 // pred_fallthru
      _
    // Predicated region
    $region62: #{sam_forward.1} parent=1 // pred_check
      _
    $region63: #{sam_forward.1} parent=1 // pred_check_branch
      %156 = sbr.rel (0) target = $region65
    $region64: #{sam_forward.1} parent=1 // pred_region
      _
    $region65: #{sam_forward.1} parent=1 // pred_fallthru
      _
    // Predicated region
    $region66: #{sam_forward.1} parent=1 // pred_check
      _
    $region67: #{sam_forward.1} parent=1 // pred_check_branch
      %158 = sbr.rel (0) target = $region69
    $region68: #{sam_forward.1} parent=1 // pred_region
      _
    $region69: #{sam_forward.1} parent=1 // pred_fallthru
      _
    // Predicated region
    $region70: #{sam_forward.1} parent=1 // pred_check
      _
    $region71: #{sam_forward.1} parent=1 // pred_check_branch
      %160 = sbr.rel (0) target = $region73
    $region72: #{sam_forward.1} parent=1 // pred_region
      _
    $region73: #{sam_forward.1} parent=1 // pred_fallthru
      _
    // Predicated region
    $region74: #{sam_forward.1} parent=1 // pred_check
      _
    $region75: #{sam_forward.1} parent=1 // pred_check_branch
      %162 = sbr.rel (0) target = $region77
    $region76: #{sam_forward.1} parent=1 // pred_region
      _
    $region77: #{sam_forward.1} parent=1 // pred_fallthru
      _
    // Predicated region
    $region78: #{sam_forward.1} parent=1 // pred_check
      _
    $region79: #{sam_forward.1} parent=1 // pred_check_branch
      %164 = sbr.rel (0) target = $region81
    $region80: #{sam_forward.1} parent=1 // pred_region
      _
    $region81: #{sam_forward.1} parent=1 // pred_fallthru
      _
    // Predicated region
    $region82: #{sam_forward.1} parent=1 // pred_check
      _
    $region83: #{sam_forward.1} parent=1 // pred_check_branch
      %166 = sbr.rel (0) target = $region85
    $region84: #{sam_forward.1} parent=1 // pred_region
      _
    $region85: #{sam_forward.1} parent=1 // pred_fallthru
      _
    // Predicated region
    $region86: #{sam_forward.1} parent=1 // pred_check
      _
    $region87: #{sam_forward.1} parent=1 // pred_check_branch
      %168 = sbr.rel (0) target = $region89
    $region88: #{sam_forward.1} parent=1 // pred_region
      _
    $region89: #{sam_forward.1} parent=1 // pred_fallthru
      _
    // Predicated region
    $region90: #{sam_forward.1} parent=1 // pred_check
      _
    $region91: #{sam_forward.1} parent=1 // pred_check_branch
      %170 = sbr.rel (0) target = $region93
    $region92: #{sam_forward.1} parent=1 // pred_region
      _
    $region93: #{sam_forward.1} parent=1 // pred_fallthru
      _
    // Predicated region
    $region94: #{sam_forward.1} parent=1 // pred_check
      _
    $region95: #{sam_forward.1} parent=1 // pred_check_branch
      %172 = sbr.rel (0) target = $region97
    $region96: #{sam_forward.1} parent=1 // pred_region
      _
    $region97: #{sam_forward.1} parent=1 // pred_fallthru
      _
    // Predicated region
    $region98: #{sam_forward.1} parent=1 // pred_check
      _
    $region99: #{sam_forward.1} parent=1 // pred_check_branch
      %174 = sbr.rel (0) target = $region101
    $region100: #{sam_forward.1} parent=1 // pred_region
      _
    $region101: #{sam_forward.1} parent=1 // pred_fallthru
      _
    // Predicated region
    $region102: #{sam_forward.1} parent=1 // pred_check
      _
    $region103: #{sam_forward.1} parent=1 // pred_check_branch
      %176 = sbr.rel (0) target = $region105
    $region104: #{sam_forward.1} parent=1 // pred_region
      _
    $region105: #{sam_forward.1} parent=1 // pred_fallthru
      _
    // Predicated region
    $region106: #{sam_forward.1} parent=1 // pred_check
      _
    $region107: #{sam_forward.1} parent=1 // pred_check_branch
      %178 = sbr.rel (0) target = $region109
    $region108: #{sam_forward.1} parent=1 // pred_region
      _
    $region109: #{sam_forward.1} parent=1 // pred_fallthru
      _
    // Predicated region
    $region110: #{sam_forward.1} parent=1 // pred_check
      _
    $region111: #{sam_forward.1} parent=1 // pred_check_branch
      %180 = sbr.rel (0) target = $region113
    $region112: #{sam_forward.1} parent=1 // pred_region
      _
    $region113: #{sam_forward.1} parent=1 // pred_fallthru
      _
    // Predicated region
    $region114: #{sam_forward.1} parent=1 // pred_check
      _
    $region115: #{sam_forward.1} parent=1 // pred_check_branch
      %182 = sbr.rel (0) target = $region117
    $region116: #{sam_forward.1} parent=1 // pred_region
      _
    $region117: #{sam_forward.1} parent=1 // pred_fallthru
      _
    // Predicated region
    $region118: #{sam_forward.1} parent=1 // pred_check
      _
    $region119: #{sam_forward.1} parent=1 // pred_check_branch
      %184 = sbr.rel (0) target = $region121
    $region120: #{sam_forward.1} parent=1 // pred_region
      _
    $region121: #{sam_forward.1} parent=1 // pred_fallthru
      _
    // Predicated region
    $region122: #{sam_forward.1} parent=1 // pred_check
      _
    $region123: #{sam_forward.1} parent=1 // pred_check_branch
      %186 = sbr.rel (0) target = $region125
    $region124: #{sam_forward.1} parent=1 // pred_region
      _
    $region125: #{sam_forward.1} parent=1 // pred_fallthru
      _
    // Predicated region
    $region126: #{sam_forward.1} parent=1 // pred_check
      _
    $region127: #{sam_forward.1} parent=1 // pred_check_branch
      %188 = sbr.rel (0) target = $region129
    $region128: #{sam_forward.1} parent=1 // pred_region
      _
    $region129: #{sam_forward.1} parent=1 // pred_fallthru
      _
    // Predicated region
    $region130: #{sam_forward.1} parent=1 // pred_check
      _
    $region131: #{sam_forward.1} parent=1 // pred_check_branch
      %190 = sbr.rel (0) target = $region133
    $region132: #{sam_forward.1} parent=1 // pred_region
      _
    $region133: #{sam_forward.1} parent=1 // pred_fallthru
      _
    // Predicated region
    $region134: #{sam_forward.1} parent=1 // pred_check
      _
    $region135: #{sam_forward.1} parent=1 // pred_check_branch
      %192 = sbr.rel (0) target = $region137
    $region136: #{sam_forward.1} parent=1 // pred_region
      _
    $region137: #{sam_forward.1} parent=1 // pred_fallthru
      _
    // Predicated region
    $region138: #{sam_forward.1} parent=1 // pred_check
      _
    $region139: #{sam_forward.1} parent=1 // pred_check_branch
      %194 = sbr.rel (0) target = $region141
    $region140: #{sam_forward.1} parent=1 // pred_region
      _
    $region141: #{sam_forward.1} parent=1 // pred_fallthru
      _
    // Predicated region
    $region142: #{sam_forward.1} parent=1 // pred_check
      _
    $region143: #{sam_forward.1} parent=1 // pred_check_branch
      %196 = sbr.rel (0) target = $region145
    $region144: #{sam_forward.1} parent=1 // pred_region
      _
    $region145: #{sam_forward.1} parent=1 // pred_fallthru
      _
    // Predicated region
    $region146: #{sam_forward.1} parent=1 // pred_check
      _
    $region147: #{sam_forward.1} parent=1 // pred_check_branch
      %198 = sbr.rel (0) target = $region149
    $region148: #{sam_forward.1} parent=1 // pred_region
      _
    $region149: #{sam_forward.1} parent=1 // pred_fallthru
      _
    // Predicated region
    $region150: #{sam_forward.1} parent=1 // pred_check
      _
    $region151: #{sam_forward.1} parent=1 // pred_check_branch
      %200 = sbr.rel (0) target = $region153
    $region152: #{sam_forward.1} parent=1 // pred_region
      _
    $region153: #{sam_forward.1} parent=1 // pred_fallthru
      _
    // Predicated region
    $region154: #{sam_forward.1} parent=1 // pred_check
      _
    $region155: #{sam_forward.1} parent=1 // pred_check_branch
      %202 = sbr.rel (0) target = $region157
    $region156: #{sam_forward.1} parent=1 // pred_region
      _
    $region157: #{sam_forward.1} parent=1 // pred_fallthru
      _
    // Predicated region
    $region158: #{sam_forward.1} parent=1 // pred_check
      _
    $region159: #{sam_forward.1} parent=1 // pred_check_branch
      %204 = sbr.rel (0) target = $region161
    $region160: #{sam_forward.1} parent=1 // pred_region
      _
    $region161: #{sam_forward.1} parent=1 // pred_fallthru
      _
    // Predicated region
    $region162: #{sam_forward.1} parent=1 // pred_check
      _
    $region163: #{sam_forward.1} parent=1 // pred_check_branch
      %206 = sbr.rel (0) target = $region165
    $region164: #{sam_forward.1} parent=1 // pred_region
      _
    $region165: #{sam_forward.1} parent=1 // pred_fallthru
      _
    // Predicated region
    $region166: #{sam_forward.1} parent=1 // pred_check
      _
    $region167: #{sam_forward.1} parent=1 // pred_check_branch
      %208 = sbr.rel (0) target = $region169
    $region168: #{sam_forward.1} parent=1 // pred_region
      %s210 = ssub.s32 16, 16
      %211 = vsyncadd [#allocation5], %s210
      %s213 = sshll.u32 [#allocation4], 4
      %s214 = int_to_ptr.vmem [resolvable:$true] %s213
      %216 = dma.hbm_to_vmem [thread:$0]  %s83, 16, %s214, [#allocation5]
    $region169: #{sam_forward.1} parent=1 // pred_fallthru
      _
    // Predicated region
    $region170: #{sam_forward.1} parent=1 // pred_check
      _
    $region171: #{sam_forward.1} parent=1 // pred_check_branch
      %218 = sbr.rel (0) target = $region173
    $region172: #{sam_forward.1} parent=1 // pred_region
      _
    $region173: #{sam_forward.1} parent=1 // pred_fallthru
      _
    // Predicated region
    $region174: #{sam_forward.1} parent=1 // pred_check
      _
    $region175: #{sam_forward.1} parent=1 // pred_check_branch
      %220 = sbr.rel (0) target = $region177
    $region176: #{sam_forward.1} parent=1 // pred_region
      _
    $region177: #{sam_forward.1} parent=1 // pred_fallthru
      _
    // Predicated region
    $region178: #{sam_forward.1} parent=1 // pred_check
      _
    $region179: #{sam_forward.1} parent=1 // pred_check_branch
      %222 = sbr.rel (0) target = $region181
    $region180: #{sam_forward.1} parent=1 // pred_region
      %s224 = ssub.s32 16, 16
      %225 = vsyncadd [#allocation7], %s224
      %s227 = sshll.u32 [#allocation6], 4
      %s228 = int_to_ptr.vmem [resolvable:$true] %s227
      %230 = dma.hbm_to_vmem [thread:$0]  %s89, 16, %s228, [#allocation7]
    $region181: #{sam_forward.1} parent=1 // pred_fallthru
      _
    // Predicated region
    $region182: #{sam_forward.1} parent=1 // pred_check
      _
    $region183: #{sam_forward.1} parent=1 // pred_check_branch
      %232 = sbr.rel (0) target = $region185
    $region184: #{sam_forward.1} parent=1 // pred_region
      %s234 = ssub.s32 16, 16
      %235 = vsyncadd [#allocation7], %s234
      %s237 = sshll.u32 [#allocation8], 4
      %s238 = int_to_ptr.vmem [resolvable:$true] %s237
      %240 = dma.hbm_to_vmem [thread:$0]  %s91, 16, %s238, [#allocation7]
    $region185: #{sam_forward.1} parent=1 // pred_fallthru
      _
    // Predicated region
    $region186: #{sam_forward.1} parent=1 // pred_check
      _
    $region187: #{sam_forward.1} parent=1 // pred_check_branch
      %242 = sbr.rel (0) target = $region189
    $region188: #{sam_forward.1} parent=1 // pred_region
      %s244 = ssub.s32 16, 16
      %245 = vsyncadd [#allocation10], %s244
      %s247 = sshll.u32 [#allocation9], 4
      %s248 = int_to_ptr.vmem [resolvable:$true] %s247
      %250 = dma.hbm_to_vmem [thread:$0]  %s93, 16, %s248, [#allocation10]
    $region189: #{sam_forward.1} parent=1 // pred_fallthru
      _
    // Predicated region
    $region190: #{sam_forward.1} parent=1 // pred_check
      _
    $region191: #{sam_forward.1} parent=1 // pred_check_branch
      %252 = sbr.rel (0) target = $region193
    $region192: #{sam_forward.1} parent=1 // pred_region
      _
    $region193: #{sam_forward.1} parent=1 // pred_fallthru
      _
    // Predicated region
    $region194: #{sam_forward.1} parent=1 // pred_check
      _
    $region195: #{sam_forward.1} parent=1 // pred_check_branch
      %254 = sbr.rel (0) target = $region197
    $region196: #{sam_forward.1} parent=1 // pred_region
      _
    $region197: #{sam_forward.1} parent=1 // pred_fallthru
      _
    // Predicated region
    $region198: #{sam_forward.1} parent=1 // pred_check
      _
    $region199: #{sam_forward.1} parent=1 // pred_check_branch
      %256 = sbr.rel (0) target = $region201
    $region200: #{sam_forward.1} parent=1 // pred_region
      %s258 = ssub.s32 16, 16
      %259 = vsyncadd [#allocation10], %s258
      %s261 = sshll.u32 [#allocation11], 4
      %s262 = int_to_ptr.vmem [resolvable:$true] %s261
      %264 = dma.hbm_to_vmem [thread:$0]  %s99, 16, %s262, [#allocation10]
    $region201: #{sam_forward.1} parent=1 // pred_fallthru
      _
    // Predicated region
    $region202: #{sam_forward.1} parent=1 // pred_check
      _
    $region203: #{sam_forward.1} parent=1 // pred_check_branch
      %266 = sbr.rel (0) target = $region205
    $region204: #{sam_forward.1} parent=1 // pred_region
      _
    $region205: #{sam_forward.1} parent=1 // pred_fallthru
      _
    // Predicated region
    $region206: #{sam_forward.1} parent=1 // pred_check
      _
    $region207: #{sam_forward.1} parent=1 // pred_check_branch
      %268 = sbr.rel (0) target = $region209
    $region208: #{sam_forward.1} parent=1 // pred_region
      %s270 = ssub.s32 16, 16
      %271 = vsyncadd [#allocation13], %s270
      %s273 = sshll.u32 [#allocation12], 4
      %s274 = int_to_ptr.vmem [resolvable:$true] %s273
      %276 = dma.hbm_to_vmem [thread:$0]  %s103, 16, %s274, [#allocation13]
    $region209: #{sam_forward.1} parent=1 // pred_fallthru
      _
    // Predicated region
    $region210: #{sam_forward.1} parent=1 // pred_check
      _
    $region211: #{sam_forward.1} parent=1 // pred_check_branch
      %278 = sbr.rel (0) target = $region213
    $region212: #{sam_forward.1} parent=1 // pred_region
      _
    $region213: #{sam_forward.1} parent=1 // pred_fallthru
      _
    // Predicated region
    $region214: #{sam_forward.1} parent=1 // pred_check
      _
    $region215: #{sam_forward.1} parent=1 // pred_check_branch
      %280 = sbr.rel (0) target = $region217
    $region216: #{sam_forward.1} parent=1 // pred_region
      %s282 = ssub.s32 16, 16
      %283 = vsyncadd [#allocation13], %s282
      %s285 = sshll.u32 [#allocation14], 4
      %s286 = int_to_ptr.vmem [resolvable:$true] %s285
      %288 = dma.hbm_to_vmem [thread:$0]  %s107, 16, %s286, [#allocation13]
    $region217: #{sam_forward.1} parent=1 // pred_fallthru
      _
    // Predicated region
    $region218: #{sam_forward.1} parent=1 // pred_check
      _
    $region219: #{sam_forward.1} parent=1 // pred_check_branch
      %290 = sbr.rel (0) target = $region221
    $region220: #{sam_forward.1} parent=1 // pred_region
      _
    $region221: #{sam_forward.1} parent=1 // pred_fallthru
      _
    // Predicated region
    $region222: #{sam_forward.1} parent=1 // pred_check
      _
    $region223: #{sam_forward.1} parent=1 // pred_check_branch
      %292 = sbr.rel (0) target = $region225
    $region224: #{sam_forward.1} parent=1 // pred_region
      %s294 = ssub.s32 16, 16
      %295 = vsyncadd [#allocation16], %s294
      %s297 = sshll.u32 [#allocation15], 4
      %s298 = int_to_ptr.vmem [resolvable:$true] %s297
      %300 = dma.hbm_to_vmem [thread:$0]  %s111, 16, %s298, [#allocation16]
    $region225: #{sam_forward.1} parent=1 // pred_fallthru
      _
    // Predicated region
    $region226: #{sam_forward.1} parent=1 // pred_check
      _
    $region227: #{sam_forward.1} parent=1 // pred_check_branch
      %302 = sbr.rel (0) target = $region229
    $region228: #{sam_forward.1} parent=1 // pred_region
      %303 = dma.done [#allocation5], 16
    $region229: #{sam_forward.1} parent=1 // pred_fallthru
      _
    // Predicated region
    $region230: #{sam_forward.1} parent=1 // pred_check
      _
    $region231: #{sam_forward.1} parent=1 // pred_check_branch
      %305 = sbr.rel (0) target = $region233
    $region232: #{sam_forward.1} parent=1 // pred_region
      %306 = dma.done [#allocation7], 16
    $region233: #{sam_forward.1} parent=1 // pred_fallthru
      _
    // Predicated region
    $region234: #{sam_forward.1} parent=1 // pred_check
      _
    $region235: #{sam_forward.1} parent=1 // pred_check_branch
      %308 = sbr.rel (0) target = $region237
    $region236: #{sam_forward.1} parent=1 // pred_region
      %309 = dma.done [#allocation7], 16
    $region237: #{sam_forward.1} parent=1 // pred_fallthru
      _
    // Predicated region
    $region238: #{sam_forward.1} parent=1 // pred_check
      _
    $region239: #{sam_forward.1} parent=1 // pred_check_branch
      %311 = sbr.rel (0) target = $region241
    $region240: #{sam_forward.1} parent=1 // pred_region
      %312 = dma.done [#allocation10], 16
    $region241: #{sam_forward.1} parent=1 // pred_fallthru
      _
    // Predicated region
    $region242: #{sam_forward.1} parent=1 // pred_check
      _
    $region243: #{sam_forward.1} parent=1 // pred_check_branch
      %314 = sbr.rel (0) target = $region245
    $region244: #{sam_forward.1} parent=1 // pred_region
      %315 = dma.done [#allocation10], 16
    $region245: #{sam_forward.1} parent=1 // pred_fallthru
      _
    // Predicated region
    $region246: #{sam_forward.1} parent=1 // pred_check
      _
    $region247: #{sam_forward.1} parent=1 // pred_check_branch
      %317 = sbr.rel (0) target = $region249
    $region248: #{sam_forward.1} parent=1 // pred_region
      %318 = dma.done [#allocation13], 16
    $region249: #{sam_forward.1} parent=1 // pred_fallthru
      _
    // Predicated region
    $region250: #{sam_forward.1} parent=1 // pred_check
      _
    $region251: #{sam_forward.1} parent=1 // pred_check_branch
      %320 = sbr.rel (0) target = $region253
    $region252: #{sam_forward.1} parent=1 // pred_region
      %321 = dma.done [#allocation13], 16
    $region253: #{sam_forward.1} parent=1 // pred_fallthru
      _
    // Predicated region
    $region254: #{sam_forward.1} parent=1 // pred_check
      _
    $region255: #{sam_forward.1} parent=1 // pred_check_branch
      %323 = sbr.rel (0) target = $region257
    $region256: #{sam_forward.1} parent=1 // pred_region
      %324 = dma.done [#allocation16], 16
    $region257: #{sam_forward.1} parent=1 // pred_fallthru
      _
    %p327 = scmp.lt.u32.totalorder 4, 8
    %p328 = pneg %p327
    // Predicated region
    $region258: #{sam_forward.1} parent=1 // pred_check
      _
    $region259: #{sam_forward.1} parent=1 // pred_check_branch
      %330 = sbr.rel (%p327) target = $region261
    $region260: #{sam_forward.1} parent=1 // pred_region
      %s855 = sand.u32 4, 7
      %p856 = scmp.eq.s32.totalorder %s855, 0
      %p857 = pneg %p856
      // Predicated region
      $region273: #{sam_forward.1} parent=260 // pred_check
        _
      $region274: #{sam_forward.1} parent=260 // pred_check_branch
        %859 = sbr.rel (%p856) target = $region276
      $region275: #{sam_forward.1} parent=260 // pred_region
        %s860 = sand.u32 4, 7
        %s861 = ssub.s32 4, %s860
        %s862 = scalar_lea.vmem %s113, %s861
        %s863 = ssub.s32 4, %s860
        %s864 = scalar_lea.vmem [#allocation2], %s863
        loop: start=0, step=1, limit=1
        $region277: #{sam_forward.1} parent=275 // loop_pre_header
          _
        $region278: #{sam_forward.1} parent=275 // loop_header
          %s866 = sphi 0, %s870
          %p867 = scmp.ge.s32.totalorder %s866, 1
          %s871 = sphi %s113, %s113
          %s872 = sphi [#allocation2], [#allocation2]
        $region279: #{sam_forward.1} parent=275 // loop_header_branch
          %869 = sbr.rel (%p867) target = $region283
        $region280: #{sam_forward.1} parent=275 // loop_body
          _
        $region281: #{sam_forward.1} parent=275 // loop_footer
          %s870 = sadd.s32 1, %s866
        $region282: #{sam_forward.1} parent=275 // loop_footer_branch
          %865 = sbr.rel target = $region278
        $region283: #{sam_forward.1} parent=275 // loop_exit
          _
        %s873 = sshllo.u32 0, %s860
        loop: start=0, step=1, limit=1
        $region284: #{sam_forward.1} parent=275 // loop_pre_header
          _
        $region285: #{sam_forward.1} parent=275 // loop_header
          %s875 = sphi 0, %s879
          %p876 = scmp.ge.s32.totalorder %s875, 1
          %s880 = sphi %s862, %s862
          %s881 = sphi %s864, %s864
        $region286: #{sam_forward.1} parent=275 // loop_header_branch
          %878 = sbr.rel (%p876) target = $region290
        $region287: #{sam_forward.1} parent=275 // loop_body
          %v882 = vld [vmem:[%s880] sm:%s873]
          %883 = vst [vmem:[%s881] sm:%s873] %v882
          %v884 = vld [vmem:[%s880 + $0x20] sm:%s873]
          %885 = vst [vmem:[%s881 + $0x4] sm:%s873] %v884
          %v886 = vld [vmem:[%s880 + $0x4] sm:%s873]
          %887 = vst [vmem:[%s881 + $0x8] sm:%s873] %v886
          %v888 = vld [vmem:[%s880 + $0x24] sm:%s873]
          %889 = vst [vmem:[%s881 + $0xc] sm:%s873] %v888
          %v890 = vld [vmem:[%s880 + $0x8] sm:%s873]
          %891 = vst [vmem:[%s881 + $0x10] sm:%s873] %v890
          %v892 = vld [vmem:[%s880 + $0x28] sm:%s873]
          %893 = vst [vmem:[%s881 + $0x14] sm:%s873] %v892
          %v894 = vld [vmem:[%s880 + $0xc] sm:%s873]
          %895 = vst [vmem:[%s881 + $0x18] sm:%s873] %v894
          %v896 = vld [vmem:[%s880 + $0x2c] sm:%s873]
          %897 = vst [vmem:[%s881 + $0x1c] sm:%s873] %v896
          %v898 = vld [vmem:[%s880 + $0x10] sm:%s873]
          %899 = vst [vmem:[%s881 + $0x20] sm:%s873] %v898
          %v900 = vld [vmem:[%s880 + $0x30] sm:%s873]
          %901 = vst [vmem:[%s881 + $0x24] sm:%s873] %v900
          %v902 = vld [vmem:[%s880 + $0x14] sm:%s873]
          %903 = vst [vmem:[%s881 + $0x28] sm:%s873] %v902
          %v904 = vld [vmem:[%s880 + $0x34] sm:%s873]
          %905 = vst [vmem:[%s881 + $0x2c] sm:%s873] %v904
          %v906 = vld [vmem:[%s880 + $0x18] sm:%s873]
          %907 = vst [vmem:[%s881 + $0x30] sm:%s873] %v906
          %v908 = vld [vmem:[%s880 + $0x38] sm:%s873]
          %909 = vst [vmem:[%s881 + $0x34] sm:%s873] %v908
          %v910 = vld [vmem:[%s880 + $0x1c] sm:%s873]
          %911 = vst [vmem:[%s881 + $0x38] sm:%s873] %v910
          %v912 = vld [vmem:[%s880 + $0x3c] sm:%s873]
          %913 = vst [vmem:[%s881 + $0x3c] sm:%s873] %v912
          %v914 = vld [vmem:[%s880 + $0x40] sm:%s873]
          %915 = vst [vmem:[%s881 + $0x40] sm:%s873] %v914
          %v916 = vld [vmem:[%s880 + $0x60] sm:%s873]
          %917 = vst [vmem:[%s881 + $0x44] sm:%s873] %v916
          %v918 = vld [vmem:[%s880 + $0x44] sm:%s873]
          %919 = vst [vmem:[%s881 + $0x48] sm:%s873] %v918
          %v920 = vld [vmem:[%s880 + $0x64] sm:%s873]
          %921 = vst [vmem:[%s881 + $0x4c] sm:%s873] %v920
          %v922 = vld [vmem:[%s880 + $0x48] sm:%s873]
          %923 = vst [vmem:[%s881 + $0x50] sm:%s873] %v922
          %v924 = vld [vmem:[%s880 + $0x68] sm:%s873]
          %925 = vst [vmem:[%s881 + $0x54] sm:%s873] %v924
          %v926 = vld [vmem:[%s880 + $0x4c] sm:%s873]
          %927 = vst [vmem:[%s881 + $0x58] sm:%s873] %v926
          %v928 = vld [vmem:[%s880 + $0x6c] sm:%s873]
          %929 = vst [vmem:[%s881 + $0x5c] sm:%s873] %v928
          %v930 = vld [vmem:[%s880 + $0x50] sm:%s873]
          %931 = vst [vmem:[%s881 + $0x60] sm:%s873] %v930
          %v932 = vld [vmem:[%s880 + $0x70] sm:%s873]
          %933 = vst [vmem:[%s881 + $0x64] sm:%s873] %v932
          %v934 = vld [vmem:[%s880 + $0x54] sm:%s873]
          %935 = vst [vmem:[%s881 + $0x68] sm:%s873] %v934
          %v936 = vld [vmem:[%s880 + $0x74] sm:%s873]
          %937 = vst [vmem:[%s881 + $0x6c] sm:%s873] %v936
          %v938 = vld [vmem:[%s880 + $0x58] sm:%s873]
          %939 = vst [vmem:[%s881 + $0x70] sm:%s873] %v938
          %v940 = vld [vmem:[%s880 + $0x78] sm:%s873]
          %941 = vst [vmem:[%s881 + $0x74] sm:%s873] %v940
          %v942 = vld [vmem:[%s880 + $0x5c] sm:%s873]
          %943 = vst [vmem:[%s881 + $0x78] sm:%s873] %v942
          %v944 = vld [vmem:[%s880 + $0x7c] sm:%s873]
          %945 = vst [vmem:[%s881 + $0x7c] sm:%s873] %v944
          %v946 = vld [vmem:[%s880 + $0x80] sm:%s873]
          %947 = vst [vmem:[%s881 + $0x80] sm:%s873] %v946
          %v948 = vld [vmem:[%s880 + $0xa0] sm:%s873]
          %949 = vst [vmem:[%s881 + $0x84] sm:%s873] %v948
          %v950 = vld [vmem:[%s880 + $0x84] sm:%s873]
          %951 = vst [vmem:[%s881 + $0x88] sm:%s873] %v950
          %v952 = vld [vmem:[%s880 + $0xa4] sm:%s873]
          %953 = vst [vmem:[%s881 + $0x8c] sm:%s873] %v952
          %v954 = vld [vmem:[%s880 + $0x88] sm:%s873]
          %955 = vst [vmem:[%s881 + $0x90] sm:%s873] %v954
          %v956 = vld [vmem:[%s880 + $0xa8] sm:%s873]
          %957 = vst [vmem:[%s881 + $0x94] sm:%s873] %v956
          %v958 = vld [vmem:[%s880 + $0x8c] sm:%s873]
          %959 = vst [vmem:[%s881 + $0x98] sm:%s873] %v958
          %v960 = vld [vmem:[%s880 + $0xac] sm:%s873]
          %961 = vst [vmem:[%s881 + $0x9c] sm:%s873] %v960
          %v962 = vld [vmem:[%s880 + $0x90] sm:%s873]
          %963 = vst [vmem:[%s881 + $0xa0] sm:%s873] %v962
          %v964 = vld [vmem:[%s880 + $0xb0] sm:%s873]
          %965 = vst [vmem:[%s881 + $0xa4] sm:%s873] %v964
          %v966 = vld [vmem:[%s880 + $0x94] sm:%s873]
          %967 = vst [vmem:[%s881 + $0xa8] sm:%s873] %v966
          %v968 = vld [vmem:[%s880 + $0xb4] sm:%s873]
          %969 = vst [vmem:[%s881 + $0xac] sm:%s873] %v968
          %v970 = vld [vmem:[%s880 + $0x98] sm:%s873]
          %971 = vst [vmem:[%s881 + $0xb0] sm:%s873] %v970
          %v972 = vld [vmem:[%s880 + $0xb8] sm:%s873]
          %973 = vst [vmem:[%s881 + $0xb4] sm:%s873] %v972
          %v974 = vld [vmem:[%s880 + $0x9c] sm:%s873]
          %975 = vst [vmem:[%s881 + $0xb8] sm:%s873] %v974
          %v976 = vld [vmem:[%s880 + $0xbc] sm:%s873]
          %977 = vst [vmem:[%s881 + $0xbc] sm:%s873] %v976
          %v978 = vld [vmem:[%s880 + $0xc0] sm:%s873]
          %979 = vst [vmem:[%s881 + $0xc0] sm:%s873] %v978
          %v980 = vld [vmem:[%s880 + $0xe0] sm:%s873]
          %981 = vst [vmem:[%s881 + $0xc4] sm:%s873] %v980
          %v982 = vld [vmem:[%s880 + $0xc4] sm:%s873]
          %983 = vst [vmem:[%s881 + $0xc8] sm:%s873] %v982
          %v984 = vld [vmem:[%s880 + $0xe4] sm:%s873]
          %985 = vst [vmem:[%s881 + $0xcc] sm:%s873] %v984
          %v986 = vld [vmem:[%s880 + $0xc8] sm:%s873]
          %987 = vst [vmem:[%s881 + $0xd0] sm:%s873] %v986
          %v988 = vld [vmem:[%s880 + $0xe8] sm:%s873]
          %989 = vst [vmem:[%s881 + $0xd4] sm:%s873] %v988
          %v990 = vld [vmem:[%s880 + $0xcc] sm:%s873]
          %991 = vst [vmem:[%s881 + $0xd8] sm:%s873] %v990
          %v992 = vld [vmem:[%s880 + $0xec] sm:%s873]
          %993 = vst [vmem:[%s881 + $0xdc] sm:%s873] %v992
          %v994 = vld [vmem:[%s880 + $0xd0] sm:%s873]
          %995 = vst [vmem:[%s881 + $0xe0] sm:%s873] %v994
          %v996 = vld [vmem:[%s880 + $0xf0] sm:%s873]
          %997 = vst [vmem:[%s881 + $0xe4] sm:%s873] %v996
          %v998 = vld [vmem:[%s880 + $0xd4] sm:%s873]
          %999 = vst [vmem:[%s881 + $0xe8] sm:%s873] %v998
          %v1000 = vld [vmem:[%s880 + $0xf4] sm:%s873]
          %1001 = vst [vmem:[%s881 + $0xec] sm:%s873] %v1000
          %v1002 = vld [vmem:[%s880 + $0xd8] sm:%s873]
          %1003 = vst [vmem:[%s881 + $0xf0] sm:%s873] %v1002
          %v1004 = vld [vmem:[%s880 + $0xf8] sm:%s873]
          %1005 = vst [vmem:[%s881 + $0xf4] sm:%s873] %v1004
          %v1006 = vld [vmem:[%s880 + $0xdc] sm:%s873]
          %1007 = vst [vmem:[%s881 + $0xf8] sm:%s873] %v1006
          %v1008 = vld [vmem:[%s880 + $0xfc] sm:%s873]
          %1009 = vst [vmem:[%s881 + $0xfc] sm:%s873] %v1008
          %v1010 = vld [vmem:[%s880 + $0x100] sm:%s873]
          %1011 = vst [vmem:[%s881 + $0x100] sm:%s873] %v1010
          %v1012 = vld [vmem:[%s880 + $0x120] sm:%s873]
          %1013 = vst [vmem:[%s881 + $0x104] sm:%s873] %v1012
          %v1014 = vld [vmem:[%s880 + $0x104] sm:%s873]
          %1015 = vst [vmem:[%s881 + $0x108] sm:%s873] %v1014
          %v1016 = vld [vmem:[%s880 + $0x124] sm:%s873]
          %1017 = vst [vmem:[%s881 + $0x10c] sm:%s873] %v1016
          %v1018 = vld [vmem:[%s880 + $0x108] sm:%s873]
          %1019 = vst [vmem:[%s881 + $0x110] sm:%s873] %v1018
          %v1020 = vld [vmem:[%s880 + $0x128] sm:%s873]
          %1021 = vst [vmem:[%s881 + $0x114] sm:%s873] %v1020
          %v1022 = vld [vmem:[%s880 + $0x10c] sm:%s873]
          %1023 = vst [vmem:[%s881 + $0x118] sm:%s873] %v1022
          %v1024 = vld [vmem:[%s880 + $0x12c] sm:%s873]
          %1025 = vst [vmem:[%s881 + $0x11c] sm:%s873] %v1024
          %v1026 = vld [vmem:[%s880 + $0x110] sm:%s873]
          %1027 = vst [vmem:[%s881 + $0x120] sm:%s873] %v1026
          %v1028 = vld [vmem:[%s880 + $0x130] sm:%s873]
          %1029 = vst [vmem:[%s881 + $0x124] sm:%s873] %v1028
          %v1030 = vld [vmem:[%s880 + $0x114] sm:%s873]
          %1031 = vst [vmem:[%s881 + $0x128] sm:%s873] %v1030
          %v1032 = vld [vmem:[%s880 + $0x134] sm:%s873]
          %1033 = vst [vmem:[%s881 + $0x12c] sm:%s873] %v1032
          %v1034 = vld [vmem:[%s880 + $0x118] sm:%s873]
          %1035 = vst [vmem:[%s881 + $0x130] sm:%s873] %v1034
          %v1036 = vld [vmem:[%s880 + $0x138] sm:%s873]
          %1037 = vst [vmem:[%s881 + $0x134] sm:%s873] %v1036
          %v1038 = vld [vmem:[%s880 + $0x11c] sm:%s873]
          %1039 = vst [vmem:[%s881 + $0x138] sm:%s873] %v1038
          %v1040 = vld [vmem:[%s880 + $0x13c] sm:%s873]
          %1041 = vst [vmem:[%s881 + $0x13c] sm:%s873] %v1040
          %v1042 = vld [vmem:[%s880 + $0x140] sm:%s873]
          %1043 = vst [vmem:[%s881 + $0x140] sm:%s873] %v1042
          %v1044 = vld [vmem:[%s880 + $0x160] sm:%s873]
          %1045 = vst [vmem:[%s881 + $0x144] sm:%s873] %v1044
          %v1046 = vld [vmem:[%s880 + $0x144] sm:%s873]
          %1047 = vst [vmem:[%s881 + $0x148] sm:%s873] %v1046
          %v1048 = vld [vmem:[%s880 + $0x164] sm:%s873]
          %1049 = vst [vmem:[%s881 + $0x14c] sm:%s873] %v1048
          %v1050 = vld [vmem:[%s880 + $0x148] sm:%s873]
          %1051 = vst [vmem:[%s881 + $0x150] sm:%s873] %v1050
          %v1052 = vld [vmem:[%s880 + $0x168] sm:%s873]
          %1053 = vst [vmem:[%s881 + $0x154] sm:%s873] %v1052
          %v1054 = vld [vmem:[%s880 + $0x14c] sm:%s873]
          %1055 = vst [vmem:[%s881 + $0x158] sm:%s873] %v1054
          %v1056 = vld [vmem:[%s880 + $0x16c] sm:%s873]
          %1057 = vst [vmem:[%s881 + $0x15c] sm:%s873] %v1056
          %v1058 = vld [vmem:[%s880 + $0x150] sm:%s873]
          %1059 = vst [vmem:[%s881 + $0x160] sm:%s873] %v1058
          %v1060 = vld [vmem:[%s880 + $0x170] sm:%s873]
          %1061 = vst [vmem:[%s881 + $0x164] sm:%s873] %v1060
          %v1062 = vld [vmem:[%s880 + $0x154] sm:%s873]
          %1063 = vst [vmem:[%s881 + $0x168] sm:%s873] %v1062
          %v1064 = vld [vmem:[%s880 + $0x174] sm:%s873]
          %1065 = vst [vmem:[%s881 + $0x16c] sm:%s873] %v1064
          %v1066 = vld [vmem:[%s880 + $0x158] sm:%s873]
          %1067 = vst [vmem:[%s881 + $0x170] sm:%s873] %v1066
          %v1068 = vld [vmem:[%s880 + $0x178] sm:%s873]
          %1069 = vst [vmem:[%s881 + $0x174] sm:%s873] %v1068
          %v1070 = vld [vmem:[%s880 + $0x15c] sm:%s873]
          %1071 = vst [vmem:[%s881 + $0x178] sm:%s873] %v1070
          %v1072 = vld [vmem:[%s880 + $0x17c] sm:%s873]
          %1073 = vst [vmem:[%s881 + $0x17c] sm:%s873] %v1072
          %v1074 = vld [vmem:[%s880 + $0x180] sm:%s873]
          %1075 = vst [vmem:[%s881 + $0x180] sm:%s873] %v1074
          %v1076 = vld [vmem:[%s880 + $0x1a0] sm:%s873]
          %1077 = vst [vmem:[%s881 + $0x184] sm:%s873] %v1076
          %v1078 = vld [vmem:[%s880 + $0x184] sm:%s873]
          %1079 = vst [vmem:[%s881 + $0x188] sm:%s873] %v1078
          %v1080 = vld [vmem:[%s880 + $0x1a4] sm:%s873]
          %1081 = vst [vmem:[%s881 + $0x18c] sm:%s873] %v1080
          %v1082 = vld [vmem:[%s880 + $0x188] sm:%s873]
          %1083 = vst [vmem:[%s881 + $0x190] sm:%s873] %v1082
          %v1084 = vld [vmem:[%s880 + $0x1a8] sm:%s873]
          %1085 = vst [vmem:[%s881 + $0x194] sm:%s873] %v1084
          %v1086 = vld [vmem:[%s880 + $0x18c] sm:%s873]
          %1087 = vst [vmem:[%s881 + $0x198] sm:%s873] %v1086
          %v1088 = vld [vmem:[%s880 + $0x1ac] sm:%s873]
          %1089 = vst [vmem:[%s881 + $0x19c] sm:%s873] %v1088
          %v1090 = vld [vmem:[%s880 + $0x190] sm:%s873]
          %1091 = vst [vmem:[%s881 + $0x1a0] sm:%s873] %v1090
          %v1092 = vld [vmem:[%s880 + $0x1b0] sm:%s873]
          %1093 = vst [vmem:[%s881 + $0x1a4] sm:%s873] %v1092
          %v1094 = vld [vmem:[%s880 + $0x194] sm:%s873]
          %1095 = vst [vmem:[%s881 + $0x1a8] sm:%s873] %v1094
          %v1096 = vld [vmem:[%s880 + $0x1b4] sm:%s873]
          %1097 = vst [vmem:[%s881 + $0x1ac] sm:%s873] %v1096
          %v1098 = vld [vmem:[%s880 + $0x198] sm:%s873]
          %1099 = vst [vmem:[%s881 + $0x1b0] sm:%s873] %v1098
          %v1100 = vld [vmem:[%s880 + $0x1b8] sm:%s873]
          %1101 = vst [vmem:[%s881 + $0x1b4] sm:%s873] %v1100
          %v1102 = vld [vmem:[%s880 + $0x19c] sm:%s873]
          %1103 = vst [vmem:[%s881 + $0x1b8] sm:%s873] %v1102
          %v1104 = vld [vmem:[%s880 + $0x1bc] sm:%s873]
          %1105 = vst [vmem:[%s881 + $0x1bc] sm:%s873] %v1104
          %v1106 = vld [vmem:[%s880 + $0x1c0] sm:%s873]
          %1107 = vst [vmem:[%s881 + $0x1c0] sm:%s873] %v1106
          %v1108 = vld [vmem:[%s880 + $0x1e0] sm:%s873]
          %1109 = vst [vmem:[%s881 + $0x1c4] sm:%s873] %v1108
          %v1110 = vld [vmem:[%s880 + $0x1c4] sm:%s873]
          %1111 = vst [vmem:[%s881 + $0x1c8] sm:%s873] %v1110
          %v1112 = vld [vmem:[%s880 + $0x1e4] sm:%s873]
          %1113 = vst [vmem:[%s881 + $0x1cc] sm:%s873] %v1112
          %v1114 = vld [vmem:[%s880 + $0x1c8] sm:%s873]
          %1115 = vst [vmem:[%s881 + $0x1d0] sm:%s873] %v1114
          %v1116 = vld [vmem:[%s880 + $0x1e8] sm:%s873]
          %1117 = vst [vmem:[%s881 + $0x1d4] sm:%s873] %v1116
          %v1118 = vld [vmem:[%s880 + $0x1cc] sm:%s873]
          %1119 = vst [vmem:[%s881 + $0x1d8] sm:%s873] %v1118
          %v1120 = vld [vmem:[%s880 + $0x1ec] sm:%s873]
          %1121 = vst [vmem:[%s881 + $0x1dc] sm:%s873] %v1120
          %v1122 = vld [vmem:[%s880 + $0x1d0] sm:%s873]
          %1123 = vst [vmem:[%s881 + $0x1e0] sm:%s873] %v1122
          %v1124 = vld [vmem:[%s880 + $0x1f0] sm:%s873]
          %1125 = vst [vmem:[%s881 + $0x1e4] sm:%s873] %v1124
          %v1126 = vld [vmem:[%s880 + $0x1d4] sm:%s873]
          %1127 = vst [vmem:[%s881 + $0x1e8] sm:%s873] %v1126
          %v1128 = vld [vmem:[%s880 + $0x1f4] sm:%s873]
          %1129 = vst [vmem:[%s881 + $0x1ec] sm:%s873] %v1128
          %v1130 = vld [vmem:[%s880 + $0x1d8] sm:%s873]
          %1131 = vst [vmem:[%s881 + $0x1f0] sm:%s873] %v1130
          %v1132 = vld [vmem:[%s880 + $0x1f8] sm:%s873]
          %1133 = vst [vmem:[%s881 + $0x1f4] sm:%s873] %v1132
          %v1134 = vld [vmem:[%s880 + $0x1dc] sm:%s873]
          %1135 = vst [vmem:[%s881 + $0x1f8] sm:%s873] %v1134
          %v1136 = vld [vmem:[%s880 + $0x1fc] sm:%s873]
          %1137 = vst [vmem:[%s881 + $0x1fc] sm:%s873] %v1136
          %v1138 = vld [vmem:[%s880 + $0x200] sm:%s873]
          %1139 = vst [vmem:[%s881 + $0x200] sm:%s873] %v1138
          %v1140 = vld [vmem:[%s880 + $0x220] sm:%s873]
          %1141 = vst [vmem:[%s881 + $0x204] sm:%s873] %v1140
          %v1142 = vld [vmem:[%s880 + $0x204] sm:%s873]
          %1143 = vst [vmem:[%s881 + $0x208] sm:%s873] %v1142
          %v1144 = vld [vmem:[%s880 + $0x224] sm:%s873]
          %1145 = vst [vmem:[%s881 + $0x20c] sm:%s873] %v1144
          %v1146 = vld [vmem:[%s880 + $0x208] sm:%s873]
          %1147 = vst [vmem:[%s881 + $0x210] sm:%s873] %v1146
          %v1148 = vld [vmem:[%s880 + $0x228] sm:%s873]
          %1149 = vst [vmem:[%s881 + $0x214] sm:%s873] %v1148
          %v1150 = vld [vmem:[%s880 + $0x20c] sm:%s873]
          %1151 = vst [vmem:[%s881 + $0x218] sm:%s873] %v1150
          %v1152 = vld [vmem:[%s880 + $0x22c] sm:%s873]
          %1153 = vst [vmem:[%s881 + $0x21c] sm:%s873] %v1152
          %v1154 = vld [vmem:[%s880 + $0x210] sm:%s873]
          %1155 = vst [vmem:[%s881 + $0x220] sm:%s873] %v1154
          %v1156 = vld [vmem:[%s880 + $0x230] sm:%s873]
          %1157 = vst [vmem:[%s881 + $0x224] sm:%s873] %v1156
          %v1158 = vld [vmem:[%s880 + $0x214] sm:%s873]
          %1159 = vst [vmem:[%s881 + $0x228] sm:%s873] %v1158
          %v1160 = vld [vmem:[%s880 + $0x234] sm:%s873]
          %1161 = vst [vmem:[%s881 + $0x22c] sm:%s873] %v1160
          %v1162 = vld [vmem:[%s880 + $0x218] sm:%s873]
          %1163 = vst [vmem:[%s881 + $0x230] sm:%s873] %v1162
          %v1164 = vld [vmem:[%s880 + $0x238] sm:%s873]
          %1165 = vst [vmem:[%s881 + $0x234] sm:%s873] %v1164
          %v1166 = vld [vmem:[%s880 + $0x21c] sm:%s873]
          %1167 = vst [vmem:[%s881 + $0x238] sm:%s873] %v1166
          %v1168 = vld [vmem:[%s880 + $0x23c] sm:%s873]
          %1169 = vst [vmem:[%s881 + $0x23c] sm:%s873] %v1168
          %v1170 = vld [vmem:[%s880 + $0x240] sm:%s873]
          %1171 = vst [vmem:[%s881 + $0x240] sm:%s873] %v1170
          %v1172 = vld [vmem:[%s880 + $0x260] sm:%s873]
          %1173 = vst [vmem:[%s881 + $0x244] sm:%s873] %v1172
          %v1174 = vld [vmem:[%s880 + $0x244] sm:%s873]
          %1175 = vst [vmem:[%s881 + $0x248] sm:%s873] %v1174
          %v1176 = vld [vmem:[%s880 + $0x264] sm:%s873]
          %1177 = vst [vmem:[%s881 + $0x24c] sm:%s873] %v1176
          %v1178 = vld [vmem:[%s880 + $0x248] sm:%s873]
          %1179 = vst [vmem:[%s881 + $0x250] sm:%s873] %v1178
          %v1180 = vld [vmem:[%s880 + $0x268] sm:%s873]
          %1181 = vst [vmem:[%s881 + $0x254] sm:%s873] %v1180
          %v1182 = vld [vmem:[%s880 + $0x24c] sm:%s873]
          %1183 = vst [vmem:[%s881 + $0x258] sm:%s873] %v1182
          %v1184 = vld [vmem:[%s880 + $0x26c] sm:%s873]
          %1185 = vst [vmem:[%s881 + $0x25c] sm:%s873] %v1184
          %v1186 = vld [vmem:[%s880 + $0x250] sm:%s873]
          %1187 = vst [vmem:[%s881 + $0x260] sm:%s873] %v1186
          %v1188 = vld [vmem:[%s880 + $0x270] sm:%s873]
          %1189 = vst [vmem:[%s881 + $0x264] sm:%s873] %v1188
          %v1190 = vld [vmem:[%s880 + $0x254] sm:%s873]
          %1191 = vst [vmem:[%s881 + $0x268] sm:%s873] %v1190
          %v1192 = vld [vmem:[%s880 + $0x274] sm:%s873]
          %1193 = vst [vmem:[%s881 + $0x26c] sm:%s873] %v1192
          %v1194 = vld [vmem:[%s880 + $0x258] sm:%s873]
          %1195 = vst [vmem:[%s881 + $0x270] sm:%s873] %v1194
          %v1196 = vld [vmem:[%s880 + $0x278] sm:%s873]
          %1197 = vst [vmem:[%s881 + $0x274] sm:%s873] %v1196
          %v1198 = vld [vmem:[%s880 + $0x25c] sm:%s873]
          %1199 = vst [vmem:[%s881 + $0x278] sm:%s873] %v1198
          %v1200 = vld [vmem:[%s880 + $0x27c] sm:%s873]
          %1201 = vst [vmem:[%s881 + $0x27c] sm:%s873] %v1200
          %v1202 = vld [vmem:[%s880 + $0x280] sm:%s873]
          %1203 = vst [vmem:[%s881 + $0x280] sm:%s873] %v1202
          %v1204 = vld [vmem:[%s880 + $0x2a0] sm:%s873]
          %1205 = vst [vmem:[%s881 + $0x284] sm:%s873] %v1204
          %v1206 = vld [vmem:[%s880 + $0x284] sm:%s873]
          %1207 = vst [vmem:[%s881 + $0x288] sm:%s873] %v1206
          %v1208 = vld [vmem:[%s880 + $0x2a4] sm:%s873]
          %1209 = vst [vmem:[%s881 + $0x28c] sm:%s873] %v1208
          %v1210 = vld [vmem:[%s880 + $0x288] sm:%s873]
          %1211 = vst [vmem:[%s881 + $0x290] sm:%s873] %v1210
          %v1212 = vld [vmem:[%s880 + $0x2a8] sm:%s873]
          %1213 = vst [vmem:[%s881 + $0x294] sm:%s873] %v1212
          %v1214 = vld [vmem:[%s880 + $0x28c] sm:%s873]
          %1215 = vst [vmem:[%s881 + $0x298] sm:%s873] %v1214
          %v1216 = vld [vmem:[%s880 + $0x2ac] sm:%s873]
          %1217 = vst [vmem:[%s881 + $0x29c] sm:%s873] %v1216
          %v1218 = vld [vmem:[%s880 + $0x290] sm:%s873]
          %1219 = vst [vmem:[%s881 + $0x2a0] sm:%s873] %v1218
          %v1220 = vld [vmem:[%s880 + $0x2b0] sm:%s873]
          %1221 = vst [vmem:[%s881 + $0x2a4] sm:%s873] %v1220
          %v1222 = vld [vmem:[%s880 + $0x294] sm:%s873]
          %1223 = vst [vmem:[%s881 + $0x2a8] sm:%s873] %v1222
          %v1224 = vld [vmem:[%s880 + $0x2b4] sm:%s873]
          %1225 = vst [vmem:[%s881 + $0x2ac] sm:%s873] %v1224
          %v1226 = vld [vmem:[%s880 + $0x298] sm:%s873]
          %1227 = vst [vmem:[%s881 + $0x2b0] sm:%s873] %v1226
          %v1228 = vld [vmem:[%s880 + $0x2b8] sm:%s873]
          %1229 = vst [vmem:[%s881 + $0x2b4] sm:%s873] %v1228
          %v1230 = vld [vmem:[%s880 + $0x29c] sm:%s873]
          %1231 = vst [vmem:[%s881 + $0x2b8] sm:%s873] %v1230
          %v1232 = vld [vmem:[%s880 + $0x2bc] sm:%s873]
          %1233 = vst [vmem:[%s881 + $0x2bc] sm:%s873] %v1232
          %v1234 = vld [vmem:[%s880 + $0x2c0] sm:%s873]
          %1235 = vst [vmem:[%s881 + $0x2c0] sm:%s873] %v1234
          %v1236 = vld [vmem:[%s880 + $0x2e0] sm:%s873]
          %1237 = vst [vmem:[%s881 + $0x2c4] sm:%s873] %v1236
          %v1238 = vld [vmem:[%s880 + $0x2c4] sm:%s873]
          %1239 = vst [vmem:[%s881 + $0x2c8] sm:%s873] %v1238
          %v1240 = vld [vmem:[%s880 + $0x2e4] sm:%s873]
          %1241 = vst [vmem:[%s881 + $0x2cc] sm:%s873] %v1240
          %v1242 = vld [vmem:[%s880 + $0x2c8] sm:%s873]
          %1243 = vst [vmem:[%s881 + $0x2d0] sm:%s873] %v1242
          %v1244 = vld [vmem:[%s880 + $0x2e8] sm:%s873]
          %1245 = vst [vmem:[%s881 + $0x2d4] sm:%s873] %v1244
          %v1246 = vld [vmem:[%s880 + $0x2cc] sm:%s873]
          %1247 = vst [vmem:[%s881 + $0x2d8] sm:%s873] %v1246
          %v1248 = vld [vmem:[%s880 + $0x2ec] sm:%s873]
          %1249 = vst [vmem:[%s881 + $0x2dc] sm:%s873] %v1248
          %v1250 = vld [vmem:[%s880 + $0x2d0] sm:%s873]
          %1251 = vst [vmem:[%s881 + $0x2e0] sm:%s873] %v1250
          %v1252 = vld [vmem:[%s880 + $0x2f0] sm:%s873]
          %1253 = vst [vmem:[%s881 + $0x2e4] sm:%s873] %v1252
          %v1254 = vld [vmem:[%s880 + $0x2d4] sm:%s873]
          %1255 = vst [vmem:[%s881 + $0x2e8] sm:%s873] %v1254
          %v1256 = vld [vmem:[%s880 + $0x2f4] sm:%s873]
          %1257 = vst [vmem:[%s881 + $0x2ec] sm:%s873] %v1256
          %v1258 = vld [vmem:[%s880 + $0x2d8] sm:%s873]
          %1259 = vst [vmem:[%s881 + $0x2f0] sm:%s873] %v1258
          %v1260 = vld [vmem:[%s880 + $0x2f8] sm:%s873]
          %1261 = vst [vmem:[%s881 + $0x2f4] sm:%s873] %v1260
          %v1262 = vld [vmem:[%s880 + $0x2dc] sm:%s873]
          %1263 = vst [vmem:[%s881 + $0x2f8] sm:%s873] %v1262
          %v1264 = vld [vmem:[%s880 + $0x2fc] sm:%s873]
          %1265 = vst [vmem:[%s881 + $0x2fc] sm:%s873] %v1264
          %v1266 = vld [vmem:[%s880 + $0x300] sm:%s873]
          %1267 = vst [vmem:[%s881 + $0x300] sm:%s873] %v1266
          %v1268 = vld [vmem:[%s880 + $0x320] sm:%s873]
          %1269 = vst [vmem:[%s881 + $0x304] sm:%s873] %v1268
          %v1270 = vld [vmem:[%s880 + $0x304] sm:%s873]
          %1271 = vst [vmem:[%s881 + $0x308] sm:%s873] %v1270
          %v1272 = vld [vmem:[%s880 + $0x324] sm:%s873]
          %1273 = vst [vmem:[%s881 + $0x30c] sm:%s873] %v1272
          %v1274 = vld [vmem:[%s880 + $0x308] sm:%s873]
          %1275 = vst [vmem:[%s881 + $0x310] sm:%s873] %v1274
          %v1276 = vld [vmem:[%s880 + $0x328] sm:%s873]
          %1277 = vst [vmem:[%s881 + $0x314] sm:%s873] %v1276
          %v1278 = vld [vmem:[%s880 + $0x30c] sm:%s873]
          %1279 = vst [vmem:[%s881 + $0x318] sm:%s873] %v1278
          %v1280 = vld [vmem:[%s880 + $0x32c] sm:%s873]
          %1281 = vst [vmem:[%s881 + $0x31c] sm:%s873] %v1280
          %v1282 = vld [vmem:[%s880 + $0x310] sm:%s873]
          %1283 = vst [vmem:[%s881 + $0x320] sm:%s873] %v1282
          %v1284 = vld [vmem:[%s880 + $0x330] sm:%s873]
          %1285 = vst [vmem:[%s881 + $0x324] sm:%s873] %v1284
          %v1286 = vld [vmem:[%s880 + $0x314] sm:%s873]
          %1287 = vst [vmem:[%s881 + $0x328] sm:%s873] %v1286
          %v1288 = vld [vmem:[%s880 + $0x334] sm:%s873]
          %1289 = vst [vmem:[%s881 + $0x32c] sm:%s873] %v1288
          %v1290 = vld [vmem:[%s880 + $0x318] sm:%s873]
          %1291 = vst [vmem:[%s881 + $0x330] sm:%s873] %v1290
          %v1292 = vld [vmem:[%s880 + $0x338] sm:%s873]
          %1293 = vst [vmem:[%s881 + $0x334] sm:%s873] %v1292
          %v1294 = vld [vmem:[%s880 + $0x31c] sm:%s873]
          %1295 = vst [vmem:[%s881 + $0x338] sm:%s873] %v1294
          %v1296 = vld [vmem:[%s880 + $0x33c] sm:%s873]
          %1297 = vst [vmem:[%s881 + $0x33c] sm:%s873] %v1296
          %v1298 = vld [vmem:[%s880 + $0x340] sm:%s873]
          %1299 = vst [vmem:[%s881 + $0x340] sm:%s873] %v1298
          %v1300 = vld [vmem:[%s880 + $0x360] sm:%s873]
          %1301 = vst [vmem:[%s881 + $0x344] sm:%s873] %v1300
          %v1302 = vld [vmem:[%s880 + $0x344] sm:%s873]
          %1303 = vst [vmem:[%s881 + $0x348] sm:%s873] %v1302
          %v1304 = vld [vmem:[%s880 + $0x364] sm:%s873]
          %1305 = vst [vmem:[%s881 + $0x34c] sm:%s873] %v1304
          %v1306 = vld [vmem:[%s880 + $0x348] sm:%s873]
          %1307 = vst [vmem:[%s881 + $0x350] sm:%s873] %v1306
          %v1308 = vld [vmem:[%s880 + $0x368] sm:%s873]
          %1309 = vst [vmem:[%s881 + $0x354] sm:%s873] %v1308
          %v1310 = vld [vmem:[%s880 + $0x34c] sm:%s873]
          %1311 = vst [vmem:[%s881 + $0x358] sm:%s873] %v1310
          %v1312 = vld [vmem:[%s880 + $0x36c] sm:%s873]
          %1313 = vst [vmem:[%s881 + $0x35c] sm:%s873] %v1312
          %v1314 = vld [vmem:[%s880 + $0x350] sm:%s873]
          %1315 = vst [vmem:[%s881 + $0x360] sm:%s873] %v1314
          %v1316 = vld [vmem:[%s880 + $0x370] sm:%s873]
          %1317 = vst [vmem:[%s881 + $0x364] sm:%s873] %v1316
          %v1318 = vld [vmem:[%s880 + $0x354] sm:%s873]
          %1319 = vst [vmem:[%s881 + $0x368] sm:%s873] %v1318
          %v1320 = vld [vmem:[%s880 + $0x374] sm:%s873]
          %1321 = vst [vmem:[%s881 + $0x36c] sm:%s873] %v1320
          %v1322 = vld [vmem:[%s880 + $0x358] sm:%s873]
          %1323 = vst [vmem:[%s881 + $0x370] sm:%s873] %v1322
          %v1324 = vld [vmem:[%s880 + $0x378] sm:%s873]
          %1325 = vst [vmem:[%s881 + $0x374] sm:%s873] %v1324
          %v1326 = vld [vmem:[%s880 + $0x35c] sm:%s873]
          %1327 = vst [vmem:[%s881 + $0x378] sm:%s873] %v1326
          %v1328 = vld [vmem:[%s880 + $0x37c] sm:%s873]
          %1329 = vst [vmem:[%s881 + $0x37c] sm:%s873] %v1328
          %v1330 = vld [vmem:[%s880 + $0x380] sm:%s873]
          %1331 = vst [vmem:[%s881 + $0x380] sm:%s873] %v1330
          %v1332 = vld [vmem:[%s880 + $0x3a0] sm:%s873]
          %1333 = vst [vmem:[%s881 + $0x384] sm:%s873] %v1332
          %v1334 = vld [vmem:[%s880 + $0x384] sm:%s873]
          %1335 = vst [vmem:[%s881 + $0x388] sm:%s873] %v1334
          %v1336 = vld [vmem:[%s880 + $0x3a4] sm:%s873]
          %1337 = vst [vmem:[%s881 + $0x38c] sm:%s873] %v1336
          %v1338 = vld [vmem:[%s880 + $0x388] sm:%s873]
          %1339 = vst [vmem:[%s881 + $0x390] sm:%s873] %v1338
          %v1340 = vld [vmem:[%s880 + $0x3a8] sm:%s873]
          %1341 = vst [vmem:[%s881 + $0x394] sm:%s873] %v1340
          %v1342 = vld [vmem:[%s880 + $0x38c] sm:%s873]
          %1343 = vst [vmem:[%s881 + $0x398] sm:%s873] %v1342
          %v1344 = vld [vmem:[%s880 + $0x3ac] sm:%s873]
          %1345 = vst [vmem:[%s881 + $0x39c] sm:%s873] %v1344
          %v1346 = vld [vmem:[%s880 + $0x390] sm:%s873]
          %1347 = vst [vmem:[%s881 + $0x3a0] sm:%s873] %v1346
          %v1348 = vld [vmem:[%s880 + $0x3b0] sm:%s873]
          %1349 = vst [vmem:[%s881 + $0x3a4] sm:%s873] %v1348
          %v1350 = vld [vmem:[%s880 + $0x394] sm:%s873]
          %1351 = vst [vmem:[%s881 + $0x3a8] sm:%s873] %v1350
          %v1352 = vld [vmem:[%s880 + $0x3b4] sm:%s873]
          %1353 = vst [vmem:[%s881 + $0x3ac] sm:%s873] %v1352
          %v1354 = vld [vmem:[%s880 + $0x398] sm:%s873]
          %1355 = vst [vmem:[%s881 + $0x3b0] sm:%s873] %v1354
          %v1356 = vld [vmem:[%s880 + $0x3b8] sm:%s873]
          %1357 = vst [vmem:[%s881 + $0x3b4] sm:%s873] %v1356
          %v1358 = vld [vmem:[%s880 + $0x39c] sm:%s873]
          %1359 = vst [vmem:[%s881 + $0x3b8] sm:%s873] %v1358
          %v1360 = vld [vmem:[%s880 + $0x3bc] sm:%s873]
          %1361 = vst [vmem:[%s881 + $0x3bc] sm:%s873] %v1360
          %v1362 = vld [vmem:[%s880 + $0x3c0] sm:%s873]
          %1363 = vst [vmem:[%s881 + $0x3c0] sm:%s873] %v1362
          %v1364 = vld [vmem:[%s880 + $0x3e0] sm:%s873]
          %1365 = vst [vmem:[%s881 + $0x3c4] sm:%s873] %v1364
          %v1366 = vld [vmem:[%s880 + $0x3c4] sm:%s873]
          %1367 = vst [vmem:[%s881 + $0x3c8] sm:%s873] %v1366
          %v1368 = vld [vmem:[%s880 + $0x3e4] sm:%s873]
          %1369 = vst [vmem:[%s881 + $0x3cc] sm:%s873] %v1368
          %v1370 = vld [vmem:[%s880 + $0x3c8] sm:%s873]
          %1371 = vst [vmem:[%s881 + $0x3d0] sm:%s873] %v1370
          %v1372 = vld [vmem:[%s880 + $0x3e8] sm:%s873]
          %1373 = vst [vmem:[%s881 + $0x3d4] sm:%s873] %v1372
          %v1374 = vld [vmem:[%s880 + $0x3cc] sm:%s873]
          %1375 = vst [vmem:[%s881 + $0x3d8] sm:%s873] %v1374
          %v1376 = vld [vmem:[%s880 + $0x3ec] sm:%s873]
          %1377 = vst [vmem:[%s881 + $0x3dc] sm:%s873] %v1376
          %v1378 = vld [vmem:[%s880 + $0x3d0] sm:%s873]
          %1379 = vst [vmem:[%s881 + $0x3e0] sm:%s873] %v1378
          %v1380 = vld [vmem:[%s880 + $0x3f0] sm:%s873]
          %1381 = vst [vmem:[%s881 + $0x3e4] sm:%s873] %v1380
          %v1382 = vld [vmem:[%s880 + $0x3d4] sm:%s873]
          %1383 = vst [vmem:[%s881 + $0x3e8] sm:%s873] %v1382
          %v1384 = vld [vmem:[%s880 + $0x3f4] sm:%s873]
          %1385 = vst [vmem:[%s881 + $0x3ec] sm:%s873] %v1384
          %v1386 = vld [vmem:[%s880 + $0x3d8] sm:%s873]
          %1387 = vst [vmem:[%s881 + $0x3f0] sm:%s873] %v1386
          %v1388 = vld [vmem:[%s880 + $0x3f8] sm:%s873]
          %1389 = vst [vmem:[%s881 + $0x3f4] sm:%s873] %v1388
          %v1390 = vld [vmem:[%s880 + $0x3dc] sm:%s873]
          %1391 = vst [vmem:[%s881 + $0x3f8] sm:%s873] %v1390
          %v1392 = vld [vmem:[%s880 + $0x3fc] sm:%s873]
          %1393 = vst [vmem:[%s881 + $0x3fc] sm:%s873] %v1392
        $region288: #{sam_forward.1} parent=275 // loop_footer
          %s879 = sadd.s32 1, %s875
        $region289: #{sam_forward.1} parent=275 // loop_footer_branch
          %874 = sbr.rel target = $region285
        $region290: #{sam_forward.1} parent=275 // loop_exit
          _
      $region276: #{sam_forward.1} parent=260 // pred_fallthru
        _
    $region261: #{sam_forward.1} parent=1 // pred_fallthru
      _
    // Predicated region
    $region262: #{sam_forward.1} parent=1 // pred_check
      %p331 = pneg %p327
    $region263: #{sam_forward.1} parent=1 // pred_check_branch
      %333 = sbr.rel (%p331) target = $region265
    $region264: #{sam_forward.1} parent=1 // pred_region
      %s334 = sshllo.u32 0, 4
      loop: start=0, step=1, limit=1
      $region266: #{sam_forward.1} parent=264 // loop_pre_header
        _
      $region267: #{sam_forward.1} parent=264 // loop_header
        %s336 = sphi 0, %s340
        %p337 = scmp.ge.s32.totalorder %s336, 1
        %s341 = sphi %s113, %s113
        %s342 = sphi [#allocation2], [#allocation2]
      $region268: #{sam_forward.1} parent=264 // loop_header_branch
        %339 = sbr.rel (%p337) target = $region272
      $region269: #{sam_forward.1} parent=264 // loop_body
        %v343 = vld [vmem:[%s341] sm:%s334]
        %344 = vst [vmem:[%s342] sm:%s334] %v343
        %v345 = vld [vmem:[%s341 + $0x20] sm:%s334]
        %346 = vst [vmem:[%s342 + $0x4] sm:%s334] %v345
        %v347 = vld [vmem:[%s341 + $0x4] sm:%s334]
        %348 = vst [vmem:[%s342 + $0x8] sm:%s334] %v347
        %v349 = vld [vmem:[%s341 + $0x24] sm:%s334]
        %350 = vst [vmem:[%s342 + $0xc] sm:%s334] %v349
        %v351 = vld [vmem:[%s341 + $0x8] sm:%s334]
        %352 = vst [vmem:[%s342 + $0x10] sm:%s334] %v351
        %v353 = vld [vmem:[%s341 + $0x28] sm:%s334]
        %354 = vst [vmem:[%s342 + $0x14] sm:%s334] %v353
        %v355 = vld [vmem:[%s341 + $0xc] sm:%s334]
        %356 = vst [vmem:[%s342 + $0x18] sm:%s334] %v355
        %v357 = vld [vmem:[%s341 + $0x2c] sm:%s334]
        %358 = vst [vmem:[%s342 + $0x1c] sm:%s334] %v357
        %v359 = vld [vmem:[%s341 + $0x10] sm:%s334]
        %360 = vst [vmem:[%s342 + $0x20] sm:%s334] %v359
        %v361 = vld [vmem:[%s341 + $0x30] sm:%s334]
        %362 = vst [vmem:[%s342 + $0x24] sm:%s334] %v361
        %v363 = vld [vmem:[%s341 + $0x14] sm:%s334]
        %364 = vst [vmem:[%s342 + $0x28] sm:%s334] %v363
        %v365 = vld [vmem:[%s341 + $0x34] sm:%s334]
        %366 = vst [vmem:[%s342 + $0x2c] sm:%s334] %v365
        %v367 = vld [vmem:[%s341 + $0x18] sm:%s334]
        %368 = vst [vmem:[%s342 + $0x30] sm:%s334] %v367
        %v369 = vld [vmem:[%s341 + $0x38] sm:%s334]
        %370 = vst [vmem:[%s342 + $0x34] sm:%s334] %v369
        %v371 = vld [vmem:[%s341 + $0x1c] sm:%s334]
        %372 = vst [vmem:[%s342 + $0x38] sm:%s334] %v371
        %v373 = vld [vmem:[%s341 + $0x3c] sm:%s334]
        %374 = vst [vmem:[%s342 + $0x3c] sm:%s334] %v373
        %v375 = vld [vmem:[%s341 + $0x40] sm:%s334]
        %376 = vst [vmem:[%s342 + $0x40] sm:%s334] %v375
        %v377 = vld [vmem:[%s341 + $0x60] sm:%s334]
        %378 = vst [vmem:[%s342 + $0x44] sm:%s334] %v377
        %v379 = vld [vmem:[%s341 + $0x44] sm:%s334]
        %380 = vst [vmem:[%s342 + $0x48] sm:%s334] %v379
        %v381 = vld [vmem:[%s341 + $0x64] sm:%s334]
        %382 = vst [vmem:[%s342 + $0x4c] sm:%s334] %v381
        %v383 = vld [vmem:[%s341 + $0x48] sm:%s334]
        %384 = vst [vmem:[%s342 + $0x50] sm:%s334] %v383
        %v385 = vld [vmem:[%s341 + $0x68] sm:%s334]
        %386 = vst [vmem:[%s342 + $0x54] sm:%s334] %v385
        %v387 = vld [vmem:[%s341 + $0x4c] sm:%s334]
        %388 = vst [vmem:[%s342 + $0x58] sm:%s334] %v387
        %v389 = vld [vmem:[%s341 + $0x6c] sm:%s334]
        %390 = vst [vmem:[%s342 + $0x5c] sm:%s334] %v389
        %v391 = vld [vmem:[%s341 + $0x50] sm:%s334]
        %392 = vst [vmem:[%s342 + $0x60] sm:%s334] %v391
        %v393 = vld [vmem:[%s341 + $0x70] sm:%s334]
        %394 = vst [vmem:[%s342 + $0x64] sm:%s334] %v393
        %v395 = vld [vmem:[%s341 + $0x54] sm:%s334]
        %396 = vst [vmem:[%s342 + $0x68] sm:%s334] %v395
        %v397 = vld [vmem:[%s341 + $0x74] sm:%s334]
        %398 = vst [vmem:[%s342 + $0x6c] sm:%s334] %v397
        %v399 = vld [vmem:[%s341 + $0x58] sm:%s334]
        %400 = vst [vmem:[%s342 + $0x70] sm:%s334] %v399
        %v401 = vld [vmem:[%s341 + $0x78] sm:%s334]
        %402 = vst [vmem:[%s342 + $0x74] sm:%s334] %v401
        %v403 = vld [vmem:[%s341 + $0x5c] sm:%s334]
        %404 = vst [vmem:[%s342 + $0x78] sm:%s334] %v403
        %v405 = vld [vmem:[%s341 + $0x7c] sm:%s334]
        %406 = vst [vmem:[%s342 + $0x7c] sm:%s334] %v405
        %v407 = vld [vmem:[%s341 + $0x80] sm:%s334]
        %408 = vst [vmem:[%s342 + $0x80] sm:%s334] %v407
        %v409 = vld [vmem:[%s341 + $0xa0] sm:%s334]
        %410 = vst [vmem:[%s342 + $0x84] sm:%s334] %v409
        %v411 = vld [vmem:[%s341 + $0x84] sm:%s334]
        %412 = vst [vmem:[%s342 + $0x88] sm:%s334] %v411
        %v413 = vld [vmem:[%s341 + $0xa4] sm:%s334]
        %414 = vst [vmem:[%s342 + $0x8c] sm:%s334] %v413
        %v415 = vld [vmem:[%s341 + $0x88] sm:%s334]
        %416 = vst [vmem:[%s342 + $0x90] sm:%s334] %v415
        %v417 = vld [vmem:[%s341 + $0xa8] sm:%s334]
        %418 = vst [vmem:[%s342 + $0x94] sm:%s334] %v417
        %v419 = vld [vmem:[%s341 + $0x8c] sm:%s334]
        %420 = vst [vmem:[%s342 + $0x98] sm:%s334] %v419
        %v421 = vld [vmem:[%s341 + $0xac] sm:%s334]
        %422 = vst [vmem:[%s342 + $0x9c] sm:%s334] %v421
        %v423 = vld [vmem:[%s341 + $0x90] sm:%s334]
        %424 = vst [vmem:[%s342 + $0xa0] sm:%s334] %v423
        %v425 = vld [vmem:[%s341 + $0xb0] sm:%s334]
        %426 = vst [vmem:[%s342 + $0xa4] sm:%s334] %v425
        %v427 = vld [vmem:[%s341 + $0x94] sm:%s334]
        %428 = vst [vmem:[%s342 + $0xa8] sm:%s334] %v427
        %v429 = vld [vmem:[%s341 + $0xb4] sm:%s334]
        %430 = vst [vmem:[%s342 + $0xac] sm:%s334] %v429
        %v431 = vld [vmem:[%s341 + $0x98] sm:%s334]
        %432 = vst [vmem:[%s342 + $0xb0] sm:%s334] %v431
        %v433 = vld [vmem:[%s341 + $0xb8] sm:%s334]
        %434 = vst [vmem:[%s342 + $0xb4] sm:%s334] %v433
        %v435 = vld [vmem:[%s341 + $0x9c] sm:%s334]
        %436 = vst [vmem:[%s342 + $0xb8] sm:%s334] %v435
        %v437 = vld [vmem:[%s341 + $0xbc] sm:%s334]
        %438 = vst [vmem:[%s342 + $0xbc] sm:%s334] %v437
        %v439 = vld [vmem:[%s341 + $0xc0] sm:%s334]
        %440 = vst [vmem:[%s342 + $0xc0] sm:%s334] %v439
        %v441 = vld [vmem:[%s341 + $0xe0] sm:%s334]
        %442 = vst [vmem:[%s342 + $0xc4] sm:%s334] %v441
        %v443 = vld [vmem:[%s341 + $0xc4] sm:%s334]
        %444 = vst [vmem:[%s342 + $0xc8] sm:%s334] %v443
        %v445 = vld [vmem:[%s341 + $0xe4] sm:%s334]
        %446 = vst [vmem:[%s342 + $0xcc] sm:%s334] %v445
        %v447 = vld [vmem:[%s341 + $0xc8] sm:%s334]
        %448 = vst [vmem:[%s342 + $0xd0] sm:%s334] %v447
        %v449 = vld [vmem:[%s341 + $0xe8] sm:%s334]
        %450 = vst [vmem:[%s342 + $0xd4] sm:%s334] %v449
        %v451 = vld [vmem:[%s341 + $0xcc] sm:%s334]
        %452 = vst [vmem:[%s342 + $0xd8] sm:%s334] %v451
        %v453 = vld [vmem:[%s341 + $0xec] sm:%s334]
        %454 = vst [vmem:[%s342 + $0xdc] sm:%s334] %v453
        %v455 = vld [vmem:[%s341 + $0xd0] sm:%s334]
        %456 = vst [vmem:[%s342 + $0xe0] sm:%s334] %v455
        %v457 = vld [vmem:[%s341 + $0xf0] sm:%s334]
        %458 = vst [vmem:[%s342 + $0xe4] sm:%s334] %v457
        %v459 = vld [vmem:[%s341 + $0xd4] sm:%s334]
        %460 = vst [vmem:[%s342 + $0xe8] sm:%s334] %v459
        %v461 = vld [vmem:[%s341 + $0xf4] sm:%s334]
        %462 = vst [vmem:[%s342 + $0xec] sm:%s334] %v461
        %v463 = vld [vmem:[%s341 + $0xd8] sm:%s334]
        %464 = vst [vmem:[%s342 + $0xf0] sm:%s334] %v463
        %v465 = vld [vmem:[%s341 + $0xf8] sm:%s334]
        %466 = vst [vmem:[%s342 + $0xf4] sm:%s334] %v465
        %v467 = vld [vmem:[%s341 + $0xdc] sm:%s334]
        %468 = vst [vmem:[%s342 + $0xf8] sm:%s334] %v467
        %v469 = vld [vmem:[%s341 + $0xfc] sm:%s334]
        %470 = vst [vmem:[%s342 + $0xfc] sm:%s334] %v469
        %v471 = vld [vmem:[%s341 + $0x100] sm:%s334]
        %472 = vst [vmem:[%s342 + $0x100] sm:%s334] %v471
        %v473 = vld [vmem:[%s341 + $0x120] sm:%s334]
        %474 = vst [vmem:[%s342 + $0x104] sm:%s334] %v473
        %v475 = vld [vmem:[%s341 + $0x104] sm:%s334]
        %476 = vst [vmem:[%s342 + $0x108] sm:%s334] %v475
        %v477 = vld [vmem:[%s341 + $0x124] sm:%s334]
        %478 = vst [vmem:[%s342 + $0x10c] sm:%s334] %v477
        %v479 = vld [vmem:[%s341 + $0x108] sm:%s334]
        %480 = vst [vmem:[%s342 + $0x110] sm:%s334] %v479
        %v481 = vld [vmem:[%s341 + $0x128] sm:%s334]
        %482 = vst [vmem:[%s342 + $0x114] sm:%s334] %v481
        %v483 = vld [vmem:[%s341 + $0x10c] sm:%s334]
        %484 = vst [vmem:[%s342 + $0x118] sm:%s334] %v483
        %v485 = vld [vmem:[%s341 + $0x12c] sm:%s334]
        %486 = vst [vmem:[%s342 + $0x11c] sm:%s334] %v485
        %v487 = vld [vmem:[%s341 + $0x110] sm:%s334]
        %488 = vst [vmem:[%s342 + $0x120] sm:%s334] %v487
        %v489 = vld [vmem:[%s341 + $0x130] sm:%s334]
        %490 = vst [vmem:[%s342 + $0x124] sm:%s334] %v489
        %v491 = vld [vmem:[%s341 + $0x114] sm:%s334]
        %492 = vst [vmem:[%s342 + $0x128] sm:%s334] %v491
        %v493 = vld [vmem:[%s341 + $0x134] sm:%s334]
        %494 = vst [vmem:[%s342 + $0x12c] sm:%s334] %v493
        %v495 = vld [vmem:[%s341 + $0x118] sm:%s334]
        %496 = vst [vmem:[%s342 + $0x130] sm:%s334] %v495
        %v497 = vld [vmem:[%s341 + $0x138] sm:%s334]
        %498 = vst [vmem:[%s342 + $0x134] sm:%s334] %v497
        %v499 = vld [vmem:[%s341 + $0x11c] sm:%s334]
        %500 = vst [vmem:[%s342 + $0x138] sm:%s334] %v499
        %v501 = vld [vmem:[%s341 + $0x13c] sm:%s334]
        %502 = vst [vmem:[%s342 + $0x13c] sm:%s334] %v501
        %v503 = vld [vmem:[%s341 + $0x140] sm:%s334]
        %504 = vst [vmem:[%s342 + $0x140] sm:%s334] %v503
        %v505 = vld [vmem:[%s341 + $0x160] sm:%s334]
        %506 = vst [vmem:[%s342 + $0x144] sm:%s334] %v505
        %v507 = vld [vmem:[%s341 + $0x144] sm:%s334]
        %508 = vst [vmem:[%s342 + $0x148] sm:%s334] %v507
        %v509 = vld [vmem:[%s341 + $0x164] sm:%s334]
        %510 = vst [vmem:[%s342 + $0x14c] sm:%s334] %v509
        %v511 = vld [vmem:[%s341 + $0x148] sm:%s334]
        %512 = vst [vmem:[%s342 + $0x150] sm:%s334] %v511
        %v513 = vld [vmem:[%s341 + $0x168] sm:%s334]
        %514 = vst [vmem:[%s342 + $0x154] sm:%s334] %v513
        %v515 = vld [vmem:[%s341 + $0x14c] sm:%s334]
        %516 = vst [vmem:[%s342 + $0x158] sm:%s334] %v515
        %v517 = vld [vmem:[%s341 + $0x16c] sm:%s334]
        %518 = vst [vmem:[%s342 + $0x15c] sm:%s334] %v517
        %v519 = vld [vmem:[%s341 + $0x150] sm:%s334]
        %520 = vst [vmem:[%s342 + $0x160] sm:%s334] %v519
        %v521 = vld [vmem:[%s341 + $0x170] sm:%s334]
        %522 = vst [vmem:[%s342 + $0x164] sm:%s334] %v521
        %v523 = vld [vmem:[%s341 + $0x154] sm:%s334]
        %524 = vst [vmem:[%s342 + $0x168] sm:%s334] %v523
        %v525 = vld [vmem:[%s341 + $0x174] sm:%s334]
        %526 = vst [vmem:[%s342 + $0x16c] sm:%s334] %v525
        %v527 = vld [vmem:[%s341 + $0x158] sm:%s334]
        %528 = vst [vmem:[%s342 + $0x170] sm:%s334] %v527
        %v529 = vld [vmem:[%s341 + $0x178] sm:%s334]
        %530 = vst [vmem:[%s342 + $0x174] sm:%s334] %v529
        %v531 = vld [vmem:[%s341 + $0x15c] sm:%s334]
        %532 = vst [vmem:[%s342 + $0x178] sm:%s334] %v531
        %v533 = vld [vmem:[%s341 + $0x17c] sm:%s334]
        %534 = vst [vmem:[%s342 + $0x17c] sm:%s334] %v533
        %v535 = vld [vmem:[%s341 + $0x180] sm:%s334]
        %536 = vst [vmem:[%s342 + $0x180] sm:%s334] %v535
        %v537 = vld [vmem:[%s341 + $0x1a0] sm:%s334]
        %538 = vst [vmem:[%s342 + $0x184] sm:%s334] %v537
        %v539 = vld [vmem:[%s341 + $0x184] sm:%s334]
        %540 = vst [vmem:[%s342 + $0x188] sm:%s334] %v539
        %v541 = vld [vmem:[%s341 + $0x1a4] sm:%s334]
        %542 = vst [vmem:[%s342 + $0x18c] sm:%s334] %v541
        %v543 = vld [vmem:[%s341 + $0x188] sm:%s334]
        %544 = vst [vmem:[%s342 + $0x190] sm:%s334] %v543
        %v545 = vld [vmem:[%s341 + $0x1a8] sm:%s334]
        %546 = vst [vmem:[%s342 + $0x194] sm:%s334] %v545
        %v547 = vld [vmem:[%s341 + $0x18c] sm:%s334]
        %548 = vst [vmem:[%s342 + $0x198] sm:%s334] %v547
        %v549 = vld [vmem:[%s341 + $0x1ac] sm:%s334]
        %550 = vst [vmem:[%s342 + $0x19c] sm:%s334] %v549
        %v551 = vld [vmem:[%s341 + $0x190] sm:%s334]
        %552 = vst [vmem:[%s342 + $0x1a0] sm:%s334] %v551
        %v553 = vld [vmem:[%s341 + $0x1b0] sm:%s334]
        %554 = vst [vmem:[%s342 + $0x1a4] sm:%s334] %v553
        %v555 = vld [vmem:[%s341 + $0x194] sm:%s334]
        %556 = vst [vmem:[%s342 + $0x1a8] sm:%s334] %v555
        %v557 = vld [vmem:[%s341 + $0x1b4] sm:%s334]
        %558 = vst [vmem:[%s342 + $0x1ac] sm:%s334] %v557
        %v559 = vld [vmem:[%s341 + $0x198] sm:%s334]
        %560 = vst [vmem:[%s342 + $0x1b0] sm:%s334] %v559
        %v561 = vld [vmem:[%s341 + $0x1b8] sm:%s334]
        %562 = vst [vmem:[%s342 + $0x1b4] sm:%s334] %v561
        %v563 = vld [vmem:[%s341 + $0x19c] sm:%s334]
        %564 = vst [vmem:[%s342 + $0x1b8] sm:%s334] %v563
        %v565 = vld [vmem:[%s341 + $0x1bc] sm:%s334]
        %566 = vst [vmem:[%s342 + $0x1bc] sm:%s334] %v565
        %v567 = vld [vmem:[%s341 + $0x1c0] sm:%s334]
        %568 = vst [vmem:[%s342 + $0x1c0] sm:%s334] %v567
        %v569 = vld [vmem:[%s341 + $0x1e0] sm:%s334]
        %570 = vst [vmem:[%s342 + $0x1c4] sm:%s334] %v569
        %v571 = vld [vmem:[%s341 + $0x1c4] sm:%s334]
        %572 = vst [vmem:[%s342 + $0x1c8] sm:%s334] %v571
        %v573 = vld [vmem:[%s341 + $0x1e4] sm:%s334]
        %574 = vst [vmem:[%s342 + $0x1cc] sm:%s334] %v573
        %v575 = vld [vmem:[%s341 + $0x1c8] sm:%s334]
        %576 = vst [vmem:[%s342 + $0x1d0] sm:%s334] %v575
        %v577 = vld [vmem:[%s341 + $0x1e8] sm:%s334]
        %578 = vst [vmem:[%s342 + $0x1d4] sm:%s334] %v577
        %v579 = vld [vmem:[%s341 + $0x1cc] sm:%s334]
        %580 = vst [vmem:[%s342 + $0x1d8] sm:%s334] %v579
        %v581 = vld [vmem:[%s341 + $0x1ec] sm:%s334]
        %582 = vst [vmem:[%s342 + $0x1dc] sm:%s334] %v581
        %v583 = vld [vmem:[%s341 + $0x1d0] sm:%s334]
        %584 = vst [vmem:[%s342 + $0x1e0] sm:%s334] %v583
        %v585 = vld [vmem:[%s341 + $0x1f0] sm:%s334]
        %586 = vst [vmem:[%s342 + $0x1e4] sm:%s334] %v585
        %v587 = vld [vmem:[%s341 + $0x1d4] sm:%s334]
        %588 = vst [vmem:[%s342 + $0x1e8] sm:%s334] %v587
        %v589 = vld [vmem:[%s341 + $0x1f4] sm:%s334]
        %590 = vst [vmem:[%s342 + $0x1ec] sm:%s334] %v589
        %v591 = vld [vmem:[%s341 + $0x1d8] sm:%s334]
        %592 = vst [vmem:[%s342 + $0x1f0] sm:%s334] %v591
        %v593 = vld [vmem:[%s341 + $0x1f8] sm:%s334]
        %594 = vst [vmem:[%s342 + $0x1f4] sm:%s334] %v593
        %v595 = vld [vmem:[%s341 + $0x1dc] sm:%s334]
        %596 = vst [vmem:[%s342 + $0x1f8] sm:%s334] %v595
        %v597 = vld [vmem:[%s341 + $0x1fc] sm:%s334]
        %598 = vst [vmem:[%s342 + $0x1fc] sm:%s334] %v597
        %v599 = vld [vmem:[%s341 + $0x200] sm:%s334]
        %600 = vst [vmem:[%s342 + $0x200] sm:%s334] %v599
        %v601 = vld [vmem:[%s341 + $0x220] sm:%s334]
        %602 = vst [vmem:[%s342 + $0x204] sm:%s334] %v601
        %v603 = vld [vmem:[%s341 + $0x204] sm:%s334]
        %604 = vst [vmem:[%s342 + $0x208] sm:%s334] %v603
        %v605 = vld [vmem:[%s341 + $0x224] sm:%s334]
        %606 = vst [vmem:[%s342 + $0x20c] sm:%s334] %v605
        %v607 = vld [vmem:[%s341 + $0x208] sm:%s334]
        %608 = vst [vmem:[%s342 + $0x210] sm:%s334] %v607
        %v609 = vld [vmem:[%s341 + $0x228] sm:%s334]
        %610 = vst [vmem:[%s342 + $0x214] sm:%s334] %v609
        %v611 = vld [vmem:[%s341 + $0x20c] sm:%s334]
        %612 = vst [vmem:[%s342 + $0x218] sm:%s334] %v611
        %v613 = vld [vmem:[%s341 + $0x22c] sm:%s334]
        %614 = vst [vmem:[%s342 + $0x21c] sm:%s334] %v613
        %v615 = vld [vmem:[%s341 + $0x210] sm:%s334]
        %616 = vst [vmem:[%s342 + $0x220] sm:%s334] %v615
        %v617 = vld [vmem:[%s341 + $0x230] sm:%s334]
        %618 = vst [vmem:[%s342 + $0x224] sm:%s334] %v617
        %v619 = vld [vmem:[%s341 + $0x214] sm:%s334]
        %620 = vst [vmem:[%s342 + $0x228] sm:%s334] %v619
        %v621 = vld [vmem:[%s341 + $0x234] sm:%s334]
        %622 = vst [vmem:[%s342 + $0x22c] sm:%s334] %v621
        %v623 = vld [vmem:[%s341 + $0x218] sm:%s334]
        %624 = vst [vmem:[%s342 + $0x230] sm:%s334] %v623
        %v625 = vld [vmem:[%s341 + $0x238] sm:%s334]
        %626 = vst [vmem:[%s342 + $0x234] sm:%s334] %v625
        %v627 = vld [vmem:[%s341 + $0x21c] sm:%s334]
        %628 = vst [vmem:[%s342 + $0x238] sm:%s334] %v627
        %v629 = vld [vmem:[%s341 + $0x23c] sm:%s334]
        %630 = vst [vmem:[%s342 + $0x23c] sm:%s334] %v629
        %v631 = vld [vmem:[%s341 + $0x240] sm:%s334]
        %632 = vst [vmem:[%s342 + $0x240] sm:%s334] %v631
        %v633 = vld [vmem:[%s341 + $0x260] sm:%s334]
        %634 = vst [vmem:[%s342 + $0x244] sm:%s334] %v633
        %v635 = vld [vmem:[%s341 + $0x244] sm:%s334]
        %636 = vst [vmem:[%s342 + $0x248] sm:%s334] %v635
        %v637 = vld [vmem:[%s341 + $0x264] sm:%s334]
        %638 = vst [vmem:[%s342 + $0x24c] sm:%s334] %v637
        %v639 = vld [vmem:[%s341 + $0x248] sm:%s334]
        %640 = vst [vmem:[%s342 + $0x250] sm:%s334] %v639
        %v641 = vld [vmem:[%s341 + $0x268] sm:%s334]
        %642 = vst [vmem:[%s342 + $0x254] sm:%s334] %v641
        %v643 = vld [vmem:[%s341 + $0x24c] sm:%s334]
        %644 = vst [vmem:[%s342 + $0x258] sm:%s334] %v643
        %v645 = vld [vmem:[%s341 + $0x26c] sm:%s334]
        %646 = vst [vmem:[%s342 + $0x25c] sm:%s334] %v645
        %v647 = vld [vmem:[%s341 + $0x250] sm:%s334]
        %648 = vst [vmem:[%s342 + $0x260] sm:%s334] %v647
        %v649 = vld [vmem:[%s341 + $0x270] sm:%s334]
        %650 = vst [vmem:[%s342 + $0x264] sm:%s334] %v649
        %v651 = vld [vmem:[%s341 + $0x254] sm:%s334]
        %652 = vst [vmem:[%s342 + $0x268] sm:%s334] %v651
        %v653 = vld [vmem:[%s341 + $0x274] sm:%s334]
        %654 = vst [vmem:[%s342 + $0x26c] sm:%s334] %v653
        %v655 = vld [vmem:[%s341 + $0x258] sm:%s334]
        %656 = vst [vmem:[%s342 + $0x270] sm:%s334] %v655
        %v657 = vld [vmem:[%s341 + $0x278] sm:%s334]
        %658 = vst [vmem:[%s342 + $0x274] sm:%s334] %v657
        %v659 = vld [vmem:[%s341 + $0x25c] sm:%s334]
        %660 = vst [vmem:[%s342 + $0x278] sm:%s334] %v659
        %v661 = vld [vmem:[%s341 + $0x27c] sm:%s334]
        %662 = vst [vmem:[%s342 + $0x27c] sm:%s334] %v661
        %v663 = vld [vmem:[%s341 + $0x280] sm:%s334]
        %664 = vst [vmem:[%s342 + $0x280] sm:%s334] %v663
        %v665 = vld [vmem:[%s341 + $0x2a0] sm:%s334]
        %666 = vst [vmem:[%s342 + $0x284] sm:%s334] %v665
        %v667 = vld [vmem:[%s341 + $0x284] sm:%s334]
        %668 = vst [vmem:[%s342 + $0x288] sm:%s334] %v667
        %v669 = vld [vmem:[%s341 + $0x2a4] sm:%s334]
        %670 = vst [vmem:[%s342 + $0x28c] sm:%s334] %v669
        %v671 = vld [vmem:[%s341 + $0x288] sm:%s334]
        %672 = vst [vmem:[%s342 + $0x290] sm:%s334] %v671
        %v673 = vld [vmem:[%s341 + $0x2a8] sm:%s334]
        %674 = vst [vmem:[%s342 + $0x294] sm:%s334] %v673
        %v675 = vld [vmem:[%s341 + $0x28c] sm:%s334]
        %676 = vst [vmem:[%s342 + $0x298] sm:%s334] %v675
        %v677 = vld [vmem:[%s341 + $0x2ac] sm:%s334]
        %678 = vst [vmem:[%s342 + $0x29c] sm:%s334] %v677
        %v679 = vld [vmem:[%s341 + $0x290] sm:%s334]
        %680 = vst [vmem:[%s342 + $0x2a0] sm:%s334] %v679
        %v681 = vld [vmem:[%s341 + $0x2b0] sm:%s334]
        %682 = vst [vmem:[%s342 + $0x2a4] sm:%s334] %v681
        %v683 = vld [vmem:[%s341 + $0x294] sm:%s334]
        %684 = vst [vmem:[%s342 + $0x2a8] sm:%s334] %v683
        %v685 = vld [vmem:[%s341 + $0x2b4] sm:%s334]
        %686 = vst [vmem:[%s342 + $0x2ac] sm:%s334] %v685
        %v687 = vld [vmem:[%s341 + $0x298] sm:%s334]
        %688 = vst [vmem:[%s342 + $0x2b0] sm:%s334] %v687
        %v689 = vld [vmem:[%s341 + $0x2b8] sm:%s334]
        %690 = vst [vmem:[%s342 + $0x2b4] sm:%s334] %v689
        %v691 = vld [vmem:[%s341 + $0x29c] sm:%s334]
        %692 = vst [vmem:[%s342 + $0x2b8] sm:%s334] %v691
        %v693 = vld [vmem:[%s341 + $0x2bc] sm:%s334]
        %694 = vst [vmem:[%s342 + $0x2bc] sm:%s334] %v693
        %v695 = vld [vmem:[%s341 + $0x2c0] sm:%s334]
        %696 = vst [vmem:[%s342 + $0x2c0] sm:%s334] %v695
        %v697 = vld [vmem:[%s341 + $0x2e0] sm:%s334]
        %698 = vst [vmem:[%s342 + $0x2c4] sm:%s334] %v697
        %v699 = vld [vmem:[%s341 + $0x2c4] sm:%s334]
        %700 = vst [vmem:[%s342 + $0x2c8] sm:%s334] %v699
        %v701 = vld [vmem:[%s341 + $0x2e4] sm:%s334]
        %702 = vst [vmem:[%s342 + $0x2cc] sm:%s334] %v701
        %v703 = vld [vmem:[%s341 + $0x2c8] sm:%s334]
        %704 = vst [vmem:[%s342 + $0x2d0] sm:%s334] %v703
        %v705 = vld [vmem:[%s341 + $0x2e8] sm:%s334]
        %706 = vst [vmem:[%s342 + $0x2d4] sm:%s334] %v705
        %v707 = vld [vmem:[%s341 + $0x2cc] sm:%s334]
        %708 = vst [vmem:[%s342 + $0x2d8] sm:%s334] %v707
        %v709 = vld [vmem:[%s341 + $0x2ec] sm:%s334]
        %710 = vst [vmem:[%s342 + $0x2dc] sm:%s334] %v709
        %v711 = vld [vmem:[%s341 + $0x2d0] sm:%s334]
        %712 = vst [vmem:[%s342 + $0x2e0] sm:%s334] %v711
        %v713 = vld [vmem:[%s341 + $0x2f0] sm:%s334]
        %714 = vst [vmem:[%s342 + $0x2e4] sm:%s334] %v713
        %v715 = vld [vmem:[%s341 + $0x2d4] sm:%s334]
        %716 = vst [vmem:[%s342 + $0x2e8] sm:%s334] %v715
        %v717 = vld [vmem:[%s341 + $0x2f4] sm:%s334]
        %718 = vst [vmem:[%s342 + $0x2ec] sm:%s334] %v717
        %v719 = vld [vmem:[%s341 + $0x2d8] sm:%s334]
        %720 = vst [vmem:[%s342 + $0x2f0] sm:%s334] %v719
        %v721 = vld [vmem:[%s341 + $0x2f8] sm:%s334]
        %722 = vst [vmem:[%s342 + $0x2f4] sm:%s334] %v721
        %v723 = vld [vmem:[%s341 + $0x2dc] sm:%s334]
        %724 = vst [vmem:[%s342 + $0x2f8] sm:%s334] %v723
        %v725 = vld [vmem:[%s341 + $0x2fc] sm:%s334]
        %726 = vst [vmem:[%s342 + $0x2fc] sm:%s334] %v725
        %v727 = vld [vmem:[%s341 + $0x300] sm:%s334]
        %728 = vst [vmem:[%s342 + $0x300] sm:%s334] %v727
        %v729 = vld [vmem:[%s341 + $0x320] sm:%s334]
        %730 = vst [vmem:[%s342 + $0x304] sm:%s334] %v729
        %v731 = vld [vmem:[%s341 + $0x304] sm:%s334]
        %732 = vst [vmem:[%s342 + $0x308] sm:%s334] %v731
        %v733 = vld [vmem:[%s341 + $0x324] sm:%s334]
        %734 = vst [vmem:[%s342 + $0x30c] sm:%s334] %v733
        %v735 = vld [vmem:[%s341 + $0x308] sm:%s334]
        %736 = vst [vmem:[%s342 + $0x310] sm:%s334] %v735
        %v737 = vld [vmem:[%s341 + $0x328] sm:%s334]
        %738 = vst [vmem:[%s342 + $0x314] sm:%s334] %v737
        %v739 = vld [vmem:[%s341 + $0x30c] sm:%s334]
        %740 = vst [vmem:[%s342 + $0x318] sm:%s334] %v739
        %v741 = vld [vmem:[%s341 + $0x32c] sm:%s334]
        %742 = vst [vmem:[%s342 + $0x31c] sm:%s334] %v741
        %v743 = vld [vmem:[%s341 + $0x310] sm:%s334]
        %744 = vst [vmem:[%s342 + $0x320] sm:%s334] %v743
        %v745 = vld [vmem:[%s341 + $0x330] sm:%s334]
        %746 = vst [vmem:[%s342 + $0x324] sm:%s334] %v745
        %v747 = vld [vmem:[%s341 + $0x314] sm:%s334]
        %748 = vst [vmem:[%s342 + $0x328] sm:%s334] %v747
        %v749 = vld [vmem:[%s341 + $0x334] sm:%s334]
        %750 = vst [vmem:[%s342 + $0x32c] sm:%s334] %v749
        %v751 = vld [vmem:[%s341 + $0x318] sm:%s334]
        %752 = vst [vmem:[%s342 + $0x330] sm:%s334] %v751
        %v753 = vld [vmem:[%s341 + $0x338] sm:%s334]
        %754 = vst [vmem:[%s342 + $0x334] sm:%s334] %v753
        %v755 = vld [vmem:[%s341 + $0x31c] sm:%s334]
        %756 = vst [vmem:[%s342 + $0x338] sm:%s334] %v755
        %v757 = vld [vmem:[%s341 + $0x33c] sm:%s334]
        %758 = vst [vmem:[%s342 + $0x33c] sm:%s334] %v757
        %v759 = vld [vmem:[%s341 + $0x340] sm:%s334]
        %760 = vst [vmem:[%s342 + $0x340] sm:%s334] %v759
        %v761 = vld [vmem:[%s341 + $0x360] sm:%s334]
        %762 = vst [vmem:[%s342 + $0x344] sm:%s334] %v761
        %v763 = vld [vmem:[%s341 + $0x344] sm:%s334]
        %764 = vst [vmem:[%s342 + $0x348] sm:%s334] %v763
        %v765 = vld [vmem:[%s341 + $0x364] sm:%s334]
        %766 = vst [vmem:[%s342 + $0x34c] sm:%s334] %v765
        %v767 = vld [vmem:[%s341 + $0x348] sm:%s334]
        %768 = vst [vmem:[%s342 + $0x350] sm:%s334] %v767
        %v769 = vld [vmem:[%s341 + $0x368] sm:%s334]
        %770 = vst [vmem:[%s342 + $0x354] sm:%s334] %v769
        %v771 = vld [vmem:[%s341 + $0x34c] sm:%s334]
        %772 = vst [vmem:[%s342 + $0x358] sm:%s334] %v771
        %v773 = vld [vmem:[%s341 + $0x36c] sm:%s334]
        %774 = vst [vmem:[%s342 + $0x35c] sm:%s334] %v773
        %v775 = vld [vmem:[%s341 + $0x350] sm:%s334]
        %776 = vst [vmem:[%s342 + $0x360] sm:%s334] %v775
        %v777 = vld [vmem:[%s341 + $0x370] sm:%s334]
        %778 = vst [vmem:[%s342 + $0x364] sm:%s334] %v777
        %v779 = vld [vmem:[%s341 + $0x354] sm:%s334]
        %780 = vst [vmem:[%s342 + $0x368] sm:%s334] %v779
        %v781 = vld [vmem:[%s341 + $0x374] sm:%s334]
        %782 = vst [vmem:[%s342 + $0x36c] sm:%s334] %v781
        %v783 = vld [vmem:[%s341 + $0x358] sm:%s334]
        %784 = vst [vmem:[%s342 + $0x370] sm:%s334] %v783
        %v785 = vld [vmem:[%s341 + $0x378] sm:%s334]
        %786 = vst [vmem:[%s342 + $0x374] sm:%s334] %v785
        %v787 = vld [vmem:[%s341 + $0x35c] sm:%s334]
        %788 = vst [vmem:[%s342 + $0x378] sm:%s334] %v787
        %v789 = vld [vmem:[%s341 + $0x37c] sm:%s334]
        %790 = vst [vmem:[%s342 + $0x37c] sm:%s334] %v789
        %v791 = vld [vmem:[%s341 + $0x380] sm:%s334]
        %792 = vst [vmem:[%s342 + $0x380] sm:%s334] %v791
        %v793 = vld [vmem:[%s341 + $0x3a0] sm:%s334]
        %794 = vst [vmem:[%s342 + $0x384] sm:%s334] %v793
        %v795 = vld [vmem:[%s341 + $0x384] sm:%s334]
        %796 = vst [vmem:[%s342 + $0x388] sm:%s334] %v795
        %v797 = vld [vmem:[%s341 + $0x3a4] sm:%s334]
        %798 = vst [vmem:[%s342 + $0x38c] sm:%s334] %v797
        %v799 = vld [vmem:[%s341 + $0x388] sm:%s334]
        %800 = vst [vmem:[%s342 + $0x390] sm:%s334] %v799
        %v801 = vld [vmem:[%s341 + $0x3a8] sm:%s334]
        %802 = vst [vmem:[%s342 + $0x394] sm:%s334] %v801
        %v803 = vld [vmem:[%s341 + $0x38c] sm:%s334]
        %804 = vst [vmem:[%s342 + $0x398] sm:%s334] %v803
        %v805 = vld [vmem:[%s341 + $0x3ac] sm:%s334]
        %806 = vst [vmem:[%s342 + $0x39c] sm:%s334] %v805
        %v807 = vld [vmem:[%s341 + $0x390] sm:%s334]
        %808 = vst [vmem:[%s342 + $0x3a0] sm:%s334] %v807
        %v809 = vld [vmem:[%s341 + $0x3b0] sm:%s334]
        %810 = vst [vmem:[%s342 + $0x3a4] sm:%s334] %v809
        %v811 = vld [vmem:[%s341 + $0x394] sm:%s334]
        %812 = vst [vmem:[%s342 + $0x3a8] sm:%s334] %v811
        %v813 = vld [vmem:[%s341 + $0x3b4] sm:%s334]
        %814 = vst [vmem:[%s342 + $0x3ac] sm:%s334] %v813
        %v815 = vld [vmem:[%s341 + $0x398] sm:%s334]
        %816 = vst [vmem:[%s342 + $0x3b0] sm:%s334] %v815
        %v817 = vld [vmem:[%s341 + $0x3b8] sm:%s334]
        %818 = vst [vmem:[%s342 + $0x3b4] sm:%s334] %v817
        %v819 = vld [vmem:[%s341 + $0x39c] sm:%s334]
        %820 = vst [vmem:[%s342 + $0x3b8] sm:%s334] %v819
        %v821 = vld [vmem:[%s341 + $0x3bc] sm:%s334]
        %822 = vst [vmem:[%s342 + $0x3bc] sm:%s334] %v821
        %v823 = vld [vmem:[%s341 + $0x3c0] sm:%s334]
        %824 = vst [vmem:[%s342 + $0x3c0] sm:%s334] %v823
        %v825 = vld [vmem:[%s341 + $0x3e0] sm:%s334]
        %826 = vst [vmem:[%s342 + $0x3c4] sm:%s334] %v825
        %v827 = vld [vmem:[%s341 + $0x3c4] sm:%s334]
        %828 = vst [vmem:[%s342 + $0x3c8] sm:%s334] %v827
        %v829 = vld [vmem:[%s341 + $0x3e4] sm:%s334]
        %830 = vst [vmem:[%s342 + $0x3cc] sm:%s334] %v829
        %v831 = vld [vmem:[%s341 + $0x3c8] sm:%s334]
        %832 = vst [vmem:[%s342 + $0x3d0] sm:%s334] %v831
        %v833 = vld [vmem:[%s341 + $0x3e8] sm:%s334]
        %834 = vst [vmem:[%s342 + $0x3d4] sm:%s334] %v833
        %v835 = vld [vmem:[%s341 + $0x3cc] sm:%s334]
        %836 = vst [vmem:[%s342 + $0x3d8] sm:%s334] %v835
        %v837 = vld [vmem:[%s341 + $0x3ec] sm:%s334]
        %838 = vst [vmem:[%s342 + $0x3dc] sm:%s334] %v837
        %v839 = vld [vmem:[%s341 + $0x3d0] sm:%s334]
        %840 = vst [vmem:[%s342 + $0x3e0] sm:%s334] %v839
        %v841 = vld [vmem:[%s341 + $0x3f0] sm:%s334]
        %842 = vst [vmem:[%s342 + $0x3e4] sm:%s334] %v841
        %v843 = vld [vmem:[%s341 + $0x3d4] sm:%s334]
        %844 = vst [vmem:[%s342 + $0x3e8] sm:%s334] %v843
        %v845 = vld [vmem:[%s341 + $0x3f4] sm:%s334]
        %846 = vst [vmem:[%s342 + $0x3ec] sm:%s334] %v845
        %v847 = vld [vmem:[%s341 + $0x3d8] sm:%s334]
        %848 = vst [vmem:[%s342 + $0x3f0] sm:%s334] %v847
        %v849 = vld [vmem:[%s341 + $0x3f8] sm:%s334]
        %850 = vst [vmem:[%s342 + $0x3f4] sm:%s334] %v849
        %v851 = vld [vmem:[%s341 + $0x3dc] sm:%s334]
        %852 = vst [vmem:[%s342 + $0x3f8] sm:%s334] %v851
        %v853 = vld [vmem:[%s341 + $0x3fc] sm:%s334]
        %854 = vst [vmem:[%s342 + $0x3fc] sm:%s334] %v853
      $region270: #{sam_forward.1} parent=264 // loop_footer
        %s340 = sadd.s32 1, %s336
      $region271: #{sam_forward.1} parent=264 // loop_footer_branch
        %335 = sbr.rel target = $region267
      $region272: #{sam_forward.1} parent=264 // loop_exit
        _
    $region265: #{sam_forward.1} parent=1 // pred_fallthru
      _
    // Predicated region
    $region291: #{sam_forward.1} parent=1 // pred_check
      _
    $region292: #{sam_forward.1} parent=1 // pred_check_branch
      %1396 = sbr.rel (0) target = $region294
    $region293: #{sam_forward.1} parent=1 // pred_region
      %1397 = vsyncadd [#allocation3], 16384
    $region294: #{sam_forward.1} parent=1 // pred_fallthru
      _
    %v1398 = vld [vmem:[%s1] sm:$0xff]
    %v1399 = vld [vmem:[%s1 + $0x8] sm:$0xff]
    %v1400 = vld [vmem:[%s1 + $0x10] sm:$0xff]
    %v1401 = vld [vmem:[%s1 + $0x18] sm:$0xff]
    %v1402 = vld [vmem:[%s3] sm:$0x3]
    %v1404 = vlaneseq
    %v1405 = vshrl.u32 %v1404, 7
    %v1406 = vsub.s32 0, %v1405
    %v1407 = vrot.slane %v1402, %v1406
    %v1408 = vlaneseq
    %v1409 = vshrl.u32 %v1408, 7
    %v1410 = vsub.s32 1, %v1409
    %v1411 = vrot.slane %v1402, %v1410
    %v1414 = vsub.f32 %v1398, %v1407
    %v1415 = vsub.f32 %v1399, %v1411
    %v1416 = vsub.f32 %v1400, %v1407
    %v1417 = vsub.f32 %v1401, %v1411
    %v1418 = vld [vmem:[%s5] sm:$0x3]
    %v1420 = vlaneseq
    %v1421 = vshrl.u32 %v1420, 7
    %v1422 = vsub.s32 0, %v1421
    %v1423 = vrot.slane %v1418, %v1422
    %v1424 = vlaneseq
    %v1425 = vshrl.u32 %v1424, 7
    %v1426 = vsub.s32 1, %v1425
    %v1427 = vrot.slane %v1418, %v1426
    %v1430 = vmul.f32 %v1414, %v1423
    %v1431 = vmul.f32 %v1415, %v1427
    %v1432 = vmul.f32 %v1416, %v1423
    %v1433 = vmul.f32 %v1417, %v1427
    %v1434 = vld [vmem:[%s7] sm:$0xf]
    %v1435 = vld [vmem:[%s7 + $0x4] sm:$0xf]
    %v1436 = vld [vmem:[%s7 + $0x8] sm:$0xf]
    %v1437 = vld [vmem:[%s7 + $0xc] sm:$0xf]
    %v1438 = vld [vmem:[%s7 + $0x10] sm:$0xf]
    %v1439 = vld [vmem:[%s7 + $0x14] sm:$0xf]
    %v1440 = vld [vmem:[%s7 + $0x18] sm:$0xf]
    %v1441 = vld [vmem:[%s7 + $0x1c] sm:$0xf]
    %v1442 = vld [vmem:[%s7 + $0x20] sm:$0xf]
    %v1443 = vld [vmem:[%s7 + $0x24] sm:$0xf]
    %v1444 = vld [vmem:[%s7 + $0x28] sm:$0xf]
    %v1445 = vld [vmem:[%s7 + $0x2c] sm:$0xf]
    %v1446 = vld [vmem:[%s7 + $0x30] sm:$0xf]
    %v1447 = vld [vmem:[%s7 + $0x34] sm:$0xf]
    %v1448 = vld [vmem:[%s7 + $0x38] sm:$0xf]
    %v1449 = vld [vmem:[%s7 + $0x3c] sm:$0xf]
    %v1450 = vld [vmem:[%s7 + $0x40] sm:$0xf]
    %v1451 = vld [vmem:[%s7 + $0x44] sm:$0xf]
    %v1452 = vld [vmem:[%s7 + $0x48] sm:$0xf]
    %v1453 = vld [vmem:[%s7 + $0x4c] sm:$0xf]
    %v1454 = vld [vmem:[%s7 + $0x50] sm:$0xf]
    %v1455 = vld [vmem:[%s7 + $0x54] sm:$0xf]
    %v1456 = vld [vmem:[%s7 + $0x58] sm:$0xf]
    %v1457 = vld [vmem:[%s7 + $0x5c] sm:$0xf]
    %v1458 = vpack.c.bf16 %v1432, %v1430
    %v1459 = vpack.c.bf16 %v1433, %v1431
    %v1460 = vld [vmem:[%s9] sm:$0x1]
    %v1462 = vlaneseq
    %v1463 = vshrl.u32 %v1462, 7
    %v1464 = vsub.s32 0, %v1463
    %v1465 = vrot.slane %v1460, %v1464
    %v1491 = vunpack.c.l.b16 %v1434
    %v1492 = vunpack.c.l.b16 %v1435
    %v1493 = vunpack.c.l.b16 %v1436
    %v1494 = vunpack.c.l.b16 %v1437
    %v1495 = vunpack.c.l.b16 %v1438
    %v1496 = vunpack.c.l.b16 %v1439
    %v1497 = vunpack.c.l.b16 %v1440
    %v1498 = vunpack.c.l.b16 %v1441
    %v1499 = vunpack.c.l.b16 %v1442
    %v1500 = vunpack.c.l.b16 %v1443
    %v1501 = vunpack.c.l.b16 %v1444
    %v1502 = vunpack.c.l.b16 %v1445
    %v1503 = vunpack.c.l.b16 %v1446
    %v1504 = vunpack.c.l.b16 %v1447
    %v1505 = vunpack.c.l.b16 %v1448
    %v1506 = vunpack.c.l.b16 %v1449
    %v1507 = vunpack.c.l.b16 %v1450
    %v1508 = vunpack.c.l.b16 %v1451
    %v1509 = vunpack.c.l.b16 %v1452
    %v1510 = vunpack.c.l.b16 %v1453
    %v1511 = vunpack.c.l.b16 %v1454
    %v1512 = vunpack.c.l.b16 %v1455
    %v1513 = vunpack.c.l.b16 %v1456
    %v1514 = vunpack.c.l.b16 %v1457
    %v1515 = vpack.c.b16 %v1492, %v1491
    %v1516 = vpack.c.b16 %v1494, %v1493
    %v1517 = vpack.c.b16 %v1496, %v1495
    %v1518 = vpack.c.b16 %v1498, %v1497
    %v1519 = vpack.c.b16 %v1500, %v1499
    %v1520 = vpack.c.b16 %v1502, %v1501
    %v1521 = vpack.c.b16 %v1504, %v1503
    %v1522 = vpack.c.b16 %v1506, %v1505
    %v1523 = vpack.c.b16 %v1508, %v1507
    %v1524 = vpack.c.b16 %v1510, %v1509
    %v1525 = vpack.c.b16 %v1512, %v1511
    %v1526 = vpack.c.b16 %v1514, %v1513
    %vm1539 = vcmask 523264
    %v1541 = vsel %vm1539, %v1459, 0
    %1543 = vmatprep.subr.bf16.mxu0 0
    %1544 = vmatpush1.bf16.msra.mxu0 %v1515
    %1545 = vmatprep.subr.bf16.mxu0 0
    %1546 = vmatpush1.bf16.msra.mxu0 %v1516
    %1547 = vmatprep.subr.bf16.mxu0 0
    %1548 = vmatpush1.bf16.msra.mxu0 %v1517
    %1549 = vmatprep.subr.bf16.mxu0 0
    %1550 = vmatpush1.bf16.msra.mxu0 %v1518
    %1551 = vmatprep.subr.bf16.mxu0 0
    %1552 = vmatpush1.bf16.msra.mxu0 %v1519
    %1553 = vmatprep.subr.bf16.mxu0 0
    %1554 = vmatpush1.bf16.msra.mxu0 %v1520
    %1555 = vmatprep.subr.bf16.mxu0 0
    %1556 = vmatpush1.bf16.msra.mxu0 %v1521
    %1557 = vmatprep.subr.bf16.mxu0 0
    %1558 = vmatpush1.bf16.msra.mxu0 %v1522
    %1559 = vmatprep.subr.bf16.mxu0 0
    %1560 = vmatpush1.bf16.msra.mxu0 %v1523
    %1561 = vmatprep.subr.bf16.mxu0 0
    %1562 = vmatpush1.bf16.msra.mxu0 %v1524
    %1563 = vmatprep.subr.bf16.mxu0 0
    %1564 = vmatpush1.bf16.msra.mxu0 %v1525
    %1565 = vmatprep.subr.bf16.mxu0 0
    %1566 = vmatpush1.bf16.msra.mxu0 %v1526
    %1567 = vmatprep.subr.bf16.mxu0 0
    %1568 = vmatpush1.bf16.msra.mxu0 0
    %1569 = vmatprep.subr.bf16.mxu0 0
    %1570 = vmatpush1.bf16.msra.mxu0 0
    %1571 = vmatprep.subr.bf16.mxu0 0
    %1572 = vmatpush1.bf16.msra.mxu0 0
    %1573 = vmatprep.subr.bf16.mxu0 0
    %1574 = vmatpush1.bf16.msra.mxu0 0
    %1575 = vmatprep.mubr.bf16.mxu0 %v1541
    %1576 = vmatmul.mubr.bf16.gmra.mrb[0].mxu0 %v1458
    %v1577 = vpop.f32.mrb[0].mxu0
    %v1578 = vadd.f32 %v1465, %v1577
    %v1579 = vpop.f32.mrb[0].mxu0
    %v1580 = vpop.f32.mrb[0].mxu0
    %v1581 = vadd.f32 %v1465, %v1580
    %v1582 = vpop.f32.mrb[0].mxu0
    %1583 = vdwg.mxu0
    %v1584 = vld [vmem:[%s11] sm:$0xff]
    %v1585 = vld [vmem:[%s11 + $0x8] sm:$0xff]
    %v1586 = vadd.f32 %v1578, %v1584
    %v1587 = vadd.f32 %v1581, %v1585
    %v1588 = vld [vmem:[%s13] sm:$0x1]
    %v1589 = vld [vmem:[%s15] sm:$0x1]
    %1590 = vadd.xlane.f32.xlu0 %v1586
    %v1591 = vpop.xlane.xlu0 %1590
    %1592 = vadd.xlane.f32.xlu0 %v1587
    %v1593 = vpop.xlane.xlu0 %1592
    %v1594 = vmul.f32 %v1591, 0.0078125
    %v1595 = vmul.f32 %v1593, 0.0078125
    %v1596 = vmul.f32 %v1586, %v1586
    %v1597 = vmul.f32 %v1587, %v1587
    %1598 = vadd.xlane.f32.xlu0 %v1596
    %v1599 = vpop.xlane.xlu0 %1598
    %1600 = vadd.xlane.f32.xlu0 %v1597
    %v1601 = vpop.xlane.xlu0 %1600
    %v1602 = vmul.f32 %v1599, 0.0078125
    %v1603 = vmul.f32 %v1601, 0.0078125
    %v1604 = vmul.f32 %v1594, %v1594
    %v1605 = vmul.f32 %v1595, %v1595
    %v1606 = vsub.f32 %v1602, %v1604
    %v1607 = vsub.f32 %v1603, %v1605
    %v1608 = vmax.f32 %v1606, 0.0
    %v1609 = vmax.f32 %v1607, 0.0
    %v1610 = vsub.f32 %v1586, %v1594
    %v1611 = vsub.f32 %v1587, %v1595
    %v1612 = vadd.f32 %v1608, 1e-06
    %v1613 = vadd.f32 %v1609, 1e-06
    %v1614 = vrsqrt.pop %v1612
    %v1615 = vrsqrt.pop %v1613
    %v1616 = vmul.f32 %v1610, %v1614
    %v1617 = vmul.f32 %v1611, %v1615
    %v1619 = vlaneseq
    %v1620 = vshrl.u32 %v1619, 7
    %v1621 = vsub.s32 0, %v1620
    %v1622 = vrot.slane %v1588, %v1621
    %v1624 = vmul.f32 %v1616, %v1622
    %v1625 = vmul.f32 %v1617, %v1622
    %v1627 = vlaneseq
    %v1628 = vshrl.u32 %v1627, 7
    %v1629 = vsub.s32 0, %v1628
    %v1630 = vrot.slane %v1589, %v1629
    %v1632 = vadd.f32 %v1624, %v1630
    %v1633 = vadd.f32 %v1625, %v1630
    %v1634 = vld [vmem:[%s17] sm:$0xff]
    %v1635 = vld [vmem:[%s17 + $0x8] sm:$0xf]
    %v1636 = vld [vmem:[%s17 + $0xc] sm:$0xff]
    %v1637 = vld [vmem:[%s17 + $0x14] sm:$0xf]
    %v1638 = vld [vmem:[%s17 + $0x18] sm:$0xff]
    %v1639 = vld [vmem:[%s17 + $0x20] sm:$0xf]
    %v1640 = vld [vmem:[%s17 + $0x24] sm:$0xff]
    %v1641 = vld [vmem:[%s17 + $0x2c] sm:$0xf]
    %v1642 = vld [vmem:[%s17 + $0x30] sm:$0xff]
    %v1643 = vld [vmem:[%s17 + $0x38] sm:$0xf]
    %v1644 = vld [vmem:[%s17 + $0x3c] sm:$0xff]
    %v1645 = vld [vmem:[%s17 + $0x44] sm:$0xf]
    %v1646 = vld [vmem:[%s17 + $0x48] sm:$0xff]
    %v1647 = vld [vmem:[%s17 + $0x50] sm:$0xf]
    %v1648 = vld [vmem:[%s17 + $0x54] sm:$0xff]
    %v1649 = vld [vmem:[%s17 + $0x5c] sm:$0xf]
    %v1650 = vld [vmem:[%s17 + $0x60] sm:$0xff]
    %v1651 = vld [vmem:[%s17 + $0x68] sm:$0xf]
    %v1652 = vld [vmem:[%s17 + $0x6c] sm:$0xff]
    %v1653 = vld [vmem:[%s17 + $0x74] sm:$0xf]
    %v1654 = vld [vmem:[%s17 + $0x78] sm:$0xff]
    %v1655 = vld [vmem:[%s17 + $0x80] sm:$0xf]
    %v1656 = vld [vmem:[%s17 + $0x84] sm:$0xff]
    %v1657 = vld [vmem:[%s17 + $0x8c] sm:$0xf]
    %v1658 = vld [vmem:[%s17 + $0x90] sm:$0xff]
    %v1659 = vld [vmem:[%s17 + $0x98] sm:$0xf]
    %v1660 = vld [vmem:[%s17 + $0x9c] sm:$0xff]
    %v1661 = vld [vmem:[%s17 + $0xa4] sm:$0xf]
    %v1662 = vld [vmem:[%s17 + $0xa8] sm:$0xff]
    %v1663 = vld [vmem:[%s17 + $0xb0] sm:$0xf]
    %v1664 = vld [vmem:[%s17 + $0xb4] sm:$0xff]
    %v1665 = vld [vmem:[%s17 + $0xbc] sm:$0xf]
    %v1666 = vpack.c.bf16 %v1633, %v1632
    %v1667 = vld [vmem:[%s19] sm:$0x7]
    %v1669 = vlaneseq
    %v1670 = vshrl.u32 %v1669, 7
    %v1671 = vsub.s32 0, %v1670
    %v1672 = vrot.slane %v1667, %v1671
    %v1673 = vlaneseq
    %v1674 = vshrl.u32 %v1673, 7
    %v1675 = vsub.s32 1, %v1674
    %v1676 = vrot.slane %v1667, %v1675
    %v1677 = vlaneseq
    %v1678 = vshrl.u32 %v1677, 7
    %v1679 = vsub.s32 2, %v1678
    %v1680 = vrot.slane %v1667, %v1679
    %v1716 = vunpack.c.l.b16 %v1634
    %v1717 = vunpack.c.h.b16 %v1634
    %v1718 = vunpack.c.l.b16 %v1635
    %v1719 = vunpack.c.l.b16 %v1636
    %v1720 = vunpack.c.h.b16 %v1636
    %v1721 = vunpack.c.l.b16 %v1637
    %v1722 = vunpack.c.l.b16 %v1638
    %v1723 = vunpack.c.h.b16 %v1638
    %v1724 = vunpack.c.l.b16 %v1639
    %v1725 = vunpack.c.l.b16 %v1640
    %v1726 = vunpack.c.h.b16 %v1640
    %v1727 = vunpack.c.l.b16 %v1641
    %v1728 = vunpack.c.l.b16 %v1642
    %v1729 = vunpack.c.h.b16 %v1642
    %v1730 = vunpack.c.l.b16 %v1643
    %v1731 = vunpack.c.l.b16 %v1644
    %v1732 = vunpack.c.h.b16 %v1644
    %v1733 = vunpack.c.l.b16 %v1645
    %v1734 = vunpack.c.l.b16 %v1646
    %v1735 = vunpack.c.h.b16 %v1646
    %v1736 = vunpack.c.l.b16 %v1647
    %v1737 = vunpack.c.l.b16 %v1648
    %v1738 = vunpack.c.h.b16 %v1648
    %v1739 = vunpack.c.l.b16 %v1649
    %v1740 = vunpack.c.l.b16 %v1650
    %v1741 = vunpack.c.h.b16 %v1650
    %v1742 = vunpack.c.l.b16 %v1651
    %v1743 = vunpack.c.l.b16 %v1652
    %v1744 = vunpack.c.h.b16 %v1652
    %v1745 = vunpack.c.l.b16 %v1653
    %v1746 = vunpack.c.l.b16 %v1654
    %v1747 = vunpack.c.h.b16 %v1654
    %v1748 = vunpack.c.l.b16 %v1655
    %v1749 = vunpack.c.l.b16 %v1656
    %v1750 = vunpack.c.h.b16 %v1656
    %v1751 = vunpack.c.l.b16 %v1657
    %v1752 = vunpack.c.l.b16 %v1658
    %v1753 = vunpack.c.h.b16 %v1658
    %v1754 = vunpack.c.l.b16 %v1659
    %v1755 = vunpack.c.l.b16 %v1660
    %v1756 = vunpack.c.h.b16 %v1660
    %v1757 = vunpack.c.l.b16 %v1661
    %v1758 = vunpack.c.l.b16 %v1662
    %v1759 = vunpack.c.h.b16 %v1662
    %v1760 = vunpack.c.l.b16 %v1663
    %v1761 = vunpack.c.l.b16 %v1664
    %v1762 = vunpack.c.h.b16 %v1664
    %v1763 = vunpack.c.l.b16 %v1665
    %v1764 = vpack.c.b16 %v1719, %v1716
    %v1765 = vpack.c.b16 %v1720, %v1717
    %v1766 = vpack.c.b16 %v1721, %v1718
    %v1767 = vpack.c.b16 %v1725, %v1722
    %v1768 = vpack.c.b16 %v1726, %v1723
    %v1769 = vpack.c.b16 %v1727, %v1724
    %v1770 = vpack.c.b16 %v1731, %v1728
    %v1771 = vpack.c.b16 %v1732, %v1729
    %v1772 = vpack.c.b16 %v1733, %v1730
    %v1773 = vpack.c.b16 %v1737, %v1734
    %v1774 = vpack.c.b16 %v1738, %v1735
    %v1775 = vpack.c.b16 %v1739, %v1736
    %v1776 = vpack.c.b16 %v1743, %v1740
    %v1777 = vpack.c.b16 %v1744, %v1741
    %v1778 = vpack.c.b16 %v1745, %v1742
    %v1779 = vpack.c.b16 %v1749, %v1746
    %v1780 = vpack.c.b16 %v1750, %v1747
    %v1781 = vpack.c.b16 %v1751, %v1748
    %v1782 = vpack.c.b16 %v1755, %v1752
    %v1783 = vpack.c.b16 %v1756, %v1753
    %v1784 = vpack.c.b16 %v1757, %v1754
    %v1785 = vpack.c.b16 %v1761, %v1758
    %v1786 = vpack.c.b16 %v1762, %v1759
    %v1787 = vpack.c.b16 %v1763, %v1760
    %1812 = vmatprep.subr.bf16.mxu0 %v1765
    %1813 = vmatpush1.bf16.msra.mxu0 %v1764
    %1814 = vmatprep.subr.bf16.mxu0 %v1768
    %1815 = vmatpush1.bf16.msra.mxu0 %v1767
    %1816 = vmatprep.subr.bf16.mxu0 %v1771
    %1817 = vmatpush1.bf16.msra.mxu0 %v1770
    %1818 = vmatprep.subr.bf16.mxu0 %v1774
    %1819 = vmatpush1.bf16.msra.mxu0 %v1773
    %1820 = vmatprep.subr.bf16.mxu0 %v1777
    %1821 = vmatpush1.bf16.msra.mxu0 %v1776
    %1822 = vmatprep.subr.bf16.mxu0 %v1780
    %1823 = vmatpush1.bf16.msra.mxu0 %v1779
    %1824 = vmatprep.subr.bf16.mxu0 %v1783
    %1825 = vmatpush1.bf16.msra.mxu0 %v1782
    %1826 = vmatprep.subr.bf16.mxu0 %v1786
    %1827 = vmatpush1.bf16.msra.mxu0 %v1785
    %1828 = vmatprep.subr.bf16.mxu0 0
    %1829 = vmatpush1.bf16.msra.mxu0 0
    %1830 = vmatprep.subr.bf16.mxu0 0
    %1831 = vmatpush1.bf16.msra.mxu0 0
    %1832 = vmatprep.subr.bf16.mxu0 0
    %1833 = vmatpush1.bf16.msra.mxu0 0
    %1834 = vmatprep.subr.bf16.mxu0 0
    %1835 = vmatpush1.bf16.msra.mxu0 0
    %1836 = vmatprep.subr.bf16.mxu0 0
    %1837 = vmatpush1.bf16.msra.mxu0 0
    %1838 = vmatprep.subr.bf16.mxu0 0
    %1839 = vmatpush1.bf16.msra.mxu0 0
    %1840 = vmatprep.subr.bf16.mxu0 0
    %1841 = vmatpush1.bf16.msra.mxu0 0
    %1842 = vmatprep.subr.bf16.mxu0 0
    %1843 = vmatpush1.bf16.msra.mxu0 0
    %1844 = vmatprep.mubr.bf16.mxu0 0
    %1845 = vmatmul.mubr.bf16.gmra.mrb[0].mxu0 %v1666
    %v1846 = vpop.f32.mrb[0].mxu0
    %v1847 = vadd.f32 %v1672, %v1846
    %v1848 = vpop.f32.mrb[0].mxu0
    %v1849 = vadd.f32 %v1676, %v1848
    %v1850 = vpop.f32.mrb[0].mxu0
    %v1851 = vadd.f32 %v1672, %v1850
    %v1852 = vpop.f32.mrb[0].mxu0
    %v1853 = vadd.f32 %v1676, %v1852
    %1854 = vdwg.mxu0
    %1855 = vmatprep.subr.bf16.mxu0 0
    %1856 = vmatpush1.bf16.msra.mxu0 %v1766
    %1857 = vmatprep.subr.bf16.mxu0 0
    %1858 = vmatpush1.bf16.msra.mxu0 %v1769
    %1859 = vmatprep.subr.bf16.mxu0 0
    %1860 = vmatpush1.bf16.msra.mxu0 %v1772
    %1861 = vmatprep.subr.bf16.mxu0 0
    %1862 = vmatpush1.bf16.msra.mxu0 %v1775
    %1863 = vmatprep.subr.bf16.mxu0 0
    %1864 = vmatpush1.bf16.msra.mxu0 %v1778
    %1865 = vmatprep.subr.bf16.mxu0 0
    %1866 = vmatpush1.bf16.msra.mxu0 %v1781
    %1867 = vmatprep.subr.bf16.mxu0 0
    %1868 = vmatpush1.bf16.msra.mxu0 %v1784
    %1869 = vmatprep.subr.bf16.mxu0 0
    %1870 = vmatpush1.bf16.msra.mxu0 %v1787
    %1871 = vmatprep.subr.bf16.mxu0 0
    %1872 = vmatpush1.bf16.msra.mxu0 0
    %1873 = vmatprep.subr.bf16.mxu0 0
    %1874 = vmatpush1.bf16.msra.mxu0 0
    %1875 = vmatprep.subr.bf16.mxu0 0
    %1876 = vmatpush1.bf16.msra.mxu0 0
    %1877 = vmatprep.subr.bf16.mxu0 0
    %1878 = vmatpush1.bf16.msra.mxu0 0
    %1879 = vmatprep.subr.bf16.mxu0 0
    %1880 = vmatpush1.bf16.msra.mxu0 0
    %1881 = vmatprep.subr.bf16.mxu0 0
    %1882 = vmatpush1.bf16.msra.mxu0 0
    %1883 = vmatprep.subr.bf16.mxu0 0
    %1884 = vmatpush1.bf16.msra.mxu0 0
    %1885 = vmatprep.subr.bf16.mxu0 0
    %1886 = vmatpush1.bf16.msra.mxu0 0
    %1887 = vmatprep.mubr.bf16.mxu0 0
    %1888 = vmatmul.mubr.bf16.gmra.mrb[0].mxu0 %v1666
    %v1889 = vpop.f32.mrb[0].mxu0
    %v1890 = vadd.f32 %v1680, %v1889
    %v1891 = vpop.f32.mrb[0].mxu0
    %v1892 = vpop.f32.mrb[0].mxu0
    %v1893 = vadd.f32 %v1680, %v1892
    %v1894 = vpop.f32.mrb[0].mxu0
    %1895 = vdwg.mxu0
    %v1896 = vpack.c.bf16 %v1851, %v1847
    %v1897 = vpack.c.bf16 %v1853, %v1849
    %1898 = vmatprep.subr.bf16.mxu0 0
    %1899 = vmatpush1.bf16.xpose.msra.mxu0 %v1897
    %1900 = vmatprep.subr.bf16.mxu0 0
    %1901 = vmatpush1.bf16.xpose.msra.mxu0 0
    %1902 = vmatprep.subr.bf16.mxu0 0
    %1903 = vmatpush1.bf16.xpose.msra.mxu0 0
    %1904 = vmatprep.subr.bf16.mxu0 0
    %1905 = vmatpush1.bf16.xpose.msra.mxu0 0
    %1906 = vmatprep.subr.bf16.mxu0 0
    %1907 = vmatpush1.bf16.xpose.msra.mxu0 0
    %1908 = vmatprep.subr.bf16.mxu0 0
    %1909 = vmatpush1.bf16.xpose.msra.mxu0 0
    %1910 = vmatprep.subr.bf16.mxu0 0
    %1911 = vmatpush1.bf16.xpose.msra.mxu0 0
    %1912 = vmatprep.subr.bf16.mxu0 0
    %1913 = vmatpush1.bf16.xpose.msra.mxu0 0
    %1914 = vmatprep.subr.bf16.mxu0 0
    %1915 = vmatpush1.bf16.xpose.msra.mxu0 0
    %1916 = vmatprep.subr.bf16.mxu0 0
    %1917 = vmatpush1.bf16.xpose.msra.mxu0 0
    %1918 = vmatprep.subr.bf16.mxu0 0
    %1919 = vmatpush1.bf16.xpose.msra.mxu0 0
    %1920 = vmatprep.subr.bf16.mxu0 0
    %1921 = vmatpush1.bf16.xpose.msra.mxu0 0
    %1922 = vmatprep.subr.bf16.mxu0 0
    %1923 = vmatpush1.bf16.xpose.msra.mxu0 0
    %1924 = vmatprep.subr.bf16.mxu0 0
    %1925 = vmatpush1.bf16.xpose.msra.mxu0 0
    %1926 = vmatprep.subr.bf16.mxu0 0
    %1927 = vmatpush1.bf16.xpose.msra.mxu0 0
    %1928 = vmatprep.subr.bf16.mxu0 0
    %1929 = vmatpush1.bf16.xpose.msra.mxu0 0
    %1930 = vmatprep.mubr.bf16.mxu0 0
    %1931 = vmatmul.mubr.bf16.gmra.mrb[0].mxu0 %v1896
    %v1932 = vpop.f32.mrb[0].mxu0
    %v1933 = vadd.f32 0.0, %v1932
    %v1934 = vpop.f32.mrb[0].mxu0
    %v1935 = vpop.f32.mrb[0].mxu0
    %v1936 = vadd.f32 0.0, %v1935
    %v1937 = vpop.f32.mrb[0].mxu0
    %1938 = vdwg.mxu0
    %v1939 = vmul.f32 %v1933, 0.088388346
    %v1940 = vmul.f32 %v1936, 0.088388346
    %vm1941 = vcmask 130048
    %v1942 = vsel %vm1941, %v1939, -inf
    %1943 = vmax.xlane.f32.xlu0 %v1942
    %v1944 = vpop.xlane.xlu0 %1943
    %v1945 = vsel %vm1941, %v1940, -inf
    %1946 = vmax.xlane.f32.xlu0 %v1945
    %v1947 = vpop.xlane.xlu0 %1946
    %v1948 = vsub.f32 %v1939, %v1944
    %v1949 = vsub.f32 %v1940, %v1947
    %v1950 = vmul.f32 %v1948, 1.442695
    %v1951 = vpow.pop %v1950
    %v1952 = vmul.f32 %v1949, 1.442695
    %v1953 = vpow.pop %v1952
    %v1954 = vsel %vm1941, %v1951, 0.0
    %1955 = vadd.xlane.f32.xlu0 %v1954
    %v1956 = vpop.xlane.xlu0 %1955
    %v1957 = vsel %vm1941, %v1953, 0.0
    %1958 = vadd.xlane.f32.xlu0 %v1957
    %v1959 = vpop.xlane.xlu0 %1958
    %v1960 = vpack.c.bf16 %v1953, %v1951
    %v1961 = vpack.c.bf16 %v1893, %v1890
    %v1963 = vsel %vm1941, %v1960, 0
    %1965 = vmatprep.subr.bf16.mxu0 0
    %1966 = vmatpush1.bf16.msra.mxu0 %v1961
    %1967 = vmatprep.subr.bf16.mxu0 0
    %1968 = vmatpush1.bf16.msra.mxu0 0
    %1969 = vmatprep.subr.bf16.mxu0 0
    %1970 = vmatpush1.bf16.msra.mxu0 0
    %1971 = vmatprep.subr.bf16.mxu0 0
    %1972 = vmatpush1.bf16.msra.mxu0 0
    %1973 = vmatprep.subr.bf16.mxu0 0
    %1974 = vmatpush1.bf16.msra.mxu0 0
    %1975 = vmatprep.subr.bf16.mxu0 0
    %1976 = vmatpush1.bf16.msra.mxu0 0
    %1977 = vmatprep.subr.bf16.mxu0 0
    %1978 = vmatpush1.bf16.msra.mxu0 0
    %1979 = vmatprep.subr.bf16.mxu0 0
    %1980 = vmatpush1.bf16.msra.mxu0 0
    %1981 = vmatprep.subr.bf16.mxu0 0
    %1982 = vmatpush1.bf16.msra.mxu0 0
    %1983 = vmatprep.subr.bf16.mxu0 0
    %1984 = vmatpush1.bf16.msra.mxu0 0
    %1985 = vmatprep.subr.bf16.mxu0 0
    %1986 = vmatpush1.bf16.msra.mxu0 0
    %1987 = vmatprep.subr.bf16.mxu0 0
    %1988 = vmatpush1.bf16.msra.mxu0 0
    %1989 = vmatprep.subr.bf16.mxu0 0
    %1990 = vmatpush1.bf16.msra.mxu0 0
    %1991 = vmatprep.subr.bf16.mxu0 0
    %1992 = vmatpush1.bf16.msra.mxu0 0
    %1993 = vmatprep.subr.bf16.mxu0 0
    %1994 = vmatpush1.bf16.msra.mxu0 0
    %1995 = vmatprep.subr.bf16.mxu0 0
    %1996 = vmatpush1.bf16.msra.mxu0 0
    %1997 = vmatprep.mubr.bf16.mxu0 0
    %1998 = vmatmul.mubr.bf16.gmra.mrb[0].mxu0 %v1963
    %v1999 = vpop.f32.mrb[0].mxu0
    %v2000 = vadd.f32 0.0, %v1999
    %v2001 = vpop.f32.mrb[0].mxu0
    %v2002 = vpop.f32.mrb[0].mxu0
    %v2003 = vadd.f32 0.0, %v2002
    %v2004 = vpop.f32.mrb[0].mxu0
    %2005 = vdwg.mxu0
    %v2006 = vrcp.pop %v1956
    %v2007 = vrcp.pop %v1959
    %v2008 = vmul.f32 %v2000, %v2006
    %v2009 = vmul.f32 %v2003, %v2007
    %v2010 = vld [vmem:[%s21] sm:$0xf]
    %v2011 = vld [vmem:[%s21 + $0x4] sm:$0xf]
    %v2012 = vld [vmem:[%s21 + $0x8] sm:$0xf]
    %v2013 = vld [vmem:[%s21 + $0xc] sm:$0xf]
    %v2014 = vld [vmem:[%s21 + $0x10] sm:$0xf]
    %v2015 = vld [vmem:[%s21 + $0x14] sm:$0xf]
    %v2016 = vld [vmem:[%s21 + $0x18] sm:$0xf]
    %v2017 = vld [vmem:[%s21 + $0x1c] sm:$0xf]
    %v2018 = vld [vmem:[%s21 + $0x20] sm:$0xf]
    %v2019 = vld [vmem:[%s21 + $0x24] sm:$0xf]
    %v2020 = vld [vmem:[%s21 + $0x28] sm:$0xf]
    %v2021 = vld [vmem:[%s21 + $0x2c] sm:$0xf]
    %v2022 = vld [vmem:[%s21 + $0x30] sm:$0xf]
    %v2023 = vld [vmem:[%s21 + $0x34] sm:$0xf]
    %v2024 = vld [vmem:[%s21 + $0x38] sm:$0xf]
    %v2025 = vld [vmem:[%s21 + $0x3c] sm:$0xf]
    %v2026 = vpack.c.bf16 %v2009, %v2008
    %v2043 = vunpack.c.l.b16 %v2010
    %v2044 = vunpack.c.l.b16 %v2011
    %v2045 = vunpack.c.l.b16 %v2012
    %v2046 = vunpack.c.l.b16 %v2013
    %v2047 = vunpack.c.l.b16 %v2014
    %v2048 = vunpack.c.l.b16 %v2015
    %v2049 = vunpack.c.l.b16 %v2016
    %v2050 = vunpack.c.l.b16 %v2017
    %v2051 = vunpack.c.l.b16 %v2018
    %v2052 = vunpack.c.l.b16 %v2019
    %v2053 = vunpack.c.l.b16 %v2020
    %v2054 = vunpack.c.l.b16 %v2021
    %v2055 = vunpack.c.l.b16 %v2022
    %v2056 = vunpack.c.l.b16 %v2023
    %v2057 = vunpack.c.l.b16 %v2024
    %v2058 = vunpack.c.l.b16 %v2025
    %v2059 = vpack.c.b16 %v2044, %v2043
    %v2060 = vpack.c.b16 %v2046, %v2045
    %v2061 = vpack.c.b16 %v2048, %v2047
    %v2062 = vpack.c.b16 %v2050, %v2049
    %v2063 = vpack.c.b16 %v2052, %v2051
    %v2064 = vpack.c.b16 %v2054, %v2053
    %v2065 = vpack.c.b16 %v2056, %v2055
    %v2066 = vpack.c.b16 %v2058, %v2057
    %2075 = vmatprep.subr.bf16.mxu0 0
    %2076 = vmatpush1.bf16.msra.mxu0 %v2059
    %2077 = vmatprep.subr.bf16.mxu0 0
    %2078 = vmatpush1.bf16.msra.mxu0 %v2060
    %2079 = vmatprep.subr.bf16.mxu0 0
    %2080 = vmatpush1.bf16.msra.mxu0 %v2061
    %2081 = vmatprep.subr.bf16.mxu0 0
    %2082 = vmatpush1.bf16.msra.mxu0 %v2062
    %2083 = vmatprep.subr.bf16.mxu0 0
    %2084 = vmatpush1.bf16.msra.mxu0 %v2063
    %2085 = vmatprep.subr.bf16.mxu0 0
    %2086 = vmatpush1.bf16.msra.mxu0 %v2064
    %2087 = vmatprep.subr.bf16.mxu0 0
    %2088 = vmatpush1.bf16.msra.mxu0 %v2065
    %2089 = vmatprep.subr.bf16.mxu0 0
    %2090 = vmatpush1.bf16.msra.mxu0 %v2066
    %2091 = vmatprep.subr.bf16.mxu0 0
    %2092 = vmatpush1.bf16.msra.mxu0 0
    %2093 = vmatprep.subr.bf16.mxu0 0
    %2094 = vmatpush1.bf16.msra.mxu0 0
    %2095 = vmatprep.subr.bf16.mxu0 0
    %2096 = vmatpush1.bf16.msra.mxu0 0
    %2097 = vmatprep.subr.bf16.mxu0 0
    %2098 = vmatpush1.bf16.msra.mxu0 0
    %2099 = vmatprep.subr.bf16.mxu0 0
    %2100 = vmatpush1.bf16.msra.mxu0 0
    %2101 = vmatprep.subr.bf16.mxu0 0
    %2102 = vmatpush1.bf16.msra.mxu0 0
    %2103 = vmatprep.subr.bf16.mxu0 0
    %2104 = vmatpush1.bf16.msra.mxu0 0
    %2105 = vmatprep.subr.bf16.mxu0 0
    %2106 = vmatpush1.bf16.msra.mxu0 0
    %2107 = vmatprep.mubr.bf16.mxu0 0
    %2108 = vmatmul.mubr.bf16.gmra.mrb[0].mxu0 %v2026
    %v2109 = vpop.f32.mrb[0].mxu0
    %v2110 = vadd.f32 0.0, %v2109
    %v2111 = vpop.f32.mrb[0].mxu0
    %v2112 = vpop.f32.mrb[0].mxu0
    %v2113 = vadd.f32 0.0, %v2112
    %v2114 = vpop.f32.mrb[0].mxu0
    %2115 = vdwg.mxu0
    %v2116 = vadd.f32 %v1586, %v2110
    %v2117 = vadd.f32 %v1587, %v2113
    %v2118 = vld [vmem:[%s23] sm:$0x1]
    %v2120 = vlaneseq
    %v2121 = vshrl.u32 %v2120, 7
    %v2122 = vsub.s32 0, %v2121
    %v2123 = vrot.slane %v2118, %v2122
    %v2125 = vadd.f32 %v2116, %v2123
    %v2126 = vadd.f32 %v2117, %v2123
    %v2127 = vld [vmem:[%s25] sm:$0x1]
    %v2128 = vld [vmem:[%s27] sm:$0x1]
    %2129 = vadd.xlane.f32.xlu0 %v2125
    %v2130 = vpop.xlane.xlu0 %2129
    %2131 = vadd.xlane.f32.xlu0 %v2126
    %v2132 = vpop.xlane.xlu0 %2131
    %v2133 = vmul.f32 %v2130, 0.0078125
    %v2134 = vmul.f32 %v2132, 0.0078125
    %v2135 = vmul.f32 %v2125, %v2125
    %v2136 = vmul.f32 %v2126, %v2126
    %2137 = vadd.xlane.f32.xlu0 %v2135
    %v2138 = vpop.xlane.xlu0 %2137
    %2139 = vadd.xlane.f32.xlu0 %v2136
    %v2140 = vpop.xlane.xlu0 %2139
    %v2141 = vmul.f32 %v2138, 0.0078125
    %v2142 = vmul.f32 %v2140, 0.0078125
    %v2143 = vmul.f32 %v2133, %v2133
    %v2144 = vmul.f32 %v2134, %v2134
    %v2145 = vsub.f32 %v2141, %v2143
    %v2146 = vsub.f32 %v2142, %v2144
    %v2147 = vmax.f32 %v2145, 0.0
    %v2148 = vmax.f32 %v2146, 0.0
    %v2149 = vsub.f32 %v2125, %v2133
    %v2150 = vsub.f32 %v2126, %v2134
    %v2151 = vadd.f32 %v2147, 1e-06
    %v2152 = vadd.f32 %v2148, 1e-06
    %v2153 = vrsqrt.pop %v2151
    %v2154 = vrsqrt.pop %v2152
    %v2155 = vmul.f32 %v2149, %v2153
    %v2156 = vmul.f32 %v2150, %v2154
    %v2158 = vlaneseq
    %v2159 = vshrl.u32 %v2158, 7
    %v2160 = vsub.s32 0, %v2159
    %v2161 = vrot.slane %v2127, %v2160
    %v2163 = vmul.f32 %v2155, %v2161
    %v2164 = vmul.f32 %v2156, %v2161
    %v2166 = vlaneseq
    %v2167 = vshrl.u32 %v2166, 7
    %v2168 = vsub.s32 0, %v2167
    %v2169 = vrot.slane %v2128, %v2168
    %v2171 = vadd.f32 %v2163, %v2169
    %v2172 = vadd.f32 %v2164, %v2169
    %v2173 = vld [vmem:[%s29] sm:$0xff]
    %v2174 = vld [vmem:[%s29 + $0x8] sm:$0xff]
    %v2175 = vld [vmem:[%s29 + $0x10] sm:$0xff]
    %v2176 = vld [vmem:[%s29 + $0x18] sm:$0xff]
    %v2177 = vld [vmem:[%s29 + $0x20] sm:$0xff]
    %v2178 = vld [vmem:[%s29 + $0x28] sm:$0xff]
    %v2179 = vld [vmem:[%s29 + $0x30] sm:$0xff]
    %v2180 = vld [vmem:[%s29 + $0x38] sm:$0xff]
    %v2181 = vld [vmem:[%s29 + $0x40] sm:$0xff]
    %v2182 = vld [vmem:[%s29 + $0x48] sm:$0xff]
    %v2183 = vld [vmem:[%s29 + $0x50] sm:$0xff]
    %v2184 = vld [vmem:[%s29 + $0x58] sm:$0xff]
    %v2185 = vld [vmem:[%s29 + $0x60] sm:$0xff]
    %v2186 = vld [vmem:[%s29 + $0x68] sm:$0xff]
    %v2187 = vld [vmem:[%s29 + $0x70] sm:$0xff]
    %v2188 = vld [vmem:[%s29 + $0x78] sm:$0xff]
    %v2189 = vld [vmem:[%s29 + $0x80] sm:$0xff]
    %v2190 = vld [vmem:[%s29 + $0x88] sm:$0xff]
    %v2191 = vld [vmem:[%s29 + $0x90] sm:$0xff]
    %v2192 = vld [vmem:[%s29 + $0x98] sm:$0xff]
    %v2193 = vld [vmem:[%s29 + $0xa0] sm:$0xff]
    %v2194 = vld [vmem:[%s29 + $0xa8] sm:$0xff]
    %v2195 = vld [vmem:[%s29 + $0xb0] sm:$0xff]
    %v2196 = vld [vmem:[%s29 + $0xb8] sm:$0xff]
    %v2197 = vld [vmem:[%s29 + $0xc0] sm:$0xff]
    %v2198 = vld [vmem:[%s29 + $0xc8] sm:$0xff]
    %v2199 = vld [vmem:[%s29 + $0xd0] sm:$0xff]
    %v2200 = vld [vmem:[%s29 + $0xd8] sm:$0xff]
    %v2201 = vld [vmem:[%s29 + $0xe0] sm:$0xff]
    %v2202 = vld [vmem:[%s29 + $0xe8] sm:$0xff]
    %v2203 = vld [vmem:[%s29 + $0xf0] sm:$0xff]
    %v2204 = vld [vmem:[%s29 + $0xf8] sm:$0xff]
    %v2205 = vpack.c.bf16 %v2172, %v2171
    %v2206 = vld [vmem:[%s31] sm:$0xf]
    %v2208 = vlaneseq
    %v2209 = vshrl.u32 %v2208, 7
    %v2210 = vsub.s32 0, %v2209
    %v2211 = vrot.slane %v2206, %v2210
    %v2212 = vlaneseq
    %v2213 = vshrl.u32 %v2212, 7
    %v2214 = vsub.s32 1, %v2213
    %v2215 = vrot.slane %v2206, %v2214
    %v2216 = vlaneseq
    %v2217 = vshrl.u32 %v2216, 7
    %v2218 = vsub.s32 2, %v2217
    %v2219 = vrot.slane %v2206, %v2218
    %v2220 = vlaneseq
    %v2221 = vshrl.u32 %v2220, 7
    %v2222 = vsub.s32 3, %v2221
    %v2223 = vrot.slane %v2206, %v2222
    %v2260 = vunpack.c.l.b16 %v2173
    %v2261 = vunpack.c.h.b16 %v2173
    %v2262 = vunpack.c.l.b16 %v2174
    %v2263 = vunpack.c.h.b16 %v2174
    %v2264 = vunpack.c.l.b16 %v2175
    %v2265 = vunpack.c.h.b16 %v2175
    %v2266 = vunpack.c.l.b16 %v2176
    %v2267 = vunpack.c.h.b16 %v2176
    %v2268 = vunpack.c.l.b16 %v2177
    %v2269 = vunpack.c.h.b16 %v2177
    %v2270 = vunpack.c.l.b16 %v2178
    %v2271 = vunpack.c.h.b16 %v2178
    %v2272 = vunpack.c.l.b16 %v2179
    %v2273 = vunpack.c.h.b16 %v2179
    %v2274 = vunpack.c.l.b16 %v2180
    %v2275 = vunpack.c.h.b16 %v2180
    %v2276 = vunpack.c.l.b16 %v2181
    %v2277 = vunpack.c.h.b16 %v2181
    %v2278 = vunpack.c.l.b16 %v2182
    %v2279 = vunpack.c.h.b16 %v2182
    %v2280 = vunpack.c.l.b16 %v2183
    %v2281 = vunpack.c.h.b16 %v2183
    %v2282 = vunpack.c.l.b16 %v2184
    %v2283 = vunpack.c.h.b16 %v2184
    %v2284 = vunpack.c.l.b16 %v2185
    %v2285 = vunpack.c.h.b16 %v2185
    %v2286 = vunpack.c.l.b16 %v2186
    %v2287 = vunpack.c.h.b16 %v2186
    %v2288 = vunpack.c.l.b16 %v2187
    %v2289 = vunpack.c.h.b16 %v2187
    %v2290 = vunpack.c.l.b16 %v2188
    %v2291 = vunpack.c.h.b16 %v2188
    %v2292 = vunpack.c.l.b16 %v2189
    %v2293 = vunpack.c.h.b16 %v2189
    %v2294 = vunpack.c.l.b16 %v2190
    %v2295 = vunpack.c.h.b16 %v2190
    %v2296 = vunpack.c.l.b16 %v2191
    %v2297 = vunpack.c.h.b16 %v2191
    %v2298 = vunpack.c.l.b16 %v2192
    %v2299 = vunpack.c.h.b16 %v2192
    %v2300 = vunpack.c.l.b16 %v2193
    %v2301 = vunpack.c.h.b16 %v2193
    %v2302 = vunpack.c.l.b16 %v2194
    %v2303 = vunpack.c.h.b16 %v2194
    %v2304 = vunpack.c.l.b16 %v2195
    %v2305 = vunpack.c.h.b16 %v2195
    %v2306 = vunpack.c.l.b16 %v2196
    %v2307 = vunpack.c.h.b16 %v2196
    %v2308 = vunpack.c.l.b16 %v2197
    %v2309 = vunpack.c.h.b16 %v2197
    %v2310 = vunpack.c.l.b16 %v2198
    %v2311 = vunpack.c.h.b16 %v2198
    %v2312 = vunpack.c.l.b16 %v2199
    %v2313 = vunpack.c.h.b16 %v2199
    %v2314 = vunpack.c.l.b16 %v2200
    %v2315 = vunpack.c.h.b16 %v2200
    %v2316 = vunpack.c.l.b16 %v2201
    %v2317 = vunpack.c.h.b16 %v2201
    %v2318 = vunpack.c.l.b16 %v2202
    %v2319 = vunpack.c.h.b16 %v2202
    %v2320 = vunpack.c.l.b16 %v2203
    %v2321 = vunpack.c.h.b16 %v2203
    %v2322 = vunpack.c.l.b16 %v2204
    %v2323 = vunpack.c.h.b16 %v2204
    %v2324 = vpack.c.b16 %v2264, %v2260
    %v2325 = vpack.c.b16 %v2265, %v2261
    %v2326 = vpack.c.b16 %v2266, %v2262
    %v2327 = vpack.c.b16 %v2267, %v2263
    %v2328 = vpack.c.b16 %v2272, %v2268
    %v2329 = vpack.c.b16 %v2273, %v2269
    %v2330 = vpack.c.b16 %v2274, %v2270
    %v2331 = vpack.c.b16 %v2275, %v2271
    %v2332 = vpack.c.b16 %v2280, %v2276
    %v2333 = vpack.c.b16 %v2281, %v2277
    %v2334 = vpack.c.b16 %v2282, %v2278
    %v2335 = vpack.c.b16 %v2283, %v2279
    %v2336 = vpack.c.b16 %v2288, %v2284
    %v2337 = vpack.c.b16 %v2289, %v2285
    %v2338 = vpack.c.b16 %v2290, %v2286
    %v2339 = vpack.c.b16 %v2291, %v2287
    %v2340 = vpack.c.b16 %v2296, %v2292
    %v2341 = vpack.c.b16 %v2297, %v2293
    %v2342 = vpack.c.b16 %v2298, %v2294
    %v2343 = vpack.c.b16 %v2299, %v2295
    %v2344 = vpack.c.b16 %v2304, %v2300
    %v2345 = vpack.c.b16 %v2305, %v2301
    %v2346 = vpack.c.b16 %v2306, %v2302
    %v2347 = vpack.c.b16 %v2307, %v2303
    %v2348 = vpack.c.b16 %v2312, %v2308
    %v2349 = vpack.c.b16 %v2313, %v2309
    %v2350 = vpack.c.b16 %v2314, %v2310
    %v2351 = vpack.c.b16 %v2315, %v2311
    %v2352 = vpack.c.b16 %v2320, %v2316
    %v2353 = vpack.c.b16 %v2321, %v2317
    %v2354 = vpack.c.b16 %v2322, %v2318
    %v2355 = vpack.c.b16 %v2323, %v2319
    %2388 = vmatprep.subr.bf16.mxu0 %v2325
    %2389 = vmatpush1.bf16.msra.mxu0 %v2324
    %2390 = vmatprep.subr.bf16.mxu0 %v2329
    %2391 = vmatpush1.bf16.msra.mxu0 %v2328
    %2392 = vmatprep.subr.bf16.mxu0 %v2333
    %2393 = vmatpush1.bf16.msra.mxu0 %v2332
    %2394 = vmatprep.subr.bf16.mxu0 %v2337
    %2395 = vmatpush1.bf16.msra.mxu0 %v2336
    %2396 = vmatprep.subr.bf16.mxu0 %v2341
    %2397 = vmatpush1.bf16.msra.mxu0 %v2340
    %2398 = vmatprep.subr.bf16.mxu0 %v2345
    %2399 = vmatpush1.bf16.msra.mxu0 %v2344
    %2400 = vmatprep.subr.bf16.mxu0 %v2349
    %2401 = vmatpush1.bf16.msra.mxu0 %v2348
    %2402 = vmatprep.subr.bf16.mxu0 %v2353
    %2403 = vmatpush1.bf16.msra.mxu0 %v2352
    %2404 = vmatprep.subr.bf16.mxu0 0
    %2405 = vmatpush1.bf16.msra.mxu0 0
    %2406 = vmatprep.subr.bf16.mxu0 0
    %2407 = vmatpush1.bf16.msra.mxu0 0
    %2408 = vmatprep.subr.bf16.mxu0 0
    %2409 = vmatpush1.bf16.msra.mxu0 0
    %2410 = vmatprep.subr.bf16.mxu0 0
    %2411 = vmatpush1.bf16.msra.mxu0 0
    %2412 = vmatprep.subr.bf16.mxu0 0
    %2413 = vmatpush1.bf16.msra.mxu0 0
    %2414 = vmatprep.subr.bf16.mxu0 0
    %2415 = vmatpush1.bf16.msra.mxu0 0
    %2416 = vmatprep.subr.bf16.mxu0 0
    %2417 = vmatpush1.bf16.msra.mxu0 0
    %2418 = vmatprep.subr.bf16.mxu0 0
    %2419 = vmatpush1.bf16.msra.mxu0 0
    %2420 = vmatprep.mubr.bf16.mxu0 0
    %2421 = vmatmul.mubr.bf16.gmra.mrb[0].mxu0 %v2205
    %v2422 = vpop.f32.mrb[0].mxu0
    %v2423 = vadd.f32 %v2211, %v2422
    %v2424 = vpop.f32.mrb[0].mxu0
    %v2425 = vadd.f32 %v2215, %v2424
    %v2426 = vpop.f32.mrb[0].mxu0
    %v2427 = vadd.f32 %v2211, %v2426
    %v2428 = vpop.f32.mrb[0].mxu0
    %v2429 = vadd.f32 %v2215, %v2428
    %2430 = vdwg.mxu0
    %2431 = vmatprep.subr.bf16.mxu0 %v2327
    %2432 = vmatpush1.bf16.msra.mxu0 %v2326
    %2433 = vmatprep.subr.bf16.mxu0 %v2331
    %2434 = vmatpush1.bf16.msra.mxu0 %v2330
    %2435 = vmatprep.subr.bf16.mxu0 %v2335
    %2436 = vmatpush1.bf16.msra.mxu0 %v2334
    %2437 = vmatprep.subr.bf16.mxu0 %v2339
    %2438 = vmatpush1.bf16.msra.mxu0 %v2338
    %2439 = vmatprep.subr.bf16.mxu0 %v2343
    %2440 = vmatpush1.bf16.msra.mxu0 %v2342
    %2441 = vmatprep.subr.bf16.mxu0 %v2347
    %2442 = vmatpush1.bf16.msra.mxu0 %v2346
    %2443 = vmatprep.subr.bf16.mxu0 %v2351
    %2444 = vmatpush1.bf16.msra.mxu0 %v2350
    %2445 = vmatprep.subr.bf16.mxu0 %v2355
    %2446 = vmatpush1.bf16.msra.mxu0 %v2354
    %2447 = vmatprep.subr.bf16.mxu0 0
    %2448 = vmatpush1.bf16.msra.mxu0 0
    %2449 = vmatprep.subr.bf16.mxu0 0
    %2450 = vmatpush1.bf16.msra.mxu0 0
    %2451 = vmatprep.subr.bf16.mxu0 0
    %2452 = vmatpush1.bf16.msra.mxu0 0
    %2453 = vmatprep.subr.bf16.mxu0 0
    %2454 = vmatpush1.bf16.msra.mxu0 0
    %2455 = vmatprep.subr.bf16.mxu0 0
    %2456 = vmatpush1.bf16.msra.mxu0 0
    %2457 = vmatprep.subr.bf16.mxu0 0
    %2458 = vmatpush1.bf16.msra.mxu0 0
    %2459 = vmatprep.subr.bf16.mxu0 0
    %2460 = vmatpush1.bf16.msra.mxu0 0
    %2461 = vmatprep.subr.bf16.mxu0 0
    %2462 = vmatpush1.bf16.msra.mxu0 0
    %2463 = vmatprep.mubr.bf16.mxu0 0
    %2464 = vmatmul.mubr.bf16.gmra.mrb[0].mxu0 %v2205
    %v2465 = vpop.f32.mrb[0].mxu0
    %v2466 = vadd.f32 %v2219, %v2465
    %v2467 = vpop.f32.mrb[0].mxu0
    %v2468 = vadd.f32 %v2223, %v2467
    %v2469 = vpop.f32.mrb[0].mxu0
    %v2470 = vadd.f32 %v2219, %v2469
    %v2471 = vpop.f32.mrb[0].mxu0
    %v2472 = vadd.f32 %v2223, %v2471
    %2473 = vdwg.mxu0
    %v2474 = vmul.f32 %v2423, %v2423
    %v2475 = vmul.f32 %v2425, %v2425
    %v2476 = vmul.f32 %v2466, %v2466
    %v2477 = vmul.f32 %v2468, %v2468
    %v2478 = vmul.f32 %v2427, %v2427
    %v2479 = vmul.f32 %v2429, %v2429
    %v2480 = vmul.f32 %v2470, %v2470
    %v2481 = vmul.f32 %v2472, %v2472
    %v2482 = vmul.f32 %v2423, %v2474
    %v2483 = vmul.f32 %v2425, %v2475
    %v2484 = vmul.f32 %v2466, %v2476
    %v2485 = vmul.f32 %v2468, %v2477
    %v2486 = vmul.f32 %v2427, %v2478
    %v2487 = vmul.f32 %v2429, %v2479
    %v2488 = vmul.f32 %v2470, %v2480
    %v2489 = vmul.f32 %v2472, %v2481
    %v2490 = vmul.f32 %v2482, 0.044715
    %v2491 = vmul.f32 %v2483, 0.044715
    %v2492 = vmul.f32 %v2484, 0.044715
    %v2493 = vmul.f32 %v2485, 0.044715
    %v2494 = vmul.f32 %v2486, 0.044715
    %v2495 = vmul.f32 %v2487, 0.044715
    %v2496 = vmul.f32 %v2488, 0.044715
    %v2497 = vmul.f32 %v2489, 0.044715
    %v2498 = vadd.f32 %v2423, %v2490
    %v2499 = vadd.f32 %v2425, %v2491
    %v2500 = vadd.f32 %v2466, %v2492
    %v2501 = vadd.f32 %v2468, %v2493
    %v2502 = vadd.f32 %v2427, %v2494
    %v2503 = vadd.f32 %v2429, %v2495
    %v2504 = vadd.f32 %v2470, %v2496
    %v2505 = vadd.f32 %v2472, %v2497
    %v2506 = vmul.f32 %v2498, 0.7978846
    %v2507 = vmul.f32 %v2499, 0.7978846
    %v2508 = vmul.f32 %v2500, 0.7978846
    %v2509 = vmul.f32 %v2501, 0.7978846
    %v2510 = vmul.f32 %v2502, 0.7978846
    %v2511 = vmul.f32 %v2503, 0.7978846
    %v2512 = vmul.f32 %v2504, 0.7978846
    %v2513 = vmul.f32 %v2505, 0.7978846
    %v2514 = vtanh.pop %v2506
    %v2515 = vtanh.pop %v2507
    %v2516 = vtanh.pop %v2508
    %v2517 = vtanh.pop %v2509
    %v2518 = vtanh.pop %v2510
    %v2519 = vtanh.pop %v2511
    %v2520 = vtanh.pop %v2512
    %v2521 = vtanh.pop %v2513
    %v2522 = vadd.f32 %v2514, 1.0
    %v2523 = vadd.f32 %v2515, 1.0
    %v2524 = vadd.f32 %v2516, 1.0
    %v2525 = vadd.f32 %v2517, 1.0
    %v2526 = vadd.f32 %v2518, 1.0
    %v2527 = vadd.f32 %v2519, 1.0
    %v2528 = vadd.f32 %v2520, 1.0
    %v2529 = vadd.f32 %v2521, 1.0
    %v2530 = vmul.f32 %v2522, 0.5
    %v2531 = vmul.f32 %v2523, 0.5
    %v2532 = vmul.f32 %v2524, 0.5
    %v2533 = vmul.f32 %v2525, 0.5
    %v2534 = vmul.f32 %v2526, 0.5
    %v2535 = vmul.f32 %v2527, 0.5
    %v2536 = vmul.f32 %v2528, 0.5
    %v2537 = vmul.f32 %v2529, 0.5
    %v2538 = vmul.f32 %v2423, %v2530
    %v2539 = vmul.f32 %v2425, %v2531
    %v2540 = vmul.f32 %v2466, %v2532
    %v2541 = vmul.f32 %v2468, %v2533
    %v2542 = vmul.f32 %v2427, %v2534
    %v2543 = vmul.f32 %v2429, %v2535
    %v2544 = vmul.f32 %v2470, %v2536
    %v2545 = vmul.f32 %v2472, %v2537
    %v2546 = vld [vmem:[%s33] sm:$0xf]
    %v2547 = vld [vmem:[%s33 + $0x4] sm:$0xf]
    %v2548 = vld [vmem:[%s33 + $0x8] sm:$0xf]
    %v2549 = vld [vmem:[%s33 + $0xc] sm:$0xf]
    %v2550 = vld [vmem:[%s33 + $0x10] sm:$0xf]
    %v2551 = vld [vmem:[%s33 + $0x14] sm:$0xf]
    %v2552 = vld [vmem:[%s33 + $0x18] sm:$0xf]
    %v2553 = vld [vmem:[%s33 + $0x1c] sm:$0xf]
    %v2554 = vld [vmem:[%s33 + $0x20] sm:$0xf]
    %v2555 = vld [vmem:[%s33 + $0x24] sm:$0xf]
    %v2556 = vld [vmem:[%s33 + $0x28] sm:$0xf]
    %v2557 = vld [vmem:[%s33 + $0x2c] sm:$0xf]
    %v2558 = vld [vmem:[%s33 + $0x30] sm:$0xf]
    %v2559 = vld [vmem:[%s33 + $0x34] sm:$0xf]
    %v2560 = vld [vmem:[%s33 + $0x38] sm:$0xf]
    %v2561 = vld [vmem:[%s33 + $0x3c] sm:$0xf]
    %v2562 = vld [vmem:[%s33 + $0x40] sm:$0xf]
    %v2563 = vld [vmem:[%s33 + $0x44] sm:$0xf]
    %v2564 = vld [vmem:[%s33 + $0x48] sm:$0xf]
    %v2565 = vld [vmem:[%s33 + $0x4c] sm:$0xf]
    %v2566 = vld [vmem:[%s33 + $0x50] sm:$0xf]
    %v2567 = vld [vmem:[%s33 + $0x54] sm:$0xf]
    %v2568 = vld [vmem:[%s33 + $0x58] sm:$0xf]
    %v2569 = vld [vmem:[%s33 + $0x5c] sm:$0xf]
    %v2570 = vld [vmem:[%s33 + $0x60] sm:$0xf]
    %v2571 = vld [vmem:[%s33 + $0x64] sm:$0xf]
    %v2572 = vld [vmem:[%s33 + $0x68] sm:$0xf]
    %v2573 = vld [vmem:[%s33 + $0x6c] sm:$0xf]
    %v2574 = vld [vmem:[%s33 + $0x70] sm:$0xf]
    %v2575 = vld [vmem:[%s33 + $0x74] sm:$0xf]
    %v2576 = vld [vmem:[%s33 + $0x78] sm:$0xf]
    %v2577 = vld [vmem:[%s33 + $0x7c] sm:$0xf]
    %v2578 = vld [vmem:[%s33 + $0x80] sm:$0xf]
    %v2579 = vld [vmem:[%s33 + $0x84] sm:$0xf]
    %v2580 = vld [vmem:[%s33 + $0x88] sm:$0xf]
    %v2581 = vld [vmem:[%s33 + $0x8c] sm:$0xf]
    %v2582 = vld [vmem:[%s33 + $0x90] sm:$0xf]
    %v2583 = vld [vmem:[%s33 + $0x94] sm:$0xf]
    %v2584 = vld [vmem:[%s33 + $0x98] sm:$0xf]
    %v2585 = vld [vmem:[%s33 + $0x9c] sm:$0xf]
    %v2586 = vld [vmem:[%s33 + $0xa0] sm:$0xf]
    %v2587 = vld [vmem:[%s33 + $0xa4] sm:$0xf]
    %v2588 = vld [vmem:[%s33 + $0xa8] sm:$0xf]
    %v2589 = vld [vmem:[%s33 + $0xac] sm:$0xf]
    %v2590 = vld [vmem:[%s33 + $0xb0] sm:$0xf]
    %v2591 = vld [vmem:[%s33 + $0xb4] sm:$0xf]
    %v2592 = vld [vmem:[%s33 + $0xb8] sm:$0xf]
    %v2593 = vld [vmem:[%s33 + $0xbc] sm:$0xf]
    %v2594 = vld [vmem:[%s33 + $0xc0] sm:$0xf]
    %v2595 = vld [vmem:[%s33 + $0xc4] sm:$0xf]
    %v2596 = vld [vmem:[%s33 + $0xc8] sm:$0xf]
    %v2597 = vld [vmem:[%s33 + $0xcc] sm:$0xf]
    %v2598 = vld [vmem:[%s33 + $0xd0] sm:$0xf]
    %v2599 = vld [vmem:[%s33 + $0xd4] sm:$0xf]
    %v2600 = vld [vmem:[%s33 + $0xd8] sm:$0xf]
    %v2601 = vld [vmem:[%s33 + $0xdc] sm:$0xf]
    %v2602 = vld [vmem:[%s33 + $0xe0] sm:$0xf]
    %v2603 = vld [vmem:[%s33 + $0xe4] sm:$0xf]
    %v2604 = vld [vmem:[%s33 + $0xe8] sm:$0xf]
    %v2605 = vld [vmem:[%s33 + $0xec] sm:$0xf]
    %v2606 = vld [vmem:[%s33 + $0xf0] sm:$0xf]
    %v2607 = vld [vmem:[%s33 + $0xf4] sm:$0xf]
    %v2608 = vld [vmem:[%s33 + $0xf8] sm:$0xf]
    %v2609 = vld [vmem:[%s33 + $0xfc] sm:$0xf]
    %v2610 = vpack.c.bf16 %v2542, %v2538
    %v2611 = vpack.c.bf16 %v2543, %v2539
    %v2612 = vpack.c.bf16 %v2544, %v2540
    %v2613 = vpack.c.bf16 %v2545, %v2541
    %v2678 = vunpack.c.l.b16 %v2546
    %v2679 = vunpack.c.l.b16 %v2547
    %v2680 = vunpack.c.l.b16 %v2548
    %v2681 = vunpack.c.l.b16 %v2549
    %v2682 = vunpack.c.l.b16 %v2550
    %v2683 = vunpack.c.l.b16 %v2551
    %v2684 = vunpack.c.l.b16 %v2552
    %v2685 = vunpack.c.l.b16 %v2553
    %v2686 = vunpack.c.l.b16 %v2554
    %v2687 = vunpack.c.l.b16 %v2555
    %v2688 = vunpack.c.l.b16 %v2556
    %v2689 = vunpack.c.l.b16 %v2557
    %v2690 = vunpack.c.l.b16 %v2558
    %v2691 = vunpack.c.l.b16 %v2559
    %v2692 = vunpack.c.l.b16 %v2560
    %v2693 = vunpack.c.l.b16 %v2561
    %v2694 = vunpack.c.l.b16 %v2562
    %v2695 = vunpack.c.l.b16 %v2563
    %v2696 = vunpack.c.l.b16 %v2564
    %v2697 = vunpack.c.l.b16 %v2565
    %v2698 = vunpack.c.l.b16 %v2566
    %v2699 = vunpack.c.l.b16 %v2567
    %v2700 = vunpack.c.l.b16 %v2568
    %v2701 = vunpack.c.l.b16 %v2569
    %v2702 = vunpack.c.l.b16 %v2570
    %v2703 = vunpack.c.l.b16 %v2571
    %v2704 = vunpack.c.l.b16 %v2572
    %v2705 = vunpack.c.l.b16 %v2573
    %v2706 = vunpack.c.l.b16 %v2574
    %v2707 = vunpack.c.l.b16 %v2575
    %v2708 = vunpack.c.l.b16 %v2576
    %v2709 = vunpack.c.l.b16 %v2577
    %v2710 = vunpack.c.l.b16 %v2578
    %v2711 = vunpack.c.l.b16 %v2579
    %v2712 = vunpack.c.l.b16 %v2580
    %v2713 = vunpack.c.l.b16 %v2581
    %v2714 = vunpack.c.l.b16 %v2582
    %v2715 = vunpack.c.l.b16 %v2583
    %v2716 = vunpack.c.l.b16 %v2584
    %v2717 = vunpack.c.l.b16 %v2585
    %v2718 = vunpack.c.l.b16 %v2586
    %v2719 = vunpack.c.l.b16 %v2587
    %v2720 = vunpack.c.l.b16 %v2588
    %v2721 = vunpack.c.l.b16 %v2589
    %v2722 = vunpack.c.l.b16 %v2590
    %v2723 = vunpack.c.l.b16 %v2591
    %v2724 = vunpack.c.l.b16 %v2592
    %v2725 = vunpack.c.l.b16 %v2593
    %v2726 = vunpack.c.l.b16 %v2594
    %v2727 = vunpack.c.l.b16 %v2595
    %v2728 = vunpack.c.l.b16 %v2596
    %v2729 = vunpack.c.l.b16 %v2597
    %v2730 = vunpack.c.l.b16 %v2598
    %v2731 = vunpack.c.l.b16 %v2599
    %v2732 = vunpack.c.l.b16 %v2600
    %v2733 = vunpack.c.l.b16 %v2601
    %v2734 = vunpack.c.l.b16 %v2602
    %v2735 = vunpack.c.l.b16 %v2603
    %v2736 = vunpack.c.l.b16 %v2604
    %v2737 = vunpack.c.l.b16 %v2605
    %v2738 = vunpack.c.l.b16 %v2606
    %v2739 = vunpack.c.l.b16 %v2607
    %v2740 = vunpack.c.l.b16 %v2608
    %v2741 = vunpack.c.l.b16 %v2609
    %v2742 = vpack.c.b16 %v2679, %v2678
    %v2743 = vpack.c.b16 %v2681, %v2680
    %v2744 = vpack.c.b16 %v2683, %v2682
    %v2745 = vpack.c.b16 %v2685, %v2684
    %v2746 = vpack.c.b16 %v2687, %v2686
    %v2747 = vpack.c.b16 %v2689, %v2688
    %v2748 = vpack.c.b16 %v2691, %v2690
    %v2749 = vpack.c.b16 %v2693, %v2692
    %v2750 = vpack.c.b16 %v2695, %v2694
    %v2751 = vpack.c.b16 %v2697, %v2696
    %v2752 = vpack.c.b16 %v2699, %v2698
    %v2753 = vpack.c.b16 %v2701, %v2700
    %v2754 = vpack.c.b16 %v2703, %v2702
    %v2755 = vpack.c.b16 %v2705, %v2704
    %v2756 = vpack.c.b16 %v2707, %v2706
    %v2757 = vpack.c.b16 %v2709, %v2708
    %v2758 = vpack.c.b16 %v2711, %v2710
    %v2759 = vpack.c.b16 %v2713, %v2712
    %v2760 = vpack.c.b16 %v2715, %v2714
    %v2761 = vpack.c.b16 %v2717, %v2716
    %v2762 = vpack.c.b16 %v2719, %v2718
    %v2763 = vpack.c.b16 %v2721, %v2720
    %v2764 = vpack.c.b16 %v2723, %v2722
    %v2765 = vpack.c.b16 %v2725, %v2724
    %v2766 = vpack.c.b16 %v2727, %v2726
    %v2767 = vpack.c.b16 %v2729, %v2728
    %v2768 = vpack.c.b16 %v2731, %v2730
    %v2769 = vpack.c.b16 %v2733, %v2732
    %v2770 = vpack.c.b16 %v2735, %v2734
    %v2771 = vpack.c.b16 %v2737, %v2736
    %v2772 = vpack.c.b16 %v2739, %v2738
    %v2773 = vpack.c.b16 %v2741, %v2740
    %2806 = vmatprep.subr.bf16.mxu0 0
    %2807 = vmatpush1.bf16.msra.mxu0 %v2742
    %2808 = vmatprep.subr.bf16.mxu0 0
    %2809 = vmatpush1.bf16.msra.mxu0 %v2743
    %2810 = vmatprep.subr.bf16.mxu0 0
    %2811 = vmatpush1.bf16.msra.mxu0 %v2744
    %2812 = vmatprep.subr.bf16.mxu0 0
    %2813 = vmatpush1.bf16.msra.mxu0 %v2745
    %2814 = vmatprep.subr.bf16.mxu0 0
    %2815 = vmatpush1.bf16.msra.mxu0 %v2746
    %2816 = vmatprep.subr.bf16.mxu0 0
    %2817 = vmatpush1.bf16.msra.mxu0 %v2747
    %2818 = vmatprep.subr.bf16.mxu0 0
    %2819 = vmatpush1.bf16.msra.mxu0 %v2748
    %2820 = vmatprep.subr.bf16.mxu0 0
    %2821 = vmatpush1.bf16.msra.mxu0 %v2749
    %2822 = vmatprep.subr.bf16.mxu0 0
    %2823 = vmatpush1.bf16.msra.mxu0 %v2750
    %2824 = vmatprep.subr.bf16.mxu0 0
    %2825 = vmatpush1.bf16.msra.mxu0 %v2751
    %2826 = vmatprep.subr.bf16.mxu0 0
    %2827 = vmatpush1.bf16.msra.mxu0 %v2752
    %2828 = vmatprep.subr.bf16.mxu0 0
    %2829 = vmatpush1.bf16.msra.mxu0 %v2753
    %2830 = vmatprep.subr.bf16.mxu0 0
    %2831 = vmatpush1.bf16.msra.mxu0 %v2754
    %2832 = vmatprep.subr.bf16.mxu0 0
    %2833 = vmatpush1.bf16.msra.mxu0 %v2755
    %2834 = vmatprep.subr.bf16.mxu0 0
    %2835 = vmatpush1.bf16.msra.mxu0 %v2756
    %2836 = vmatprep.subr.bf16.mxu0 0
    %2837 = vmatpush1.bf16.msra.mxu0 %v2757
    %2838 = vmatprep.mubr.bf16.mxu0 %v2611
    %2839 = vmatmul.mubr.bf16.gmra.mrb[0].mxu0 %v2610
    %v2840 = vpop.f32.mrb[0].mxu0
    %v2841 = vadd.f32 0.0, %v2840
    %v2842 = vpop.f32.mrb[0].mxu0
    %v2843 = vpop.f32.mrb[0].mxu0
    %v2844 = vadd.f32 0.0, %v2843
    %v2845 = vpop.f32.mrb[0].mxu0
    %2846 = vdwg.mxu0
    %2847 = vmatprep.subr.bf16.mxu0 0
    %2848 = vmatpush1.bf16.msra.mxu0 %v2758
    %2849 = vmatprep.subr.bf16.mxu0 0
    %2850 = vmatpush1.bf16.msra.mxu0 %v2759
    %2851 = vmatprep.subr.bf16.mxu0 0
    %2852 = vmatpush1.bf16.msra.mxu0 %v2760
    %2853 = vmatprep.subr.bf16.mxu0 0
    %2854 = vmatpush1.bf16.msra.mxu0 %v2761
    %2855 = vmatprep.subr.bf16.mxu0 0
    %2856 = vmatpush1.bf16.msra.mxu0 %v2762
    %2857 = vmatprep.subr.bf16.mxu0 0
    %2858 = vmatpush1.bf16.msra.mxu0 %v2763
    %2859 = vmatprep.subr.bf16.mxu0 0
    %2860 = vmatpush1.bf16.msra.mxu0 %v2764
    %2861 = vmatprep.subr.bf16.mxu0 0
    %2862 = vmatpush1.bf16.msra.mxu0 %v2765
    %2863 = vmatprep.subr.bf16.mxu0 0
    %2864 = vmatpush1.bf16.msra.mxu0 %v2766
    %2865 = vmatprep.subr.bf16.mxu0 0
    %2866 = vmatpush1.bf16.msra.mxu0 %v2767
    %2867 = vmatprep.subr.bf16.mxu0 0
    %2868 = vmatpush1.bf16.msra.mxu0 %v2768
    %2869 = vmatprep.subr.bf16.mxu0 0
    %2870 = vmatpush1.bf16.msra.mxu0 %v2769
    %2871 = vmatprep.subr.bf16.mxu0 0
    %2872 = vmatpush1.bf16.msra.mxu0 %v2770
    %2873 = vmatprep.subr.bf16.mxu0 0
    %2874 = vmatpush1.bf16.msra.mxu0 %v2771
    %2875 = vmatprep.subr.bf16.mxu0 0
    %2876 = vmatpush1.bf16.msra.mxu0 %v2772
    %2877 = vmatprep.subr.bf16.mxu0 0
    %2878 = vmatpush1.bf16.msra.mxu0 %v2773
    %2879 = vmatprep.mubr.bf16.mxu0 %v2613
    %2880 = vmatmul.mubr.bf16.gmra.mrb[0].mxu0 %v2612
    %v2881 = vpop.f32.mrb[0].mxu0
    %v2882 = vadd.f32 %v2841, %v2881
    %v2883 = vpop.f32.mrb[0].mxu0
    %v2884 = vpop.f32.mrb[0].mxu0
    %v2885 = vadd.f32 %v2844, %v2884
    %v2886 = vpop.f32.mrb[0].mxu0
    %2887 = vdwg.mxu0
    %v2888 = vadd.f32 %v2125, %v2882
    %v2889 = vadd.f32 %v2126, %v2885
    %v2890 = vld [vmem:[%s35] sm:$0x1]
    %v2892 = vlaneseq
    %v2893 = vshrl.u32 %v2892, 7
    %v2894 = vsub.s32 0, %v2893
    %v2895 = vrot.slane %v2890, %v2894
    %v2897 = vadd.f32 %v2888, %v2895
    %v2898 = vadd.f32 %v2889, %v2895
    %v2899 = vld [vmem:[%s37] sm:$0xf]
    %v2900 = vld [vmem:[%s37 + $0x4] sm:$0xf]
    %v2901 = vld [vmem:[%s37 + $0x8] sm:$0xf]
    %v2902 = vld [vmem:[%s37 + $0xc] sm:$0xf]
    %v2903 = vld [vmem:[%s37 + $0x10] sm:$0xf]
    %v2904 = vld [vmem:[%s37 + $0x14] sm:$0xf]
    %v2905 = vld [vmem:[%s37 + $0x18] sm:$0xf]
    %v2906 = vld [vmem:[%s37 + $0x1c] sm:$0xf]
    %v2907 = vld [vmem:[%s37 + $0x20] sm:$0xf]
    %v2908 = vld [vmem:[%s37 + $0x24] sm:$0xf]
    %v2909 = vld [vmem:[%s37 + $0x28] sm:$0xf]
    %v2910 = vld [vmem:[%s37 + $0x2c] sm:$0xf]
    %v2911 = vld [vmem:[%s37 + $0x30] sm:$0xf]
    %v2912 = vld [vmem:[%s37 + $0x34] sm:$0xf]
    %v2913 = vld [vmem:[%s37 + $0x38] sm:$0xf]
    %v2914 = vld [vmem:[%s37 + $0x3c] sm:$0xf]
    %v2915 = vpack.c.bf16 %v2898, %v2897
    %v2932 = vunpack.c.l.b16 %v2899
    %v2933 = vunpack.c.l.b16 %v2900
    %v2934 = vunpack.c.l.b16 %v2901
    %v2935 = vunpack.c.l.b16 %v2902
    %v2936 = vunpack.c.l.b16 %v2903
    %v2937 = vunpack.c.l.b16 %v2904
    %v2938 = vunpack.c.l.b16 %v2905
    %v2939 = vunpack.c.l.b16 %v2906
    %v2940 = vunpack.c.l.b16 %v2907
    %v2941 = vunpack.c.l.b16 %v2908
    %v2942 = vunpack.c.l.b16 %v2909
    %v2943 = vunpack.c.l.b16 %v2910
    %v2944 = vunpack.c.l.b16 %v2911
    %v2945 = vunpack.c.l.b16 %v2912
    %v2946 = vunpack.c.l.b16 %v2913
    %v2947 = vunpack.c.l.b16 %v2914
    %v2948 = vpack.c.b16 %v2933, %v2932
    %v2949 = vpack.c.b16 %v2935, %v2934
    %v2950 = vpack.c.b16 %v2937, %v2936
    %v2951 = vpack.c.b16 %v2939, %v2938
    %v2952 = vpack.c.b16 %v2941, %v2940
    %v2953 = vpack.c.b16 %v2943, %v2942
    %v2954 = vpack.c.b16 %v2945, %v2944
    %v2955 = vpack.c.b16 %v2947, %v2946
    %2964 = vmatprep.subr.bf16.mxu0 0
    %2965 = vmatpush1.bf16.msra.mxu0 %v2948
    %2966 = vmatprep.subr.bf16.mxu0 0
    %2967 = vmatpush1.bf16.msra.mxu0 %v2949
    %2968 = vmatprep.subr.bf16.mxu0 0
    %2969 = vmatpush1.bf16.msra.mxu0 %v2950
    %2970 = vmatprep.subr.bf16.mxu0 0
    %2971 = vmatpush1.bf16.msra.mxu0 %v2951
    %2972 = vmatprep.subr.bf16.mxu0 0
    %2973 = vmatpush1.bf16.msra.mxu0 %v2952
    %2974 = vmatprep.subr.bf16.mxu0 0
    %2975 = vmatpush1.bf16.msra.mxu0 %v2953
    %2976 = vmatprep.subr.bf16.mxu0 0
    %2977 = vmatpush1.bf16.msra.mxu0 %v2954
    %2978 = vmatprep.subr.bf16.mxu0 0
    %2979 = vmatpush1.bf16.msra.mxu0 %v2955
    %2980 = vmatprep.subr.bf16.mxu0 0
    %2981 = vmatpush1.bf16.msra.mxu0 0
    %2982 = vmatprep.subr.bf16.mxu0 0
    %2983 = vmatpush1.bf16.msra.mxu0 0
    %2984 = vmatprep.subr.bf16.mxu0 0
    %2985 = vmatpush1.bf16.msra.mxu0 0
    %2986 = vmatprep.subr.bf16.mxu0 0
    %2987 = vmatpush1.bf16.msra.mxu0 0
    %2988 = vmatprep.subr.bf16.mxu0 0
    %2989 = vmatpush1.bf16.msra.mxu0 0
    %2990 = vmatprep.subr.bf16.mxu0 0
    %2991 = vmatpush1.bf16.msra.mxu0 0
    %2992 = vmatprep.subr.bf16.mxu0 0
    %2993 = vmatpush1.bf16.msra.mxu0 0
    %2994 = vmatprep.subr.bf16.mxu0 0
    %2995 = vmatpush1.bf16.msra.mxu0 0
    %2996 = vmatprep.mubr.bf16.mxu0 0
    %2997 = vmatmul.mubr.bf16.gmra.mrb[0].mxu0 %v2915
    %v2998 = vpop.f32.mrb[0].mxu0
    %v2999 = vadd.f32 0.0, %v2998
    %v3000 = vpop.f32.mrb[0].mxu0
    %v3001 = vpop.f32.mrb[0].mxu0
    %v3002 = vadd.f32 0.0, %v3001
    %v3003 = vpop.f32.mrb[0].mxu0
    %3004 = vdwg.mxu0
    %v3005 = vld [vmem:[%s39] sm:$0x1]
    %v3006 = vld [vmem:[%s41] sm:$0x1]
    %vm3007 = vcmask 261120
    %v3008 = vsel %vm3007, %v2999, 0.0
    %3009 = vadd.xlane.f32.xlu0 %v3008
    %v3010 = vpop.xlane.xlu0 %3009
    %v3011 = vsel %vm3007, %v3002, 0.0
    %3012 = vadd.xlane.f32.xlu0 %v3011
    %v3013 = vpop.xlane.xlu0 %3012
    %v3014 = vmul.f32 %v3010, 0.03125
    %v3015 = vmul.f32 %v3013, 0.03125
    %v3016 = vmul.f32 %v2999, %v2999
    %v3017 = vmul.f32 %v3002, %v3002
    %v3018 = vsel %vm3007, %v3016, 0.0
    %3019 = vadd.xlane.f32.xlu0 %v3018
    %v3020 = vpop.xlane.xlu0 %3019
    %v3021 = vsel %vm3007, %v3017, 0.0
    %3022 = vadd.xlane.f32.xlu0 %v3021
    %v3023 = vpop.xlane.xlu0 %3022
    %v3024 = vmul.f32 %v3020, 0.03125
    %v3025 = vmul.f32 %v3023, 0.03125
    %v3026 = vmul.f32 %v3014, %v3014
    %v3027 = vmul.f32 %v3015, %v3015
    %v3028 = vsub.f32 %v3024, %v3026
    %v3029 = vsub.f32 %v3025, %v3027
    %v3030 = vmax.f32 %v3028, 0.0
    %v3031 = vmax.f32 %v3029, 0.0
    %v3032 = vsub.f32 %v2999, %v3014
    %v3033 = vsub.f32 %v3002, %v3015
    %v3034 = vadd.f32 %v3030, 1e-06
    %v3035 = vadd.f32 %v3031, 1e-06
    %v3036 = vrsqrt.pop %v3034
    %v3037 = vrsqrt.pop %v3035
    %v3038 = vmul.f32 %v3032, %v3036
    %v3039 = vmul.f32 %v3033, %v3037
    %v3041 = vlaneseq
    %v3042 = vshrl.u32 %v3041, 7
    %v3043 = vsub.s32 0, %v3042
    %v3044 = vrot.slane %v3005, %v3043
    %v3046 = vmul.f32 %v3038, %v3044
    %v3047 = vmul.f32 %v3039, %v3044
    %v3049 = vlaneseq
    %v3050 = vshrl.u32 %v3049, 7
    %v3051 = vsub.s32 0, %v3050
    %v3052 = vrot.slane %v3006, %v3051
    %v3054 = vadd.f32 %v3046, %v3052
    %v3055 = vadd.f32 %v3047, %v3052
    %v3056 = vld [vmem:[%s43] sm:$0xf]
    %v3057 = vld [vmem:[%s43 + $0x4] sm:$0xf]
    %v3058 = vld [vmem:[%s43 + $0x8] sm:$0xf]
    %v3059 = vld [vmem:[%s43 + $0xc] sm:$0xf]
    %v3060 = vld [vmem:[%s43 + $0x10] sm:$0xf]
    %v3061 = vld [vmem:[%s43 + $0x14] sm:$0xf]
    %v3062 = vld [vmem:[%s43 + $0x18] sm:$0xf]
    %v3063 = vld [vmem:[%s43 + $0x1c] sm:$0xf]
    %v3064 = vld [vmem:[%s43 + $0x20] sm:$0xf]
    %v3065 = vld [vmem:[%s43 + $0x24] sm:$0xf]
    %v3066 = vld [vmem:[%s43 + $0x28] sm:$0xf]
    %v3067 = vld [vmem:[%s43 + $0x2c] sm:$0xf]
    %v3068 = vld [vmem:[%s43 + $0x30] sm:$0xf]
    %v3069 = vld [vmem:[%s43 + $0x34] sm:$0xf]
    %v3070 = vld [vmem:[%s43 + $0x38] sm:$0xf]
    %v3071 = vld [vmem:[%s43 + $0x3c] sm:$0xf]
    %v3072 = vld [vmem:[%s43 + $0x40] sm:$0xf]
    %v3073 = vld [vmem:[%s43 + $0x44] sm:$0xf]
    %v3074 = vpack.c.bf16 %v3055, %v3054
    %v3093 = vunpack.c.l.b16 %v3056
    %v3094 = vunpack.c.l.b16 %v3057
    %v3095 = vunpack.c.l.b16 %v3058
    %v3096 = vunpack.c.l.b16 %v3059
    %v3097 = vunpack.c.l.b16 %v3060
    %v3098 = vunpack.c.l.b16 %v3061
    %v3099 = vunpack.c.l.b16 %v3062
    %v3100 = vunpack.c.l.b16 %v3063
    %v3101 = vunpack.c.l.b16 %v3064
    %v3102 = vunpack.c.l.b16 %v3065
    %v3103 = vunpack.c.l.b16 %v3066
    %v3104 = vunpack.c.l.b16 %v3067
    %v3105 = vunpack.c.l.b16 %v3068
    %v3106 = vunpack.c.l.b16 %v3069
    %v3107 = vunpack.c.l.b16 %v3070
    %v3108 = vunpack.c.l.b16 %v3071
    %v3109 = vunpack.c.l.b16 %v3072
    %v3110 = vunpack.c.l.b16 %v3073
    %v3111 = vpack.c.b16 %v3094, %v3093
    %v3112 = vpack.c.b16 %v3096, %v3095
    %v3113 = vpack.c.b16 %v3098, %v3097
    %v3114 = vpack.c.b16 %v3100, %v3099
    %v3115 = vpack.c.b16 %v3102, %v3101
    %v3116 = vpack.c.b16 %v3104, %v3103
    %v3117 = vpack.c.b16 %v3106, %v3105
    %v3118 = vpack.c.b16 %v3108, %v3107
    %v3119 = vpack.c.b16 %v3110, %v3109
    %v3121 = vsel %vm1941, %v3111, 0
    %v3124 = vsel %vm1941, %v3112, 0
    %v3127 = vsel %vm1941, %v3113, 0
    %v3130 = vsel %vm1941, %v3114, 0
    %v3133 = vsel %vm1941, %v3115, 0
    %v3136 = vsel %vm1941, %v3116, 0
    %v3139 = vsel %vm1941, %v3117, 0
    %v3142 = vsel %vm1941, %v3118, 0
    %v3145 = vsel %vm1941, %v3119, 0
    %3147 = vmatprep.subr.bf16.mxu0 0
    %3148 = vmatpush1.bf16.msra.mxu0 %v3074
    %3149 = vmatprep.subr.bf16.mxu0 0
    %3150 = vmatpush1.bf16.msra.mxu0 0
    %3151 = vmatprep.subr.bf16.mxu0 0
    %3152 = vmatpush1.bf16.msra.mxu0 0
    %3153 = vmatprep.subr.bf16.mxu0 0
    %3154 = vmatpush1.bf16.msra.mxu0 0
    %3155 = vmatprep.subr.bf16.mxu0 0
    %3156 = vmatpush1.bf16.msra.mxu0 0
    %3157 = vmatprep.subr.bf16.mxu0 0
    %3158 = vmatpush1.bf16.msra.mxu0 0
    %3159 = vmatprep.subr.bf16.mxu0 0
    %3160 = vmatpush1.bf16.msra.mxu0 0
    %3161 = vmatprep.subr.bf16.mxu0 0
    %3162 = vmatpush1.bf16.msra.mxu0 0
    %3163 = vmatprep.subr.bf16.mxu0 0
    %3164 = vmatpush1.bf16.msra.mxu0 0
    %3165 = vmatprep.subr.bf16.mxu0 0
    %3166 = vmatpush1.bf16.msra.mxu0 0
    %3167 = vmatprep.subr.bf16.mxu0 0
    %3168 = vmatpush1.bf16.msra.mxu0 0
    %3169 = vmatprep.subr.bf16.mxu0 0
    %3170 = vmatpush1.bf16.msra.mxu0 0
    %3171 = vmatprep.subr.bf16.mxu0 0
    %3172 = vmatpush1.bf16.msra.mxu0 0
    %3173 = vmatprep.subr.bf16.mxu0 0
    %3174 = vmatpush1.bf16.msra.mxu0 0
    %3175 = vmatprep.subr.bf16.mxu0 0
    %3176 = vmatpush1.bf16.msra.mxu0 0
    %3177 = vmatprep.subr.bf16.mxu0 0
    %3178 = vmatpush1.bf16.msra.mxu0 0
    %3179 = vmatprep.mubr.bf16.mxu0 0
    %3180 = vmatmul.mubr.bf16.gmra.mrb[0].mxu0 %v3121
    %v3181 = vpop.f32.mrb[0].mxu0
    %v3182 = vadd.f32 0.0, %v3181
    %v3183 = vpop.f32.mrb[0].mxu0
    %v3184 = vpop.f32.mrb[0].mxu0
    %v3185 = vadd.f32 0.0, %v3184
    %v3186 = vpop.f32.mrb[0].mxu0
    %3187 = vmatprep.mubr.bf16.mxu0 0
    %3188 = vmatmul.mubr.bf16.gmra.mrb[0].mxu0 %v3124
    %v3189 = vpop.f32.mrb[0].mxu0
    %v3190 = vadd.f32 0.0, %v3189
    %v3191 = vpop.f32.mrb[0].mxu0
    %v3192 = vpop.f32.mrb[0].mxu0
    %v3193 = vadd.f32 0.0, %v3192
    %v3194 = vpop.f32.mrb[0].mxu0
    %3195 = vmatprep.mubr.bf16.mxu0 0
    %3196 = vmatmul.mubr.bf16.gmra.mrb[0].mxu0 %v3127
    %v3197 = vpop.f32.mrb[0].mxu0
    %v3198 = vadd.f32 0.0, %v3197
    %v3199 = vpop.f32.mrb[0].mxu0
    %v3200 = vpop.f32.mrb[0].mxu0
    %v3201 = vadd.f32 0.0, %v3200
    %v3202 = vpop.f32.mrb[0].mxu0
    %3203 = vmatprep.mubr.bf16.mxu0 0
    %3204 = vmatmul.mubr.bf16.gmra.mrb[0].mxu0 %v3130
    %v3205 = vpop.f32.mrb[0].mxu0
    %v3206 = vadd.f32 0.0, %v3205
    %v3207 = vpop.f32.mrb[0].mxu0
    %v3208 = vpop.f32.mrb[0].mxu0
    %v3209 = vadd.f32 0.0, %v3208
    %v3210 = vpop.f32.mrb[0].mxu0
    %3211 = vmatprep.mubr.bf16.mxu0 0
    %3212 = vmatmul.mubr.bf16.gmra.mrb[0].mxu0 %v3133
    %v3213 = vpop.f32.mrb[0].mxu0
    %v3214 = vadd.f32 0.0, %v3213
    %v3215 = vpop.f32.mrb[0].mxu0
    %v3216 = vpop.f32.mrb[0].mxu0
    %v3217 = vadd.f32 0.0, %v3216
    %v3218 = vpop.f32.mrb[0].mxu0
    %3219 = vmatprep.mubr.bf16.mxu0 0
    %3220 = vmatmul.mubr.bf16.gmra.mrb[0].mxu0 %v3136
    %v3221 = vpop.f32.mrb[0].mxu0
    %v3222 = vadd.f32 0.0, %v3221
    %v3223 = vpop.f32.mrb[0].mxu0
    %v3224 = vpop.f32.mrb[0].mxu0
    %v3225 = vadd.f32 0.0, %v3224
    %v3226 = vpop.f32.mrb[0].mxu0
    %3227 = vmatprep.mubr.bf16.mxu0 0
    %3228 = vmatmul.mubr.bf16.gmra.mrb[0].mxu0 %v3139
    %v3229 = vpop.f32.mrb[0].mxu0
    %v3230 = vadd.f32 0.0, %v3229
    %v3231 = vpop.f32.mrb[0].mxu0
    %v3232 = vpop.f32.mrb[0].mxu0
    %v3233 = vadd.f32 0.0, %v3232
    %v3234 = vpop.f32.mrb[0].mxu0
    %3235 = vmatprep.mubr.bf16.mxu0 0
    %3236 = vmatmul.mubr.bf16.gmra.mrb[0].mxu0 %v3142
    %v3237 = vpop.f32.mrb[0].mxu0
    %v3238 = vadd.f32 0.0, %v3237
    %v3239 = vpop.f32.mrb[0].mxu0
    %v3240 = vpop.f32.mrb[0].mxu0
    %v3241 = vadd.f32 0.0, %v3240
    %v3242 = vpop.f32.mrb[0].mxu0
    %3243 = vmatprep.mubr.bf16.mxu0 0
    %3244 = vmatmul.mubr.bf16.gmra.mrb[0].mxu0 %v3145
    %v3245 = vpop.f32.mrb[0].mxu0
    %v3246 = vadd.f32 0.0, %v3245
    %v3247 = vpop.f32.mrb[0].mxu0
    %v3248 = vpop.f32.mrb[0].mxu0
    %v3249 = vadd.f32 0.0, %v3248
    %v3250 = vpop.f32.mrb[0].mxu0
    %3251 = vdwg.mxu0
    %3254 = vrot.lane.b32.xlu0 %v3190, 32
    %v3255 = vpop.permute.xlu0 %3254
    %3256 = vrot.lane.b32.xlu0 %v3193, 32
    %v3257 = vpop.permute.xlu0 %3256
    %3262 = vrot.lane.b32.xlu0 %v3198, 64
    %v3263 = vpop.permute.xlu0 %3262
    %3264 = vrot.lane.b32.xlu0 %v3201, 64
    %v3265 = vpop.permute.xlu0 %3264
    %3270 = vrot.lane.b32.xlu0 %v3206, 96
    %v3271 = vpop.permute.xlu0 %3270
    %3272 = vrot.lane.b32.xlu0 %v3209, 96
    %v3273 = vpop.permute.xlu0 %3272
    %3278 = vrot.lane.b32.xlu0 %v3222, 32
    %v3279 = vpop.permute.xlu0 %3278
    %3280 = vrot.lane.b32.xlu0 %v3225, 32
    %v3281 = vpop.permute.xlu0 %3280
    %3286 = vrot.lane.b32.xlu0 %v3230, 64
    %v3287 = vpop.permute.xlu0 %3286
    %3288 = vrot.lane.b32.xlu0 %v3233, 64
    %v3289 = vpop.permute.xlu0 %3288
    %3294 = vrot.lane.b32.xlu0 %v3238, 96
    %v3295 = vpop.permute.xlu0 %3294
    %3296 = vrot.lane.b32.xlu0 %v3241, 96
    %v3297 = vpop.permute.xlu0 %3296
    %v3300 = vsel %vm3007, %v3182, %v3255
    %v3301 = vsel %vm3007, %v3185, %v3257
    %v3302 = vsel %vm1539, %v3300, %v3263
    %v3303 = vsel %vm1539, %v3301, %v3265
    %vm3304 = vcmask 785408
    %v3305 = vsel %vm3304, %v3302, %v3271
    %v3306 = vsel %vm3304, %v3303, %v3273
    %v3307 = vsel %vm3007, %v3214, %v3279
    %v3308 = vsel %vm3007, %v3217, %v3281
    %v3309 = vsel %vm1539, %v3307, %v3287
    %v3310 = vsel %vm1539, %v3308, %v3289
    %v3311 = vsel %vm3304, %v3309, %v3295
    %v3312 = vsel %vm3304, %v3310, %v3297
    %v3313 = vpack.c.bf16 %v3306, %v3305
    %v3314 = vpack.c.bf16 %v3312, %v3311
    %v3315 = vpack.c.bf16 %v3249, %v3246
    %v3316 = vld [vmem:[%s45] sm:$0xf]
    %v3317 = vld [vmem:[%s45 + $0x4] sm:$0xf]
    %v3318 = vld [vmem:[%s45 + $0x8] sm:$0xf]
    %v3319 = vld [vmem:[%s45 + $0xc] sm:$0xf]
    %v3320 = vld [vmem:[%s45 + $0x10] sm:$0xf]
    %v3321 = vld [vmem:[%s45 + $0x14] sm:$0xf]
    %v3322 = vld [vmem:[%s45 + $0x18] sm:$0xf]
    %v3323 = vld [vmem:[%s45 + $0x1c] sm:$0xf]
    %v3324 = vld [vmem:[%s45 + $0x20] sm:$0xf]
    %v3325 = vld [vmem:[%s45 + $0x24] sm:$0xf]
    %v3326 = vld [vmem:[%s45 + $0x28] sm:$0xf]
    %v3327 = vld [vmem:[%s45 + $0x2c] sm:$0xf]
    %v3328 = vld [vmem:[%s45 + $0x30] sm:$0xf]
    %v3329 = vld [vmem:[%s45 + $0x34] sm:$0xf]
    %v3330 = vld [vmem:[%s45 + $0x38] sm:$0xf]
    %v3331 = vld [vmem:[%s45 + $0x3c] sm:$0xf]
    %v3332 = vld [vmem:[%s45 + $0x40] sm:$0xf]
    %v3333 = vld [vmem:[%s45 + $0x44] sm:$0xf]
    %v3334 = vld [vmem:[%s45 + $0x48] sm:$0xf]
    %v3335 = vld [vmem:[%s45 + $0x4c] sm:$0xf]
    %v3336 = vld [vmem:[%s45 + $0x50] sm:$0xf]
    %v3337 = vld [vmem:[%s45 + $0x54] sm:$0xf]
    %v3338 = vld [vmem:[%s45 + $0x58] sm:$0xf]
    %v3339 = vld [vmem:[%s45 + $0x5c] sm:$0xf]
    %v3340 = vld [vmem:[%s45 + $0x60] sm:$0xf]
    %v3341 = vld [vmem:[%s45 + $0x64] sm:$0xf]
    %v3342 = vld [vmem:[%s45 + $0x68] sm:$0xf]
    %v3343 = vld [vmem:[%s45 + $0x6c] sm:$0xf]
    %v3344 = vld [vmem:[%s45 + $0x70] sm:$0xf]
    %v3345 = vld [vmem:[%s45 + $0x74] sm:$0xf]
    %v3346 = vld [vmem:[%s45 + $0x78] sm:$0xf]
    %v3347 = vld [vmem:[%s45 + $0x7c] sm:$0xf]
    %v3348 = vld [vmem:[%s45 + $0x80] sm:$0xf]
    %v3349 = vld [vmem:[%s45 + $0x84] sm:$0xf]
    %v3350 = vld [vmem:[%s45 + $0x88] sm:$0xf]
    %v3351 = vld [vmem:[%s45 + $0x8c] sm:$0xf]
    %v3388 = vunpack.c.l.b16 %v3316
    %v3389 = vunpack.c.l.b16 %v3317
    %v3390 = vunpack.c.l.b16 %v3318
    %v3391 = vunpack.c.l.b16 %v3319
    %v3392 = vunpack.c.l.b16 %v3320
    %v3393 = vunpack.c.l.b16 %v3321
    %v3394 = vunpack.c.l.b16 %v3322
    %v3395 = vunpack.c.l.b16 %v3323
    %v3396 = vunpack.c.l.b16 %v3324
    %v3397 = vunpack.c.l.b16 %v3325
    %v3398 = vunpack.c.l.b16 %v3326
    %v3399 = vunpack.c.l.b16 %v3327
    %v3400 = vunpack.c.l.b16 %v3328
    %v3401 = vunpack.c.l.b16 %v3329
    %v3402 = vunpack.c.l.b16 %v3330
    %v3403 = vunpack.c.l.b16 %v3331
    %v3404 = vunpack.c.l.b16 %v3332
    %v3405 = vunpack.c.l.b16 %v3333
    %v3406 = vunpack.c.l.b16 %v3334
    %v3407 = vunpack.c.l.b16 %v3335
    %v3408 = vunpack.c.l.b16 %v3336
    %v3409 = vunpack.c.l.b16 %v3337
    %v3410 = vunpack.c.l.b16 %v3338
    %v3411 = vunpack.c.l.b16 %v3339
    %v3412 = vunpack.c.l.b16 %v3340
    %v3413 = vunpack.c.l.b16 %v3341
    %v3414 = vunpack.c.l.b16 %v3342
    %v3415 = vunpack.c.l.b16 %v3343
    %v3416 = vunpack.c.l.b16 %v3344
    %v3417 = vunpack.c.l.b16 %v3345
    %v3418 = vunpack.c.l.b16 %v3346
    %v3419 = vunpack.c.l.b16 %v3347
    %v3420 = vunpack.c.l.b16 %v3348
    %v3421 = vunpack.c.l.b16 %v3349
    %v3422 = vunpack.c.l.b16 %v3350
    %v3423 = vunpack.c.l.b16 %v3351
    %v3424 = vpack.c.b16 %v3389, %v3388
    %v3425 = vpack.c.b16 %v3391, %v3390
    %v3426 = vpack.c.b16 %v3393, %v3392
    %v3427 = vpack.c.b16 %v3395, %v3394
    %v3428 = vpack.c.b16 %v3397, %v3396
    %v3429 = vpack.c.b16 %v3399, %v3398
    %v3430 = vpack.c.b16 %v3401, %v3400
    %v3431 = vpack.c.b16 %v3403, %v3402
    %v3432 = vpack.c.b16 %v3405, %v3404
    %v3433 = vpack.c.b16 %v3407, %v3406
    %v3434 = vpack.c.b16 %v3409, %v3408
    %v3435 = vpack.c.b16 %v3411, %v3410
    %v3436 = vpack.c.b16 %v3413, %v3412
    %v3437 = vpack.c.b16 %v3415, %v3414
    %v3438 = vpack.c.b16 %v3417, %v3416
    %v3439 = vpack.c.b16 %v3419, %v3418
    %v3440 = vpack.c.b16 %v3421, %v3420
    %v3441 = vpack.c.b16 %v3423, %v3422
    %v3461 = vsel %vm3007, %v3315, 0
    %3463 = vmatprep.subr.bf16.mxu0 0
    %3464 = vmatpush1.bf16.msra.mxu0 %v3424
    %3465 = vmatprep.subr.bf16.mxu0 0
    %3466 = vmatpush1.bf16.msra.mxu0 %v3425
    %3467 = vmatprep.subr.bf16.mxu0 0
    %3468 = vmatpush1.bf16.msra.mxu0 %v3426
    %3469 = vmatprep.subr.bf16.mxu0 0
    %3470 = vmatpush1.bf16.msra.mxu0 %v3427
    %3471 = vmatprep.subr.bf16.mxu0 0
    %3472 = vmatpush1.bf16.msra.mxu0 %v3428
    %3473 = vmatprep.subr.bf16.mxu0 0
    %3474 = vmatpush1.bf16.msra.mxu0 %v3429
    %3475 = vmatprep.subr.bf16.mxu0 0
    %3476 = vmatpush1.bf16.msra.mxu0 %v3430
    %3477 = vmatprep.subr.bf16.mxu0 0
    %3478 = vmatpush1.bf16.msra.mxu0 %v3431
    %3479 = vmatprep.subr.bf16.mxu0 0
    %3480 = vmatpush1.bf16.msra.mxu0 %v3432
    %3481 = vmatprep.subr.bf16.mxu0 0
    %3482 = vmatpush1.bf16.msra.mxu0 %v3433
    %3483 = vmatprep.subr.bf16.mxu0 0
    %3484 = vmatpush1.bf16.msra.mxu0 %v3434
    %3485 = vmatprep.subr.bf16.mxu0 0
    %3486 = vmatpush1.bf16.msra.mxu0 %v3435
    %3487 = vmatprep.subr.bf16.mxu0 0
    %3488 = vmatpush1.bf16.msra.mxu0 %v3436
    %3489 = vmatprep.subr.bf16.mxu0 0
    %3490 = vmatpush1.bf16.msra.mxu0 %v3437
    %3491 = vmatprep.subr.bf16.mxu0 0
    %3492 = vmatpush1.bf16.msra.mxu0 %v3438
    %3493 = vmatprep.subr.bf16.mxu0 0
    %3494 = vmatpush1.bf16.msra.mxu0 %v3439
    %3495 = vmatprep.mubr.bf16.mxu0 %v3314
    %3496 = vmatmul.mubr.bf16.gmra.mrb[0].mxu0 %v3313
    %v3497 = vpop.f32.mrb[0].mxu0
    %v3498 = vadd.f32 0.0, %v3497
    %v3499 = vpop.f32.mrb[0].mxu0
    %v3500 = vpop.f32.mrb[0].mxu0
    %v3501 = vadd.f32 0.0, %v3500
    %v3502 = vpop.f32.mrb[0].mxu0
    %3503 = vdwg.mxu0
    %3504 = vmatprep.subr.bf16.mxu0 0
    %3505 = vmatpush1.bf16.msra.mxu0 %v3440
    %3506 = vmatprep.subr.bf16.mxu0 0
    %3507 = vmatpush1.bf16.msra.mxu0 %v3441
    %3508 = vmatprep.subr.bf16.mxu0 0
    %3509 = vmatpush1.bf16.msra.mxu0 0
    %3510 = vmatprep.subr.bf16.mxu0 0
    %3511 = vmatpush1.bf16.msra.mxu0 0
    %3512 = vmatprep.subr.bf16.mxu0 0
    %3513 = vmatpush1.bf16.msra.mxu0 0
    %3514 = vmatprep.subr.bf16.mxu0 0
    %3515 = vmatpush1.bf16.msra.mxu0 0
    %3516 = vmatprep.subr.bf16.mxu0 0
    %3517 = vmatpush1.bf16.msra.mxu0 0
    %3518 = vmatprep.subr.bf16.mxu0 0
    %3519 = vmatpush1.bf16.msra.mxu0 0
    %3520 = vmatprep.subr.bf16.mxu0 0
    %3521 = vmatpush1.bf16.msra.mxu0 0
    %3522 = vmatprep.subr.bf16.mxu0 0
    %3523 = vmatpush1.bf16.msra.mxu0 0
    %3524 = vmatprep.subr.bf16.mxu0 0
    %3525 = vmatpush1.bf16.msra.mxu0 0
    %3526 = vmatprep.subr.bf16.mxu0 0
    %3527 = vmatpush1.bf16.msra.mxu0 0
    %3528 = vmatprep.subr.bf16.mxu0 0
    %3529 = vmatpush1.bf16.msra.mxu0 0
    %3530 = vmatprep.subr.bf16.mxu0 0
    %3531 = vmatpush1.bf16.msra.mxu0 0
    %3532 = vmatprep.subr.bf16.mxu0 0
    %3533 = vmatpush1.bf16.msra.mxu0 0
    %3534 = vmatprep.subr.bf16.mxu0 0
    %3535 = vmatpush1.bf16.msra.mxu0 0
    %3536 = vmatprep.mubr.bf16.mxu0 0
    %3537 = vmatmul.mubr.bf16.gmra.mrb[0].mxu0 %v3461
    %v3538 = vpop.f32.mrb[0].mxu0
    %v3539 = vadd.f32 %v3498, %v3538
    %v3540 = vpop.f32.mrb[0].mxu0
    %v3541 = vpop.f32.mrb[0].mxu0
    %v3542 = vadd.f32 %v3501, %v3541
    %v3543 = vpop.f32.mrb[0].mxu0
    %3544 = vdwg.mxu0
    %v3545 = vld [vmem:[%s47] sm:$0x1]
    %v3546 = vld [vmem:[%s49] sm:$0x1]
    %v3547 = vsel %vm3007, %v3539, 0.0
    %3548 = vadd.xlane.f32.xlu0 %v3547
    %v3549 = vpop.xlane.xlu0 %3548
    %v3550 = vsel %vm3007, %v3542, 0.0
    %3551 = vadd.xlane.f32.xlu0 %v3550
    %v3552 = vpop.xlane.xlu0 %3551
    %v3553 = vmul.f32 %v3549, 0.03125
    %v3554 = vmul.f32 %v3552, 0.03125
    %v3555 = vmul.f32 %v3539, %v3539
    %v3556 = vmul.f32 %v3542, %v3542
    %v3557 = vsel %vm3007, %v3555, 0.0
    %3558 = vadd.xlane.f32.xlu0 %v3557
    %v3559 = vpop.xlane.xlu0 %3558
    %v3560 = vsel %vm3007, %v3556, 0.0
    %3561 = vadd.xlane.f32.xlu0 %v3560
    %v3562 = vpop.xlane.xlu0 %3561
    %v3563 = vmul.f32 %v3559, 0.03125
    %v3564 = vmul.f32 %v3562, 0.03125
    %v3565 = vmul.f32 %v3553, %v3553
    %v3566 = vmul.f32 %v3554, %v3554
    %v3567 = vsub.f32 %v3563, %v3565
    %v3568 = vsub.f32 %v3564, %v3566
    %v3569 = vmax.f32 %v3567, 0.0
    %v3570 = vmax.f32 %v3568, 0.0
    %v3571 = vsub.f32 %v3539, %v3553
    %v3572 = vsub.f32 %v3542, %v3554
    %v3573 = vadd.f32 %v3569, 1e-06
    %v3574 = vadd.f32 %v3570, 1e-06
    %v3575 = vrsqrt.pop %v3573
    %v3576 = vrsqrt.pop %v3574
    %v3577 = vmul.f32 %v3571, %v3575
    %v3578 = vmul.f32 %v3572, %v3576
    %v3580 = vlaneseq
    %v3581 = vshrl.u32 %v3580, 7
    %v3582 = vsub.s32 0, %v3581
    %v3583 = vrot.slane %v3545, %v3582
    %v3585 = vmul.f32 %v3577, %v3583
    %v3586 = vmul.f32 %v3578, %v3583
    %v3588 = vlaneseq
    %v3589 = vshrl.u32 %v3588, 7
    %v3590 = vsub.s32 0, %v3589
    %v3591 = vrot.slane %v3546, %v3590
    %v3593 = vadd.f32 %v3585, %v3591
    %v3594 = vadd.f32 %v3586, %v3591
    %v3595 = vld [vmem:[%s51] sm:$0xff]
    %vm3596 = vcmp.eq.f32.partialorder %v3595, 1.0
    %v3597 = vld [vmem:[%s53] sm:$0xff]
    %v3598 = vld [vmem:[%s55] sm:$0xff]
    %v3599 = vsel %vm3596, %v3598, 1024.0
    %3600 = vmin.xlane.f32.xlu0 %v3599
    %v3601 = vpop.xlane.xlu0 %3600
    %v3602 = vrot.slane %v3601, 4
    %v3603 = vmin.f32 %v3601, %v3602
    %v3604 = vrot.slane %v3603, 2
    %v3605 = vmin.f32 %v3603, %v3604
    %v3606 = vrot.slane %v3605, 1
    %v3607 = vmin.f32 %v3605, %v3606
    %v3608 = vsel %vm3596, %v3597, 1024.0
    %3609 = vmin.xlane.f32.xlu0 %v3608
    %v3610 = vpop.xlane.xlu0 %3609
    %v3611 = vrot.slane %v3610, 4
    %v3612 = vmin.f32 %v3610, %v3611
    %v3613 = vrot.slane %v3612, 2
    %v3614 = vmin.f32 %v3612, %v3613
    %v3615 = vrot.slane %v3614, 1
    %v3616 = vmin.f32 %v3614, %v3615
    %v3617 = vsel %vm3596, %v3598, -1.0
    %3618 = vmax.xlane.f32.xlu0 %v3617
    %v3619 = vpop.xlane.xlu0 %3618
    %v3620 = vrot.slane %v3619, 4
    %v3621 = vmax.f32 %v3619, %v3620
    %v3622 = vrot.slane %v3621, 2
    %v3623 = vmax.f32 %v3621, %v3622
    %v3624 = vrot.slane %v3623, 1
    %v3625 = vmax.f32 %v3623, %v3624
    %v3626 = vsel %vm3596, %v3597, -1.0
    %3627 = vmax.xlane.f32.xlu0 %v3626
    %v3628 = vpop.xlane.xlu0 %3627
    %v3629 = vrot.slane %v3628, 4
    %v3630 = vmax.f32 %v3628, %v3629
    %v3631 = vrot.slane %v3630, 2
    %v3632 = vmax.f32 %v3630, %v3631
    %v3633 = vrot.slane %v3632, 1
    %v3634 = vmax.f32 %v3632, %v3633
    %v3635 = vsel %vm3596, 1.0, 0.0
    %3636 = vmax.xlane.f32.xlu0 %v3635
    %v3637 = vpop.xlane.xlu0 %3636
    %v3638 = vrot.slane %v3637, 4
    %v3639 = vmax.f32 %v3637, %v3638
    %v3640 = vrot.slane %v3639, 2
    %v3641 = vmax.f32 %v3639, %v3640
    %v3642 = vrot.slane %v3641, 1
    %v3643 = vmax.f32 %v3641, %v3642
    %vm3644 = vcmp.gt.f32.partialorder %v3643, 0.0
    %v3645 = vsel %vm3644, %v3607, 0.0
    %v3646 = vsel %vm3644, %v3616, 0.0
    %v3647 = vsel %vm3644, %v3625, 31.0
    %v3648 = vsel %vm3644, %v3634, 31.0
    %v3649 = vld [vmem:[%s59] sm:$0x1]
    %v3650 = vld [vmem:[%s59 + $0x1] sm:$0x1]
    %v3651 = vadd.f32 %v3645, 0.5
    %v3652 = vrcp.pop 32.0
    %v3653 = vmul.f32 %v3651, %v3652
    %v3654 = vmul.f32 %v3653, 2.0
    %v3655 = vsub.f32 %v3654, 1.0
    %v3656 = vmul.f32 %v3655, %v3649
    %v3657 = vadd.f32 %v3646, 0.5
    %v3658 = vmul.f32 %v3657, %v3652
    %v3659 = vmul.f32 %v3658, 2.0
    %v3660 = vsub.f32 %v3659, 1.0
    %v3661 = vmul.f32 %v3660, %v3650
    %v3662 = vadd.f32 %v3656, %v3661
    %v3663 = vmul.f32 %v3662, 6.2831855
    %v3664 = vand.u32 2147483647, %v3663
    %vm3665 = vcmp.le.f32.partialorder %v3664, 0.7853982
    %vm3666 = vcmp.lt.s32.totalorder %v3663, 0
    %v3667 = vand.u32 %v3663, 2139095040
    %v3668 = vshrl.u32 %v3667, 23
    %v3669 = vsub.s32 %v3668, 127
    %v3670 = vand.u32 2147483647, %v3663
    %v3671 = vand.u32 %v3670, 8388607
    %v3672 = vor.u32 %v3671, 8388608
    %v3673 = vsub.s32 0, %v3672
    %v3674 = vadd.s32 %v3669, 1
    %vm3675 = vcmp.gt.s32.totalorder %v3674, 0
    %v3676 = vsel %vm3675, %v3674, 0
    %v3677 = vshrl.u32 %v3676, 5
    %v3678 = vand.u32 %v3676, 31
    %v3679 = vsub.s32 32, %v3678
    %v3680 = vshrl.u32 683565275, %v3679
    %v3681 = vshll.u32 683565275, %v3678
    %v3682 = vshrl.u32 2475754826, %v3679
    %v3683 = vor.u32 %v3681, %v3682
    %v3684 = vshll.u32 2475754826, %v3678
    %v3685 = vshrl.u32 2131351028, %v3679
    %v3686 = vor.u32 %v3684, %v3685
    %v3687 = vshll.u32 2131351028, %v3678
    %v3688 = vshrl.u32 2102212464, %v3679
    %v3689 = vor.u32 %v3687, %v3688
    %v3690 = vshll.u32 2102212464, %v3678
    %v3691 = vshrl.u32 920167782, %v3679
    %v3692 = vor.u32 %v3690, %v3691
    %v3693 = vshll.u32 920167782, %v3678
    %v3694 = vshrl.u32 1326507024, %v3679
    %v3695 = vor.u32 %v3693, %v3694
    %vm3696 = vcmp.lt.s32.totalorder %v3677, 1
    %vm3697 = vcmp.lt.s32.totalorder %v3677, 2
    %vm3698 = vcmp.lt.s32.totalorder %v3677, 3
    %vm3699 = vcmp.lt.s32.totalorder %v3677, 4
    %v3700 = vsel %vm3696, %v3680, %v3683
    %v3701 = vsel %vm3699, %v3689, 2102212464
    %v3702 = vsel %vm3698, %v3686, %v3701
    %v3703 = vsel %vm3697, %v3700, %v3702
    %v3704 = vsel %vm3696, %v3683, %v3686
    %v3705 = vsel %vm3699, %v3692, 920167782
    %v3706 = vsel %vm3698, %v3689, %v3705
    %v3707 = vsel %vm3697, %v3704, %v3706
    %v3708 = vsel %vm3696, %v3686, %v3689
    %v3709 = vsel %vm3699, %v3695, 1326507024
    %v3710 = vsel %vm3698, %v3692, %v3709
    %v3711 = vsel %vm3697, %v3708, %v3710
    %v3712 = vshll.u32 %v3672, 8
    %v3713 = vmul.u32.u64.compose %v3712, %v3711
    %v3714 = vextract.low.u32 %v3713
    %v3715 = vextract.high.u32 %v3713
    %v3716 = vmul.u32.u64.compose %v3712, %v3707
    %v3717 = vextract.low.u32 %v3716
    %v3718 = vextract.high.u32 %v3716
    %v3719 = vmul.u32 %v3712, %v3703
    %v3720 = vadd.s32 %v3715, %v3717
    %vm3721 = vc.u32 %v3715, %v3717
    %v3722 = vadd.s32 %v3718, 1
    %v3723 = vsel %vm3721, %v3722, %v3718
    %v3724 = vadd.s32 %v3719, %v3723
    %v3725 = vadd.s32 %v3724, 536870912
    %v3726 = vshrl.u32 %v3725, 30
    %v3727 = vshll.u32 %v3726, 30
    %v3728 = vsub.s32 %v3724, %v3727
    %vm3729 = vcmp.lt.s32.totalorder %v3728, 0
    %v3730 = vsub.s32 0, %v3728
    %v3731 = vsel %vm3729, %v3730, %v3728
    %v3732 = vclz %v3731
    %v3733 = vsub.s32 %v3732, 2
    %vm3734 = vcmp.gt.s32.totalorder 0, %v3733
    %v3735 = vsel %vm3734, 0, %v3733
    %v3736 = vsub.s32 32, %v3735
    %v3737 = vshll.u32 %v3728, %v3735
    %v3738 = vshrl.u32 %v3720, %v3736
    %v3739 = vor.u32 %v3737, %v3738
    %v3740 = vsub.s32 4294967266, %v3735
    %v3741 = vadd.s32 %v3740, 127
    %v3742 = vshll.u32 %v3741, 23
    %v3743 = vor.u32 4788187, %v3742
    %v3744 = vand.u32 2147483647, %v3743
    %v3746 = vcvt.s32.f32 %v3739
    %v3747 = vmul.f32 %v3746, %v3744
    %v3748 = vxor.u32 %v3747, 2147483648
    %v3749 = vsel %vm3666, %v3748, %v3747
    %v3750 = vsub.s32 4, %v3726
    %v3751 = vsel %vm3666, %v3750, %v3726
    %v3752 = vsel %vm3665, %v3663, %v3749
    %v3753 = vsel %vm3665, 0, %v3751
    %v3754 = vcosq.f32.pop %v3752
    %v3755 = vsinq.f32.pop %v3752
    %vm3756 = vweird.f32 %v3663
    %v3757 = vadd.s32 %v3753, 3
    %v3758 = vand.u32 %v3757, 3
    %vm3759 = vcmp.lt.s32.totalorder %v3758, 2
    %vm3760 = vcmp.eq.s32.totalorder %v3758, 0
    %v3761 = vxor.u32 %v3755, 2147483648
    %v3762 = vsel %vm3760, %v3754, %v3761
    %vm3763 = vcmp.eq.s32.totalorder %v3758, 2
    %v3764 = vxor.u32 %v3754, 2147483648
    %v3765 = vsel %vm3763, %v3764, %v3755
    %v3766 = vsel %vm3759, %v3762, %v3765
    %v3767 = vsel %vm3756, nan, %v3766
    %v3768 = vand.u32 2147483647, %v3663
    %vm3769 = vcmp.le.f32.partialorder %v3768, 0.7853982
    %vm3770 = vcmp.lt.s32.totalorder %v3663, 0
    %v3771 = vand.u32 %v3663, 2139095040
    %v3772 = vshrl.u32 %v3771, 23
    %v3773 = vsub.s32 %v3772, 127
    %v3774 = vand.u32 2147483647, %v3663
    %v3775 = vand.u32 %v3774, 8388607
    %v3776 = vor.u32 %v3775, 8388608
    %v3777 = vsub.s32 0, %v3776
    %v3778 = vadd.s32 %v3773, 1
    %vm3779 = vcmp.gt.s32.totalorder %v3778, 0
    %v3780 = vsel %vm3779, %v3778, 0
    %v3781 = vshrl.u32 %v3780, 5
    %v3782 = vand.u32 %v3780, 31
    %v3783 = vsub.s32 32, %v3782
    %v3784 = vshrl.u32 683565275, %v3783
    %v3785 = vshll.u32 683565275, %v3782
    %v3786 = vshrl.u32 2475754826, %v3783
    %v3787 = vor.u32 %v3785, %v3786
    %v3788 = vshll.u32 2475754826, %v3782
    %v3789 = vshrl.u32 2131351028, %v3783
    %v3790 = vor.u32 %v3788, %v3789
    %v3791 = vshll.u32 2131351028, %v3782
    %v3792 = vshrl.u32 2102212464, %v3783
    %v3793 = vor.u32 %v3791, %v3792
    %v3794 = vshll.u32 2102212464, %v3782
    %v3795 = vshrl.u32 920167782, %v3783
    %v3796 = vor.u32 %v3794, %v3795
    %v3797 = vshll.u32 920167782, %v3782
    %v3798 = vshrl.u32 1326507024, %v3783
    %v3799 = vor.u32 %v3797, %v3798
    %vm3800 = vcmp.lt.s32.totalorder %v3781, 1
    %vm3801 = vcmp.lt.s32.totalorder %v3781, 2
    %vm3802 = vcmp.lt.s32.totalorder %v3781, 3
    %vm3803 = vcmp.lt.s32.totalorder %v3781, 4
    %v3804 = vsel %vm3800, %v3784, %v3787
    %v3805 = vsel %vm3803, %v3793, 2102212464
    %v3806 = vsel %vm3802, %v3790, %v3805
    %v3807 = vsel %vm3801, %v3804, %v3806
    %v3808 = vsel %vm3800, %v3787, %v3790
    %v3809 = vsel %vm3803, %v3796, 920167782
    %v3810 = vsel %vm3802, %v3793, %v3809
    %v3811 = vsel %vm3801, %v3808, %v3810
    %v3812 = vsel %vm3800, %v3790, %v3793
    %v3813 = vsel %vm3803, %v3799, 1326507024
    %v3814 = vsel %vm3802, %v3796, %v3813
    %v3815 = vsel %vm3801, %v3812, %v3814
    %v3816 = vshll.u32 %v3776, 8
    %v3817 = vmul.u32.u64.compose %v3816, %v3815
    %v3818 = vextract.low.u32 %v3817
    %v3819 = vextract.high.u32 %v3817
    %v3820 = vmul.u32.u64.compose %v3816, %v3811
    %v3821 = vextract.low.u32 %v3820
    %v3822 = vextract.high.u32 %v3820
    %v3823 = vmul.u32 %v3816, %v3807
    %v3824 = vadd.s32 %v3819, %v3821
    %vm3825 = vc.u32 %v3819, %v3821
    %v3826 = vadd.s32 %v3822, 1
    %v3827 = vsel %vm3825, %v3826, %v3822
    %v3828 = vadd.s32 %v3823, %v3827
    %v3829 = vadd.s32 %v3828, 536870912
    %v3830 = vshrl.u32 %v3829, 30
    %v3831 = vshll.u32 %v3830, 30
    %v3832 = vsub.s32 %v3828, %v3831
    %vm3833 = vcmp.lt.s32.totalorder %v3832, 0
    %v3834 = vsub.s32 0, %v3832
    %v3835 = vsel %vm3833, %v3834, %v3832
    %v3836 = vclz %v3835
    %v3837 = vsub.s32 %v3836, 2
    %vm3838 = vcmp.gt.s32.totalorder 0, %v3837
    %v3839 = vsel %vm3838, 0, %v3837
    %v3840 = vsub.s32 32, %v3839
    %v3841 = vshll.u32 %v3832, %v3839
    %v3842 = vshrl.u32 %v3824, %v3840
    %v3843 = vor.u32 %v3841, %v3842
    %v3844 = vsub.s32 4294967266, %v3839
    %v3845 = vadd.s32 %v3844, 127
    %v3846 = vshll.u32 %v3845, 23
    %v3847 = vor.u32 4788187, %v3846
    %v3848 = vand.u32 2147483647, %v3847
    %v3850 = vcvt.s32.f32 %v3843
    %v3851 = vmul.f32 %v3850, %v3848
    %v3852 = vxor.u32 %v3851, 2147483648
    %v3853 = vsel %vm3770, %v3852, %v3851
    %v3854 = vsub.s32 4, %v3830
    %v3855 = vsel %vm3770, %v3854, %v3830
    %v3856 = vsel %vm3769, %v3663, %v3853
    %v3857 = vsel %vm3769, 0, %v3855
    %v3858 = vcosq.f32.pop %v3856
    %v3859 = vsinq.f32.pop %v3856
    %vm3860 = vweird.f32 %v3663
    %v3861 = vand.u32 %v3857, 3
    %vm3862 = vcmp.lt.s32.totalorder %v3861, 2
    %vm3863 = vcmp.eq.s32.totalorder %v3861, 0
    %v3864 = vxor.u32 %v3859, 2147483648
    %v3865 = vsel %vm3863, %v3858, %v3864
    %vm3866 = vcmp.eq.s32.totalorder %v3861, 2
    %v3867 = vxor.u32 %v3858, 2147483648
    %v3868 = vsel %vm3866, %v3867, %v3859
    %v3869 = vsel %vm3862, %v3865, %v3868
    %v3870 = vsel %vm3860, nan, %v3869
    %3872 = vrot.lane.b32.xlu0 %v3870, 16
    %v3873 = vpop.permute.xlu0 %3872
    %v3875 = vsel %vm1941, %v3767, %v3873
    %v3876 = vld [vmem:[%s61] sm:$0x1]
    %v3877 = vadd.f32 %v3875, %v3876
    %v3878 = vadd.f32 %v3647, 0.5
    %v3879 = vmul.f32 %v3878, %v3652
    %v3880 = vmul.f32 %v3879, 2.0
    %v3881 = vsub.f32 %v3880, 1.0
    %v3882 = vmul.f32 %v3881, %v3649
    %v3883 = vadd.f32 %v3648, 0.5
    %v3884 = vmul.f32 %v3883, %v3652
    %v3885 = vmul.f32 %v3884, 2.0
    %v3886 = vsub.f32 %v3885, 1.0
    %v3887 = vmul.f32 %v3886, %v3650
    %v3888 = vadd.f32 %v3882, %v3887
    %v3889 = vmul.f32 %v3888, 6.2831855
    %v3890 = vand.u32 2147483647, %v3889
    %vm3891 = vcmp.le.f32.partialorder %v3890, 0.7853982
    %vm3892 = vcmp.lt.s32.totalorder %v3889, 0
    %v3893 = vand.u32 %v3889, 2139095040
    %v3894 = vshrl.u32 %v3893, 23
    %v3895 = vsub.s32 %v3894, 127
    %v3896 = vand.u32 2147483647, %v3889
    %v3897 = vand.u32 %v3896, 8388607
    %v3898 = vor.u32 %v3897, 8388608
    %v3899 = vsub.s32 0, %v3898
    %v3900 = vadd.s32 %v3895, 1
    %vm3901 = vcmp.gt.s32.totalorder %v3900, 0
    %v3902 = vsel %vm3901, %v3900, 0
    %v3903 = vshrl.u32 %v3902, 5
    %v3904 = vand.u32 %v3902, 31
    %v3905 = vsub.s32 32, %v3904
    %v3906 = vshrl.u32 683565275, %v3905
    %v3907 = vshll.u32 683565275, %v3904
    %v3908 = vshrl.u32 2475754826, %v3905
    %v3909 = vor.u32 %v3907, %v3908
    %v3910 = vshll.u32 2475754826, %v3904
    %v3911 = vshrl.u32 2131351028, %v3905
    %v3912 = vor.u32 %v3910, %v3911
    %v3913 = vshll.u32 2131351028, %v3904
    %v3914 = vshrl.u32 2102212464, %v3905
    %v3915 = vor.u32 %v3913, %v3914
    %v3916 = vshll.u32 2102212464, %v3904
    %v3917 = vshrl.u32 920167782, %v3905
    %v3918 = vor.u32 %v3916, %v3917
    %v3919 = vshll.u32 920167782, %v3904
    %v3920 = vshrl.u32 1326507024, %v3905
    %v3921 = vor.u32 %v3919, %v3920
    %vm3922 = vcmp.lt.s32.totalorder %v3903, 1
    %vm3923 = vcmp.lt.s32.totalorder %v3903, 2
    %vm3924 = vcmp.lt.s32.totalorder %v3903, 3
    %vm3925 = vcmp.lt.s32.totalorder %v3903, 4
    %v3926 = vsel %vm3922, %v3906, %v3909
    %v3927 = vsel %vm3925, %v3915, 2102212464
    %v3928 = vsel %vm3924, %v3912, %v3927
    %v3929 = vsel %vm3923, %v3926, %v3928
    %v3930 = vsel %vm3922, %v3909, %v3912
    %v3931 = vsel %vm3925, %v3918, 920167782
    %v3932 = vsel %vm3924, %v3915, %v3931
    %v3933 = vsel %vm3923, %v3930, %v3932
    %v3934 = vsel %vm3922, %v3912, %v3915
    %v3935 = vsel %vm3925, %v3921, 1326507024
    %v3936 = vsel %vm3924, %v3918, %v3935
    %v3937 = vsel %vm3923, %v3934, %v3936
    %v3938 = vshll.u32 %v3898, 8
    %v3939 = vmul.u32.u64.compose %v3938, %v3937
    %v3940 = vextract.low.u32 %v3939
    %v3941 = vextract.high.u32 %v3939
    %v3942 = vmul.u32.u64.compose %v3938, %v3933
    %v3943 = vextract.low.u32 %v3942
    %v3944 = vextract.high.u32 %v3942
    %v3945 = vmul.u32 %v3938, %v3929
    %v3946 = vadd.s32 %v3941, %v3943
    %vm3947 = vc.u32 %v3941, %v3943
    %v3948 = vadd.s32 %v3944, 1
    %v3949 = vsel %vm3947, %v3948, %v3944
    %v3950 = vadd.s32 %v3945, %v3949
    %v3951 = vadd.s32 %v3950, 536870912
    %v3952 = vshrl.u32 %v3951, 30
    %v3953 = vshll.u32 %v3952, 30
    %v3954 = vsub.s32 %v3950, %v3953
    %vm3955 = vcmp.lt.s32.totalorder %v3954, 0
    %v3956 = vsub.s32 0, %v3954
    %v3957 = vsel %vm3955, %v3956, %v3954
    %v3958 = vclz %v3957
    %v3959 = vsub.s32 %v3958, 2
    %vm3960 = vcmp.gt.s32.totalorder 0, %v3959
    %v3961 = vsel %vm3960, 0, %v3959
    %v3962 = vsub.s32 32, %v3961
    %v3963 = vshll.u32 %v3954, %v3961
    %v3964 = vshrl.u32 %v3946, %v3962
    %v3965 = vor.u32 %v3963, %v3964
    %v3966 = vsub.s32 4294967266, %v3961
    %v3967 = vadd.s32 %v3966, 127
    %v3968 = vshll.u32 %v3967, 23
    %v3969 = vor.u32 4788187, %v3968
    %v3970 = vand.u32 2147483647, %v3969
    %v3972 = vcvt.s32.f32 %v3965
    %v3973 = vmul.f32 %v3972, %v3970
    %v3974 = vxor.u32 %v3973, 2147483648
    %v3975 = vsel %vm3892, %v3974, %v3973
    %v3976 = vsub.s32 4, %v3952
    %v3977 = vsel %vm3892, %v3976, %v3952
    %v3978 = vsel %vm3891, %v3889, %v3975
    %v3979 = vsel %vm3891, 0, %v3977
    %v3980 = vcosq.f32.pop %v3978
    %v3981 = vsinq.f32.pop %v3978
    %vm3982 = vweird.f32 %v3889
    %v3983 = vadd.s32 %v3979, 3
    %v3984 = vand.u32 %v3983, 3
    %vm3985 = vcmp.lt.s32.totalorder %v3984, 2
    %vm3986 = vcmp.eq.s32.totalorder %v3984, 0
    %v3987 = vxor.u32 %v3981, 2147483648
    %v3988 = vsel %vm3986, %v3980, %v3987
    %vm3989 = vcmp.eq.s32.totalorder %v3984, 2
    %v3990 = vxor.u32 %v3980, 2147483648
    %v3991 = vsel %vm3989, %v3990, %v3981
    %v3992 = vsel %vm3985, %v3988, %v3991
    %v3993 = vsel %vm3982, nan, %v3992
    %v3994 = vand.u32 2147483647, %v3889
    %vm3995 = vcmp.le.f32.partialorder %v3994, 0.7853982
    %vm3996 = vcmp.lt.s32.totalorder %v3889, 0
    %v3997 = vand.u32 %v3889, 2139095040
    %v3998 = vshrl.u32 %v3997, 23
    %v3999 = vsub.s32 %v3998, 127
    %v4000 = vand.u32 2147483647, %v3889
    %v4001 = vand.u32 %v4000, 8388607
    %v4002 = vor.u32 %v4001, 8388608
    %v4003 = vsub.s32 0, %v4002
    %v4004 = vadd.s32 %v3999, 1
    %vm4005 = vcmp.gt.s32.totalorder %v4004, 0
    %v4006 = vsel %vm4005, %v4004, 0
    %v4007 = vshrl.u32 %v4006, 5
    %v4008 = vand.u32 %v4006, 31
    %v4009 = vsub.s32 32, %v4008
    %v4010 = vshrl.u32 683565275, %v4009
    %v4011 = vshll.u32 683565275, %v4008
    %v4012 = vshrl.u32 2475754826, %v4009
    %v4013 = vor.u32 %v4011, %v4012
    %v4014 = vshll.u32 2475754826, %v4008
    %v4015 = vshrl.u32 2131351028, %v4009
    %v4016 = vor.u32 %v4014, %v4015
    %v4017 = vshll.u32 2131351028, %v4008
    %v4018 = vshrl.u32 2102212464, %v4009
    %v4019 = vor.u32 %v4017, %v4018
    %v4020 = vshll.u32 2102212464, %v4008
    %v4021 = vshrl.u32 920167782, %v4009
    %v4022 = vor.u32 %v4020, %v4021
    %v4023 = vshll.u32 920167782, %v4008
    %v4024 = vshrl.u32 1326507024, %v4009
    %v4025 = vor.u32 %v4023, %v4024
    %vm4026 = vcmp.lt.s32.totalorder %v4007, 1
    %vm4027 = vcmp.lt.s32.totalorder %v4007, 2
    %vm4028 = vcmp.lt.s32.totalorder %v4007, 3
    %vm4029 = vcmp.lt.s32.totalorder %v4007, 4
    %v4030 = vsel %vm4026, %v4010, %v4013
    %v4031 = vsel %vm4029, %v4019, 2102212464
    %v4032 = vsel %vm4028, %v4016, %v4031
    %v4033 = vsel %vm4027, %v4030, %v4032
    %v4034 = vsel %vm4026, %v4013, %v4016
    %v4035 = vsel %vm4029, %v4022, 920167782
    %v4036 = vsel %vm4028, %v4019, %v4035
    %v4037 = vsel %vm4027, %v4034, %v4036
    %v4038 = vsel %vm4026, %v4016, %v4019
    %v4039 = vsel %vm4029, %v4025, 1326507024
    %v4040 = vsel %vm4028, %v4022, %v4039
    %v4041 = vsel %vm4027, %v4038, %v4040
    %v4042 = vshll.u32 %v4002, 8
    %v4043 = vmul.u32.u64.compose %v4042, %v4041
    %v4044 = vextract.low.u32 %v4043
    %v4045 = vextract.high.u32 %v4043
    %v4046 = vmul.u32.u64.compose %v4042, %v4037
    %v4047 = vextract.low.u32 %v4046
    %v4048 = vextract.high.u32 %v4046
    %v4049 = vmul.u32 %v4042, %v4033
    %v4050 = vadd.s32 %v4045, %v4047
    %vm4051 = vc.u32 %v4045, %v4047
    %v4052 = vadd.s32 %v4048, 1
    %v4053 = vsel %vm4051, %v4052, %v4048
    %v4054 = vadd.s32 %v4049, %v4053
    %v4055 = vadd.s32 %v4054, 536870912
    %v4056 = vshrl.u32 %v4055, 30
    %v4057 = vshll.u32 %v4056, 30
    %v4058 = vsub.s32 %v4054, %v4057
    %vm4059 = vcmp.lt.s32.totalorder %v4058, 0
    %v4060 = vsub.s32 0, %v4058
    %v4061 = vsel %vm4059, %v4060, %v4058
    %v4062 = vclz %v4061
    %v4063 = vsub.s32 %v4062, 2
    %vm4064 = vcmp.gt.s32.totalorder 0, %v4063
    %v4065 = vsel %vm4064, 0, %v4063
    %v4066 = vsub.s32 32, %v4065
    %v4067 = vshll.u32 %v4058, %v4065
    %v4068 = vshrl.u32 %v4050, %v4066
    %v4069 = vor.u32 %v4067, %v4068
    %v4070 = vsub.s32 4294967266, %v4065
    %v4071 = vadd.s32 %v4070, 127
    %v4072 = vshll.u32 %v4071, 23
    %v4073 = vor.u32 4788187, %v4072
    %v4074 = vand.u32 2147483647, %v4073
    %v4076 = vcvt.s32.f32 %v4069
    %v4077 = vmul.f32 %v4076, %v4074
    %v4078 = vxor.u32 %v4077, 2147483648
    %v4079 = vsel %vm3996, %v4078, %v4077
    %v4080 = vsub.s32 4, %v4056
    %v4081 = vsel %vm3996, %v4080, %v4056
    %v4082 = vsel %vm3995, %v3889, %v4079
    %v4083 = vsel %vm3995, 0, %v4081
    %v4084 = vcosq.f32.pop %v4082
    %v4085 = vsinq.f32.pop %v4082
    %vm4086 = vweird.f32 %v3889
    %v4087 = vand.u32 %v4083, 3
    %vm4088 = vcmp.lt.s32.totalorder %v4087, 2
    %vm4089 = vcmp.eq.s32.totalorder %v4087, 0
    %v4090 = vxor.u32 %v4085, 2147483648
    %v4091 = vsel %vm4089, %v4084, %v4090
    %vm4092 = vcmp.eq.s32.totalorder %v4087, 2
    %v4093 = vxor.u32 %v4084, 2147483648
    %v4094 = vsel %vm4092, %v4093, %v4085
    %v4095 = vsel %vm4088, %v4091, %v4094
    %v4096 = vsel %vm4086, nan, %v4095
    %4098 = vrot.lane.b32.xlu0 %v4096, 16
    %v4099 = vpop.permute.xlu0 %4098
    %v4101 = vsel %vm1941, %v3993, %v4099
    %v4102 = vld [vmem:[%s61 + $0x1] sm:$0x1]
    %v4103 = vadd.f32 %v4101, %v4102
    %v4104 = vld [vmem:[%s57] sm:$0xff]
    %v4105 = vld [vmem:[%s57 + $0x8] sm:$0xff]
    %v4106 = vmul.f32 %v4104, 2.0
    %v4107 = vmul.f32 %v4105, 2.0
    %v4108 = vsub.f32 %v4106, 1.0
    %v4109 = vsub.f32 %v4107, 1.0
    %4111 = vset.pattern.permute.xlu0 0
    %4112 = vperm.xlu0 %4111, %v4108
    %v4113 = vpop.permute.xlu0 %4112
    %4116 = vset.pattern.permute.xlu0 0
    %4117 = vperm.xlu0 %4116, %v4109
    %v4118 = vpop.permute.xlu0 %4117
    %v4120 = vlaneseq
    %v4121 = vshrl.u32 %v4120, 7
    %v4122 = vsub.s32 0, %v4121
    %v4123 = vrot.slane %v3649, %v4122
    %v4124 = vmul.f32 %v4113, %v4123
    %v4125 = vmul.f32 %v4118, %v4123
    %4126 = vset.pattern.permute.xlu0 1
    %4127 = vperm.xlu0 %4126, %v4108
    %v4128 = vpop.permute.xlu0 %4127
    %4130 = vset.pattern.permute.xlu0 1
    %4131 = vperm.xlu0 %4130, %v4109
    %v4132 = vpop.permute.xlu0 %4131
    %v4134 = vlaneseq
    %v4135 = vshrl.u32 %v4134, 7
    %v4136 = vsub.s32 0, %v4135
    %v4137 = vrot.slane %v3650, %v4136
    %v4138 = vmul.f32 %v4128, %v4137
    %v4139 = vmul.f32 %v4132, %v4137
    %v4140 = vadd.f32 %v4124, %v4138
    %v4141 = vadd.f32 %v4125, %v4139
    %v4142 = vmul.f32 %v4140, 6.2831855
    %v4143 = vmul.f32 %v4141, 6.2831855
    %v4144 = vand.u32 2147483647, %v4142
    %vm4145 = vcmp.le.f32.partialorder %v4144, 0.7853982
    %vm4146 = vcmp.lt.s32.totalorder %v4142, 0
    %v4147 = vand.u32 %v4142, 2139095040
    %v4148 = vshrl.u32 %v4147, 23
    %v4149 = vsub.s32 %v4148, 127
    %v4150 = vand.u32 2147483647, %v4142
    %v4151 = vand.u32 %v4150, 8388607
    %v4152 = vor.u32 %v4151, 8388608
    %v4153 = vsub.s32 0, %v4152
    %v4154 = vadd.s32 %v4149, 1
    %vm4155 = vcmp.gt.s32.totalorder %v4154, 0
    %v4156 = vsel %vm4155, %v4154, 0
    %v4157 = vshrl.u32 %v4156, 5
    %v4158 = vand.u32 %v4156, 31
    %v4159 = vsub.s32 32, %v4158
    %v4160 = vshrl.u32 683565275, %v4159
    %v4161 = vshll.u32 683565275, %v4158
    %v4162 = vshrl.u32 2475754826, %v4159
    %v4163 = vor.u32 %v4161, %v4162
    %v4164 = vshll.u32 2475754826, %v4158
    %v4165 = vshrl.u32 2131351028, %v4159
    %v4166 = vor.u32 %v4164, %v4165
    %v4167 = vshll.u32 2131351028, %v4158
    %v4168 = vshrl.u32 2102212464, %v4159
    %v4169 = vor.u32 %v4167, %v4168
    %v4170 = vshll.u32 2102212464, %v4158
    %v4171 = vshrl.u32 920167782, %v4159
    %v4172 = vor.u32 %v4170, %v4171
    %v4173 = vshll.u32 920167782, %v4158
    %v4174 = vshrl.u32 1326507024, %v4159
    %v4175 = vor.u32 %v4173, %v4174
    %vm4176 = vcmp.lt.s32.totalorder %v4157, 1
    %vm4177 = vcmp.lt.s32.totalorder %v4157, 2
    %vm4178 = vcmp.lt.s32.totalorder %v4157, 3
    %vm4179 = vcmp.lt.s32.totalorder %v4157, 4
    %v4180 = vsel %vm4176, %v4160, %v4163
    %v4181 = vsel %vm4179, %v4169, 2102212464
    %v4182 = vsel %vm4178, %v4166, %v4181
    %v4183 = vsel %vm4177, %v4180, %v4182
    %v4184 = vsel %vm4176, %v4163, %v4166
    %v4185 = vsel %vm4179, %v4172, 920167782
    %v4186 = vsel %vm4178, %v4169, %v4185
    %v4187 = vsel %vm4177, %v4184, %v4186
    %v4188 = vsel %vm4176, %v4166, %v4169
    %v4189 = vsel %vm4179, %v4175, 1326507024
    %v4190 = vsel %vm4178, %v4172, %v4189
    %v4191 = vsel %vm4177, %v4188, %v4190
    %v4192 = vshll.u32 %v4152, 8
    %v4193 = vmul.u32.u64.compose %v4192, %v4191
    %v4194 = vextract.low.u32 %v4193
    %v4195 = vextract.high.u32 %v4193
    %v4196 = vmul.u32.u64.compose %v4192, %v4187
    %v4197 = vextract.low.u32 %v4196
    %v4198 = vextract.high.u32 %v4196
    %v4199 = vmul.u32 %v4192, %v4183
    %v4200 = vadd.s32 %v4195, %v4197
    %vm4201 = vc.u32 %v4195, %v4197
    %v4202 = vadd.s32 %v4198, 1
    %v4203 = vsel %vm4201, %v4202, %v4198
    %v4204 = vadd.s32 %v4199, %v4203
    %v4205 = vadd.s32 %v4204, 536870912
    %v4206 = vshrl.u32 %v4205, 30
    %v4207 = vshll.u32 %v4206, 30
    %v4208 = vsub.s32 %v4204, %v4207
    %vm4209 = vcmp.lt.s32.totalorder %v4208, 0
    %v4210 = vsub.s32 0, %v4208
    %v4211 = vsel %vm4209, %v4210, %v4208
    %v4212 = vclz %v4211
    %v4213 = vsub.s32 %v4212, 2
    %vm4214 = vcmp.gt.s32.totalorder 0, %v4213
    %v4215 = vsel %vm4214, 0, %v4213
    %v4216 = vsub.s32 32, %v4215
    %v4217 = vshll.u32 %v4208, %v4215
    %v4218 = vshrl.u32 %v4200, %v4216
    %v4219 = vor.u32 %v4217, %v4218
    %v4220 = vsub.s32 4294967266, %v4215
    %v4221 = vadd.s32 %v4220, 127
    %v4222 = vshll.u32 %v4221, 23
    %v4223 = vor.u32 4788187, %v4222
    %v4224 = vand.u32 2147483647, %v4223
    %v4226 = vcvt.s32.f32 %v4219
    %v4227 = vmul.f32 %v4226, %v4224
    %v4228 = vxor.u32 %v4227, 2147483648
    %v4229 = vsel %vm4146, %v4228, %v4227
    %v4230 = vsub.s32 4, %v4206
    %v4231 = vsel %vm4146, %v4230, %v4206
    %v4232 = vsel %vm4145, %v4142, %v4229
    %v4233 = vsel %vm4145, 0, %v4231
    %v4234 = vcosq.f32.pop %v4232
    %v4235 = vsinq.f32.pop %v4232
    %vm4236 = vweird.f32 %v4142
    %v4237 = vadd.s32 %v4233, 3
    %v4238 = vand.u32 %v4237, 3
    %vm4239 = vcmp.lt.s32.totalorder %v4238, 2
    %vm4240 = vcmp.eq.s32.totalorder %v4238, 0
    %v4241 = vxor.u32 %v4235, 2147483648
    %v4242 = vsel %vm4240, %v4234, %v4241
    %vm4243 = vcmp.eq.s32.totalorder %v4238, 2
    %v4244 = vxor.u32 %v4234, 2147483648
    %v4245 = vsel %vm4243, %v4244, %v4235
    %v4246 = vsel %vm4239, %v4242, %v4245
    %v4247 = vsel %vm4236, nan, %v4246
    %v4248 = vand.u32 2147483647, %v4143
    %vm4249 = vcmp.le.f32.partialorder %v4248, 0.7853982
    %vm4250 = vcmp.lt.s32.totalorder %v4143, 0
    %v4251 = vand.u32 %v4143, 2139095040
    %v4252 = vshrl.u32 %v4251, 23
    %v4253 = vsub.s32 %v4252, 127
    %v4254 = vand.u32 2147483647, %v4143
    %v4255 = vand.u32 %v4254, 8388607
    %v4256 = vor.u32 %v4255, 8388608
    %v4257 = vsub.s32 0, %v4256
    %v4258 = vadd.s32 %v4253, 1
    %vm4259 = vcmp.gt.s32.totalorder %v4258, 0
    %v4260 = vsel %vm4259, %v4258, 0
    %v4261 = vshrl.u32 %v4260, 5
    %v4262 = vand.u32 %v4260, 31
    %v4263 = vsub.s32 32, %v4262
    %v4264 = vshrl.u32 683565275, %v4263
    %v4265 = vshll.u32 683565275, %v4262
    %v4266 = vshrl.u32 2475754826, %v4263
    %v4267 = vor.u32 %v4265, %v4266
    %v4268 = vshll.u32 2475754826, %v4262
    %v4269 = vshrl.u32 2131351028, %v4263
    %v4270 = vor.u32 %v4268, %v4269
    %v4271 = vshll.u32 2131351028, %v4262
    %v4272 = vshrl.u32 2102212464, %v4263
    %v4273 = vor.u32 %v4271, %v4272
    %v4274 = vshll.u32 2102212464, %v4262
    %v4275 = vshrl.u32 920167782, %v4263
    %v4276 = vor.u32 %v4274, %v4275
    %v4277 = vshll.u32 920167782, %v4262
    %v4278 = vshrl.u32 1326507024, %v4263
    %v4279 = vor.u32 %v4277, %v4278
    %vm4280 = vcmp.lt.s32.totalorder %v4261, 1
    %vm4281 = vcmp.lt.s32.totalorder %v4261, 2
    %vm4282 = vcmp.lt.s32.totalorder %v4261, 3
    %vm4283 = vcmp.lt.s32.totalorder %v4261, 4
    %v4284 = vsel %vm4280, %v4264, %v4267
    %v4285 = vsel %vm4283, %v4273, 2102212464
    %v4286 = vsel %vm4282, %v4270, %v4285
    %v4287 = vsel %vm4281, %v4284, %v4286
    %v4288 = vsel %vm4280, %v4267, %v4270
    %v4289 = vsel %vm4283, %v4276, 920167782
    %v4290 = vsel %vm4282, %v4273, %v4289
    %v4291 = vsel %vm4281, %v4288, %v4290
    %v4292 = vsel %vm4280, %v4270, %v4273
    %v4293 = vsel %vm4283, %v4279, 1326507024
    %v4294 = vsel %vm4282, %v4276, %v4293
    %v4295 = vsel %vm4281, %v4292, %v4294
    %v4296 = vshll.u32 %v4256, 8
    %v4297 = vmul.u32.u64.compose %v4296, %v4295
    %v4298 = vextract.low.u32 %v4297
    %v4299 = vextract.high.u32 %v4297
    %v4300 = vmul.u32.u64.compose %v4296, %v4291
    %v4301 = vextract.low.u32 %v4300
    %v4302 = vextract.high.u32 %v4300
    %v4303 = vmul.u32 %v4296, %v4287
    %v4304 = vadd.s32 %v4299, %v4301
    %vm4305 = vc.u32 %v4299, %v4301
    %v4306 = vadd.s32 %v4302, 1
    %v4307 = vsel %vm4305, %v4306, %v4302
    %v4308 = vadd.s32 %v4303, %v4307
    %v4309 = vadd.s32 %v4308, 536870912
    %v4310 = vshrl.u32 %v4309, 30
    %v4311 = vshll.u32 %v4310, 30
    %v4312 = vsub.s32 %v4308, %v4311
    %vm4313 = vcmp.lt.s32.totalorder %v4312, 0
    %v4314 = vsub.s32 0, %v4312
    %v4315 = vsel %vm4313, %v4314, %v4312
    %v4316 = vclz %v4315
    %v4317 = vsub.s32 %v4316, 2
    %vm4318 = vcmp.gt.s32.totalorder 0, %v4317
    %v4319 = vsel %vm4318, 0, %v4317
    %v4320 = vsub.s32 32, %v4319
    %v4321 = vshll.u32 %v4312, %v4319
    %v4322 = vshrl.u32 %v4304, %v4320
    %v4323 = vor.u32 %v4321, %v4322
    %v4324 = vsub.s32 4294967266, %v4319
    %v4325 = vadd.s32 %v4324, 127
    %v4326 = vshll.u32 %v4325, 23
    %v4327 = vor.u32 4788187, %v4326
    %v4328 = vand.u32 2147483647, %v4327
    %v4330 = vcvt.s32.f32 %v4323
    %v4331 = vmul.f32 %v4330, %v4328
    %v4332 = vxor.u32 %v4331, 2147483648
    %v4333 = vsel %vm4250, %v4332, %v4331
    %v4334 = vsub.s32 4, %v4310
    %v4335 = vsel %vm4250, %v4334, %v4310
    %v4336 = vsel %vm4249, %v4143, %v4333
    %v4337 = vsel %vm4249, 0, %v4335
    %v4338 = vcosq.f32.pop %v4336
    %v4339 = vsinq.f32.pop %v4336
    %vm4340 = vweird.f32 %v4143
    %v4341 = vadd.s32 %v4337, 3
    %v4342 = vand.u32 %v4341, 3
    %vm4343 = vcmp.lt.s32.totalorder %v4342, 2
    %vm4344 = vcmp.eq.s32.totalorder %v4342, 0
    %v4345 = vxor.u32 %v4339, 2147483648
    %v4346 = vsel %vm4344, %v4338, %v4345
    %vm4347 = vcmp.eq.s32.totalorder %v4342, 2
    %v4348 = vxor.u32 %v4338, 2147483648
    %v4349 = vsel %vm4347, %v4348, %v4339
    %v4350 = vsel %vm4343, %v4346, %v4349
    %v4351 = vsel %vm4340, nan, %v4350
    %v4352 = vand.u32 2147483647, %v4142
    %vm4353 = vcmp.le.f32.partialorder %v4352, 0.7853982
    %vm4354 = vcmp.lt.s32.totalorder %v4142, 0
    %v4355 = vand.u32 %v4142, 2139095040
    %v4356 = vshrl.u32 %v4355, 23
    %v4357 = vsub.s32 %v4356, 127
    %v4358 = vand.u32 2147483647, %v4142
    %v4359 = vand.u32 %v4358, 8388607
    %v4360 = vor.u32 %v4359, 8388608
    %v4361 = vsub.s32 0, %v4360
    %v4362 = vadd.s32 %v4357, 1
    %vm4363 = vcmp.gt.s32.totalorder %v4362, 0
    %v4364 = vsel %vm4363, %v4362, 0
    %v4365 = vshrl.u32 %v4364, 5
    %v4366 = vand.u32 %v4364, 31
    %v4367 = vsub.s32 32, %v4366
    %v4368 = vshrl.u32 683565275, %v4367
    %v4369 = vshll.u32 683565275, %v4366
    %v4370 = vshrl.u32 2475754826, %v4367
    %v4371 = vor.u32 %v4369, %v4370
    %v4372 = vshll.u32 2475754826, %v4366
    %v4373 = vshrl.u32 2131351028, %v4367
    %v4374 = vor.u32 %v4372, %v4373
    %v4375 = vshll.u32 2131351028, %v4366
    %v4376 = vshrl.u32 2102212464, %v4367
    %v4377 = vor.u32 %v4375, %v4376
    %v4378 = vshll.u32 2102212464, %v4366
    %v4379 = vshrl.u32 920167782, %v4367
    %v4380 = vor.u32 %v4378, %v4379
    %v4381 = vshll.u32 920167782, %v4366
    %v4382 = vshrl.u32 1326507024, %v4367
    %v4383 = vor.u32 %v4381, %v4382
    %vm4384 = vcmp.lt.s32.totalorder %v4365, 1
    %vm4385 = vcmp.lt.s32.totalorder %v4365, 2
    %vm4386 = vcmp.lt.s32.totalorder %v4365, 3
    %vm4387 = vcmp.lt.s32.totalorder %v4365, 4
    %v4388 = vsel %vm4384, %v4368, %v4371
    %v4389 = vsel %vm4387, %v4377, 2102212464
    %v4390 = vsel %vm4386, %v4374, %v4389
    %v4391 = vsel %vm4385, %v4388, %v4390
    %v4392 = vsel %vm4384, %v4371, %v4374
    %v4393 = vsel %vm4387, %v4380, 920167782
    %v4394 = vsel %vm4386, %v4377, %v4393
    %v4395 = vsel %vm4385, %v4392, %v4394
    %v4396 = vsel %vm4384, %v4374, %v4377
    %v4397 = vsel %vm4387, %v4383, 1326507024
    %v4398 = vsel %vm4386, %v4380, %v4397
    %v4399 = vsel %vm4385, %v4396, %v4398
    %v4400 = vshll.u32 %v4360, 8
    %v4401 = vmul.u32.u64.compose %v4400, %v4399
    %v4402 = vextract.low.u32 %v4401
    %v4403 = vextract.high.u32 %v4401
    %v4404 = vmul.u32.u64.compose %v4400, %v4395
    %v4405 = vextract.low.u32 %v4404
    %v4406 = vextract.high.u32 %v4404
    %v4407 = vmul.u32 %v4400, %v4391
    %v4408 = vadd.s32 %v4403, %v4405
    %vm4409 = vc.u32 %v4403, %v4405
    %v4410 = vadd.s32 %v4406, 1
    %v4411 = vsel %vm4409, %v4410, %v4406
    %v4412 = vadd.s32 %v4407, %v4411
    %v4413 = vadd.s32 %v4412, 536870912
    %v4414 = vshrl.u32 %v4413, 30
    %v4415 = vshll.u32 %v4414, 30
    %v4416 = vsub.s32 %v4412, %v4415
    %vm4417 = vcmp.lt.s32.totalorder %v4416, 0
    %v4418 = vsub.s32 0, %v4416
    %v4419 = vsel %vm4417, %v4418, %v4416
    %v4420 = vclz %v4419
    %v4421 = vsub.s32 %v4420, 2
    %vm4422 = vcmp.gt.s32.totalorder 0, %v4421
    %v4423 = vsel %vm4422, 0, %v4421
    %v4424 = vsub.s32 32, %v4423
    %v4425 = vshll.u32 %v4416, %v4423
    %v4426 = vshrl.u32 %v4408, %v4424
    %v4427 = vor.u32 %v4425, %v4426
    %v4428 = vsub.s32 4294967266, %v4423
    %v4429 = vadd.s32 %v4428, 127
    %v4430 = vshll.u32 %v4429, 23
    %v4431 = vor.u32 4788187, %v4430
    %v4432 = vand.u32 2147483647, %v4431
    %v4434 = vcvt.s32.f32 %v4427
    %v4435 = vmul.f32 %v4434, %v4432
    %v4436 = vxor.u32 %v4435, 2147483648
    %v4437 = vsel %vm4354, %v4436, %v4435
    %v4438 = vsub.s32 4, %v4414
    %v4439 = vsel %vm4354, %v4438, %v4414
    %v4440 = vsel %vm4353, %v4142, %v4437
    %v4441 = vsel %vm4353, 0, %v4439
    %v4442 = vcosq.f32.pop %v4440
    %v4443 = vsinq.f32.pop %v4440
    %vm4444 = vweird.f32 %v4142
    %v4445 = vand.u32 %v4441, 3
    %vm4446 = vcmp.lt.s32.totalorder %v4445, 2
    %vm4447 = vcmp.eq.s32.totalorder %v4445, 0
    %v4448 = vxor.u32 %v4443, 2147483648
    %v4449 = vsel %vm4447, %v4442, %v4448
    %vm4450 = vcmp.eq.s32.totalorder %v4445, 2
    %v4451 = vxor.u32 %v4442, 2147483648
    %v4452 = vsel %vm4450, %v4451, %v4443
    %v4453 = vsel %vm4446, %v4449, %v4452
    %v4454 = vsel %vm4444, nan, %v4453
    %v4455 = vand.u32 2147483647, %v4143
    %vm4456 = vcmp.le.f32.partialorder %v4455, 0.7853982
    %vm4457 = vcmp.lt.s32.totalorder %v4143, 0
    %v4458 = vand.u32 %v4143, 2139095040
    %v4459 = vshrl.u32 %v4458, 23
    %v4460 = vsub.s32 %v4459, 127
    %v4461 = vand.u32 2147483647, %v4143
    %v4462 = vand.u32 %v4461, 8388607
    %v4463 = vor.u32 %v4462, 8388608
    %v4464 = vsub.s32 0, %v4463
    %v4465 = vadd.s32 %v4460, 1
    %vm4466 = vcmp.gt.s32.totalorder %v4465, 0
    %v4467 = vsel %vm4466, %v4465, 0
    %v4468 = vshrl.u32 %v4467, 5
    %v4469 = vand.u32 %v4467, 31
    %v4470 = vsub.s32 32, %v4469
    %v4471 = vshrl.u32 683565275, %v4470
    %v4472 = vshll.u32 683565275, %v4469
    %v4473 = vshrl.u32 2475754826, %v4470
    %v4474 = vor.u32 %v4472, %v4473
    %v4475 = vshll.u32 2475754826, %v4469
    %v4476 = vshrl.u32 2131351028, %v4470
    %v4477 = vor.u32 %v4475, %v4476
    %v4478 = vshll.u32 2131351028, %v4469
    %v4479 = vshrl.u32 2102212464, %v4470
    %v4480 = vor.u32 %v4478, %v4479
    %v4481 = vshll.u32 2102212464, %v4469
    %v4482 = vshrl.u32 920167782, %v4470
    %v4483 = vor.u32 %v4481, %v4482
    %v4484 = vshll.u32 920167782, %v4469
    %v4485 = vshrl.u32 1326507024, %v4470
    %v4486 = vor.u32 %v4484, %v4485
    %vm4487 = vcmp.lt.s32.totalorder %v4468, 1
    %vm4488 = vcmp.lt.s32.totalorder %v4468, 2
    %vm4489 = vcmp.lt.s32.totalorder %v4468, 3
    %vm4490 = vcmp.lt.s32.totalorder %v4468, 4
    %v4491 = vsel %vm4487, %v4471, %v4474
    %v4492 = vsel %vm4490, %v4480, 2102212464
    %v4493 = vsel %vm4489, %v4477, %v4492
    %v4494 = vsel %vm4488, %v4491, %v4493
    %v4495 = vsel %vm4487, %v4474, %v4477
    %v4496 = vsel %vm4490, %v4483, 920167782
    %v4497 = vsel %vm4489, %v4480, %v4496
    %v4498 = vsel %vm4488, %v4495, %v4497
    %v4499 = vsel %vm4487, %v4477, %v4480
    %v4500 = vsel %vm4490, %v4486, 1326507024
    %v4501 = vsel %vm4489, %v4483, %v4500
    %v4502 = vsel %vm4488, %v4499, %v4501
    %v4503 = vshll.u32 %v4463, 8
    %v4504 = vmul.u32.u64.compose %v4503, %v4502
    %v4505 = vextract.low.u32 %v4504
    %v4506 = vextract.high.u32 %v4504
    %v4507 = vmul.u32.u64.compose %v4503, %v4498
    %v4508 = vextract.low.u32 %v4507
    %v4509 = vextract.high.u32 %v4507
    %v4510 = vmul.u32 %v4503, %v4494
    %v4511 = vadd.s32 %v4506, %v4508
    %vm4512 = vc.u32 %v4506, %v4508
    %v4513 = vadd.s32 %v4509, 1
    %v4514 = vsel %vm4512, %v4513, %v4509
    %v4515 = vadd.s32 %v4510, %v4514
    %v4516 = vadd.s32 %v4515, 536870912
    %v4517 = vshrl.u32 %v4516, 30
    %v4518 = vshll.u32 %v4517, 30
    %v4519 = vsub.s32 %v4515, %v4518
    %vm4520 = vcmp.lt.s32.totalorder %v4519, 0
    %v4521 = vsub.s32 0, %v4519
    %v4522 = vsel %vm4520, %v4521, %v4519
    %v4523 = vclz %v4522
    %v4524 = vsub.s32 %v4523, 2
    %vm4525 = vcmp.gt.s32.totalorder 0, %v4524
    %v4526 = vsel %vm4525, 0, %v4524
    %v4527 = vsub.s32 32, %v4526
    %v4528 = vshll.u32 %v4519, %v4526
    %v4529 = vshrl.u32 %v4511, %v4527
    %v4530 = vor.u32 %v4528, %v4529
    %v4531 = vsub.s32 4294967266, %v4526
    %v4532 = vadd.s32 %v4531, 127
    %v4533 = vshll.u32 %v4532, 23
    %v4534 = vor.u32 4788187, %v4533
    %v4535 = vand.u32 2147483647, %v4534
    %v4537 = vcvt.s32.f32 %v4530
    %v4538 = vmul.f32 %v4537, %v4535
    %v4539 = vxor.u32 %v4538, 2147483648
    %v4540 = vsel %vm4457, %v4539, %v4538
    %v4541 = vsub.s32 4, %v4517
    %v4542 = vsel %vm4457, %v4541, %v4517
    %v4543 = vsel %vm4456, %v4143, %v4540
    %v4544 = vsel %vm4456, 0, %v4542
    %v4545 = vcosq.f32.pop %v4543
    %v4546 = vsinq.f32.pop %v4543
    %vm4547 = vweird.f32 %v4143
    %v4548 = vand.u32 %v4544, 3
    %vm4549 = vcmp.lt.s32.totalorder %v4548, 2
    %vm4550 = vcmp.eq.s32.totalorder %v4548, 0
    %v4551 = vxor.u32 %v4546, 2147483648
    %v4552 = vsel %vm4550, %v4545, %v4551
    %vm4553 = vcmp.eq.s32.totalorder %v4548, 2
    %v4554 = vxor.u32 %v4545, 2147483648
    %v4555 = vsel %vm4553, %v4554, %v4546
    %v4556 = vsel %vm4549, %v4552, %v4555
    %v4557 = vsel %vm4547, nan, %v4556
    %4560 = vrot.lane.b32.xlu0 %v4454, 16
    %v4561 = vpop.permute.xlu0 %4560
    %4562 = vrot.lane.b32.xlu0 %v4557, 16
    %v4563 = vpop.permute.xlu0 %4562
    %v4566 = vsel %vm1941, %v4247, %v4561
    %v4567 = vsel %vm1941, %v4351, %v4563
    %v4568 = vld [vmem:[%s67] sm:$0x7f]
    %v4569 = vld [vmem:[%s65] sm:$0x7f]
    %4571 = vset.pattern.permute.xlu0 0
    %4572 = vperm.xlu0 %4571, %v4568
    %v4573 = vpop.permute.xlu0 %4572
    %v4575 = vlaneseq
    %v4576 = vshrl.u32 %v4575, 7
    %v4577 = vsub.s32 0, %v4576
    %v4578 = vrot.slane %v3877, %v4577
    %v4579 = vmul.f32 %v4573, %v4578
    %v4580 = vadd.f32 %v4569, %v4579
    %4581 = vset.pattern.permute.xlu0 1
    %4582 = vperm.xlu0 %4581, %v4568
    %v4583 = vpop.permute.xlu0 %4582
    %v4585 = vlaneseq
    %v4586 = vshrl.u32 %v4585, 7
    %v4587 = vsub.s32 0, %v4586
    %v4588 = vrot.slane %v4103, %v4587
    %v4589 = vmul.f32 %v4583, %v4588
    %v4590 = vadd.f32 %v4580, %v4589
    %v4591 = vld [vmem:[%s63] sm:$0x1]
    %v4593 = vlaneseq
    %v4594 = vshrl.u32 %v4593, 7
    %v4595 = vsub.s32 0, %v4594
    %v4596 = vrot.slane %v4591, %v4595
    %v4598 = vadd.f32 %v3593, %v4596
    %v4599 = vadd.f32 %v3594, %v4596
    %v4600 = vld [vmem:[%s73] sm:$0x1f]
    %v4601 = vld [vmem:[%s75] sm:$0x1f]
    %v4602 = vld [vmem:[%s69] sm:$0xf]
    %v4603 = vld [vmem:[%s69 + $0x4] sm:$0xf]
    %v4604 = vld [vmem:[%s69 + $0x8] sm:$0xf]
    %v4605 = vld [vmem:[%s69 + $0xc] sm:$0xf]
    %v4606 = vpack.c.bf16 %v4590, %v4590
    %v4607 = vld [vmem:[%s71] sm:$0x1]
    %v4608 = vlaneseq
    %v4609 = vshrl.u32 %v4608, 7
    %v4610 = vsub.s32 0, %v4609
    %v4611 = vrot.slane %v4607, %v4610
    %v4616 = vunpack.c.l.b16 %v4602
    %v4617 = vunpack.c.l.b16 %v4603
    %v4618 = vunpack.c.l.b16 %v4604
    %v4619 = vunpack.c.l.b16 %v4605
    %v4620 = vpack.c.b16 %v4617, %v4616
    %v4621 = vpack.c.b16 %v4619, %v4618
    %v4625 = vsel %vm3007, %v4606, 0
    %4627 = vmatprep.subr.bf16.mxu0 0
    %4628 = vmatpush1.bf16.msra.mxu0 %v4620
    %4629 = vmatprep.subr.bf16.mxu0 0
    %4630 = vmatpush1.bf16.msra.mxu0 %v4621
    %4631 = vmatprep.subr.bf16.mxu0 0
    %4632 = vmatpush1.bf16.msra.mxu0 0
    %4633 = vmatprep.subr.bf16.mxu0 0
    %4634 = vmatpush1.bf16.msra.mxu0 0
    %4635 = vmatprep.subr.bf16.mxu0 0
    %4636 = vmatpush1.bf16.msra.mxu0 0
    %4637 = vmatprep.subr.bf16.mxu0 0
    %4638 = vmatpush1.bf16.msra.mxu0 0
    %4639 = vmatprep.subr.bf16.mxu0 0
    %4640 = vmatpush1.bf16.msra.mxu0 0
    %4641 = vmatprep.subr.bf16.mxu0 0
    %4642 = vmatpush1.bf16.msra.mxu0 0
    %4643 = vmatprep.subr.bf16.mxu0 0
    %4644 = vmatpush1.bf16.msra.mxu0 0
    %4645 = vmatprep.subr.bf16.mxu0 0
    %4646 = vmatpush1.bf16.msra.mxu0 0
    %4647 = vmatprep.subr.bf16.mxu0 0
    %4648 = vmatpush1.bf16.msra.mxu0 0
    %4649 = vmatprep.subr.bf16.mxu0 0
    %4650 = vmatpush1.bf16.msra.mxu0 0
    %4651 = vmatprep.subr.bf16.mxu0 0
    %4652 = vmatpush1.bf16.msra.mxu0 0
    %4653 = vmatprep.subr.bf16.mxu0 0
    %4654 = vmatpush1.bf16.msra.mxu0 0
    %4655 = vmatprep.subr.bf16.mxu0 0
    %4656 = vmatpush1.bf16.msra.mxu0 0
    %4657 = vmatprep.subr.bf16.mxu0 0
    %4658 = vmatpush1.bf16.msra.mxu0 0
    %4659 = vmatprep.mubr.bf16.mxu0 0
    %4660 = vmatmul.mubr.bf16.gmra.mrb[0].mxu0 %v4625
    %v4661 = vpop.f32.mrb[0].mxu0
    %v4662 = vadd.f32 %v4611, %v4661
    %v4663 = vpop.f32.mrb[0].mxu0
    %v4664 = vpop.f32.mrb[0].mxu0
    %v4665 = vpop.f32.mrb[0].mxu0
    %4666 = vdwg.mxu0
    %s4667 = scalar_lea.vmem %s69, 16
    %v4668 = vld [vmem:[%s4667] sm:$0xf]
    %v4669 = vld [vmem:[%s4667 + $0x4] sm:$0xf]
    %v4670 = vld [vmem:[%s4667 + $0x8] sm:$0xf]
    %v4671 = vld [vmem:[%s4667 + $0xc] sm:$0xf]
    %v4672 = vld [vmem:[%s71 + $0x1] sm:$0x1]
    %v4673 = vlaneseq
    %v4674 = vshrl.u32 %v4673, 7
    %v4675 = vsub.s32 0, %v4674
    %v4676 = vrot.slane %v4672, %v4675
    %v4681 = vunpack.c.l.b16 %v4668
    %v4682 = vunpack.c.l.b16 %v4669
    %v4683 = vunpack.c.l.b16 %v4670
    %v4684 = vunpack.c.l.b16 %v4671
    %v4685 = vpack.c.b16 %v4682, %v4681
    %v4686 = vpack.c.b16 %v4684, %v4683
    %4689 = vmatprep.subr.bf16.mxu0 0
    %4690 = vmatpush1.bf16.msra.mxu0 %v4685
    %4691 = vmatprep.subr.bf16.mxu0 0
    %4692 = vmatpush1.bf16.msra.mxu0 %v4686
    %4693 = vmatprep.subr.bf16.mxu0 0
    %4694 = vmatpush1.bf16.msra.mxu0 0
    %4695 = vmatprep.subr.bf16.mxu0 0
    %4696 = vmatpush1.bf16.msra.mxu0 0
    %4697 = vmatprep.subr.bf16.mxu0 0
    %4698 = vmatpush1.bf16.msra.mxu0 0
    %4699 = vmatprep.subr.bf16.mxu0 0
    %4700 = vmatpush1.bf16.msra.mxu0 0
    %4701 = vmatprep.subr.bf16.mxu0 0
    %4702 = vmatpush1.bf16.msra.mxu0 0
    %4703 = vmatprep.subr.bf16.mxu0 0
    %4704 = vmatpush1.bf16.msra.mxu0 0
    %4705 = vmatprep.subr.bf16.mxu0 0
    %4706 = vmatpush1.bf16.msra.mxu0 0
    %4707 = vmatprep.subr.bf16.mxu0 0
    %4708 = vmatpush1.bf16.msra.mxu0 0
    %4709 = vmatprep.subr.bf16.mxu0 0
    %4710 = vmatpush1.bf16.msra.mxu0 0
    %4711 = vmatprep.subr.bf16.mxu0 0
    %4712 = vmatpush1.bf16.msra.mxu0 0
    %4713 = vmatprep.subr.bf16.mxu0 0
    %4714 = vmatpush1.bf16.msra.mxu0 0
    %4715 = vmatprep.subr.bf16.mxu0 0
    %4716 = vmatpush1.bf16.msra.mxu0 0
    %4717 = vmatprep.subr.bf16.mxu0 0
    %4718 = vmatpush1.bf16.msra.mxu0 0
    %4719 = vmatprep.subr.bf16.mxu0 0
    %4720 = vmatpush1.bf16.msra.mxu0 0
    %4721 = vmatprep.mubr.bf16.mxu0 0
    %4722 = vmatmul.mubr.bf16.gmra.mrb[0].mxu0 %v4625
    %v4723 = vpop.f32.mrb[0].mxu0
    %v4724 = vadd.f32 %v4676, %v4723
    %v4725 = vpop.f32.mrb[0].mxu0
    %v4726 = vpop.f32.mrb[0].mxu0
    %v4727 = vpop.f32.mrb[0].mxu0
    %4728 = vdwg.mxu0
    %s4729 = scalar_lea.vmem %s69, 32
    %v4730 = vld [vmem:[%s4729] sm:$0xf]
    %v4731 = vld [vmem:[%s4729 + $0x4] sm:$0xf]
    %v4732 = vld [vmem:[%s4729 + $0x8] sm:$0xf]
    %v4733 = vld [vmem:[%s4729 + $0xc] sm:$0xf]
    %v4734 = vld [vmem:[%s71 + $0x2] sm:$0x1]
    %v4735 = vlaneseq
    %v4736 = vshrl.u32 %v4735, 7
    %v4737 = vsub.s32 0, %v4736
    %v4738 = vrot.slane %v4734, %v4737
    %v4743 = vunpack.c.l.b16 %v4730
    %v4744 = vunpack.c.l.b16 %v4731
    %v4745 = vunpack.c.l.b16 %v4732
    %v4746 = vunpack.c.l.b16 %v4733
    %v4747 = vpack.c.b16 %v4744, %v4743
    %v4748 = vpack.c.b16 %v4746, %v4745
    %4751 = vmatprep.subr.bf16.mxu0 0
    %4752 = vmatpush1.bf16.msra.mxu0 %v4747
    %4753 = vmatprep.subr.bf16.mxu0 0
    %4754 = vmatpush1.bf16.msra.mxu0 %v4748
    %4755 = vmatprep.subr.bf16.mxu0 0
    %4756 = vmatpush1.bf16.msra.mxu0 0
    %4757 = vmatprep.subr.bf16.mxu0 0
    %4758 = vmatpush1.bf16.msra.mxu0 0
    %4759 = vmatprep.subr.bf16.mxu0 0
    %4760 = vmatpush1.bf16.msra.mxu0 0
    %4761 = vmatprep.subr.bf16.mxu0 0
    %4762 = vmatpush1.bf16.msra.mxu0 0
    %4763 = vmatprep.subr.bf16.mxu0 0
    %4764 = vmatpush1.bf16.msra.mxu0 0
    %4765 = vmatprep.subr.bf16.mxu0 0
    %4766 = vmatpush1.bf16.msra.mxu0 0
    %4767 = vmatprep.subr.bf16.mxu0 0
    %4768 = vmatpush1.bf16.msra.mxu0 0
    %4769 = vmatprep.subr.bf16.mxu0 0
    %4770 = vmatpush1.bf16.msra.mxu0 0
    %4771 = vmatprep.subr.bf16.mxu0 0
    %4772 = vmatpush1.bf16.msra.mxu0 0
    %4773 = vmatprep.subr.bf16.mxu0 0
    %4774 = vmatpush1.bf16.msra.mxu0 0
    %4775 = vmatprep.subr.bf16.mxu0 0
    %4776 = vmatpush1.bf16.msra.mxu0 0
    %4777 = vmatprep.subr.bf16.mxu0 0
    %4778 = vmatpush1.bf16.msra.mxu0 0
    %4779 = vmatprep.subr.bf16.mxu0 0
    %4780 = vmatpush1.bf16.msra.mxu0 0
    %4781 = vmatprep.subr.bf16.mxu0 0
    %4782 = vmatpush1.bf16.msra.mxu0 0
    %4783 = vmatprep.mubr.bf16.mxu0 0
    %4784 = vmatmul.mubr.bf16.gmra.mrb[0].mxu0 %v4625
    %v4785 = vpop.f32.mrb[0].mxu0
    %v4786 = vadd.f32 %v4738, %v4785
    %v4787 = vpop.f32.mrb[0].mxu0
    %v4788 = vpop.f32.mrb[0].mxu0
    %v4789 = vpop.f32.mrb[0].mxu0
    %4790 = vdwg.mxu0
    %v4791 = vpack.c.bf16 %v4662, %v4662
    %v4792 = vpack.c.bf16 %v4724, %v4724
    %v4794 = vsel %vm3007, %v4791, 0
    %v4797 = vsel %vm3007, %v4792, 0
    %4799 = vmatprep.subr.bf16.mxu0 0
    %4800 = vmatpush1.bf16.xpose.msra.mxu0 %v4797
    %4801 = vmatprep.subr.bf16.mxu0 0
    %4802 = vmatpush1.bf16.xpose.msra.mxu0 0
    %4803 = vmatprep.subr.bf16.mxu0 0
    %4804 = vmatpush1.bf16.xpose.msra.mxu0 0
    %4805 = vmatprep.subr.bf16.mxu0 0
    %4806 = vmatpush1.bf16.xpose.msra.mxu0 0
    %4807 = vmatprep.subr.bf16.mxu0 0
    %4808 = vmatpush1.bf16.xpose.msra.mxu0 0
    %4809 = vmatprep.subr.bf16.mxu0 0
    %4810 = vmatpush1.bf16.xpose.msra.mxu0 0
    %4811 = vmatprep.subr.bf16.mxu0 0
    %4812 = vmatpush1.bf16.xpose.msra.mxu0 0
    %4813 = vmatprep.subr.bf16.mxu0 0
    %4814 = vmatpush1.bf16.xpose.msra.mxu0 0
    %4815 = vmatprep.subr.bf16.mxu0 0
    %4816 = vmatpush1.bf16.xpose.msra.mxu0 0
    %4817 = vmatprep.subr.bf16.mxu0 0
    %4818 = vmatpush1.bf16.xpose.msra.mxu0 0
    %4819 = vmatprep.subr.bf16.mxu0 0
    %4820 = vmatpush1.bf16.xpose.msra.mxu0 0
    %4821 = vmatprep.subr.bf16.mxu0 0
    %4822 = vmatpush1.bf16.xpose.msra.mxu0 0
    %4823 = vmatprep.subr.bf16.mxu0 0
    %4824 = vmatpush1.bf16.xpose.msra.mxu0 0
    %4825 = vmatprep.subr.bf16.mxu0 0
    %4826 = vmatpush1.bf16.xpose.msra.mxu0 0
    %4827 = vmatprep.subr.bf16.mxu0 0
    %4828 = vmatpush1.bf16.xpose.msra.mxu0 0
    %4829 = vmatprep.subr.bf16.mxu0 0
    %4830 = vmatpush1.bf16.xpose.msra.mxu0 0
    %4831 = vmatprep.mubr.bf16.mxu0 0
    %4832 = vmatmul.mubr.bf16.gmra.mrb[0].mxu0 %v4794
    %v4833 = vpop.f32.mrb[0].mxu0
    %v4834 = vadd.f32 0.0, %v4833
    %v4835 = vpop.f32.mrb[0].mxu0
    %v4836 = vpop.f32.mrb[0].mxu0
    %v4837 = vpop.f32.mrb[0].mxu0
    %4838 = vdwg.mxu0
    %v4839 = vmul.f32 %v4834, 0.17677669
    %vm4840 = vcmask 55296
    %v4841 = vsel %vm4840, %v4839, -inf
    %4842 = vmax.xlane.f32.xlu0 %v4841
    %v4843 = vpop.xlane.xlu0 %4842
    %v4844 = vsub.f32 %v4839, %v4843
    %v4845 = vmul.f32 %v4844, 1.442695
    %v4846 = vpow.pop %v4845
    %v4847 = vsel %vm4840, %v4846, 0.0
    %4848 = vadd.xlane.f32.xlu0 %v4847
    %v4849 = vpop.xlane.xlu0 %4848
    %v4850 = vpack.c.bf16 %v4846, %v4846
    %v4851 = vpack.c.bf16 %v4786, %v4786
    %vm4852 = vcmask 56320
    %v4854 = vsel %vm4852, %v4850, 0
    %vm4856 = vcmask 1042432
    %vm4857 = vcmask 1043456
    %v4858 = vsel %vm4856, 4294967295, 65535
    %v4859 = vsel %vm4857, %v4858, 0
    %v4861 = vand.u32 %v4851, %v4859
    %4863 = vmatprep.subr.bf16.mxu0 0
    %4864 = vmatpush1.bf16.msra.mxu0 %v4861
    %4865 = vmatprep.subr.bf16.mxu0 0
    %4866 = vmatpush1.bf16.msra.mxu0 0
    %4867 = vmatprep.subr.bf16.mxu0 0
    %4868 = vmatpush1.bf16.msra.mxu0 0
    %4869 = vmatprep.subr.bf16.mxu0 0
    %4870 = vmatpush1.bf16.msra.mxu0 0
    %4871 = vmatprep.subr.bf16.mxu0 0
    %4872 = vmatpush1.bf16.msra.mxu0 0
    %4873 = vmatprep.subr.bf16.mxu0 0
    %4874 = vmatpush1.bf16.msra.mxu0 0
    %4875 = vmatprep.subr.bf16.mxu0 0
    %4876 = vmatpush1.bf16.msra.mxu0 0
    %4877 = vmatprep.subr.bf16.mxu0 0
    %4878 = vmatpush1.bf16.msra.mxu0 0
    %4879 = vmatprep.subr.bf16.mxu0 0
    %4880 = vmatpush1.bf16.msra.mxu0 0
    %4881 = vmatprep.subr.bf16.mxu0 0
    %4882 = vmatpush1.bf16.msra.mxu0 0
    %4883 = vmatprep.subr.bf16.mxu0 0
    %4884 = vmatpush1.bf16.msra.mxu0 0
    %4885 = vmatprep.subr.bf16.mxu0 0
    %4886 = vmatpush1.bf16.msra.mxu0 0
    %4887 = vmatprep.subr.bf16.mxu0 0
    %4888 = vmatpush1.bf16.msra.mxu0 0
    %4889 = vmatprep.subr.bf16.mxu0 0
    %4890 = vmatpush1.bf16.msra.mxu0 0
    %4891 = vmatprep.subr.bf16.mxu0 0
    %4892 = vmatpush1.bf16.msra.mxu0 0
    %4893 = vmatprep.subr.bf16.mxu0 0
    %4894 = vmatpush1.bf16.msra.mxu0 0
    %4895 = vmatprep.mubr.bf16.mxu0 0
    %4896 = vmatmul.mubr.bf16.gmra.mrb[0].mxu0 %v4854
    %v4897 = vpop.f32.mrb[0].mxu0
    %v4898 = vadd.f32 0.0, %v4897
    %v4899 = vpop.f32.mrb[0].mxu0
    %v4900 = vpop.f32.mrb[0].mxu0
    %v4901 = vpop.f32.mrb[0].mxu0
    %4902 = vdwg.mxu0
    %v4903 = vrcp.pop %v4849
    %v4904 = vmul.f32 %v4898, %v4903
    %s4905 = scalar_lea.vmem %s69, 48
    %v4906 = vld [vmem:[%s4905] sm:$0xf]
    %v4907 = vld [vmem:[%s4905 + $0x4] sm:$0xf]
    %v4908 = vld [vmem:[%s4905 + $0x8] sm:$0xf]
    %v4909 = vld [vmem:[%s4905 + $0xc] sm:$0xf]
    %v4910 = vpack.c.bf16 %v4904, %v4904
    %v4911 = vld [vmem:[%s71 + $0x3] sm:$0x1]
    %v4912 = vlaneseq
    %v4913 = vshrl.u32 %v4912, 7
    %v4914 = vsub.s32 0, %v4913
    %v4915 = vrot.slane %v4911, %v4914
    %v4920 = vunpack.c.l.b16 %v4906
    %v4921 = vunpack.c.l.b16 %v4907
    %v4922 = vunpack.c.l.b16 %v4908
    %v4923 = vunpack.c.l.b16 %v4909
    %v4924 = vpack.c.b16 %v4921, %v4920
    %v4925 = vpack.c.b16 %v4923, %v4922
    %v4929 = vsel %vm3007, %v4910, 0
    %4931 = vmatprep.subr.bf16.mxu0 0
    %4932 = vmatpush1.bf16.msra.mxu0 %v4924
    %4933 = vmatprep.subr.bf16.mxu0 0
    %4934 = vmatpush1.bf16.msra.mxu0 %v4925
    %4935 = vmatprep.subr.bf16.mxu0 0
    %4936 = vmatpush1.bf16.msra.mxu0 0
    %4937 = vmatprep.subr.bf16.mxu0 0
    %4938 = vmatpush1.bf16.msra.mxu0 0
    %4939 = vmatprep.subr.bf16.mxu0 0
    %4940 = vmatpush1.bf16.msra.mxu0 0
    %4941 = vmatprep.subr.bf16.mxu0 0
    %4942 = vmatpush1.bf16.msra.mxu0 0
    %4943 = vmatprep.subr.bf16.mxu0 0
    %4944 = vmatpush1.bf16.msra.mxu0 0
    %4945 = vmatprep.subr.bf16.mxu0 0
    %4946 = vmatpush1.bf16.msra.mxu0 0
    %4947 = vmatprep.subr.bf16.mxu0 0
    %4948 = vmatpush1.bf16.msra.mxu0 0
    %4949 = vmatprep.subr.bf16.mxu0 0
    %4950 = vmatpush1.bf16.msra.mxu0 0
    %4951 = vmatprep.subr.bf16.mxu0 0
    %4952 = vmatpush1.bf16.msra.mxu0 0
    %4953 = vmatprep.subr.bf16.mxu0 0
    %4954 = vmatpush1.bf16.msra.mxu0 0
    %4955 = vmatprep.subr.bf16.mxu0 0
    %4956 = vmatpush1.bf16.msra.mxu0 0
    %4957 = vmatprep.subr.bf16.mxu0 0
    %4958 = vmatpush1.bf16.msra.mxu0 0
    %4959 = vmatprep.subr.bf16.mxu0 0
    %4960 = vmatpush1.bf16.msra.mxu0 0
    %4961 = vmatprep.subr.bf16.mxu0 0
    %4962 = vmatpush1.bf16.msra.mxu0 0
    %4963 = vmatprep.mubr.bf16.mxu0 0
    %4964 = vmatmul.mubr.bf16.gmra.mrb[0].mxu0 %v4929
    %v4965 = vpop.f32.mrb[0].mxu0
    %v4966 = vadd.f32 %v4915, %v4965
    %v4967 = vpop.f32.mrb[0].mxu0
    %v4968 = vpop.f32.mrb[0].mxu0
    %v4969 = vpop.f32.mrb[0].mxu0
    %4970 = vdwg.mxu0
    %vm4971 = vcmask 260096
    %v4972 = vsel %vm4971, %v4966, 0.0
    %4973 = vadd.xlane.f32.xlu0 %v4972
    %v4974 = vpop.xlane.xlu0 %4973
    %v4975 = vmul.f32 %v4974, 0.03125
    %v4976 = vmul.f32 %v4966, %v4966
    %v4977 = vsel %vm4971, %v4976, 0.0
    %4978 = vadd.xlane.f32.xlu0 %v4977
    %v4979 = vpop.xlane.xlu0 %4978
    %v4980 = vmul.f32 %v4979, 0.03125
    %v4981 = vmul.f32 %v4975, %v4975
    %v4982 = vsub.f32 %v4980, %v4981
    %v4983 = vmax.f32 %v4982, 0.0
    %v4984 = vsub.f32 %v4966, %v4975
    %v4985 = vadd.f32 %v4983, 1e-06
    %v4986 = vrsqrt.pop %v4985
    %v4987 = vmul.f32 %v4984, %v4986
    %v4988 = vlaneseq
    %v4989 = vshrl.u32 %v4988, 7
    %v4990 = vsub.s32 0, %v4989
    %v4991 = vrot.slane %v4600, %v4990
    %v4992 = vmul.f32 %v4987, %v4991
    %v4993 = vlaneseq
    %v4994 = vshrl.u32 %v4993, 7
    %v4995 = vsub.s32 0, %v4994
    %v4996 = vrot.slane %v4601, %v4995
    %v4997 = vadd.f32 %v4992, %v4996
    %v4998 = vadd.f32 %v4997, %v4590
    %v4999 = vadd.f32 %v4598, %v4566
    %v5000 = vadd.f32 %v4599, %v4567
    %s5001 = scalar_lea.vmem %s69, 64
    %v5002 = vld [vmem:[%s5001] sm:$0xf]
    %v5003 = vld [vmem:[%s5001 + $0x4] sm:$0xf]
    %v5004 = vld [vmem:[%s5001 + $0x8] sm:$0xf]
    %v5005 = vld [vmem:[%s5001 + $0xc] sm:$0xf]
    %v5006 = vpack.c.bf16 %v4998, %v4998
    %v5007 = vld [vmem:[%s71 + $0x4] sm:$0x1]
    %v5008 = vlaneseq
    %v5009 = vshrl.u32 %v5008, 7
    %v5010 = vsub.s32 0, %v5009
    %v5011 = vrot.slane %v5007, %v5010
    %v5016 = vunpack.c.l.b16 %v5002
    %v5017 = vunpack.c.l.b16 %v5003
    %v5018 = vunpack.c.l.b16 %v5004
    %v5019 = vunpack.c.l.b16 %v5005
    %v5020 = vpack.c.b16 %v5017, %v5016
    %v5021 = vpack.c.b16 %v5019, %v5018
    %v5025 = vsel %vm3007, %v5006, 0
    %5027 = vmatprep.subr.bf16.mxu0 0
    %5028 = vmatpush1.bf16.msra.mxu0 %v5020
    %5029 = vmatprep.subr.bf16.mxu0 0
    %5030 = vmatpush1.bf16.msra.mxu0 %v5021
    %5031 = vmatprep.subr.bf16.mxu0 0
    %5032 = vmatpush1.bf16.msra.mxu0 0
    %5033 = vmatprep.subr.bf16.mxu0 0
    %5034 = vmatpush1.bf16.msra.mxu0 0
    %5035 = vmatprep.subr.bf16.mxu0 0
    %5036 = vmatpush1.bf16.msra.mxu0 0
    %5037 = vmatprep.subr.bf16.mxu0 0
    %5038 = vmatpush1.bf16.msra.mxu0 0
    %5039 = vmatprep.subr.bf16.mxu0 0
    %5040 = vmatpush1.bf16.msra.mxu0 0
    %5041 = vmatprep.subr.bf16.mxu0 0
    %5042 = vmatpush1.bf16.msra.mxu0 0
    %5043 = vmatprep.subr.bf16.mxu0 0
    %5044 = vmatpush1.bf16.msra.mxu0 0
    %5045 = vmatprep.subr.bf16.mxu0 0
    %5046 = vmatpush1.bf16.msra.mxu0 0
    %5047 = vmatprep.subr.bf16.mxu0 0
    %5048 = vmatpush1.bf16.msra.mxu0 0
    %5049 = vmatprep.subr.bf16.mxu0 0
    %5050 = vmatpush1.bf16.msra.mxu0 0
    %5051 = vmatprep.subr.bf16.mxu0 0
    %5052 = vmatpush1.bf16.msra.mxu0 0
    %5053 = vmatprep.subr.bf16.mxu0 0
    %5054 = vmatpush1.bf16.msra.mxu0 0
    %5055 = vmatprep.subr.bf16.mxu0 0
    %5056 = vmatpush1.bf16.msra.mxu0 0
    %5057 = vmatprep.subr.bf16.mxu0 0
    %5058 = vmatpush1.bf16.msra.mxu0 0
    %5059 = vmatprep.mubr.bf16.mxu0 0
    %5060 = vmatmul.mubr.bf16.gmra.mrb[0].mxu0 %v5025
    %v5061 = vpop.f32.mrb[0].mxu0
    %v5062 = vadd.f32 %v5011, %v5061
    %v5063 = vpop.f32.mrb[0].mxu0
    %v5064 = vpop.f32.mrb[0].mxu0
    %v5065 = vpop.f32.mrb[0].mxu0
    %5066 = vdwg.mxu0
    %s5067 = scalar_lea.vmem %s69, 80
    %v5068 = vld [vmem:[%s5067] sm:$0xf]
    %v5069 = vld [vmem:[%s5067 + $0x4] sm:$0xf]
    %v5070 = vld [vmem:[%s5067 + $0x8] sm:$0xf]
    %v5071 = vld [vmem:[%s5067 + $0xc] sm:$0xf]
    %v5072 = vpack.c.bf16 %v5000, %v4999
    %v5073 = vld [vmem:[%s71 + $0x5] sm:$0x1]
    %v5074 = vlaneseq
    %v5075 = vshrl.u32 %v5074, 7
    %v5076 = vsub.s32 0, %v5075
    %v5077 = vrot.slane %v5073, %v5076
    %v5082 = vunpack.c.l.b16 %v5068
    %v5083 = vunpack.c.l.b16 %v5069
    %v5084 = vunpack.c.l.b16 %v5070
    %v5085 = vunpack.c.l.b16 %v5071
    %v5086 = vpack.c.b16 %v5083, %v5082
    %v5087 = vpack.c.b16 %v5085, %v5084
    %v5091 = vsel %vm3007, %v5072, 0
    %5093 = vmatprep.subr.bf16.mxu0 0
    %5094 = vmatpush1.bf16.msra.mxu0 %v5086
    %5095 = vmatprep.subr.bf16.mxu0 0
    %5096 = vmatpush1.bf16.msra.mxu0 %v5087
    %5097 = vmatprep.subr.bf16.mxu0 0
    %5098 = vmatpush1.bf16.msra.mxu0 0
    %5099 = vmatprep.subr.bf16.mxu0 0
    %5100 = vmatpush1.bf16.msra.mxu0 0
    %5101 = vmatprep.subr.bf16.mxu0 0
    %5102 = vmatpush1.bf16.msra.mxu0 0
    %5103 = vmatprep.subr.bf16.mxu0 0
    %5104 = vmatpush1.bf16.msra.mxu0 0
    %5105 = vmatprep.subr.bf16.mxu0 0
    %5106 = vmatpush1.bf16.msra.mxu0 0
    %5107 = vmatprep.subr.bf16.mxu0 0
    %5108 = vmatpush1.bf16.msra.mxu0 0
    %5109 = vmatprep.subr.bf16.mxu0 0
    %5110 = vmatpush1.bf16.msra.mxu0 0
    %5111 = vmatprep.subr.bf16.mxu0 0
    %5112 = vmatpush1.bf16.msra.mxu0 0
    %5113 = vmatprep.subr.bf16.mxu0 0
    %5114 = vmatpush1.bf16.msra.mxu0 0
    %5115 = vmatprep.subr.bf16.mxu0 0
    %5116 = vmatpush1.bf16.msra.mxu0 0
    %5117 = vmatprep.subr.bf16.mxu0 0
    %5118 = vmatpush1.bf16.msra.mxu0 0
    %5119 = vmatprep.subr.bf16.mxu0 0
    %5120 = vmatpush1.bf16.msra.mxu0 0
    %5121 = vmatprep.subr.bf16.mxu0 0
    %5122 = vmatpush1.bf16.msra.mxu0 0
    %5123 = vmatprep.subr.bf16.mxu0 0
    %5124 = vmatpush1.bf16.msra.mxu0 0
    %5125 = vmatprep.mubr.bf16.mxu0 0
    %5126 = vmatmul.mubr.bf16.gmra.mrb[0].mxu0 %v5091
    %v5127 = vpop.f32.mrb[0].mxu0
    %v5128 = vadd.f32 %v5077, %v5127
    %v5129 = vpop.f32.mrb[0].mxu0
    %v5130 = vpop.f32.mrb[0].mxu0
    %v5131 = vadd.f32 %v5077, %v5130
    %v5132 = vpop.f32.mrb[0].mxu0
    %5133 = vdwg.mxu0
    %s5134 = scalar_lea.vmem %s69, 96
    %v5135 = vld [vmem:[%s5134] sm:$0xf]
    %v5136 = vld [vmem:[%s5134 + $0x4] sm:$0xf]
    %v5137 = vld [vmem:[%s5134 + $0x8] sm:$0xf]
    %v5138 = vld [vmem:[%s5134 + $0xc] sm:$0xf]
    %v5139 = vpack.c.bf16 %v4599, %v4598
    %v5140 = vld [vmem:[%s71 + $0x6] sm:$0x1]
    %v5141 = vlaneseq
    %v5142 = vshrl.u32 %v5141, 7
    %v5143 = vsub.s32 0, %v5142
    %v5144 = vrot.slane %v5140, %v5143
    %v5149 = vunpack.c.l.b16 %v5135
    %v5150 = vunpack.c.l.b16 %v5136
    %v5151 = vunpack.c.l.b16 %v5137
    %v5152 = vunpack.c.l.b16 %v5138
    %v5153 = vpack.c.b16 %v5150, %v5149
    %v5154 = vpack.c.b16 %v5152, %v5151
    %v5158 = vsel %vm3007, %v5139, 0
    %5160 = vmatprep.subr.bf16.mxu0 0
    %5161 = vmatpush1.bf16.msra.mxu0 %v5153
    %5162 = vmatprep.subr.bf16.mxu0 0
    %5163 = vmatpush1.bf16.msra.mxu0 %v5154
    %5164 = vmatprep.subr.bf16.mxu0 0
    %5165 = vmatpush1.bf16.msra.mxu0 0
    %5166 = vmatprep.subr.bf16.mxu0 0
    %5167 = vmatpush1.bf16.msra.mxu0 0
    %5168 = vmatprep.subr.bf16.mxu0 0
    %5169 = vmatpush1.bf16.msra.mxu0 0
    %5170 = vmatprep.subr.bf16.mxu0 0
    %5171 = vmatpush1.bf16.msra.mxu0 0
    %5172 = vmatprep.subr.bf16.mxu0 0
    %5173 = vmatpush1.bf16.msra.mxu0 0
    %5174 = vmatprep.subr.bf16.mxu0 0
    %5175 = vmatpush1.bf16.msra.mxu0 0
    %5176 = vmatprep.subr.bf16.mxu0 0
    %5177 = vmatpush1.bf16.msra.mxu0 0
    %5178 = vmatprep.subr.bf16.mxu0 0
    %5179 = vmatpush1.bf16.msra.mxu0 0
    %5180 = vmatprep.subr.bf16.mxu0 0
    %5181 = vmatpush1.bf16.msra.mxu0 0
    %5182 = vmatprep.subr.bf16.mxu0 0
    %5183 = vmatpush1.bf16.msra.mxu0 0
    %5184 = vmatprep.subr.bf16.mxu0 0
    %5185 = vmatpush1.bf16.msra.mxu0 0
    %5186 = vmatprep.subr.bf16.mxu0 0
    %5187 = vmatpush1.bf16.msra.mxu0 0
    %5188 = vmatprep.subr.bf16.mxu0 0
    %5189 = vmatpush1.bf16.msra.mxu0 0
    %5190 = vmatprep.subr.bf16.mxu0 0
    %5191 = vmatpush1.bf16.msra.mxu0 0
    %5192 = vmatprep.mubr.bf16.mxu0 0
    %5193 = vmatmul.mubr.bf16.gmra.mrb[0].mxu0 %v5158
    %v5194 = vpop.f32.mrb[0].mxu0
    %v5195 = vadd.f32 %v5144, %v5194
    %v5196 = vpop.f32.mrb[0].mxu0
    %v5197 = vpop.f32.mrb[0].mxu0
    %v5198 = vadd.f32 %v5144, %v5197
    %v5199 = vpop.f32.mrb[0].mxu0
    %5200 = vdwg.mxu0
    %v5201 = vpack.c.bf16 %v5062, %v5062
    %v5202 = vpack.c.bf16 %v5131, %v5128
    %v5204 = vsel %vm3007, %v5201, 0
    %v5207 = vsel %vm3007, %v5202, 0
    %5209 = vmatprep.subr.bf16.mxu0 0
    %5210 = vmatpush1.bf16.xpose.msra.mxu0 %v5207
    %5211 = vmatprep.subr.bf16.mxu0 0
    %5212 = vmatpush1.bf16.xpose.msra.mxu0 0
    %5213 = vmatprep.subr.bf16.mxu0 0
    %5214 = vmatpush1.bf16.xpose.msra.mxu0 0
    %5215 = vmatprep.subr.bf16.mxu0 0
    %5216 = vmatpush1.bf16.xpose.msra.mxu0 0
    %5217 = vmatprep.subr.bf16.mxu0 0
    %5218 = vmatpush1.bf16.xpose.msra.mxu0 0
    %5219 = vmatprep.subr.bf16.mxu0 0
    %5220 = vmatpush1.bf16.xpose.msra.mxu0 0
    %5221 = vmatprep.subr.bf16.mxu0 0
    %5222 = vmatpush1.bf16.xpose.msra.mxu0 0
    %5223 = vmatprep.subr.bf16.mxu0 0
    %5224 = vmatpush1.bf16.xpose.msra.mxu0 0
    %5225 = vmatprep.subr.bf16.mxu0 0
    %5226 = vmatpush1.bf16.xpose.msra.mxu0 0
    %5227 = vmatprep.subr.bf16.mxu0 0
    %5228 = vmatpush1.bf16.xpose.msra.mxu0 0
    %5229 = vmatprep.subr.bf16.mxu0 0
    %5230 = vmatpush1.bf16.xpose.msra.mxu0 0
    %5231 = vmatprep.subr.bf16.mxu0 0
    %5232 = vmatpush1.bf16.xpose.msra.mxu0 0
    %5233 = vmatprep.subr.bf16.mxu0 0
    %5234 = vmatpush1.bf16.xpose.msra.mxu0 0
    %5235 = vmatprep.subr.bf16.mxu0 0
    %5236 = vmatpush1.bf16.xpose.msra.mxu0 0
    %5237 = vmatprep.subr.bf16.mxu0 0
    %5238 = vmatpush1.bf16.xpose.msra.mxu0 0
    %5239 = vmatprep.subr.bf16.mxu0 0
    %5240 = vmatpush1.bf16.xpose.msra.mxu0 0
    %5241 = vmatprep.mubr.bf16.mxu0 0
    %5242 = vmatmul.mubr.bf16.gmra.mrb[0].mxu0 %v5204
    %v5243 = vpop.f32.mrb[0].mxu0
    %v5244 = vadd.f32 0.0, %v5243
    %v5245 = vpop.f32.mrb[0].mxu0
    %v5246 = vpop.f32.mrb[0].mxu0
    %v5247 = vpop.f32.mrb[0].mxu0
    %5248 = vdwg.mxu0
    %v5249 = vmul.f32 %v5244, 0.17677669
    %vm5250 = vcmask 129024
    %v5251 = vsel %vm5250, %v5249, -inf
    %5252 = vmax.xlane.f32.xlu0 %v5251
    %v5253 = vpop.xlane.xlu0 %5252
    %v5254 = vsub.f32 %v5249, %v5253
    %v5255 = vmul.f32 %v5254, 1.442695
    %v5256 = vpow.pop %v5255
    %v5257 = vsel %vm5250, %v5256, 0.0
    %5258 = vadd.xlane.f32.xlu0 %v5257
    %v5259 = vpop.xlane.xlu0 %5258
    %v5260 = vpack.c.bf16 %v5256, %v5256
    %v5261 = vpack.c.bf16 %v5198, %v5195
    %v5263 = vsel %vm1941, %v5260, 0
    %5265 = vmatprep.subr.bf16.mxu0 0
    %5266 = vmatpush1.bf16.msra.mxu0 %v5261
    %5267 = vmatprep.subr.bf16.mxu0 0
    %5268 = vmatpush1.bf16.msra.mxu0 0
    %5269 = vmatprep.subr.bf16.mxu0 0
    %5270 = vmatpush1.bf16.msra.mxu0 0
    %5271 = vmatprep.subr.bf16.mxu0 0
    %5272 = vmatpush1.bf16.msra.mxu0 0
    %5273 = vmatprep.subr.bf16.mxu0 0
    %5274 = vmatpush1.bf16.msra.mxu0 0
    %5275 = vmatprep.subr.bf16.mxu0 0
    %5276 = vmatpush1.bf16.msra.mxu0 0
    %5277 = vmatprep.subr.bf16.mxu0 0
    %5278 = vmatpush1.bf16.msra.mxu0 0
    %5279 = vmatprep.subr.bf16.mxu0 0
    %5280 = vmatpush1.bf16.msra.mxu0 0
    %5281 = vmatprep.subr.bf16.mxu0 0
    %5282 = vmatpush1.bf16.msra.mxu0 0
    %5283 = vmatprep.subr.bf16.mxu0 0
    %5284 = vmatpush1.bf16.msra.mxu0 0
    %5285 = vmatprep.subr.bf16.mxu0 0
    %5286 = vmatpush1.bf16.msra.mxu0 0
    %5287 = vmatprep.subr.bf16.mxu0 0
    %5288 = vmatpush1.bf16.msra.mxu0 0
    %5289 = vmatprep.subr.bf16.mxu0 0
    %5290 = vmatpush1.bf16.msra.mxu0 0
    %5291 = vmatprep.subr.bf16.mxu0 0
    %5292 = vmatpush1.bf16.msra.mxu0 0
    %5293 = vmatprep.subr.bf16.mxu0 0
    %5294 = vmatpush1.bf16.msra.mxu0 0
    %5295 = vmatprep.subr.bf16.mxu0 0
    %5296 = vmatpush1.bf16.msra.mxu0 0
    %5297 = vmatprep.mubr.bf16.mxu0 0
    %5298 = vmatmul.mubr.bf16.gmra.mrb[0].mxu0 %v5263
    %v5299 = vpop.f32.mrb[0].mxu0
    %v5300 = vadd.f32 0.0, %v5299
    %v5301 = vpop.f32.mrb[0].mxu0
    %v5302 = vpop.f32.mrb[0].mxu0
    %v5303 = vpop.f32.mrb[0].mxu0
    %5304 = vdwg.mxu0
    %v5305 = vrcp.pop %v5259
    %v5306 = vmul.f32 %v5300, %v5305
    %s5307 = scalar_lea.vmem %s69, 112
    %v5308 = vld [vmem:[%s5307] sm:$0xf]
    %v5309 = vld [vmem:[%s5307 + $0x4] sm:$0xf]
    %v5310 = vld [vmem:[%s5307 + $0x8] sm:$0xf]
    %v5311 = vld [vmem:[%s5307 + $0xc] sm:$0xf]
    %v5312 = vpack.c.bf16 %v5306, %v5306
    %v5313 = vld [vmem:[%s71 + $0x7] sm:$0x1]
    %v5314 = vlaneseq
    %v5315 = vshrl.u32 %v5314, 7
    %v5316 = vsub.s32 0, %v5315
    %v5317 = vrot.slane %v5313, %v5316
    %v5322 = vunpack.c.l.b16 %v5308
    %v5323 = vunpack.c.l.b16 %v5309
    %v5324 = vunpack.c.l.b16 %v5310
    %v5325 = vunpack.c.l.b16 %v5311
    %v5326 = vpack.c.b16 %v5323, %v5322
    %v5327 = vpack.c.b16 %v5325, %v5324
    %v5331 = vsel %vm3007, %v5312, 0
    %5333 = vmatprep.subr.bf16.mxu0 0
    %5334 = vmatpush1.bf16.msra.mxu0 %v5326
    %5335 = vmatprep.subr.bf16.mxu0 0
    %5336 = vmatpush1.bf16.msra.mxu0 %v5327
    %5337 = vmatprep.subr.bf16.mxu0 0
    %5338 = vmatpush1.bf16.msra.mxu0 0
    %5339 = vmatprep.subr.bf16.mxu0 0
    %5340 = vmatpush1.bf16.msra.mxu0 0
    %5341 = vmatprep.subr.bf16.mxu0 0
    %5342 = vmatpush1.bf16.msra.mxu0 0
    %5343 = vmatprep.subr.bf16.mxu0 0
    %5344 = vmatpush1.bf16.msra.mxu0 0
    %5345 = vmatprep.subr.bf16.mxu0 0
    %5346 = vmatpush1.bf16.msra.mxu0 0
    %5347 = vmatprep.subr.bf16.mxu0 0
    %5348 = vmatpush1.bf16.msra.mxu0 0
    %5349 = vmatprep.subr.bf16.mxu0 0
    %5350 = vmatpush1.bf16.msra.mxu0 0
    %5351 = vmatprep.subr.bf16.mxu0 0
    %5352 = vmatpush1.bf16.msra.mxu0 0
    %5353 = vmatprep.subr.bf16.mxu0 0
    %5354 = vmatpush1.bf16.msra.mxu0 0
    %5355 = vmatprep.subr.bf16.mxu0 0
    %5356 = vmatpush1.bf16.msra.mxu0 0
    %5357 = vmatprep.subr.bf16.mxu0 0
    %5358 = vmatpush1.bf16.msra.mxu0 0
    %5359 = vmatprep.subr.bf16.mxu0 0
    %5360 = vmatpush1.bf16.msra.mxu0 0
    %5361 = vmatprep.subr.bf16.mxu0 0
    %5362 = vmatpush1.bf16.msra.mxu0 0
    %5363 = vmatprep.subr.bf16.mxu0 0
    %5364 = vmatpush1.bf16.msra.mxu0 0
    %5365 = vmatprep.mubr.bf16.mxu0 0
    %5366 = vmatmul.mubr.bf16.gmra.mrb[0].mxu0 %v5331
    %v5367 = vpop.f32.mrb[0].mxu0
    %v5368 = vadd.f32 %v5317, %v5367
    %v5369 = vpop.f32.mrb[0].mxu0
    %v5370 = vpop.f32.mrb[0].mxu0
    %v5371 = vpop.f32.mrb[0].mxu0
    %5372 = vdwg.mxu0
    %v5373 = vadd.f32 %v4997, %v5368
    %v5374 = vsel %vm4971, %v5373, 0.0
    %5375 = vadd.xlane.f32.xlu0 %v5374
    %v5376 = vpop.xlane.xlu0 %5375
    %v5377 = vmul.f32 %v5376, 0.03125
    %v5378 = vmul.f32 %v5373, %v5373
    %v5379 = vsel %vm4971, %v5378, 0.0
    %5380 = vadd.xlane.f32.xlu0 %v5379
    %v5381 = vpop.xlane.xlu0 %5380
    %v5382 = vmul.f32 %v5381, 0.03125
    %v5383 = vmul.f32 %v5377, %v5377
    %v5384 = vsub.f32 %v5382, %v5383
    %v5385 = vmax.f32 %v5384, 0.0
    %v5386 = vsub.f32 %v5373, %v5377
    %v5387 = vadd.f32 %v5385, 1e-06
    %v5388 = vrsqrt.pop %v5387
    %v5389 = vmul.f32 %v5386, %v5388
    %v5390 = vlaneseq
    %v5391 = vshrl.u32 %v5390, 7
    %v5392 = vsub.s32 1, %v5391
    %v5393 = vrot.slane %v4600, %v5392
    %v5394 = vmul.f32 %v5389, %v5393
    %v5395 = vlaneseq
    %v5396 = vshrl.u32 %v5395, 7
    %v5397 = vsub.s32 1, %v5396
    %v5398 = vrot.slane %v4601, %v5397
    %v5399 = vadd.f32 %v5394, %v5398
    %v5400 = vld [vmem:[%s77] sm:$0xf]
    %v5401 = vld [vmem:[%s77 + $0x4] sm:$0xf]
    %v5402 = vld [vmem:[%s77 + $0x8] sm:$0xf]
    %v5403 = vld [vmem:[%s77 + $0xc] sm:$0xf]
    %v5404 = vpack.c.bf16 %v5399, %v5399
    %v5405 = vld [vmem:[%s79] sm:$0x1]
    %v5407 = vlaneseq
    %v5408 = vshrl.u32 %v5407, 7
    %v5409 = vsub.s32 0, %v5408
    %v5410 = vrot.slane %v5405, %v5409
    %v5416 = vunpack.c.l.b16 %v5400
    %v5417 = vunpack.c.l.b16 %v5401
    %v5418 = vunpack.c.l.b16 %v5402
    %v5419 = vunpack.c.l.b16 %v5403
    %v5420 = vpack.c.b16 %v5417, %v5416
    %v5421 = vpack.c.b16 %v5419, %v5418
    %v5425 = vsel %vm3007, %v5404, 0
    %5427 = vmatprep.subr.bf16.mxu0 0
    %5428 = vmatpush1.bf16.msra.mxu0 %v5420
    %5429 = vmatprep.subr.bf16.mxu0 0
    %5430 = vmatpush1.bf16.msra.mxu0 %v5421
    %5431 = vmatprep.subr.bf16.mxu0 0
    %5432 = vmatpush1.bf16.msra.mxu0 0
    %5433 = vmatprep.subr.bf16.mxu0 0
    %5434 = vmatpush1.bf16.msra.mxu0 0
    %5435 = vmatprep.subr.bf16.mxu0 0
    %5436 = vmatpush1.bf16.msra.mxu0 0
    %5437 = vmatprep.subr.bf16.mxu0 0
    %5438 = vmatpush1.bf16.msra.mxu0 0
    %5439 = vmatprep.subr.bf16.mxu0 0
    %5440 = vmatpush1.bf16.msra.mxu0 0
    %5441 = vmatprep.subr.bf16.mxu0 0
    %5442 = vmatpush1.bf16.msra.mxu0 0
    %5443 = vmatprep.subr.bf16.mxu0 0
    %5444 = vmatpush1.bf16.msra.mxu0 0
    %5445 = vmatprep.subr.bf16.mxu0 0
    %5446 = vmatpush1.bf16.msra.mxu0 0
    %5447 = vmatprep.subr.bf16.mxu0 0
    %5448 = vmatpush1.bf16.msra.mxu0 0
    %5449 = vmatprep.subr.bf16.mxu0 0
    %5450 = vmatpush1.bf16.msra.mxu0 0
    %5451 = vmatprep.subr.bf16.mxu0 0
    %5452 = vmatpush1.bf16.msra.mxu0 0
    %5453 = vmatprep.subr.bf16.mxu0 0
    %5454 = vmatpush1.bf16.msra.mxu0 0
    %5455 = vmatprep.subr.bf16.mxu0 0
    %5456 = vmatpush1.bf16.msra.mxu0 0
    %5457 = vmatprep.subr.bf16.mxu0 0
    %5458 = vmatpush1.bf16.msra.mxu0 0
    %5459 = vmatprep.mubr.bf16.mxu0 0
    %5460 = vmatmul.mubr.bf16.gmra.mrb[0].mxu0 %v5425
    %v5461 = vpop.f32.mrb[0].mxu0
    %v5462 = vadd.f32 %v5410, %v5461
    %v5463 = vpop.f32.mrb[0].mxu0
    %v5464 = vpop.f32.mrb[0].mxu0
    %v5465 = vpop.f32.mrb[0].mxu0
    %5466 = vdwg.mxu0
    %v5467 = vmax.f32 %v5462, 0.0
    %v5468 = vld [vmem:[%s81] sm:$0xf]
    %v5469 = vld [vmem:[%s81 + $0x4] sm:$0xf]
    %v5470 = vld [vmem:[%s81 + $0x8] sm:$0xf]
    %v5471 = vld [vmem:[%s81 + $0xc] sm:$0xf]
    %v5472 = vld [vmem:[%s81 + $0x10] sm:$0xf]
    %v5473 = vld [vmem:[%s81 + $0x14] sm:$0xf]
    %v5474 = vld [vmem:[%s81 + $0x18] sm:$0xf]
    %v5475 = vld [vmem:[%s81 + $0x1c] sm:$0xf]
    %v5476 = vpack.c.bf16 %v5467, %v5467
    %v5485 = vunpack.c.l.b16 %v5468
    %v5486 = vunpack.c.l.b16 %v5469
    %v5487 = vunpack.c.l.b16 %v5470
    %v5488 = vunpack.c.l.b16 %v5471
    %v5489 = vunpack.c.l.b16 %v5472
    %v5490 = vunpack.c.l.b16 %v5473
    %v5491 = vunpack.c.l.b16 %v5474
    %v5492 = vunpack.c.l.b16 %v5475
    %v5493 = vpack.c.b16 %v5486, %v5485
    %v5494 = vpack.c.b16 %v5488, %v5487
    %v5495 = vpack.c.b16 %v5490, %v5489
    %v5496 = vpack.c.b16 %v5492, %v5491
    %v5502 = vsel %vm1539, %v5476, 0
    %5504 = vmatprep.subr.bf16.mxu0 0
    %5505 = vmatpush1.bf16.msra.mxu0 %v5493
    %5506 = vmatprep.subr.bf16.mxu0 0
    %5507 = vmatpush1.bf16.msra.mxu0 %v5494
    %5508 = vmatprep.subr.bf16.mxu0 0
    %5509 = vmatpush1.bf16.msra.mxu0 %v5495
    %5510 = vmatprep.subr.bf16.mxu0 0
    %5511 = vmatpush1.bf16.msra.mxu0 %v5496
    %5512 = vmatprep.subr.bf16.mxu0 0
    %5513 = vmatpush1.bf16.msra.mxu0 0
    %5514 = vmatprep.subr.bf16.mxu0 0
    %5515 = vmatpush1.bf16.msra.mxu0 0
    %5516 = vmatprep.subr.bf16.mxu0 0
    %5517 = vmatpush1.bf16.msra.mxu0 0
    %5518 = vmatprep.subr.bf16.mxu0 0
    %5519 = vmatpush1.bf16.msra.mxu0 0
    %5520 = vmatprep.subr.bf16.mxu0 0
    %5521 = vmatpush1.bf16.msra.mxu0 0
    %5522 = vmatprep.subr.bf16.mxu0 0
    %5523 = vmatpush1.bf16.msra.mxu0 0
    %5524 = vmatprep.subr.bf16.mxu0 0
    %5525 = vmatpush1.bf16.msra.mxu0 0
    %5526 = vmatprep.subr.bf16.mxu0 0
    %5527 = vmatpush1.bf16.msra.mxu0 0
    %5528 = vmatprep.subr.bf16.mxu0 0
    %5529 = vmatpush1.bf16.msra.mxu0 0
    %5530 = vmatprep.subr.bf16.mxu0 0
    %5531 = vmatpush1.bf16.msra.mxu0 0
    %5532 = vmatprep.subr.bf16.mxu0 0
    %5533 = vmatpush1.bf16.msra.mxu0 0
    %5534 = vmatprep.subr.bf16.mxu0 0
    %5535 = vmatpush1.bf16.msra.mxu0 0
    %5536 = vmatprep.mubr.bf16.mxu0 0
    %5537 = vmatmul.mubr.bf16.gmra.mrb[0].mxu0 %v5502
    %v5538 = vpop.f32.mrb[0].mxu0
    %v5539 = vadd.f32 0.0, %v5538
    %v5540 = vpop.f32.mrb[0].mxu0
    %v5541 = vpop.f32.mrb[0].mxu0
    %v5542 = vpop.f32.mrb[0].mxu0
    %5543 = vdwg.mxu0
    %v5544 = vadd.f32 %v5399, %v5539
    %v5545 = vld [vmem:[#allocation4] sm:$0x1]
    %v5547 = vlaneseq
    %v5548 = vshrl.u32 %v5547, 7
    %v5549 = vsub.s32 0, %v5548
    %v5550 = vrot.slane %v5545, %v5549
    %v5552 = vadd.f32 %v5544, %v5550
    %v5553 = vsel %vm4971, %v5552, 0.0
    %5554 = vadd.xlane.f32.xlu0 %v5553
    %v5555 = vpop.xlane.xlu0 %5554
    %v5556 = vmul.f32 %v5555, 0.03125
    %v5557 = vmul.f32 %v5552, %v5552
    %v5558 = vsel %vm4971, %v5557, 0.0
    %5559 = vadd.xlane.f32.xlu0 %v5558
    %v5560 = vpop.xlane.xlu0 %5559
    %v5561 = vmul.f32 %v5560, 0.03125
    %v5562 = vmul.f32 %v5556, %v5556
    %v5563 = vsub.f32 %v5561, %v5562
    %v5564 = vmax.f32 %v5563, 0.0
    %v5565 = vsub.f32 %v5552, %v5556
    %v5566 = vadd.f32 %v5564, 1e-06
    %v5567 = vrsqrt.pop %v5566
    %v5568 = vmul.f32 %v5565, %v5567
    %v5569 = vlaneseq
    %v5570 = vshrl.u32 %v5569, 7
    %v5571 = vsub.s32 2, %v5570
    %v5572 = vrot.slane %v4600, %v5571
    %v5573 = vmul.f32 %v5568, %v5572
    %v5574 = vlaneseq
    %v5575 = vshrl.u32 %v5574, 7
    %v5576 = vsub.s32 2, %v5575
    %v5577 = vrot.slane %v4601, %v5576
    %v5578 = vadd.f32 %v5573, %v5577
    %v5579 = vadd.f32 %v5578, %v4590
    %s5580 = scalar_lea.vmem %s69, 128
    %v5581 = vld [vmem:[%s5580] sm:$0xf]
    %v5582 = vld [vmem:[%s5580 + $0x4] sm:$0xf]
    %v5583 = vld [vmem:[%s5580 + $0x8] sm:$0xf]
    %v5584 = vld [vmem:[%s5580 + $0xc] sm:$0xf]
    %v5585 = vld [vmem:[%s71 + $0x8] sm:$0x1]
    %v5586 = vlaneseq
    %v5587 = vshrl.u32 %v5586, 7
    %v5588 = vsub.s32 0, %v5587
    %v5589 = vrot.slane %v5585, %v5588
    %v5594 = vunpack.c.l.b16 %v5581
    %v5595 = vunpack.c.l.b16 %v5582
    %v5596 = vunpack.c.l.b16 %v5583
    %v5597 = vunpack.c.l.b16 %v5584
    %v5598 = vpack.c.b16 %v5595, %v5594
    %v5599 = vpack.c.b16 %v5597, %v5596
    %5602 = vmatprep.subr.bf16.mxu0 0
    %5603 = vmatpush1.bf16.msra.mxu0 %v5598
    %5604 = vmatprep.subr.bf16.mxu0 0
    %5605 = vmatpush1.bf16.msra.mxu0 %v5599
    %5606 = vmatprep.subr.bf16.mxu0 0
    %5607 = vmatpush1.bf16.msra.mxu0 0
    %5608 = vmatprep.subr.bf16.mxu0 0
    %5609 = vmatpush1.bf16.msra.mxu0 0
    %5610 = vmatprep.subr.bf16.mxu0 0
    %5611 = vmatpush1.bf16.msra.mxu0 0
    %5612 = vmatprep.subr.bf16.mxu0 0
    %5613 = vmatpush1.bf16.msra.mxu0 0
    %5614 = vmatprep.subr.bf16.mxu0 0
    %5615 = vmatpush1.bf16.msra.mxu0 0
    %5616 = vmatprep.subr.bf16.mxu0 0
    %5617 = vmatpush1.bf16.msra.mxu0 0
    %5618 = vmatprep.subr.bf16.mxu0 0
    %5619 = vmatpush1.bf16.msra.mxu0 0
    %5620 = vmatprep.subr.bf16.mxu0 0
    %5621 = vmatpush1.bf16.msra.mxu0 0
    %5622 = vmatprep.subr.bf16.mxu0 0
    %5623 = vmatpush1.bf16.msra.mxu0 0
    %5624 = vmatprep.subr.bf16.mxu0 0
    %5625 = vmatpush1.bf16.msra.mxu0 0
    %5626 = vmatprep.subr.bf16.mxu0 0
    %5627 = vmatpush1.bf16.msra.mxu0 0
    %5628 = vmatprep.subr.bf16.mxu0 0
    %5629 = vmatpush1.bf16.msra.mxu0 0
    %5630 = vmatprep.subr.bf16.mxu0 0
    %5631 = vmatpush1.bf16.msra.mxu0 0
    %5632 = vmatprep.subr.bf16.mxu0 0
    %5633 = vmatpush1.bf16.msra.mxu0 0
    %5634 = vmatprep.mubr.bf16.mxu0 0
    %5635 = vmatmul.mubr.bf16.gmra.mrb[0].mxu0 %v5091
    %v5636 = vpop.f32.mrb[0].mxu0
    %v5637 = vadd.f32 %v5589, %v5636
    %v5638 = vpop.f32.mrb[0].mxu0
    %v5639 = vpop.f32.mrb[0].mxu0
    %v5640 = vadd.f32 %v5589, %v5639
    %v5641 = vpop.f32.mrb[0].mxu0
    %5642 = vdwg.mxu0
    %s5643 = scalar_lea.vmem %s69, 144
    %v5644 = vld [vmem:[%s5643] sm:$0xf]
    %v5645 = vld [vmem:[%s5643 + $0x4] sm:$0xf]
    %v5646 = vld [vmem:[%s5643 + $0x8] sm:$0xf]
    %v5647 = vld [vmem:[%s5643 + $0xc] sm:$0xf]
    %v5648 = vpack.c.bf16 %v5579, %v5579
    %v5649 = vld [vmem:[%s71 + $0x9] sm:$0x1]
    %v5650 = vlaneseq
    %v5651 = vshrl.u32 %v5650, 7
    %v5652 = vsub.s32 0, %v5651
    %v5653 = vrot.slane %v5649, %v5652
    %v5658 = vunpack.c.l.b16 %v5644
    %v5659 = vunpack.c.l.b16 %v5645
    %v5660 = vunpack.c.l.b16 %v5646
    %v5661 = vunpack.c.l.b16 %v5647
    %v5662 = vpack.c.b16 %v5659, %v5658
    %v5663 = vpack.c.b16 %v5661, %v5660
    %v5667 = vsel %vm3007, %v5648, 0
    %5669 = vmatprep.subr.bf16.mxu0 0
    %5670 = vmatpush1.bf16.msra.mxu0 %v5662
    %5671 = vmatprep.subr.bf16.mxu0 0
    %5672 = vmatpush1.bf16.msra.mxu0 %v5663
    %5673 = vmatprep.subr.bf16.mxu0 0
    %5674 = vmatpush1.bf16.msra.mxu0 0
    %5675 = vmatprep.subr.bf16.mxu0 0
    %5676 = vmatpush1.bf16.msra.mxu0 0
    %5677 = vmatprep.subr.bf16.mxu0 0
    %5678 = vmatpush1.bf16.msra.mxu0 0
    %5679 = vmatprep.subr.bf16.mxu0 0
    %5680 = vmatpush1.bf16.msra.mxu0 0
    %5681 = vmatprep.subr.bf16.mxu0 0
    %5682 = vmatpush1.bf16.msra.mxu0 0
    %5683 = vmatprep.subr.bf16.mxu0 0
    %5684 = vmatpush1.bf16.msra.mxu0 0
    %5685 = vmatprep.subr.bf16.mxu0 0
    %5686 = vmatpush1.bf16.msra.mxu0 0
    %5687 = vmatprep.subr.bf16.mxu0 0
    %5688 = vmatpush1.bf16.msra.mxu0 0
    %5689 = vmatprep.subr.bf16.mxu0 0
    %5690 = vmatpush1.bf16.msra.mxu0 0
    %5691 = vmatprep.subr.bf16.mxu0 0
    %5692 = vmatpush1.bf16.msra.mxu0 0
    %5693 = vmatprep.subr.bf16.mxu0 0
    %5694 = vmatpush1.bf16.msra.mxu0 0
    %5695 = vmatprep.subr.bf16.mxu0 0
    %5696 = vmatpush1.bf16.msra.mxu0 0
    %5697 = vmatprep.subr.bf16.mxu0 0
    %5698 = vmatpush1.bf16.msra.mxu0 0
    %5699 = vmatprep.subr.bf16.mxu0 0
    %5700 = vmatpush1.bf16.msra.mxu0 0
    %5701 = vmatprep.mubr.bf16.mxu0 0
    %5702 = vmatmul.mubr.bf16.gmra.mrb[0].mxu0 %v5667
    %v5703 = vpop.f32.mrb[0].mxu0
    %v5704 = vadd.f32 %v5653, %v5703
    %v5705 = vpop.f32.mrb[0].mxu0
    %v5706 = vpop.f32.mrb[0].mxu0
    %v5707 = vpop.f32.mrb[0].mxu0
    %5708 = vdwg.mxu0
    %s5709 = scalar_lea.vmem %s69, 160
    %v5710 = vld [vmem:[%s5709] sm:$0xf]
    %v5711 = vld [vmem:[%s5709 + $0x4] sm:$0xf]
    %v5712 = vld [vmem:[%s5709 + $0x8] sm:$0xf]
    %v5713 = vld [vmem:[%s5709 + $0xc] sm:$0xf]
    %v5714 = vpack.c.bf16 %v5578, %v5578
    %v5715 = vld [vmem:[%s71 + $0xa] sm:$0x1]
    %v5716 = vlaneseq
    %v5717 = vshrl.u32 %v5716, 7
    %v5718 = vsub.s32 0, %v5717
    %v5719 = vrot.slane %v5715, %v5718
    %v5724 = vunpack.c.l.b16 %v5710
    %v5725 = vunpack.c.l.b16 %v5711
    %v5726 = vunpack.c.l.b16 %v5712
    %v5727 = vunpack.c.l.b16 %v5713
    %v5728 = vpack.c.b16 %v5725, %v5724
    %v5729 = vpack.c.b16 %v5727, %v5726
    %v5733 = vsel %vm3007, %v5714, 0
    %5735 = vmatprep.subr.bf16.mxu0 0
    %5736 = vmatpush1.bf16.msra.mxu0 %v5728
    %5737 = vmatprep.subr.bf16.mxu0 0
    %5738 = vmatpush1.bf16.msra.mxu0 %v5729
    %5739 = vmatprep.subr.bf16.mxu0 0
    %5740 = vmatpush1.bf16.msra.mxu0 0
    %5741 = vmatprep.subr.bf16.mxu0 0
    %5742 = vmatpush1.bf16.msra.mxu0 0
    %5743 = vmatprep.subr.bf16.mxu0 0
    %5744 = vmatpush1.bf16.msra.mxu0 0
    %5745 = vmatprep.subr.bf16.mxu0 0
    %5746 = vmatpush1.bf16.msra.mxu0 0
    %5747 = vmatprep.subr.bf16.mxu0 0
    %5748 = vmatpush1.bf16.msra.mxu0 0
    %5749 = vmatprep.subr.bf16.mxu0 0
    %5750 = vmatpush1.bf16.msra.mxu0 0
    %5751 = vmatprep.subr.bf16.mxu0 0
    %5752 = vmatpush1.bf16.msra.mxu0 0
    %5753 = vmatprep.subr.bf16.mxu0 0
    %5754 = vmatpush1.bf16.msra.mxu0 0
    %5755 = vmatprep.subr.bf16.mxu0 0
    %5756 = vmatpush1.bf16.msra.mxu0 0
    %5757 = vmatprep.subr.bf16.mxu0 0
    %5758 = vmatpush1.bf16.msra.mxu0 0
    %5759 = vmatprep.subr.bf16.mxu0 0
    %5760 = vmatpush1.bf16.msra.mxu0 0
    %5761 = vmatprep.subr.bf16.mxu0 0
    %5762 = vmatpush1.bf16.msra.mxu0 0
    %5763 = vmatprep.subr.bf16.mxu0 0
    %5764 = vmatpush1.bf16.msra.mxu0 0
    %5765 = vmatprep.subr.bf16.mxu0 0
    %5766 = vmatpush1.bf16.msra.mxu0 0
    %5767 = vmatprep.mubr.bf16.mxu0 0
    %5768 = vmatmul.mubr.bf16.gmra.mrb[0].mxu0 %v5733
    %v5769 = vpop.f32.mrb[0].mxu0
    %v5770 = vadd.f32 %v5719, %v5769
    %v5771 = vpop.f32.mrb[0].mxu0
    %v5772 = vpop.f32.mrb[0].mxu0
    %v5773 = vpop.f32.mrb[0].mxu0
    %5774 = vdwg.mxu0
    %v5775 = vpack.c.bf16 %v5640, %v5637
    %v5776 = vpack.c.bf16 %v5704, %v5704
    %v5778 = vsel %vm3007, %v5775, 0
    %v5781 = vsel %vm3007, %v5776, 0
    %5783 = vmatprep.subr.bf16.mxu0 0
    %5784 = vmatpush1.bf16.xpose.msra.mxu0 %v5781
    %5785 = vmatprep.subr.bf16.mxu0 0
    %5786 = vmatpush1.bf16.xpose.msra.mxu0 0
    %5787 = vmatprep.subr.bf16.mxu0 0
    %5788 = vmatpush1.bf16.xpose.msra.mxu0 0
    %5789 = vmatprep.subr.bf16.mxu0 0
    %5790 = vmatpush1.bf16.xpose.msra.mxu0 0
    %5791 = vmatprep.subr.bf16.mxu0 0
    %5792 = vmatpush1.bf16.xpose.msra.mxu0 0
    %5793 = vmatprep.subr.bf16.mxu0 0
    %5794 = vmatpush1.bf16.xpose.msra.mxu0 0
    %5795 = vmatprep.subr.bf16.mxu0 0
    %5796 = vmatpush1.bf16.xpose.msra.mxu0 0
    %5797 = vmatprep.subr.bf16.mxu0 0
    %5798 = vmatpush1.bf16.xpose.msra.mxu0 0
    %5799 = vmatprep.subr.bf16.mxu0 0
    %5800 = vmatpush1.bf16.xpose.msra.mxu0 0
    %5801 = vmatprep.subr.bf16.mxu0 0
    %5802 = vmatpush1.bf16.xpose.msra.mxu0 0
    %5803 = vmatprep.subr.bf16.mxu0 0
    %5804 = vmatpush1.bf16.xpose.msra.mxu0 0
    %5805 = vmatprep.subr.bf16.mxu0 0
    %5806 = vmatpush1.bf16.xpose.msra.mxu0 0
    %5807 = vmatprep.subr.bf16.mxu0 0
    %5808 = vmatpush1.bf16.xpose.msra.mxu0 0
    %5809 = vmatprep.subr.bf16.mxu0 0
    %5810 = vmatpush1.bf16.xpose.msra.mxu0 0
    %5811 = vmatprep.subr.bf16.mxu0 0
    %5812 = vmatpush1.bf16.xpose.msra.mxu0 0
    %5813 = vmatprep.subr.bf16.mxu0 0
    %5814 = vmatpush1.bf16.xpose.msra.mxu0 0
    %5815 = vmatprep.mubr.bf16.mxu0 0
    %5816 = vmatmul.mubr.bf16.gmra.mrb[0].mxu0 %v5778
    %v5817 = vpop.f32.mrb[0].mxu0
    %v5818 = vadd.f32 0.0, %v5817
    %v5819 = vpop.f32.mrb[0].mxu0
    %v5820 = vpop.f32.mrb[0].mxu0
    %v5821 = vadd.f32 0.0, %v5820
    %v5822 = vpop.f32.mrb[0].mxu0
    %5823 = vdwg.mxu0
    %v5824 = vmul.f32 %v5818, 0.17677669
    %v5825 = vmul.f32 %v5821, 0.17677669
    %v5826 = vsel %vm4852, %v5824, -inf
    %5827 = vmax.xlane.f32.xlu0 %v5826
    %v5828 = vpop.xlane.xlu0 %5827
    %v5829 = vsel %vm4852, %v5825, -inf
    %5830 = vmax.xlane.f32.xlu0 %v5829
    %v5831 = vpop.xlane.xlu0 %5830
    %v5832 = vsub.f32 %v5824, %v5828
    %v5833 = vsub.f32 %v5825, %v5831
    %v5834 = vmul.f32 %v5832, 1.442695
    %v5835 = vpow.pop %v5834
    %v5836 = vmul.f32 %v5833, 1.442695
    %v5837 = vpow.pop %v5836
    %v5838 = vsel %vm4852, %v5835, 0.0
    %5839 = vadd.xlane.f32.xlu0 %v5838
    %v5840 = vpop.xlane.xlu0 %5839
    %v5841 = vsel %vm4852, %v5837, 0.0
    %5842 = vadd.xlane.f32.xlu0 %v5841
    %v5843 = vpop.xlane.xlu0 %5842
    %v5844 = vpack.c.bf16 %v5837, %v5835
    %v5845 = vpack.c.bf16 %v5770, %v5770
    %v5847 = vsel %vm4852, %v5844, 0
    %v5850 = vand.u32 %v5845, %v4859
    %5852 = vmatprep.subr.bf16.mxu0 0
    %5853 = vmatpush1.bf16.msra.mxu0 %v5850
    %5854 = vmatprep.subr.bf16.mxu0 0
    %5855 = vmatpush1.bf16.msra.mxu0 0
    %5856 = vmatprep.subr.bf16.mxu0 0
    %5857 = vmatpush1.bf16.msra.mxu0 0
    %5858 = vmatprep.subr.bf16.mxu0 0
    %5859 = vmatpush1.bf16.msra.mxu0 0
    %5860 = vmatprep.subr.bf16.mxu0 0
    %5861 = vmatpush1.bf16.msra.mxu0 0
    %5862 = vmatprep.subr.bf16.mxu0 0
    %5863 = vmatpush1.bf16.msra.mxu0 0
    %5864 = vmatprep.subr.bf16.mxu0 0
    %5865 = vmatpush1.bf16.msra.mxu0 0
    %5866 = vmatprep.subr.bf16.mxu0 0
    %5867 = vmatpush1.bf16.msra.mxu0 0
    %5868 = vmatprep.subr.bf16.mxu0 0
    %5869 = vmatpush1.bf16.msra.mxu0 0
    %5870 = vmatprep.subr.bf16.mxu0 0
    %5871 = vmatpush1.bf16.msra.mxu0 0
    %5872 = vmatprep.subr.bf16.mxu0 0
    %5873 = vmatpush1.bf16.msra.mxu0 0
    %5874 = vmatprep.subr.bf16.mxu0 0
    %5875 = vmatpush1.bf16.msra.mxu0 0
    %5876 = vmatprep.subr.bf16.mxu0 0
    %5877 = vmatpush1.bf16.msra.mxu0 0
    %5878 = vmatprep.subr.bf16.mxu0 0
    %5879 = vmatpush1.bf16.msra.mxu0 0
    %5880 = vmatprep.subr.bf16.mxu0 0
    %5881 = vmatpush1.bf16.msra.mxu0 0
    %5882 = vmatprep.subr.bf16.mxu0 0
    %5883 = vmatpush1.bf16.msra.mxu0 0
    %5884 = vmatprep.mubr.bf16.mxu0 0
    %5885 = vmatmul.mubr.bf16.gmra.mrb[0].mxu0 %v5847
    %v5886 = vpop.f32.mrb[0].mxu0
    %v5887 = vadd.f32 0.0, %v5886
    %v5888 = vpop.f32.mrb[0].mxu0
    %v5889 = vpop.f32.mrb[0].mxu0
    %v5890 = vadd.f32 0.0, %v5889
    %v5891 = vpop.f32.mrb[0].mxu0
    %5892 = vdwg.mxu0
    %v5893 = vrcp.pop %v5840
    %v5894 = vrcp.pop %v5843
    %v5895 = vmul.f32 %v5887, %v5893
    %v5896 = vmul.f32 %v5890, %v5894
    %s5897 = scalar_lea.vmem %s69, 176
    %v5898 = vld [vmem:[%s5897] sm:$0xf]
    %v5899 = vld [vmem:[%s5897 + $0x4] sm:$0xf]
    %v5900 = vld [vmem:[%s5897 + $0x8] sm:$0xf]
    %v5901 = vld [vmem:[%s5897 + $0xc] sm:$0xf]
    %v5902 = vpack.c.bf16 %v5896, %v5895
    %v5903 = vld [vmem:[%s71 + $0xb] sm:$0x1]
    %v5904 = vlaneseq
    %v5905 = vshrl.u32 %v5904, 7
    %v5906 = vsub.s32 0, %v5905
    %v5907 = vrot.slane %v5903, %v5906
    %v5912 = vunpack.c.l.b16 %v5898
    %v5913 = vunpack.c.l.b16 %v5899
    %v5914 = vunpack.c.l.b16 %v5900
    %v5915 = vunpack.c.l.b16 %v5901
    %v5916 = vpack.c.b16 %v5913, %v5912
    %v5917 = vpack.c.b16 %v5915, %v5914
    %v5921 = vsel %vm3007, %v5902, 0
    %5923 = vmatprep.subr.bf16.mxu0 0
    %5924 = vmatpush1.bf16.msra.mxu0 %v5916
    %5925 = vmatprep.subr.bf16.mxu0 0
    %5926 = vmatpush1.bf16.msra.mxu0 %v5917
    %5927 = vmatprep.subr.bf16.mxu0 0
    %5928 = vmatpush1.bf16.msra.mxu0 0
    %5929 = vmatprep.subr.bf16.mxu0 0
    %5930 = vmatpush1.bf16.msra.mxu0 0
    %5931 = vmatprep.subr.bf16.mxu0 0
    %5932 = vmatpush1.bf16.msra.mxu0 0
    %5933 = vmatprep.subr.bf16.mxu0 0
    %5934 = vmatpush1.bf16.msra.mxu0 0
    %5935 = vmatprep.subr.bf16.mxu0 0
    %5936 = vmatpush1.bf16.msra.mxu0 0
    %5937 = vmatprep.subr.bf16.mxu0 0
    %5938 = vmatpush1.bf16.msra.mxu0 0
    %5939 = vmatprep.subr.bf16.mxu0 0
    %5940 = vmatpush1.bf16.msra.mxu0 0
    %5941 = vmatprep.subr.bf16.mxu0 0
    %5942 = vmatpush1.bf16.msra.mxu0 0
    %5943 = vmatprep.subr.bf16.mxu0 0
    %5944 = vmatpush1.bf16.msra.mxu0 0
    %5945 = vmatprep.subr.bf16.mxu0 0
    %5946 = vmatpush1.bf16.msra.mxu0 0
    %5947 = vmatprep.subr.bf16.mxu0 0
    %5948 = vmatpush1.bf16.msra.mxu0 0
    %5949 = vmatprep.subr.bf16.mxu0 0
    %5950 = vmatpush1.bf16.msra.mxu0 0
    %5951 = vmatprep.subr.bf16.mxu0 0
    %5952 = vmatpush1.bf16.msra.mxu0 0
    %5953 = vmatprep.subr.bf16.mxu0 0
    %5954 = vmatpush1.bf16.msra.mxu0 0
    %5955 = vmatprep.mubr.bf16.mxu0 0
    %5956 = vmatmul.mubr.bf16.gmra.mrb[0].mxu0 %v5921
    %v5957 = vpop.f32.mrb[0].mxu0
    %v5958 = vadd.f32 %v5907, %v5957
    %v5959 = vpop.f32.mrb[0].mxu0
    %v5960 = vpop.f32.mrb[0].mxu0
    %v5961 = vadd.f32 %v5907, %v5960
    %v5962 = vpop.f32.mrb[0].mxu0
    %5963 = vdwg.mxu0
    %v5964 = vadd.f32 %v4598, %v5958
    %v5965 = vadd.f32 %v4599, %v5961
    %v5966 = vsel %vm3007, %v5964, 0.0
    %5967 = vadd.xlane.f32.xlu0 %v5966
    %v5968 = vpop.xlane.xlu0 %5967
    %v5969 = vsel %vm3007, %v5965, 0.0
    %5970 = vadd.xlane.f32.xlu0 %v5969
    %v5971 = vpop.xlane.xlu0 %5970
    %v5972 = vmul.f32 %v5968, 0.03125
    %v5973 = vmul.f32 %v5971, 0.03125
    %v5974 = vmul.f32 %v5964, %v5964
    %v5975 = vmul.f32 %v5965, %v5965
    %v5976 = vsel %vm3007, %v5974, 0.0
    %5977 = vadd.xlane.f32.xlu0 %v5976
    %v5978 = vpop.xlane.xlu0 %5977
    %v5979 = vsel %vm3007, %v5975, 0.0
    %5980 = vadd.xlane.f32.xlu0 %v5979
    %v5981 = vpop.xlane.xlu0 %5980
    %v5982 = vmul.f32 %v5978, 0.03125
    %v5983 = vmul.f32 %v5981, 0.03125
    %v5984 = vmul.f32 %v5972, %v5972
    %v5985 = vmul.f32 %v5973, %v5973
    %v5986 = vsub.f32 %v5982, %v5984
    %v5987 = vsub.f32 %v5983, %v5985
    %v5988 = vmax.f32 %v5986, 0.0
    %v5989 = vmax.f32 %v5987, 0.0
    %v5990 = vsub.f32 %v5964, %v5972
    %v5991 = vsub.f32 %v5965, %v5973
    %v5992 = vadd.f32 %v5988, 1e-06
    %v5993 = vadd.f32 %v5989, 1e-06
    %v5994 = vrsqrt.pop %v5992
    %v5995 = vrsqrt.pop %v5993
    %v5996 = vmul.f32 %v5990, %v5994
    %v5997 = vmul.f32 %v5991, %v5995
    %v5998 = vlaneseq
    %v5999 = vshrl.u32 %v5998, 7
    %v6000 = vsub.s32 3, %v5999
    %v6001 = vrot.slane %v4600, %v6000
    %v6002 = vmul.f32 %v5996, %v6001
    %v6003 = vmul.f32 %v5997, %v6001
    %v6004 = vlaneseq
    %v6005 = vshrl.u32 %v6004, 7
    %v6006 = vsub.s32 3, %v6005
    %v6007 = vrot.slane %v4601, %v6006
    %v6008 = vadd.f32 %v6002, %v6007
    %v6009 = vadd.f32 %v6003, %v6007
    %v6010 = vadd.f32 %v6008, %v4566
    %v6011 = vadd.f32 %v6009, %v4567
    %s6012 = scalar_lea.vmem %s69, 192
    %v6013 = vld [vmem:[%s6012] sm:$0xf]
    %v6014 = vld [vmem:[%s6012 + $0x4] sm:$0xf]
    %v6015 = vld [vmem:[%s6012 + $0x8] sm:$0xf]
    %v6016 = vld [vmem:[%s6012 + $0xc] sm:$0xf]
    %v6017 = vld [vmem:[%s71 + $0xc] sm:$0x1]
    %v6018 = vlaneseq
    %v6019 = vshrl.u32 %v6018, 7
    %v6020 = vsub.s32 0, %v6019
    %v6021 = vrot.slane %v6017, %v6020
    %v6026 = vunpack.c.l.b16 %v6013
    %v6027 = vunpack.c.l.b16 %v6014
    %v6028 = vunpack.c.l.b16 %v6015
    %v6029 = vunpack.c.l.b16 %v6016
    %v6030 = vpack.c.b16 %v6027, %v6026
    %v6031 = vpack.c.b16 %v6029, %v6028
    %6034 = vmatprep.subr.bf16.mxu0 0
    %6035 = vmatpush1.bf16.msra.mxu0 %v6030
    %6036 = vmatprep.subr.bf16.mxu0 0
    %6037 = vmatpush1.bf16.msra.mxu0 %v6031
    %6038 = vmatprep.subr.bf16.mxu0 0
    %6039 = vmatpush1.bf16.msra.mxu0 0
    %6040 = vmatprep.subr.bf16.mxu0 0
    %6041 = vmatpush1.bf16.msra.mxu0 0
    %6042 = vmatprep.subr.bf16.mxu0 0
    %6043 = vmatpush1.bf16.msra.mxu0 0
    %6044 = vmatprep.subr.bf16.mxu0 0
    %6045 = vmatpush1.bf16.msra.mxu0 0
    %6046 = vmatprep.subr.bf16.mxu0 0
    %6047 = vmatpush1.bf16.msra.mxu0 0
    %6048 = vmatprep.subr.bf16.mxu0 0
    %6049 = vmatpush1.bf16.msra.mxu0 0
    %6050 = vmatprep.subr.bf16.mxu0 0
    %6051 = vmatpush1.bf16.msra.mxu0 0
    %6052 = vmatprep.subr.bf16.mxu0 0
    %6053 = vmatpush1.bf16.msra.mxu0 0
    %6054 = vmatprep.subr.bf16.mxu0 0
    %6055 = vmatpush1.bf16.msra.mxu0 0
    %6056 = vmatprep.subr.bf16.mxu0 0
    %6057 = vmatpush1.bf16.msra.mxu0 0
    %6058 = vmatprep.subr.bf16.mxu0 0
    %6059 = vmatpush1.bf16.msra.mxu0 0
    %6060 = vmatprep.subr.bf16.mxu0 0
    %6061 = vmatpush1.bf16.msra.mxu0 0
    %6062 = vmatprep.subr.bf16.mxu0 0
    %6063 = vmatpush1.bf16.msra.mxu0 0
    %6064 = vmatprep.subr.bf16.mxu0 0
    %6065 = vmatpush1.bf16.msra.mxu0 0
    %6066 = vmatprep.mubr.bf16.mxu0 0
    %6067 = vmatmul.mubr.bf16.gmra.mrb[0].mxu0 %v5667
    %v6068 = vpop.f32.mrb[0].mxu0
    %v6069 = vadd.f32 %v6021, %v6068
    %v6070 = vpop.f32.mrb[0].mxu0
    %v6071 = vpop.f32.mrb[0].mxu0
    %v6072 = vpop.f32.mrb[0].mxu0
    %6073 = vdwg.mxu0
    %s6074 = scalar_lea.vmem %s69, 208
    %v6075 = vld [vmem:[%s6074] sm:$0xf]
    %v6076 = vld [vmem:[%s6074 + $0x4] sm:$0xf]
    %v6077 = vld [vmem:[%s6074 + $0x8] sm:$0xf]
    %v6078 = vld [vmem:[%s6074 + $0xc] sm:$0xf]
    %v6079 = vpack.c.bf16 %v6011, %v6010
    %v6080 = vld [vmem:[%s71 + $0xd] sm:$0x1]
    %v6081 = vlaneseq
    %v6082 = vshrl.u32 %v6081, 7
    %v6083 = vsub.s32 0, %v6082
    %v6084 = vrot.slane %v6080, %v6083
    %v6089 = vunpack.c.l.b16 %v6075
    %v6090 = vunpack.c.l.b16 %v6076
    %v6091 = vunpack.c.l.b16 %v6077
    %v6092 = vunpack.c.l.b16 %v6078
    %v6093 = vpack.c.b16 %v6090, %v6089
    %v6094 = vpack.c.b16 %v6092, %v6091
    %v6098 = vsel %vm3007, %v6079, 0
    %6100 = vmatprep.subr.bf16.mxu0 0
    %6101 = vmatpush1.bf16.msra.mxu0 %v6093
    %6102 = vmatprep.subr.bf16.mxu0 0
    %6103 = vmatpush1.bf16.msra.mxu0 %v6094
    %6104 = vmatprep.subr.bf16.mxu0 0
    %6105 = vmatpush1.bf16.msra.mxu0 0
    %6106 = vmatprep.subr.bf16.mxu0 0
    %6107 = vmatpush1.bf16.msra.mxu0 0
    %6108 = vmatprep.subr.bf16.mxu0 0
    %6109 = vmatpush1.bf16.msra.mxu0 0
    %6110 = vmatprep.subr.bf16.mxu0 0
    %6111 = vmatpush1.bf16.msra.mxu0 0
    %6112 = vmatprep.subr.bf16.mxu0 0
    %6113 = vmatpush1.bf16.msra.mxu0 0
    %6114 = vmatprep.subr.bf16.mxu0 0
    %6115 = vmatpush1.bf16.msra.mxu0 0
    %6116 = vmatprep.subr.bf16.mxu0 0
    %6117 = vmatpush1.bf16.msra.mxu0 0
    %6118 = vmatprep.subr.bf16.mxu0 0
    %6119 = vmatpush1.bf16.msra.mxu0 0
    %6120 = vmatprep.subr.bf16.mxu0 0
    %6121 = vmatpush1.bf16.msra.mxu0 0
    %6122 = vmatprep.subr.bf16.mxu0 0
    %6123 = vmatpush1.bf16.msra.mxu0 0
    %6124 = vmatprep.subr.bf16.mxu0 0
    %6125 = vmatpush1.bf16.msra.mxu0 0
    %6126 = vmatprep.subr.bf16.mxu0 0
    %6127 = vmatpush1.bf16.msra.mxu0 0
    %6128 = vmatprep.subr.bf16.mxu0 0
    %6129 = vmatpush1.bf16.msra.mxu0 0
    %6130 = vmatprep.subr.bf16.mxu0 0
    %6131 = vmatpush1.bf16.msra.mxu0 0
    %6132 = vmatprep.mubr.bf16.mxu0 0
    %6133 = vmatmul.mubr.bf16.gmra.mrb[0].mxu0 %v6098
    %v6134 = vpop.f32.mrb[0].mxu0
    %v6135 = vadd.f32 %v6084, %v6134
    %v6136 = vpop.f32.mrb[0].mxu0
    %v6137 = vpop.f32.mrb[0].mxu0
    %v6138 = vadd.f32 %v6084, %v6137
    %v6139 = vpop.f32.mrb[0].mxu0
    %6140 = vdwg.mxu0
    %s6141 = scalar_lea.vmem %s69, 224
    %v6142 = vld [vmem:[%s6141] sm:$0xf]
    %v6143 = vld [vmem:[%s6141 + $0x4] sm:$0xf]
    %v6144 = vld [vmem:[%s6141 + $0x8] sm:$0xf]
    %v6145 = vld [vmem:[%s6141 + $0xc] sm:$0xf]
    %v6146 = vpack.c.bf16 %v6009, %v6008
    %v6147 = vld [vmem:[%s71 + $0xe] sm:$0x1]
    %v6148 = vlaneseq
    %v6149 = vshrl.u32 %v6148, 7
    %v6150 = vsub.s32 0, %v6149
    %v6151 = vrot.slane %v6147, %v6150
    %v6156 = vunpack.c.l.b16 %v6142
    %v6157 = vunpack.c.l.b16 %v6143
    %v6158 = vunpack.c.l.b16 %v6144
    %v6159 = vunpack.c.l.b16 %v6145
    %v6160 = vpack.c.b16 %v6157, %v6156
    %v6161 = vpack.c.b16 %v6159, %v6158
    %v6165 = vsel %vm3007, %v6146, 0
    %6167 = vmatprep.subr.bf16.mxu0 0
    %6168 = vmatpush1.bf16.msra.mxu0 %v6160
    %6169 = vmatprep.subr.bf16.mxu0 0
    %6170 = vmatpush1.bf16.msra.mxu0 %v6161
    %6171 = vmatprep.subr.bf16.mxu0 0
    %6172 = vmatpush1.bf16.msra.mxu0 0
    %6173 = vmatprep.subr.bf16.mxu0 0
    %6174 = vmatpush1.bf16.msra.mxu0 0
    %6175 = vmatprep.subr.bf16.mxu0 0
    %6176 = vmatpush1.bf16.msra.mxu0 0
    %6177 = vmatprep.subr.bf16.mxu0 0
    %6178 = vmatpush1.bf16.msra.mxu0 0
    %6179 = vmatprep.subr.bf16.mxu0 0
    %6180 = vmatpush1.bf16.msra.mxu0 0
    %6181 = vmatprep.subr.bf16.mxu0 0
    %6182 = vmatpush1.bf16.msra.mxu0 0
    %6183 = vmatprep.subr.bf16.mxu0 0
    %6184 = vmatpush1.bf16.msra.mxu0 0
    %6185 = vmatprep.subr.bf16.mxu0 0
    %6186 = vmatpush1.bf16.msra.mxu0 0
    %6187 = vmatprep.subr.bf16.mxu0 0
    %6188 = vmatpush1.bf16.msra.mxu0 0
    %6189 = vmatprep.subr.bf16.mxu0 0
    %6190 = vmatpush1.bf16.msra.mxu0 0
    %6191 = vmatprep.subr.bf16.mxu0 0
    %6192 = vmatpush1.bf16.msra.mxu0 0
    %6193 = vmatprep.subr.bf16.mxu0 0
    %6194 = vmatpush1.bf16.msra.mxu0 0
    %6195 = vmatprep.subr.bf16.mxu0 0
    %6196 = vmatpush1.bf16.msra.mxu0 0
    %6197 = vmatprep.subr.bf16.mxu0 0
    %6198 = vmatpush1.bf16.msra.mxu0 0
    %6199 = vmatprep.mubr.bf16.mxu0 0
    %6200 = vmatmul.mubr.bf16.gmra.mrb[0].mxu0 %v6165
    %v6201 = vpop.f32.mrb[0].mxu0
    %v6202 = vadd.f32 %v6151, %v6201
    %v6203 = vpop.f32.mrb[0].mxu0
    %v6204 = vpop.f32.mrb[0].mxu0
    %v6205 = vadd.f32 %v6151, %v6204
    %v6206 = vpop.f32.mrb[0].mxu0
    %6207 = vdwg.mxu0
    %v6208 = vpack.c.bf16 %v6069, %v6069
    %v6209 = vpack.c.bf16 %v6138, %v6135
    %v6211 = vsel %vm3007, %v6208, 0
    %v6214 = vsel %vm3007, %v6209, 0
    %6216 = vmatprep.subr.bf16.mxu0 0
    %6217 = vmatpush1.bf16.xpose.msra.mxu0 %v6214
    %6218 = vmatprep.subr.bf16.mxu0 0
    %6219 = vmatpush1.bf16.xpose.msra.mxu0 0
    %6220 = vmatprep.subr.bf16.mxu0 0
    %6221 = vmatpush1.bf16.xpose.msra.mxu0 0
    %6222 = vmatprep.subr.bf16.mxu0 0
    %6223 = vmatpush1.bf16.xpose.msra.mxu0 0
    %6224 = vmatprep.subr.bf16.mxu0 0
    %6225 = vmatpush1.bf16.xpose.msra.mxu0 0
    %6226 = vmatprep.subr.bf16.mxu0 0
    %6227 = vmatpush1.bf16.xpose.msra.mxu0 0
    %6228 = vmatprep.subr.bf16.mxu0 0
    %6229 = vmatpush1.bf16.xpose.msra.mxu0 0
    %6230 = vmatprep.subr.bf16.mxu0 0
    %6231 = vmatpush1.bf16.xpose.msra.mxu0 0
    %6232 = vmatprep.subr.bf16.mxu0 0
    %6233 = vmatpush1.bf16.xpose.msra.mxu0 0
    %6234 = vmatprep.subr.bf16.mxu0 0
    %6235 = vmatpush1.bf16.xpose.msra.mxu0 0
    %6236 = vmatprep.subr.bf16.mxu0 0
    %6237 = vmatpush1.bf16.xpose.msra.mxu0 0
    %6238 = vmatprep.subr.bf16.mxu0 0
    %6239 = vmatpush1.bf16.xpose.msra.mxu0 0
    %6240 = vmatprep.subr.bf16.mxu0 0
    %6241 = vmatpush1.bf16.xpose.msra.mxu0 0
    %6242 = vmatprep.subr.bf16.mxu0 0
    %6243 = vmatpush1.bf16.xpose.msra.mxu0 0
    %6244 = vmatprep.subr.bf16.mxu0 0
    %6245 = vmatpush1.bf16.xpose.msra.mxu0 0
    %6246 = vmatprep.subr.bf16.mxu0 0
    %6247 = vmatpush1.bf16.xpose.msra.mxu0 0
    %6248 = vmatprep.mubr.bf16.mxu0 0
    %6249 = vmatmul.mubr.bf16.gmra.mrb[0].mxu0 %v6211
    %v6250 = vpop.f32.mrb[0].mxu0
    %v6251 = vadd.f32 0.0, %v6250
    %v6252 = vpop.f32.mrb[0].mxu0
    %v6253 = vpop.f32.mrb[0].mxu0
    %v6254 = vpop.f32.mrb[0].mxu0
    %6255 = vdwg.mxu0
    %v6256 = vmul.f32 %v6251, 0.17677669
    %v6257 = vsel %vm5250, %v6256, -inf
    %6258 = vmax.xlane.f32.xlu0 %v6257
    %v6259 = vpop.xlane.xlu0 %6258
    %v6260 = vsub.f32 %v6256, %v6259
    %v6261 = vmul.f32 %v6260, 1.442695
    %v6262 = vpow.pop %v6261
    %v6263 = vsel %vm5250, %v6262, 0.0
    %6264 = vadd.xlane.f32.xlu0 %v6263
    %v6265 = vpop.xlane.xlu0 %6264
    %v6266 = vpack.c.bf16 %v6262, %v6262
    %v6267 = vpack.c.bf16 %v6205, %v6202
    %v6269 = vsel %vm1941, %v6266, 0
    %6271 = vmatprep.subr.bf16.mxu0 0
    %6272 = vmatpush1.bf16.msra.mxu0 %v6267
    %6273 = vmatprep.subr.bf16.mxu0 0
    %6274 = vmatpush1.bf16.msra.mxu0 0
    %6275 = vmatprep.subr.bf16.mxu0 0
    %6276 = vmatpush1.bf16.msra.mxu0 0
    %6277 = vmatprep.subr.bf16.mxu0 0
    %6278 = vmatpush1.bf16.msra.mxu0 0
    %6279 = vmatprep.subr.bf16.mxu0 0
    %6280 = vmatpush1.bf16.msra.mxu0 0
    %6281 = vmatprep.subr.bf16.mxu0 0
    %6282 = vmatpush1.bf16.msra.mxu0 0
    %6283 = vmatprep.subr.bf16.mxu0 0
    %6284 = vmatpush1.bf16.msra.mxu0 0
    %6285 = vmatprep.subr.bf16.mxu0 0
    %6286 = vmatpush1.bf16.msra.mxu0 0
    %6287 = vmatprep.subr.bf16.mxu0 0
    %6288 = vmatpush1.bf16.msra.mxu0 0
    %6289 = vmatprep.subr.bf16.mxu0 0
    %6290 = vmatpush1.bf16.msra.mxu0 0
    %6291 = vmatprep.subr.bf16.mxu0 0
    %6292 = vmatpush1.bf16.msra.mxu0 0
    %6293 = vmatprep.subr.bf16.mxu0 0
    %6294 = vmatpush1.bf16.msra.mxu0 0
    %6295 = vmatprep.subr.bf16.mxu0 0
    %6296 = vmatpush1.bf16.msra.mxu0 0
    %6297 = vmatprep.subr.bf16.mxu0 0
    %6298 = vmatpush1.bf16.msra.mxu0 0
    %6299 = vmatprep.subr.bf16.mxu0 0
    %6300 = vmatpush1.bf16.msra.mxu0 0
    %6301 = vmatprep.subr.bf16.mxu0 0
    %6302 = vmatpush1.bf16.msra.mxu0 0
    %6303 = vmatprep.mubr.bf16.mxu0 0
    %6304 = vmatmul.mubr.bf16.gmra.mrb[0].mxu0 %v6269
    %v6305 = vpop.f32.mrb[0].mxu0
    %v6306 = vadd.f32 0.0, %v6305
    %v6307 = vpop.f32.mrb[0].mxu0
    %v6308 = vpop.f32.mrb[0].mxu0
    %v6309 = vpop.f32.mrb[0].mxu0
    %6310 = vdwg.mxu0
    %v6311 = vrcp.pop %v6265
    %v6312 = vmul.f32 %v6306, %v6311
    %s6313 = scalar_lea.vmem %s69, 240
    %v6314 = vld [vmem:[%s6313] sm:$0xf]
    %v6315 = vld [vmem:[%s6313 + $0x4] sm:$0xf]
    %v6316 = vld [vmem:[%s6313 + $0x8] sm:$0xf]
    %v6317 = vld [vmem:[%s6313 + $0xc] sm:$0xf]
    %v6318 = vpack.c.bf16 %v6312, %v6312
    %v6319 = vld [vmem:[%s71 + $0xf] sm:$0x1]
    %v6320 = vlaneseq
    %v6321 = vshrl.u32 %v6320, 7
    %v6322 = vsub.s32 0, %v6321
    %v6323 = vrot.slane %v6319, %v6322
    %v6328 = vunpack.c.l.b16 %v6314
    %v6329 = vunpack.c.l.b16 %v6315
    %v6330 = vunpack.c.l.b16 %v6316
    %v6331 = vunpack.c.l.b16 %v6317
    %v6332 = vpack.c.b16 %v6329, %v6328
    %v6333 = vpack.c.b16 %v6331, %v6330
    %v6337 = vsel %vm3007, %v6318, 0
    %6339 = vmatprep.subr.bf16.mxu0 0
    %6340 = vmatpush1.bf16.msra.mxu0 %v6332
    %6341 = vmatprep.subr.bf16.mxu0 0
    %6342 = vmatpush1.bf16.msra.mxu0 %v6333
    %6343 = vmatprep.subr.bf16.mxu0 0
    %6344 = vmatpush1.bf16.msra.mxu0 0
    %6345 = vmatprep.subr.bf16.mxu0 0
    %6346 = vmatpush1.bf16.msra.mxu0 0
    %6347 = vmatprep.subr.bf16.mxu0 0
    %6348 = vmatpush1.bf16.msra.mxu0 0
    %6349 = vmatprep.subr.bf16.mxu0 0
    %6350 = vmatpush1.bf16.msra.mxu0 0
    %6351 = vmatprep.subr.bf16.mxu0 0
    %6352 = vmatpush1.bf16.msra.mxu0 0
    %6353 = vmatprep.subr.bf16.mxu0 0
    %6354 = vmatpush1.bf16.msra.mxu0 0
    %6355 = vmatprep.subr.bf16.mxu0 0
    %6356 = vmatpush1.bf16.msra.mxu0 0
    %6357 = vmatprep.subr.bf16.mxu0 0
    %6358 = vmatpush1.bf16.msra.mxu0 0
    %6359 = vmatprep.subr.bf16.mxu0 0
    %6360 = vmatpush1.bf16.msra.mxu0 0
    %6361 = vmatprep.subr.bf16.mxu0 0
    %6362 = vmatpush1.bf16.msra.mxu0 0
    %6363 = vmatprep.subr.bf16.mxu0 0
    %6364 = vmatpush1.bf16.msra.mxu0 0
    %6365 = vmatprep.subr.bf16.mxu0 0
    %6366 = vmatpush1.bf16.msra.mxu0 0
    %6367 = vmatprep.subr.bf16.mxu0 0
    %6368 = vmatpush1.bf16.msra.mxu0 0
    %6369 = vmatprep.subr.bf16.mxu0 0
    %6370 = vmatpush1.bf16.msra.mxu0 0
    %6371 = vmatprep.mubr.bf16.mxu0 0
    %6372 = vmatmul.mubr.bf16.gmra.mrb[0].mxu0 %v6337
    %v6373 = vpop.f32.mrb[0].mxu0
    %v6374 = vadd.f32 %v6323, %v6373
    %v6375 = vpop.f32.mrb[0].mxu0
    %v6376 = vpop.f32.mrb[0].mxu0
    %v6377 = vpop.f32.mrb[0].mxu0
    %6378 = vdwg.mxu0
    %v6379 = vadd.f32 %v5578, %v6374
    %v6380 = vsel %vm4971, %v6379, 0.0
    %6381 = vadd.xlane.f32.xlu0 %v6380
    %v6382 = vpop.xlane.xlu0 %6381
    %v6383 = vmul.f32 %v6382, 0.03125
    %v6384 = vmul.f32 %v6379, %v6379
    %v6385 = vsel %vm4971, %v6384, 0.0
    %6386 = vadd.xlane.f32.xlu0 %v6385
    %v6387 = vpop.xlane.xlu0 %6386
    %v6388 = vmul.f32 %v6387, 0.03125
    %v6389 = vmul.f32 %v6383, %v6383
    %v6390 = vsub.f32 %v6388, %v6389
    %v6391 = vmax.f32 %v6390, 0.0
    %v6392 = vsub.f32 %v6379, %v6383
    %v6393 = vadd.f32 %v6391, 1e-06
    %v6394 = vrsqrt.pop %v6393
    %v6395 = vmul.f32 %v6392, %v6394
    %v6396 = vlaneseq
    %v6397 = vshrl.u32 %v6396, 7
    %v6398 = vsub.s32 4, %v6397
    %v6399 = vrot.slane %v4600, %v6398
    %v6400 = vmul.f32 %v6395, %v6399
    %v6401 = vlaneseq
    %v6402 = vshrl.u32 %v6401, 7
    %v6403 = vsub.s32 4, %v6402
    %v6404 = vrot.slane %v4601, %v6403
    %v6405 = vadd.f32 %v6400, %v6404
    %v6406 = vld [vmem:[%s87] sm:$0xf]
    %v6407 = vld [vmem:[%s87 + $0x4] sm:$0xf]
    %v6408 = vld [vmem:[%s87 + $0x8] sm:$0xf]
    %v6409 = vld [vmem:[%s87 + $0xc] sm:$0xf]
    %v6414 = vunpack.c.l.b16 %v6406
    %v6415 = vunpack.c.l.b16 %v6407
    %v6416 = vunpack.c.l.b16 %v6408
    %v6417 = vunpack.c.l.b16 %v6409
    %v6418 = vpack.c.b16 %v6415, %v6414
    %v6419 = vpack.c.b16 %v6417, %v6416
    %6422 = vmatprep.subr.bf16.mxu0 0
    %6423 = vmatpush1.bf16.msra.mxu0 %v6418
    %6424 = vmatprep.subr.bf16.mxu0 0
    %6425 = vmatpush1.bf16.msra.mxu0 %v6419
    %6426 = vmatprep.subr.bf16.mxu0 0
    %6427 = vmatpush1.bf16.msra.mxu0 0
    %6428 = vmatprep.subr.bf16.mxu0 0
    %6429 = vmatpush1.bf16.msra.mxu0 0
    %6430 = vmatprep.subr.bf16.mxu0 0
    %6431 = vmatpush1.bf16.msra.mxu0 0
    %6432 = vmatprep.subr.bf16.mxu0 0
    %6433 = vmatpush1.bf16.msra.mxu0 0
    %6434 = vmatprep.subr.bf16.mxu0 0
    %6435 = vmatpush1.bf16.msra.mxu0 0
    %6436 = vmatprep.subr.bf16.mxu0 0
    %6437 = vmatpush1.bf16.msra.mxu0 0
    %6438 = vmatprep.subr.bf16.mxu0 0
    %6439 = vmatpush1.bf16.msra.mxu0 0
    %6440 = vmatprep.subr.bf16.mxu0 0
    %6441 = vmatpush1.bf16.msra.mxu0 0
    %6442 = vmatprep.subr.bf16.mxu0 0
    %6443 = vmatpush1.bf16.msra.mxu0 0
    %6444 = vmatprep.subr.bf16.mxu0 0
    %6445 = vmatpush1.bf16.msra.mxu0 0
    %6446 = vmatprep.subr.bf16.mxu0 0
    %6447 = vmatpush1.bf16.msra.mxu0 0
    %6448 = vmatprep.subr.bf16.mxu0 0
    %6449 = vmatpush1.bf16.msra.mxu0 0
    %6450 = vmatprep.subr.bf16.mxu0 0
    %6451 = vmatpush1.bf16.msra.mxu0 0
    %6452 = vmatprep.subr.bf16.mxu0 0
    %6453 = vmatpush1.bf16.msra.mxu0 0
    %6454 = vmatprep.mubr.bf16.mxu0 0
    %6455 = vmatmul.mubr.bf16.gmra.mrb[0].mxu0 %v6165
    %v6456 = vpop.f32.mrb[0].mxu0
    %v6457 = vadd.f32 0.0, %v6456
    %v6458 = vpop.f32.mrb[0].mxu0
    %v6459 = vpop.f32.mrb[0].mxu0
    %v6460 = vadd.f32 0.0, %v6459
    %v6461 = vpop.f32.mrb[0].mxu0
    %6462 = vdwg.mxu0
    %6465 = vrot.lane.b32.xlu0 %v6457, 120
    %v6466 = vpop.permute.xlu0 %6465
    %6467 = vrot.lane.b32.xlu0 %v6460, 120
    %v6468 = vpop.permute.xlu0 %6467
    %6471 = vrot.lane.b32.xlu0 %v6457, 112
    %v6472 = vpop.permute.xlu0 %6471
    %6473 = vrot.lane.b32.xlu0 %v6460, 112
    %v6474 = vpop.permute.xlu0 %6473
    %6477 = vrot.lane.b32.xlu0 %v6457, 104
    %v6478 = vpop.permute.xlu0 %6477
    %6479 = vrot.lane.b32.xlu0 %v6460, 104
    %v6480 = vpop.permute.xlu0 %6479
    %v6483 = vld [vmem:[%s85] sm:$0xf]
    %v6484 = vld [vmem:[%s85 + $0x4] sm:$0xf]
    %v6485 = vld [vmem:[%s85 + $0x8] sm:$0xf]
    %v6486 = vld [vmem:[%s85 + $0xc] sm:$0xf]
    %v6487 = vld [vmem:[%s85 + $0x10] sm:$0xf]
    %v6488 = vld [vmem:[%s85 + $0x14] sm:$0xf]
    %v6489 = vld [vmem:[%s85 + $0x18] sm:$0xf]
    %v6490 = vld [vmem:[%s85 + $0x1c] sm:$0xf]
    %v6491 = vpack.c.bf16 %v6460, %v6457
    %v6492 = vpack.c.bf16 %v6468, %v6466
    %v6493 = vpack.c.bf16 %v6474, %v6472
    %v6494 = vpack.c.bf16 %v6480, %v6478
    %v6495 = vld [vmem:[#allocation6] sm:$0x1]
    %v6497 = vlaneseq
    %v6498 = vshrl.u32 %v6497, 7
    %v6499 = vsub.s32 0, %v6498
    %v6500 = vrot.slane %v6495, %v6499
    %v6510 = vunpack.c.l.b16 %v6483
    %v6511 = vunpack.c.l.b16 %v6484
    %v6512 = vunpack.c.l.b16 %v6485
    %v6513 = vunpack.c.l.b16 %v6486
    %v6514 = vunpack.c.l.b16 %v6487
    %v6515 = vunpack.c.l.b16 %v6488
    %v6516 = vunpack.c.l.b16 %v6489
    %v6517 = vunpack.c.l.b16 %v6490
    %v6518 = vpack.c.b16 %v6511, %v6510
    %v6519 = vpack.c.b16 %v6513, %v6512
    %v6520 = vpack.c.b16 %v6515, %v6514
    %v6521 = vpack.c.b16 %v6517, %v6516
    %v6523 = vsel %vm1539, %v6518, 0
    %v6526 = vsel %vm1539, %v6519, 0
    %v6529 = vsel %vm1539, %v6520, 0
    %v6532 = vsel %vm1539, %v6521, 0
    %6534 = vmatprep.subr.bf16.mxu0 0
    %6535 = vmatpush1.bf16.msra.mxu0 %v6491
    %6536 = vmatprep.subr.bf16.mxu0 0
    %6537 = vmatpush1.bf16.msra.mxu0 %v6492
    %6538 = vmatprep.subr.bf16.mxu0 0
    %6539 = vmatpush1.bf16.msra.mxu0 %v6493
    %6540 = vmatprep.subr.bf16.mxu0 0
    %6541 = vmatpush1.bf16.msra.mxu0 %v6494
    %6542 = vmatprep.subr.bf16.mxu0 0
    %6543 = vmatpush1.bf16.msra.mxu0 0
    %6544 = vmatprep.subr.bf16.mxu0 0
    %6545 = vmatpush1.bf16.msra.mxu0 0
    %6546 = vmatprep.subr.bf16.mxu0 0
    %6547 = vmatpush1.bf16.msra.mxu0 0
    %6548 = vmatprep.subr.bf16.mxu0 0
    %6549 = vmatpush1.bf16.msra.mxu0 0
    %6550 = vmatprep.subr.bf16.mxu0 0
    %6551 = vmatpush1.bf16.msra.mxu0 0
    %6552 = vmatprep.subr.bf16.mxu0 0
    %6553 = vmatpush1.bf16.msra.mxu0 0
    %6554 = vmatprep.subr.bf16.mxu0 0
    %6555 = vmatpush1.bf16.msra.mxu0 0
    %6556 = vmatprep.subr.bf16.mxu0 0
    %6557 = vmatpush1.bf16.msra.mxu0 0
    %6558 = vmatprep.subr.bf16.mxu0 0
    %6559 = vmatpush1.bf16.msra.mxu0 0
    %6560 = vmatprep.subr.bf16.mxu0 0
    %6561 = vmatpush1.bf16.msra.mxu0 0
    %6562 = vmatprep.subr.bf16.mxu0 0
    %6563 = vmatpush1.bf16.msra.mxu0 0
    %6564 = vmatprep.subr.bf16.mxu0 0
    %6565 = vmatpush1.bf16.msra.mxu0 0
    %6566 = vmatprep.mubr.bf16.mxu0 0
    %6567 = vmatmul.mubr.bf16.gmra.mrb[0].mxu0 %v6523
    %v6568 = vpop.f32.mrb[0].mxu0
    %v6569 = vadd.f32 %v6500, %v6568
    %v6570 = vpop.f32.mrb[0].mxu0
    %v6571 = vpop.f32.mrb[0].mxu0
    %v6572 = vadd.f32 %v6500, %v6571
    %v6573 = vpop.f32.mrb[0].mxu0
    %6574 = vmatprep.mubr.bf16.mxu0 0
    %6575 = vmatmul.mubr.bf16.gmra.mrb[0].mxu0 %v6526
    %v6576 = vpop.f32.mrb[0].mxu0
    %v6577 = vadd.f32 %v6500, %v6576
    %v6578 = vpop.f32.mrb[0].mxu0
    %v6579 = vpop.f32.mrb[0].mxu0
    %v6580 = vadd.f32 %v6500, %v6579
    %v6581 = vpop.f32.mrb[0].mxu0
    %6582 = vmatprep.mubr.bf16.mxu0 0
    %6583 = vmatmul.mubr.bf16.gmra.mrb[0].mxu0 %v6529
    %v6584 = vpop.f32.mrb[0].mxu0
    %v6585 = vadd.f32 %v6500, %v6584
    %v6586 = vpop.f32.mrb[0].mxu0
    %v6587 = vpop.f32.mrb[0].mxu0
    %v6588 = vadd.f32 %v6500, %v6587
    %v6589 = vpop.f32.mrb[0].mxu0
    %6590 = vmatprep.mubr.bf16.mxu0 0
    %6591 = vmatmul.mubr.bf16.gmra.mrb[0].mxu0 %v6532
    %v6592 = vpop.f32.mrb[0].mxu0
    %v6593 = vadd.f32 %v6500, %v6592
    %v6594 = vpop.f32.mrb[0].mxu0
    %v6595 = vpop.f32.mrb[0].mxu0
    %v6596 = vadd.f32 %v6500, %v6595
    %v6597 = vpop.f32.mrb[0].mxu0
    %6598 = vdwg.mxu0
    %v6599 = vld [vmem:[#allocation8] sm:$0x1]
    %v6600 = vld [vmem:[#allocation9] sm:$0x1]
    %vm6601 = vcmask 64512
    %v6602 = vsel %vm6601, %v6569, 0.0
    %6603 = vadd.xlane.f32.xlu0 %v6602
    %v6604 = vpop.xlane.xlu0 %6603
    %v6605 = vsel %vm6601, %v6572, 0.0
    %6606 = vadd.xlane.f32.xlu0 %v6605
    %v6607 = vpop.xlane.xlu0 %6606
    %v6608 = vsel %vm6601, %v6577, 0.0
    %6609 = vadd.xlane.f32.xlu0 %v6608
    %v6610 = vpop.xlane.xlu0 %6609
    %v6611 = vsel %vm6601, %v6580, 0.0
    %6612 = vadd.xlane.f32.xlu0 %v6611
    %v6613 = vpop.xlane.xlu0 %6612
    %v6614 = vsel %vm6601, %v6585, 0.0
    %6615 = vadd.xlane.f32.xlu0 %v6614
    %v6616 = vpop.xlane.xlu0 %6615
    %v6617 = vsel %vm6601, %v6588, 0.0
    %6618 = vadd.xlane.f32.xlu0 %v6617
    %v6619 = vpop.xlane.xlu0 %6618
    %v6620 = vsel %vm6601, %v6593, 0.0
    %6621 = vadd.xlane.f32.xlu0 %v6620
    %v6622 = vpop.xlane.xlu0 %6621
    %v6623 = vsel %vm6601, %v6596, 0.0
    %6624 = vadd.xlane.f32.xlu0 %v6623
    %v6625 = vpop.xlane.xlu0 %6624
    %v6626 = vmul.f32 %v6604, 0.125
    %v6627 = vmul.f32 %v6607, 0.125
    %v6628 = vmul.f32 %v6610, 0.125
    %v6629 = vmul.f32 %v6613, 0.125
    %v6630 = vmul.f32 %v6616, 0.125
    %v6631 = vmul.f32 %v6619, 0.125
    %v6632 = vmul.f32 %v6622, 0.125
    %v6633 = vmul.f32 %v6625, 0.125
    %v6634 = vmul.f32 %v6569, %v6569
    %v6635 = vmul.f32 %v6572, %v6572
    %v6636 = vmul.f32 %v6577, %v6577
    %v6637 = vmul.f32 %v6580, %v6580
    %v6638 = vmul.f32 %v6585, %v6585
    %v6639 = vmul.f32 %v6588, %v6588
    %v6640 = vmul.f32 %v6593, %v6593
    %v6641 = vmul.f32 %v6596, %v6596
    %v6642 = vsel %vm6601, %v6634, 0.0
    %6643 = vadd.xlane.f32.xlu0 %v6642
    %v6644 = vpop.xlane.xlu0 %6643
    %v6645 = vsel %vm6601, %v6635, 0.0
    %6646 = vadd.xlane.f32.xlu0 %v6645
    %v6647 = vpop.xlane.xlu0 %6646
    %v6648 = vsel %vm6601, %v6636, 0.0
    %6649 = vadd.xlane.f32.xlu0 %v6648
    %v6650 = vpop.xlane.xlu0 %6649
    %v6651 = vsel %vm6601, %v6637, 0.0
    %6652 = vadd.xlane.f32.xlu0 %v6651
    %v6653 = vpop.xlane.xlu0 %6652
    %v6654 = vsel %vm6601, %v6638, 0.0
    %6655 = vadd.xlane.f32.xlu0 %v6654
    %v6656 = vpop.xlane.xlu0 %6655
    %v6657 = vsel %vm6601, %v6639, 0.0
    %6658 = vadd.xlane.f32.xlu0 %v6657
    %v6659 = vpop.xlane.xlu0 %6658
    %v6660 = vsel %vm6601, %v6640, 0.0
    %6661 = vadd.xlane.f32.xlu0 %v6660
    %v6662 = vpop.xlane.xlu0 %6661
    %v6663 = vsel %vm6601, %v6641, 0.0
    %6664 = vadd.xlane.f32.xlu0 %v6663
    %v6665 = vpop.xlane.xlu0 %6664
    %v6666 = vmul.f32 %v6644, 0.125
    %v6667 = vmul.f32 %v6647, 0.125
    %v6668 = vmul.f32 %v6650, 0.125
    %v6669 = vmul.f32 %v6653, 0.125
    %v6670 = vmul.f32 %v6656, 0.125
    %v6671 = vmul.f32 %v6659, 0.125
    %v6672 = vmul.f32 %v6662, 0.125
    %v6673 = vmul.f32 %v6665, 0.125
    %v6674 = vmul.f32 %v6626, %v6626
    %v6675 = vmul.f32 %v6627, %v6627
    %v6676 = vmul.f32 %v6628, %v6628
    %v6677 = vmul.f32 %v6629, %v6629
    %v6678 = vmul.f32 %v6630, %v6630
    %v6679 = vmul.f32 %v6631, %v6631
    %v6680 = vmul.f32 %v6632, %v6632
    %v6681 = vmul.f32 %v6633, %v6633
    %v6682 = vsub.f32 %v6666, %v6674
    %v6683 = vsub.f32 %v6667, %v6675
    %v6684 = vsub.f32 %v6668, %v6676
    %v6685 = vsub.f32 %v6669, %v6677
    %v6686 = vsub.f32 %v6670, %v6678
    %v6687 = vsub.f32 %v6671, %v6679
    %v6688 = vsub.f32 %v6672, %v6680
    %v6689 = vsub.f32 %v6673, %v6681
    %v6690 = vmax.f32 %v6682, 0.0
    %v6691 = vmax.f32 %v6683, 0.0
    %v6692 = vmax.f32 %v6684, 0.0
    %v6693 = vmax.f32 %v6685, 0.0
    %v6694 = vmax.f32 %v6686, 0.0
    %v6695 = vmax.f32 %v6687, 0.0
    %v6696 = vmax.f32 %v6688, 0.0
    %v6697 = vmax.f32 %v6689, 0.0
    %v6698 = vsub.f32 %v6569, %v6626
    %v6699 = vsub.f32 %v6572, %v6627
    %v6700 = vsub.f32 %v6577, %v6628
    %v6701 = vsub.f32 %v6580, %v6629
    %v6702 = vsub.f32 %v6585, %v6630
    %v6703 = vsub.f32 %v6588, %v6631
    %v6704 = vsub.f32 %v6593, %v6632
    %v6705 = vsub.f32 %v6596, %v6633
    %v6706 = vadd.f32 %v6690, 1e-06
    %v6707 = vadd.f32 %v6691, 1e-06
    %v6708 = vadd.f32 %v6692, 1e-06
    %v6709 = vadd.f32 %v6693, 1e-06
    %v6710 = vadd.f32 %v6694, 1e-06
    %v6711 = vadd.f32 %v6695, 1e-06
    %v6712 = vadd.f32 %v6696, 1e-06
    %v6713 = vadd.f32 %v6697, 1e-06
    %v6714 = vrsqrt.pop %v6706
    %v6715 = vrsqrt.pop %v6707
    %v6716 = vrsqrt.pop %v6708
    %v6717 = vrsqrt.pop %v6709
    %v6718 = vrsqrt.pop %v6710
    %v6719 = vrsqrt.pop %v6711
    %v6720 = vrsqrt.pop %v6712
    %v6721 = vrsqrt.pop %v6713
    %v6722 = vmul.f32 %v6698, %v6714
    %v6723 = vmul.f32 %v6699, %v6715
    %v6724 = vmul.f32 %v6700, %v6716
    %v6725 = vmul.f32 %v6701, %v6717
    %v6726 = vmul.f32 %v6702, %v6718
    %v6727 = vmul.f32 %v6703, %v6719
    %v6728 = vmul.f32 %v6704, %v6720
    %v6729 = vmul.f32 %v6705, %v6721
    %v6731 = vlaneseq
    %v6732 = vshrl.u32 %v6731, 7
    %v6733 = vsub.s32 0, %v6732
    %v6734 = vrot.slane %v6599, %v6733
    %v6736 = vmul.f32 %v6722, %v6734
    %v6737 = vmul.f32 %v6723, %v6734
    %v6738 = vmul.f32 %v6724, %v6734
    %v6739 = vmul.f32 %v6725, %v6734
    %v6740 = vmul.f32 %v6726, %v6734
    %v6741 = vmul.f32 %v6727, %v6734
    %v6742 = vmul.f32 %v6728, %v6734
    %v6743 = vmul.f32 %v6729, %v6734
    %v6745 = vlaneseq
    %v6746 = vshrl.u32 %v6745, 7
    %v6747 = vsub.s32 0, %v6746
    %v6748 = vrot.slane %v6600, %v6747
    %v6750 = vadd.f32 %v6736, %v6748
    %v6751 = vadd.f32 %v6737, %v6748
    %v6752 = vadd.f32 %v6738, %v6748
    %v6753 = vadd.f32 %v6739, %v6748
    %v6754 = vadd.f32 %v6740, %v6748
    %v6755 = vadd.f32 %v6741, %v6748
    %v6756 = vadd.f32 %v6742, %v6748
    %v6757 = vadd.f32 %v6743, %v6748
    %v6758 = vmul.f32 %v6750, %v6750
    %v6759 = vmul.f32 %v6751, %v6751
    %v6760 = vmul.f32 %v6752, %v6752
    %v6761 = vmul.f32 %v6753, %v6753
    %v6762 = vmul.f32 %v6754, %v6754
    %v6763 = vmul.f32 %v6755, %v6755
    %v6764 = vmul.f32 %v6756, %v6756
    %v6765 = vmul.f32 %v6757, %v6757
    %v6766 = vmul.f32 %v6750, %v6758
    %v6767 = vmul.f32 %v6751, %v6759
    %v6768 = vmul.f32 %v6752, %v6760
    %v6769 = vmul.f32 %v6753, %v6761
    %v6770 = vmul.f32 %v6754, %v6762
    %v6771 = vmul.f32 %v6755, %v6763
    %v6772 = vmul.f32 %v6756, %v6764
    %v6773 = vmul.f32 %v6757, %v6765
    %v6774 = vmul.f32 %v6766, 0.044715
    %v6775 = vmul.f32 %v6767, 0.044715
    %v6776 = vmul.f32 %v6768, 0.044715
    %v6777 = vmul.f32 %v6769, 0.044715
    %v6778 = vmul.f32 %v6770, 0.044715
    %v6779 = vmul.f32 %v6771, 0.044715
    %v6780 = vmul.f32 %v6772, 0.044715
    %v6781 = vmul.f32 %v6773, 0.044715
    %v6782 = vadd.f32 %v6750, %v6774
    %v6783 = vadd.f32 %v6751, %v6775
    %v6784 = vadd.f32 %v6752, %v6776
    %v6785 = vadd.f32 %v6753, %v6777
    %v6786 = vadd.f32 %v6754, %v6778
    %v6787 = vadd.f32 %v6755, %v6779
    %v6788 = vadd.f32 %v6756, %v6780
    %v6789 = vadd.f32 %v6757, %v6781
    %v6790 = vmul.f32 %v6782, 0.7978846
    %v6791 = vmul.f32 %v6783, 0.7978846
    %v6792 = vmul.f32 %v6784, 0.7978846
    %v6793 = vmul.f32 %v6785, 0.7978846
    %v6794 = vmul.f32 %v6786, 0.7978846
    %v6795 = vmul.f32 %v6787, 0.7978846
    %v6796 = vmul.f32 %v6788, 0.7978846
    %v6797 = vmul.f32 %v6789, 0.7978846
    %v6798 = vtanh.pop %v6790
    %v6799 = vtanh.pop %v6791
    %v6800 = vtanh.pop %v6792
    %v6801 = vtanh.pop %v6793
    %v6802 = vtanh.pop %v6794
    %v6803 = vtanh.pop %v6795
    %v6804 = vtanh.pop %v6796
    %v6805 = vtanh.pop %v6797
    %v6806 = vadd.f32 %v6798, 1.0
    %v6807 = vadd.f32 %v6799, 1.0
    %v6808 = vadd.f32 %v6800, 1.0
    %v6809 = vadd.f32 %v6801, 1.0
    %v6810 = vadd.f32 %v6802, 1.0
    %v6811 = vadd.f32 %v6803, 1.0
    %v6812 = vadd.f32 %v6804, 1.0
    %v6813 = vadd.f32 %v6805, 1.0
    %v6814 = vmul.f32 %v6806, 0.5
    %v6815 = vmul.f32 %v6807, 0.5
    %v6816 = vmul.f32 %v6808, 0.5
    %v6817 = vmul.f32 %v6809, 0.5
    %v6818 = vmul.f32 %v6810, 0.5
    %v6819 = vmul.f32 %v6811, 0.5
    %v6820 = vmul.f32 %v6812, 0.5
    %v6821 = vmul.f32 %v6813, 0.5
    %v6822 = vmul.f32 %v6750, %v6814
    %v6823 = vmul.f32 %v6751, %v6815
    %v6824 = vmul.f32 %v6752, %v6816
    %v6825 = vmul.f32 %v6753, %v6817
    %v6826 = vmul.f32 %v6754, %v6818
    %v6827 = vmul.f32 %v6755, %v6819
    %v6828 = vmul.f32 %v6756, %v6820
    %v6829 = vmul.f32 %v6757, %v6821
    %v6830 = vld [vmem:[%s97] sm:$0xf]
    %v6831 = vpack.c.bf16 %v6823, %v6822
    %v6832 = vpack.c.bf16 %v6825, %v6824
    %v6833 = vpack.c.bf16 %v6827, %v6826
    %v6834 = vpack.c.bf16 %v6829, %v6828
    %v6836 = vsel %vm6601, %v6831, 0
    %v6839 = vsel %vm6601, %v6832, 0
    %v6842 = vsel %vm6601, %v6833, 0
    %v6845 = vsel %vm6601, %v6834, 0
    %v6848 = vsel %vm4857, %v6830, 0
    %6850 = vmatprep.subr.bf16.mxu0 0
    %6851 = vmatpush1.bf16.msra.mxu0 %v6848
    %6852 = vmatprep.subr.bf16.mxu0 0
    %6853 = vmatpush1.bf16.msra.mxu0 0
    %6854 = vmatprep.subr.bf16.mxu0 0
    %6855 = vmatpush1.bf16.msra.mxu0 0
    %6856 = vmatprep.subr.bf16.mxu0 0
    %6857 = vmatpush1.bf16.msra.mxu0 0
    %6858 = vmatprep.subr.bf16.mxu0 0
    %6859 = vmatpush1.bf16.msra.mxu0 0
    %6860 = vmatprep.subr.bf16.mxu0 0
    %6861 = vmatpush1.bf16.msra.mxu0 0
    %6862 = vmatprep.subr.bf16.mxu0 0
    %6863 = vmatpush1.bf16.msra.mxu0 0
    %6864 = vmatprep.subr.bf16.mxu0 0
    %6865 = vmatpush1.bf16.msra.mxu0 0
    %6866 = vmatprep.subr.bf16.mxu0 0
    %6867 = vmatpush1.bf16.msra.mxu0 0
    %6868 = vmatprep.subr.bf16.mxu0 0
    %6869 = vmatpush1.bf16.msra.mxu0 0
    %6870 = vmatprep.subr.bf16.mxu0 0
    %6871 = vmatpush1.bf16.msra.mxu0 0
    %6872 = vmatprep.subr.bf16.mxu0 0
    %6873 = vmatpush1.bf16.msra.mxu0 0
    %6874 = vmatprep.subr.bf16.mxu0 0
    %6875 = vmatpush1.bf16.msra.mxu0 0
    %6876 = vmatprep.subr.bf16.mxu0 0
    %6877 = vmatpush1.bf16.msra.mxu0 0
    %6878 = vmatprep.subr.bf16.mxu0 0
    %6879 = vmatpush1.bf16.msra.mxu0 0
    %6880 = vmatprep.subr.bf16.mxu0 0
    %6881 = vmatpush1.bf16.msra.mxu0 0
    %6882 = vmatprep.mubr.bf16.mxu0 0
    %6883 = vmatmul.mubr.bf16.gmra.mrb[0].mxu0 %v6836
    %v6884 = vpop.f32.mrb[0].mxu0
    %v6885 = vadd.f32 0.0, %v6884
    %v6886 = vpop.f32.mrb[0].mxu0
    %v6887 = vpop.f32.mrb[0].mxu0
    %v6888 = vadd.f32 0.0, %v6887
    %v6889 = vpop.f32.mrb[0].mxu0
    %6890 = vmatprep.mubr.bf16.mxu0 0
    %6891 = vmatmul.mubr.bf16.gmra.mrb[0].mxu0 %v6839
    %v6892 = vpop.f32.mrb[0].mxu0
    %v6893 = vadd.f32 0.0, %v6892
    %v6894 = vpop.f32.mrb[0].mxu0
    %v6895 = vpop.f32.mrb[0].mxu0
    %v6896 = vadd.f32 0.0, %v6895
    %v6897 = vpop.f32.mrb[0].mxu0
    %6898 = vmatprep.mubr.bf16.mxu0 0
    %6899 = vmatmul.mubr.bf16.gmra.mrb[0].mxu0 %v6842
    %v6900 = vpop.f32.mrb[0].mxu0
    %v6901 = vadd.f32 0.0, %v6900
    %v6902 = vpop.f32.mrb[0].mxu0
    %v6903 = vpop.f32.mrb[0].mxu0
    %v6904 = vadd.f32 0.0, %v6903
    %v6905 = vpop.f32.mrb[0].mxu0
    %6906 = vmatprep.mubr.bf16.mxu0 0
    %6907 = vmatmul.mubr.bf16.gmra.mrb[0].mxu0 %v6845
    %v6908 = vpop.f32.mrb[0].mxu0
    %v6909 = vadd.f32 0.0, %v6908
    %v6910 = vpop.f32.mrb[0].mxu0
    %v6911 = vpop.f32.mrb[0].mxu0
    %v6912 = vadd.f32 0.0, %v6911
    %v6913 = vpop.f32.mrb[0].mxu0
    %6914 = vdwg.mxu0
    %6923 = vrot.lane.b32.xlu0 %v6885, 124
    %v6924 = vpop.permute.xlu0 %6923
    %6925 = vrot.lane.b32.xlu0 %v6888, 124
    %v6926 = vpop.permute.xlu0 %6925
    %6927 = vrot.lane.b32.xlu0 %v6893, 124
    %v6928 = vpop.permute.xlu0 %6927
    %6929 = vrot.lane.b32.xlu0 %v6896, 124
    %v6930 = vpop.permute.xlu0 %6929
    %6931 = vrot.lane.b32.xlu0 %v6901, 124
    %v6932 = vpop.permute.xlu0 %6931
    %6933 = vrot.lane.b32.xlu0 %v6904, 124
    %v6934 = vpop.permute.xlu0 %6933
    %6935 = vrot.lane.b32.xlu0 %v6909, 124
    %v6936 = vpop.permute.xlu0 %6935
    %6937 = vrot.lane.b32.xlu0 %v6912, 124
    %v6938 = vpop.permute.xlu0 %6937
    %6947 = vrot.lane.b32.xlu0 %v6885, 120
    %v6948 = vpop.permute.xlu0 %6947
    %6949 = vrot.lane.b32.xlu0 %v6888, 120
    %v6950 = vpop.permute.xlu0 %6949
    %6951 = vrot.lane.b32.xlu0 %v6893, 120
    %v6952 = vpop.permute.xlu0 %6951
    %6953 = vrot.lane.b32.xlu0 %v6896, 120
    %v6954 = vpop.permute.xlu0 %6953
    %6955 = vrot.lane.b32.xlu0 %v6901, 120
    %v6956 = vpop.permute.xlu0 %6955
    %6957 = vrot.lane.b32.xlu0 %v6904, 120
    %v6958 = vpop.permute.xlu0 %6957
    %6959 = vrot.lane.b32.xlu0 %v6909, 120
    %v6960 = vpop.permute.xlu0 %6959
    %6961 = vrot.lane.b32.xlu0 %v6912, 120
    %v6962 = vpop.permute.xlu0 %6961
    %6971 = vrot.lane.b32.xlu0 %v6885, 116
    %v6972 = vpop.permute.xlu0 %6971
    %6973 = vrot.lane.b32.xlu0 %v6888, 116
    %v6974 = vpop.permute.xlu0 %6973
    %6975 = vrot.lane.b32.xlu0 %v6893, 116
    %v6976 = vpop.permute.xlu0 %6975
    %6977 = vrot.lane.b32.xlu0 %v6896, 116
    %v6978 = vpop.permute.xlu0 %6977
    %6979 = vrot.lane.b32.xlu0 %v6901, 116
    %v6980 = vpop.permute.xlu0 %6979
    %6981 = vrot.lane.b32.xlu0 %v6904, 116
    %v6982 = vpop.permute.xlu0 %6981
    %6983 = vrot.lane.b32.xlu0 %v6909, 116
    %v6984 = vpop.permute.xlu0 %6983
    %6985 = vrot.lane.b32.xlu0 %v6912, 116
    %v6986 = vpop.permute.xlu0 %6985
    %v6995 = vld [vmem:[%s95] sm:$0xff]
    %v6996 = vld [vmem:[%s95 + $0x8] sm:$0xff]
    %v6997 = vld [vmem:[%s95 + $0x10] sm:$0xff]
    %v6998 = vld [vmem:[%s95 + $0x18] sm:$0xff]
    %v6999 = vld [vmem:[%s95 + $0x20] sm:$0xff]
    %v7000 = vld [vmem:[%s95 + $0x28] sm:$0xff]
    %v7001 = vld [vmem:[%s95 + $0x30] sm:$0xff]
    %v7002 = vld [vmem:[%s95 + $0x38] sm:$0xff]
    %v7003 = vld [vmem:[%s95 + $0x40] sm:$0xff]
    %v7004 = vld [vmem:[%s95 + $0x48] sm:$0xff]
    %v7005 = vld [vmem:[%s95 + $0x50] sm:$0xff]
    %v7006 = vld [vmem:[%s95 + $0x58] sm:$0xff]
    %v7007 = vld [vmem:[%s95 + $0x60] sm:$0xff]
    %v7008 = vld [vmem:[%s95 + $0x68] sm:$0xff]
    %v7009 = vld [vmem:[%s95 + $0x70] sm:$0xff]
    %v7010 = vld [vmem:[%s95 + $0x78] sm:$0xff]
    %v7011 = vld [vmem:[%s95 + $0x80] sm:$0xff]
    %v7012 = vld [vmem:[%s95 + $0x88] sm:$0xff]
    %v7013 = vld [vmem:[%s95 + $0x90] sm:$0xff]
    %v7014 = vld [vmem:[%s95 + $0x98] sm:$0xff]
    %v7015 = vld [vmem:[%s95 + $0xa0] sm:$0xff]
    %v7016 = vld [vmem:[%s95 + $0xa8] sm:$0xff]
    %v7017 = vld [vmem:[%s95 + $0xb0] sm:$0xff]
    %v7018 = vld [vmem:[%s95 + $0xb8] sm:$0xff]
    %v7019 = vld [vmem:[%s95 + $0xc0] sm:$0xff]
    %v7020 = vld [vmem:[%s95 + $0xc8] sm:$0xff]
    %v7021 = vld [vmem:[%s95 + $0xd0] sm:$0xff]
    %v7022 = vld [vmem:[%s95 + $0xd8] sm:$0xff]
    %v7023 = vld [vmem:[%s95 + $0xe0] sm:$0xff]
    %v7024 = vld [vmem:[%s95 + $0xe8] sm:$0xff]
    %v7025 = vld [vmem:[%s95 + $0xf0] sm:$0xff]
    %v7026 = vld [vmem:[%s95 + $0xf8] sm:$0xff]
    %v7027 = vpack.c.bf16 %v6888, %v6885
    %v7028 = vpack.c.bf16 %v6896, %v6893
    %v7029 = vpack.c.bf16 %v6904, %v6901
    %v7030 = vpack.c.bf16 %v6912, %v6909
    %v7031 = vpack.c.bf16 %v6926, %v6924
    %v7032 = vpack.c.bf16 %v6930, %v6928
    %v7033 = vpack.c.bf16 %v6934, %v6932
    %v7034 = vpack.c.bf16 %v6938, %v6936
    %v7035 = vpack.c.bf16 %v6950, %v6948
    %v7036 = vpack.c.bf16 %v6954, %v6952
    %v7037 = vpack.c.bf16 %v6958, %v6956
    %v7038 = vpack.c.bf16 %v6962, %v6960
    %v7039 = vpack.c.bf16 %v6974, %v6972
    %v7040 = vpack.c.bf16 %v6978, %v6976
    %v7041 = vpack.c.bf16 %v6982, %v6980
    %v7042 = vpack.c.bf16 %v6986, %v6984
    %v7043 = vld [vmem:[#allocation11] sm:$0x1]
    %v7045 = vlaneseq
    %v7046 = vshrl.u32 %v7045, 7
    %v7047 = vsub.s32 0, %v7046
    %v7048 = vrot.slane %v7043, %v7047
    %v7082 = vunpack.c.l.b16 %v6995
    %v7083 = vunpack.c.h.b16 %v6995
    %v7084 = vunpack.c.l.b16 %v6996
    %v7085 = vunpack.c.h.b16 %v6996
    %v7086 = vunpack.c.l.b16 %v6997
    %v7087 = vunpack.c.h.b16 %v6997
    %v7088 = vunpack.c.l.b16 %v6998
    %v7089 = vunpack.c.h.b16 %v6998
    %v7090 = vunpack.c.l.b16 %v6999
    %v7091 = vunpack.c.h.b16 %v6999
    %v7092 = vunpack.c.l.b16 %v7000
    %v7093 = vunpack.c.h.b16 %v7000
    %v7094 = vunpack.c.l.b16 %v7001
    %v7095 = vunpack.c.h.b16 %v7001
    %v7096 = vunpack.c.l.b16 %v7002
    %v7097 = vunpack.c.h.b16 %v7002
    %v7098 = vunpack.c.l.b16 %v7003
    %v7099 = vunpack.c.h.b16 %v7003
    %v7100 = vunpack.c.l.b16 %v7004
    %v7101 = vunpack.c.h.b16 %v7004
    %v7102 = vunpack.c.l.b16 %v7005
    %v7103 = vunpack.c.h.b16 %v7005
    %v7104 = vunpack.c.l.b16 %v7006
    %v7105 = vunpack.c.h.b16 %v7006
    %v7106 = vunpack.c.l.b16 %v7007
    %v7107 = vunpack.c.h.b16 %v7007
    %v7108 = vunpack.c.l.b16 %v7008
    %v7109 = vunpack.c.h.b16 %v7008
    %v7110 = vunpack.c.l.b16 %v7009
    %v7111 = vunpack.c.h.b16 %v7009
    %v7112 = vunpack.c.l.b16 %v7010
    %v7113 = vunpack.c.h.b16 %v7010
    %v7114 = vunpack.c.l.b16 %v7011
    %v7115 = vunpack.c.h.b16 %v7011
    %v7116 = vunpack.c.l.b16 %v7012
    %v7117 = vunpack.c.h.b16 %v7012
    %v7118 = vunpack.c.l.b16 %v7013
    %v7119 = vunpack.c.h.b16 %v7013
    %v7120 = vunpack.c.l.b16 %v7014
    %v7121 = vunpack.c.h.b16 %v7014
    %v7122 = vunpack.c.l.b16 %v7015
    %v7123 = vunpack.c.h.b16 %v7015
    %v7124 = vunpack.c.l.b16 %v7016
    %v7125 = vunpack.c.h.b16 %v7016
    %v7126 = vunpack.c.l.b16 %v7017
    %v7127 = vunpack.c.h.b16 %v7017
    %v7128 = vunpack.c.l.b16 %v7018
    %v7129 = vunpack.c.h.b16 %v7018
    %v7130 = vunpack.c.l.b16 %v7019
    %v7131 = vunpack.c.h.b16 %v7019
    %v7132 = vunpack.c.l.b16 %v7020
    %v7133 = vunpack.c.h.b16 %v7020
    %v7134 = vunpack.c.l.b16 %v7021
    %v7135 = vunpack.c.h.b16 %v7021
    %v7136 = vunpack.c.l.b16 %v7022
    %v7137 = vunpack.c.h.b16 %v7022
    %v7138 = vunpack.c.l.b16 %v7023
    %v7139 = vunpack.c.h.b16 %v7023
    %v7140 = vunpack.c.l.b16 %v7024
    %v7141 = vunpack.c.h.b16 %v7024
    %v7142 = vunpack.c.l.b16 %v7025
    %v7143 = vunpack.c.h.b16 %v7025
    %v7144 = vunpack.c.l.b16 %v7026
    %v7145 = vunpack.c.h.b16 %v7026
    %v7146 = vpack.c.b16 %v7084, %v7082
    %v7147 = vpack.c.b16 %v7085, %v7083
    %v7148 = vpack.c.b16 %v7088, %v7086
    %v7149 = vpack.c.b16 %v7089, %v7087
    %v7150 = vpack.c.b16 %v7092, %v7090
    %v7151 = vpack.c.b16 %v7093, %v7091
    %v7152 = vpack.c.b16 %v7096, %v7094
    %v7153 = vpack.c.b16 %v7097, %v7095
    %v7154 = vpack.c.b16 %v7100, %v7098
    %v7155 = vpack.c.b16 %v7101, %v7099
    %v7156 = vpack.c.b16 %v7104, %v7102
    %v7157 = vpack.c.b16 %v7105, %v7103
    %v7158 = vpack.c.b16 %v7108, %v7106
    %v7159 = vpack.c.b16 %v7109, %v7107
    %v7160 = vpack.c.b16 %v7112, %v7110
    %v7161 = vpack.c.b16 %v7113, %v7111
    %v7162 = vpack.c.b16 %v7116, %v7114
    %v7163 = vpack.c.b16 %v7117, %v7115
    %v7164 = vpack.c.b16 %v7120, %v7118
    %v7165 = vpack.c.b16 %v7121, %v7119
    %v7166 = vpack.c.b16 %v7124, %v7122
    %v7167 = vpack.c.b16 %v7125, %v7123
    %v7168 = vpack.c.b16 %v7128, %v7126
    %v7169 = vpack.c.b16 %v7129, %v7127
    %v7170 = vpack.c.b16 %v7132, %v7130
    %v7171 = vpack.c.b16 %v7133, %v7131
    %v7172 = vpack.c.b16 %v7136, %v7134
    %v7173 = vpack.c.b16 %v7137, %v7135
    %v7174 = vpack.c.b16 %v7140, %v7138
    %v7175 = vpack.c.b16 %v7141, %v7139
    %v7176 = vpack.c.b16 %v7144, %v7142
    %v7177 = vpack.c.b16 %v7145, %v7143
    %7210 = vmatprep.subr.bf16.mxu0 0
    %7211 = vmatpush1.bf16.msra.mxu0 %v7027
    %7212 = vmatprep.subr.bf16.mxu0 0
    %7213 = vmatpush1.bf16.msra.mxu0 %v7028
    %7214 = vmatprep.subr.bf16.mxu0 0
    %7215 = vmatpush1.bf16.msra.mxu0 %v7029
    %7216 = vmatprep.subr.bf16.mxu0 0
    %7217 = vmatpush1.bf16.msra.mxu0 %v7030
    %7218 = vmatprep.subr.bf16.mxu0 0
    %7219 = vmatpush1.bf16.msra.mxu0 %v7031
    %7220 = vmatprep.subr.bf16.mxu0 0
    %7221 = vmatpush1.bf16.msra.mxu0 %v7032
    %7222 = vmatprep.subr.bf16.mxu0 0
    %7223 = vmatpush1.bf16.msra.mxu0 %v7033
    %7224 = vmatprep.subr.bf16.mxu0 0
    %7225 = vmatpush1.bf16.msra.mxu0 %v7034
    %7226 = vmatprep.subr.bf16.mxu0 0
    %7227 = vmatpush1.bf16.msra.mxu0 %v7035
    %7228 = vmatprep.subr.bf16.mxu0 0
    %7229 = vmatpush1.bf16.msra.mxu0 %v7036
    %7230 = vmatprep.subr.bf16.mxu0 0
    %7231 = vmatpush1.bf16.msra.mxu0 %v7037
    %7232 = vmatprep.subr.bf16.mxu0 0
    %7233 = vmatpush1.bf16.msra.mxu0 %v7038
    %7234 = vmatprep.subr.bf16.mxu0 0
    %7235 = vmatpush1.bf16.msra.mxu0 %v7039
    %7236 = vmatprep.subr.bf16.mxu0 0
    %7237 = vmatpush1.bf16.msra.mxu0 %v7040
    %7238 = vmatprep.subr.bf16.mxu0 0
    %7239 = vmatpush1.bf16.msra.mxu0 %v7041
    %7240 = vmatprep.subr.bf16.mxu0 0
    %7241 = vmatpush1.bf16.msra.mxu0 %v7042
    %7242 = vmatprep.mubr.bf16.mxu0 %v7147
    %7243 = vmatmul.mubr.bf16.gmra.mrb[0].mxu0 %v7146
    %v7244 = vpop.f32.mrb[0].mxu0
    %v7245 = vadd.f32 %v7048, %v7244
    %v7246 = vpop.f32.mrb[0].mxu0
    %v7247 = vpop.f32.mrb[0].mxu0
    %v7248 = vadd.f32 %v7048, %v7247
    %v7249 = vpop.f32.mrb[0].mxu0
    %7250 = vmatprep.mubr.bf16.mxu0 %v7149
    %7251 = vmatmul.mubr.bf16.gmra.mrb[0].mxu0 %v7148
    %v7252 = vpop.f32.mrb[0].mxu0
    %v7253 = vadd.f32 %v7048, %v7252
    %v7254 = vpop.f32.mrb[0].mxu0
    %v7255 = vpop.f32.mrb[0].mxu0
    %v7256 = vadd.f32 %v7048, %v7255
    %v7257 = vpop.f32.mrb[0].mxu0
    %7258 = vmatprep.mubr.bf16.mxu0 %v7151
    %7259 = vmatmul.mubr.bf16.gmra.mrb[0].mxu0 %v7150
    %v7260 = vpop.f32.mrb[0].mxu0
    %v7261 = vadd.f32 %v7048, %v7260
    %v7262 = vpop.f32.mrb[0].mxu0
    %v7263 = vpop.f32.mrb[0].mxu0
    %v7264 = vadd.f32 %v7048, %v7263
    %v7265 = vpop.f32.mrb[0].mxu0
    %7266 = vmatprep.mubr.bf16.mxu0 %v7153
    %7267 = vmatmul.mubr.bf16.gmra.mrb[0].mxu0 %v7152
    %v7268 = vpop.f32.mrb[0].mxu0
    %v7269 = vadd.f32 %v7048, %v7268
    %v7270 = vpop.f32.mrb[0].mxu0
    %v7271 = vpop.f32.mrb[0].mxu0
    %v7272 = vadd.f32 %v7048, %v7271
    %v7273 = vpop.f32.mrb[0].mxu0
    %7274 = vmatprep.mubr.bf16.mxu0 %v7155
    %7275 = vmatmul.mubr.bf16.gmra.mrb[0].mxu0 %v7154
    %v7276 = vpop.f32.mrb[0].mxu0
    %v7277 = vadd.f32 %v7048, %v7276
    %v7278 = vpop.f32.mrb[0].mxu0
    %v7279 = vpop.f32.mrb[0].mxu0
    %v7280 = vadd.f32 %v7048, %v7279
    %v7281 = vpop.f32.mrb[0].mxu0
    %7282 = vmatprep.mubr.bf16.mxu0 %v7157
    %7283 = vmatmul.mubr.bf16.gmra.mrb[0].mxu0 %v7156
    %v7284 = vpop.f32.mrb[0].mxu0
    %v7285 = vadd.f32 %v7048, %v7284
    %v7286 = vpop.f32.mrb[0].mxu0
    %v7287 = vpop.f32.mrb[0].mxu0
    %v7288 = vadd.f32 %v7048, %v7287
    %v7289 = vpop.f32.mrb[0].mxu0
    %7290 = vmatprep.mubr.bf16.mxu0 %v7159
    %7291 = vmatmul.mubr.bf16.gmra.mrb[0].mxu0 %v7158
    %v7292 = vpop.f32.mrb[0].mxu0
    %v7293 = vadd.f32 %v7048, %v7292
    %v7294 = vpop.f32.mrb[0].mxu0
    %v7295 = vpop.f32.mrb[0].mxu0
    %v7296 = vadd.f32 %v7048, %v7295
    %v7297 = vpop.f32.mrb[0].mxu0
    %7298 = vmatprep.mubr.bf16.mxu0 %v7161
    %7299 = vmatmul.mubr.bf16.gmra.mrb[0].mxu0 %v7160
    %v7300 = vpop.f32.mrb[0].mxu0
    %v7301 = vadd.f32 %v7048, %v7300
    %v7302 = vpop.f32.mrb[0].mxu0
    %v7303 = vpop.f32.mrb[0].mxu0
    %v7304 = vadd.f32 %v7048, %v7303
    %v7305 = vpop.f32.mrb[0].mxu0
    %7306 = vmatprep.mubr.bf16.mxu0 %v7163
    %7307 = vmatmul.mubr.bf16.gmra.mrb[0].mxu0 %v7162
    %v7308 = vpop.f32.mrb[0].mxu0
    %v7309 = vadd.f32 %v7048, %v7308
    %v7310 = vpop.f32.mrb[0].mxu0
    %v7311 = vpop.f32.mrb[0].mxu0
    %v7312 = vadd.f32 %v7048, %v7311
    %v7313 = vpop.f32.mrb[0].mxu0
    %7314 = vmatprep.mubr.bf16.mxu0 %v7165
    %7315 = vmatmul.mubr.bf16.gmra.mrb[0].mxu0 %v7164
    %v7316 = vpop.f32.mrb[0].mxu0
    %v7317 = vadd.f32 %v7048, %v7316
    %v7318 = vpop.f32.mrb[0].mxu0
    %v7319 = vpop.f32.mrb[0].mxu0
    %v7320 = vadd.f32 %v7048, %v7319
    %v7321 = vpop.f32.mrb[0].mxu0
    %7322 = vmatprep.mubr.bf16.mxu0 %v7167
    %7323 = vmatmul.mubr.bf16.gmra.mrb[0].mxu0 %v7166
    %v7324 = vpop.f32.mrb[0].mxu0
    %v7325 = vadd.f32 %v7048, %v7324
    %v7326 = vpop.f32.mrb[0].mxu0
    %v7327 = vpop.f32.mrb[0].mxu0
    %v7328 = vadd.f32 %v7048, %v7327
    %v7329 = vpop.f32.mrb[0].mxu0
    %7330 = vmatprep.mubr.bf16.mxu0 %v7169
    %7331 = vmatmul.mubr.bf16.gmra.mrb[0].mxu0 %v7168
    %v7332 = vpop.f32.mrb[0].mxu0
    %v7333 = vadd.f32 %v7048, %v7332
    %v7334 = vpop.f32.mrb[0].mxu0
    %v7335 = vpop.f32.mrb[0].mxu0
    %v7336 = vadd.f32 %v7048, %v7335
    %v7337 = vpop.f32.mrb[0].mxu0
    %7338 = vmatprep.mubr.bf16.mxu0 %v7171
    %7339 = vmatmul.mubr.bf16.gmra.mrb[0].mxu0 %v7170
    %v7340 = vpop.f32.mrb[0].mxu0
    %v7341 = vadd.f32 %v7048, %v7340
    %v7342 = vpop.f32.mrb[0].mxu0
    %v7343 = vpop.f32.mrb[0].mxu0
    %v7344 = vadd.f32 %v7048, %v7343
    %v7345 = vpop.f32.mrb[0].mxu0
    %7346 = vmatprep.mubr.bf16.mxu0 %v7173
    %7347 = vmatmul.mubr.bf16.gmra.mrb[0].mxu0 %v7172
    %v7348 = vpop.f32.mrb[0].mxu0
    %v7349 = vadd.f32 %v7048, %v7348
    %v7350 = vpop.f32.mrb[0].mxu0
    %v7351 = vpop.f32.mrb[0].mxu0
    %v7352 = vadd.f32 %v7048, %v7351
    %v7353 = vpop.f32.mrb[0].mxu0
    %7354 = vmatprep.mubr.bf16.mxu0 %v7175
    %7355 = vmatmul.mubr.bf16.gmra.mrb[0].mxu0 %v7174
    %v7356 = vpop.f32.mrb[0].mxu0
    %v7357 = vadd.f32 %v7048, %v7356
    %v7358 = vpop.f32.mrb[0].mxu0
    %v7359 = vpop.f32.mrb[0].mxu0
    %v7360 = vadd.f32 %v7048, %v7359
    %v7361 = vpop.f32.mrb[0].mxu0
    %7362 = vmatprep.mubr.bf16.mxu0 %v7177
    %7363 = vmatmul.mubr.bf16.gmra.mrb[0].mxu0 %v7176
    %v7364 = vpop.f32.mrb[0].mxu0
    %v7365 = vadd.f32 %v7048, %v7364
    %v7366 = vpop.f32.mrb[0].mxu0
    %v7367 = vpop.f32.mrb[0].mxu0
    %v7368 = vadd.f32 %v7048, %v7367
    %v7369 = vpop.f32.mrb[0].mxu0
    %7370 = vdwg.mxu0
    %v7371 = vmul.f32 %v7245, %v7245
    %v7372 = vmul.f32 %v7248, %v7248
    %v7373 = vmul.f32 %v7253, %v7253
    %v7374 = vmul.f32 %v7256, %v7256
    %v7375 = vmul.f32 %v7261, %v7261
    %v7376 = vmul.f32 %v7264, %v7264
    %v7377 = vmul.f32 %v7269, %v7269
    %v7378 = vmul.f32 %v7272, %v7272
    %v7379 = vmul.f32 %v7277, %v7277
    %v7380 = vmul.f32 %v7280, %v7280
    %v7381 = vmul.f32 %v7285, %v7285
    %v7382 = vmul.f32 %v7288, %v7288
    %v7383 = vmul.f32 %v7293, %v7293
    %v7384 = vmul.f32 %v7296, %v7296
    %v7385 = vmul.f32 %v7301, %v7301
    %v7386 = vmul.f32 %v7304, %v7304
    %v7387 = vmul.f32 %v7309, %v7309
    %v7388 = vmul.f32 %v7312, %v7312
    %v7389 = vmul.f32 %v7317, %v7317
    %v7390 = vmul.f32 %v7320, %v7320
    %v7391 = vmul.f32 %v7325, %v7325
    %v7392 = vmul.f32 %v7328, %v7328
    %v7393 = vmul.f32 %v7333, %v7333
    %v7394 = vmul.f32 %v7336, %v7336
    %v7395 = vmul.f32 %v7341, %v7341
    %v7396 = vmul.f32 %v7344, %v7344
    %v7397 = vmul.f32 %v7349, %v7349
    %v7398 = vmul.f32 %v7352, %v7352
    %v7399 = vmul.f32 %v7357, %v7357
    %v7400 = vmul.f32 %v7360, %v7360
    %v7401 = vmul.f32 %v7365, %v7365
    %v7402 = vmul.f32 %v7368, %v7368
    %v7403 = vmul.f32 %v7245, %v7371
    %v7404 = vmul.f32 %v7248, %v7372
    %v7405 = vmul.f32 %v7253, %v7373
    %v7406 = vmul.f32 %v7256, %v7374
    %v7407 = vmul.f32 %v7261, %v7375
    %v7408 = vmul.f32 %v7264, %v7376
    %v7409 = vmul.f32 %v7269, %v7377
    %v7410 = vmul.f32 %v7272, %v7378
    %v7411 = vmul.f32 %v7277, %v7379
    %v7412 = vmul.f32 %v7280, %v7380
    %v7413 = vmul.f32 %v7285, %v7381
    %v7414 = vmul.f32 %v7288, %v7382
    %v7415 = vmul.f32 %v7293, %v7383
    %v7416 = vmul.f32 %v7296, %v7384
    %v7417 = vmul.f32 %v7301, %v7385
    %v7418 = vmul.f32 %v7304, %v7386
    %v7419 = vmul.f32 %v7309, %v7387
    %v7420 = vmul.f32 %v7312, %v7388
    %v7421 = vmul.f32 %v7317, %v7389
    %v7422 = vmul.f32 %v7320, %v7390
    %v7423 = vmul.f32 %v7325, %v7391
    %v7424 = vmul.f32 %v7328, %v7392
    %v7425 = vmul.f32 %v7333, %v7393
    %v7426 = vmul.f32 %v7336, %v7394
    %v7427 = vmul.f32 %v7341, %v7395
    %v7428 = vmul.f32 %v7344, %v7396
    %v7429 = vmul.f32 %v7349, %v7397
    %v7430 = vmul.f32 %v7352, %v7398
    %v7431 = vmul.f32 %v7357, %v7399
    %v7432 = vmul.f32 %v7360, %v7400
    %v7433 = vmul.f32 %v7365, %v7401
    %v7434 = vmul.f32 %v7368, %v7402
    %v7435 = vmul.f32 %v7403, 0.044715
    %v7436 = vmul.f32 %v7404, 0.044715
    %v7437 = vmul.f32 %v7405, 0.044715
    %v7438 = vmul.f32 %v7406, 0.044715
    %v7439 = vmul.f32 %v7407, 0.044715
    %v7440 = vmul.f32 %v7408, 0.044715
    %v7441 = vmul.f32 %v7409, 0.044715
    %v7442 = vmul.f32 %v7410, 0.044715
    %v7443 = vmul.f32 %v7411, 0.044715
    %v7444 = vmul.f32 %v7412, 0.044715
    %v7445 = vmul.f32 %v7413, 0.044715
    %v7446 = vmul.f32 %v7414, 0.044715
    %v7447 = vmul.f32 %v7415, 0.044715
    %v7448 = vmul.f32 %v7416, 0.044715
    %v7449 = vmul.f32 %v7417, 0.044715
    %v7450 = vmul.f32 %v7418, 0.044715
    %v7451 = vmul.f32 %v7419, 0.044715
    %v7452 = vmul.f32 %v7420, 0.044715
    %v7453 = vmul.f32 %v7421, 0.044715
    %v7454 = vmul.f32 %v7422, 0.044715
    %v7455 = vmul.f32 %v7423, 0.044715
    %v7456 = vmul.f32 %v7424, 0.044715
    %v7457 = vmul.f32 %v7425, 0.044715
    %v7458 = vmul.f32 %v7426, 0.044715
    %v7459 = vmul.f32 %v7427, 0.044715
    %v7460 = vmul.f32 %v7428, 0.044715
    %v7461 = vmul.f32 %v7429, 0.044715
    %v7462 = vmul.f32 %v7430, 0.044715
    %v7463 = vmul.f32 %v7431, 0.044715
    %v7464 = vmul.f32 %v7432, 0.044715
    %v7465 = vmul.f32 %v7433, 0.044715
    %v7466 = vmul.f32 %v7434, 0.044715
    %v7467 = vadd.f32 %v7245, %v7435
    %v7468 = vadd.f32 %v7248, %v7436
    %v7469 = vadd.f32 %v7253, %v7437
    %v7470 = vadd.f32 %v7256, %v7438
    %v7471 = vadd.f32 %v7261, %v7439
    %v7472 = vadd.f32 %v7264, %v7440
    %v7473 = vadd.f32 %v7269, %v7441
    %v7474 = vadd.f32 %v7272, %v7442
    %v7475 = vadd.f32 %v7277, %v7443
    %v7476 = vadd.f32 %v7280, %v7444
    %v7477 = vadd.f32 %v7285, %v7445
    %v7478 = vadd.f32 %v7288, %v7446
    %v7479 = vadd.f32 %v7293, %v7447
    %v7480 = vadd.f32 %v7296, %v7448
    %v7481 = vadd.f32 %v7301, %v7449
    %v7482 = vadd.f32 %v7304, %v7450
    %v7483 = vadd.f32 %v7309, %v7451
    %v7484 = vadd.f32 %v7312, %v7452
    %v7485 = vadd.f32 %v7317, %v7453
    %v7486 = vadd.f32 %v7320, %v7454
    %v7487 = vadd.f32 %v7325, %v7455
    %v7488 = vadd.f32 %v7328, %v7456
    %v7489 = vadd.f32 %v7333, %v7457
    %v7490 = vadd.f32 %v7336, %v7458
    %v7491 = vadd.f32 %v7341, %v7459
    %v7492 = vadd.f32 %v7344, %v7460
    %v7493 = vadd.f32 %v7349, %v7461
    %v7494 = vadd.f32 %v7352, %v7462
    %v7495 = vadd.f32 %v7357, %v7463
    %v7496 = vadd.f32 %v7360, %v7464
    %v7497 = vadd.f32 %v7365, %v7465
    %v7498 = vadd.f32 %v7368, %v7466
    %v7499 = vmul.f32 %v7467, 0.7978846
    %v7500 = vmul.f32 %v7468, 0.7978846
    %v7501 = vmul.f32 %v7469, 0.7978846
    %v7502 = vmul.f32 %v7470, 0.7978846
    %v7503 = vmul.f32 %v7471, 0.7978846
    %v7504 = vmul.f32 %v7472, 0.7978846
    %v7505 = vmul.f32 %v7473, 0.7978846
    %v7506 = vmul.f32 %v7474, 0.7978846
    %v7507 = vmul.f32 %v7475, 0.7978846
    %v7508 = vmul.f32 %v7476, 0.7978846
    %v7509 = vmul.f32 %v7477, 0.7978846
    %v7510 = vmul.f32 %v7478, 0.7978846
    %v7511 = vmul.f32 %v7479, 0.7978846
    %v7512 = vmul.f32 %v7480, 0.7978846
    %v7513 = vmul.f32 %v7481, 0.7978846
    %v7514 = vmul.f32 %v7482, 0.7978846
    %v7515 = vmul.f32 %v7483, 0.7978846
    %v7516 = vmul.f32 %v7484, 0.7978846
    %v7517 = vmul.f32 %v7485, 0.7978846
    %v7518 = vmul.f32 %v7486, 0.7978846
    %v7519 = vmul.f32 %v7487, 0.7978846
    %v7520 = vmul.f32 %v7488, 0.7978846
    %v7521 = vmul.f32 %v7489, 0.7978846
    %v7522 = vmul.f32 %v7490, 0.7978846
    %v7523 = vmul.f32 %v7491, 0.7978846
    %v7524 = vmul.f32 %v7492, 0.7978846
    %v7525 = vmul.f32 %v7493, 0.7978846
    %v7526 = vmul.f32 %v7494, 0.7978846
    %v7527 = vmul.f32 %v7495, 0.7978846
    %v7528 = vmul.f32 %v7496, 0.7978846
    %v7529 = vmul.f32 %v7497, 0.7978846
    %v7530 = vmul.f32 %v7498, 0.7978846
    %v7531 = vtanh.pop %v7499
    %v7532 = vtanh.pop %v7500
    %v7533 = vtanh.pop %v7501
    %v7534 = vtanh.pop %v7502
    %v7535 = vtanh.pop %v7503
    %v7536 = vtanh.pop %v7504
    %v7537 = vtanh.pop %v7505
    %v7538 = vtanh.pop %v7506
    %v7539 = vtanh.pop %v7507
    %v7540 = vtanh.pop %v7508
    %v7541 = vtanh.pop %v7509
    %v7542 = vtanh.pop %v7510
    %v7543 = vtanh.pop %v7511
    %v7544 = vtanh.pop %v7512
    %v7545 = vtanh.pop %v7513
    %v7546 = vtanh.pop %v7514
    %v7547 = vtanh.pop %v7515
    %v7548 = vtanh.pop %v7516
    %v7549 = vtanh.pop %v7517
    %v7550 = vtanh.pop %v7518
    %v7551 = vtanh.pop %v7519
    %v7552 = vtanh.pop %v7520
    %v7553 = vtanh.pop %v7521
    %v7554 = vtanh.pop %v7522
    %v7555 = vtanh.pop %v7523
    %v7556 = vtanh.pop %v7524
    %v7557 = vtanh.pop %v7525
    %v7558 = vtanh.pop %v7526
    %v7559 = vtanh.pop %v7527
    %v7560 = vtanh.pop %v7528
    %v7561 = vtanh.pop %v7529
    %v7562 = vtanh.pop %v7530
    %v7563 = vadd.f32 %v7531, 1.0
    %v7564 = vadd.f32 %v7532, 1.0
    %v7565 = vadd.f32 %v7533, 1.0
    %v7566 = vadd.f32 %v7534, 1.0
    %v7567 = vadd.f32 %v7535, 1.0
    %v7568 = vadd.f32 %v7536, 1.0
    %v7569 = vadd.f32 %v7537, 1.0
    %v7570 = vadd.f32 %v7538, 1.0
    %v7571 = vadd.f32 %v7539, 1.0
    %v7572 = vadd.f32 %v7540, 1.0
    %v7573 = vadd.f32 %v7541, 1.0
    %v7574 = vadd.f32 %v7542, 1.0
    %v7575 = vadd.f32 %v7543, 1.0
    %v7576 = vadd.f32 %v7544, 1.0
    %v7577 = vadd.f32 %v7545, 1.0
    %v7578 = vadd.f32 %v7546, 1.0
    %v7579 = vadd.f32 %v7547, 1.0
    %v7580 = vadd.f32 %v7548, 1.0
    %v7581 = vadd.f32 %v7549, 1.0
    %v7582 = vadd.f32 %v7550, 1.0
    %v7583 = vadd.f32 %v7551, 1.0
    %v7584 = vadd.f32 %v7552, 1.0
    %v7585 = vadd.f32 %v7553, 1.0
    %v7586 = vadd.f32 %v7554, 1.0
    %v7587 = vadd.f32 %v7555, 1.0
    %v7588 = vadd.f32 %v7556, 1.0
    %v7589 = vadd.f32 %v7557, 1.0
    %v7590 = vadd.f32 %v7558, 1.0
    %v7591 = vadd.f32 %v7559, 1.0
    %v7592 = vadd.f32 %v7560, 1.0
    %v7593 = vadd.f32 %v7561, 1.0
    %v7594 = vadd.f32 %v7562, 1.0
    %v7595 = vmul.f32 %v7563, 0.5
    %v7596 = vmul.f32 %v7564, 0.5
    %v7597 = vmul.f32 %v7565, 0.5
    %v7598 = vmul.f32 %v7566, 0.5
    %v7599 = vmul.f32 %v7567, 0.5
    %v7600 = vmul.f32 %v7568, 0.5
    %v7601 = vmul.f32 %v7569, 0.5
    %v7602 = vmul.f32 %v7570, 0.5
    %v7603 = vmul.f32 %v7571, 0.5
    %v7604 = vmul.f32 %v7572, 0.5
    %v7605 = vmul.f32 %v7573, 0.5
    %v7606 = vmul.f32 %v7574, 0.5
    %v7607 = vmul.f32 %v7575, 0.5
    %v7608 = vmul.f32 %v7576, 0.5
    %v7609 = vmul.f32 %v7577, 0.5
    %v7610 = vmul.f32 %v7578, 0.5
    %v7611 = vmul.f32 %v7579, 0.5
    %v7612 = vmul.f32 %v7580, 0.5
    %v7613 = vmul.f32 %v7581, 0.5
    %v7614 = vmul.f32 %v7582, 0.5
    %v7615 = vmul.f32 %v7583, 0.5
    %v7616 = vmul.f32 %v7584, 0.5
    %v7617 = vmul.f32 %v7585, 0.5
    %v7618 = vmul.f32 %v7586, 0.5
    %v7619 = vmul.f32 %v7587, 0.5
    %v7620 = vmul.f32 %v7588, 0.5
    %v7621 = vmul.f32 %v7589, 0.5
    %v7622 = vmul.f32 %v7590, 0.5
    %v7623 = vmul.f32 %v7591, 0.5
    %v7624 = vmul.f32 %v7592, 0.5
    %v7625 = vmul.f32 %v7593, 0.5
    %v7626 = vmul.f32 %v7594, 0.5
    %v7627 = vmul.f32 %v7245, %v7595
    %v7628 = vmul.f32 %v7248, %v7596
    %v7629 = vmul.f32 %v7253, %v7597
    %v7630 = vmul.f32 %v7256, %v7598
    %v7631 = vmul.f32 %v7261, %v7599
    %v7632 = vmul.f32 %v7264, %v7600
    %v7633 = vmul.f32 %v7269, %v7601
    %v7634 = vmul.f32 %v7272, %v7602
    %v7635 = vmul.f32 %v7277, %v7603
    %v7636 = vmul.f32 %v7280, %v7604
    %v7637 = vmul.f32 %v7285, %v7605
    %v7638 = vmul.f32 %v7288, %v7606
    %v7639 = vmul.f32 %v7293, %v7607
    %v7640 = vmul.f32 %v7296, %v7608
    %v7641 = vmul.f32 %v7301, %v7609
    %v7642 = vmul.f32 %v7304, %v7610
    %v7643 = vmul.f32 %v7309, %v7611
    %v7644 = vmul.f32 %v7312, %v7612
    %v7645 = vmul.f32 %v7317, %v7613
    %v7646 = vmul.f32 %v7320, %v7614
    %v7647 = vmul.f32 %v7325, %v7615
    %v7648 = vmul.f32 %v7328, %v7616
    %v7649 = vmul.f32 %v7333, %v7617
    %v7650 = vmul.f32 %v7336, %v7618
    %v7651 = vmul.f32 %v7341, %v7619
    %v7652 = vmul.f32 %v7344, %v7620
    %v7653 = vmul.f32 %v7349, %v7621
    %v7654 = vmul.f32 %v7352, %v7622
    %v7655 = vmul.f32 %v7357, %v7623
    %v7656 = vmul.f32 %v7360, %v7624
    %v7657 = vmul.f32 %v7365, %v7625
    %v7658 = vmul.f32 %v7368, %v7626
    %v7659 = vld [vmem:[%s101] sm:$0xf]
    %v7660 = vld [vmem:[%s101 + $0x4] sm:$0xf]
    %v7661 = vld [vmem:[%s101 + $0x8] sm:$0xf]
    %v7662 = vld [vmem:[%s101 + $0xc] sm:$0xf]
    %v7663 = vpack.c.bf16 %v6405, %v6405
    %v7664 = vld [vmem:[#allocation12] sm:$0x1]
    %v7666 = vshrl.u32 %v7663, 16
    %v7672 = vunpack.c.l.b16 %v7659
    %v7673 = vunpack.c.l.b16 %v7660
    %v7674 = vunpack.c.l.b16 %v7661
    %v7675 = vunpack.c.l.b16 %v7662
    %v7676 = vpack.c.b16 %v7673, %v7672
    %v7677 = vpack.c.b16 %v7675, %v7674
    %v7681 = vsel %vm3007, %v7666, 0
    %7683 = vmatprep.subr.bf16.mxu0 0
    %7684 = vmatpush1.bf16.msra.mxu0 %v7676
    %7685 = vmatprep.subr.bf16.mxu0 0
    %7686 = vmatpush1.bf16.msra.mxu0 %v7677
    %7687 = vmatprep.subr.bf16.mxu0 0
    %7688 = vmatpush1.bf16.msra.mxu0 0
    %7689 = vmatprep.subr.bf16.mxu0 0
    %7690 = vmatpush1.bf16.msra.mxu0 0
    %7691 = vmatprep.subr.bf16.mxu0 0
    %7692 = vmatpush1.bf16.msra.mxu0 0
    %7693 = vmatprep.subr.bf16.mxu0 0
    %7694 = vmatpush1.bf16.msra.mxu0 0
    %7695 = vmatprep.subr.bf16.mxu0 0
    %7696 = vmatpush1.bf16.msra.mxu0 0
    %7697 = vmatprep.subr.bf16.mxu0 0
    %7698 = vmatpush1.bf16.msra.mxu0 0
    %7699 = vmatprep.subr.bf16.mxu0 0
    %7700 = vmatpush1.bf16.msra.mxu0 0
    %7701 = vmatprep.subr.bf16.mxu0 0
    %7702 = vmatpush1.bf16.msra.mxu0 0
    %7703 = vmatprep.subr.bf16.mxu0 0
    %7704 = vmatpush1.bf16.msra.mxu0 0
    %7705 = vmatprep.subr.bf16.mxu0 0
    %7706 = vmatpush1.bf16.msra.mxu0 0
    %7707 = vmatprep.subr.bf16.mxu0 0
    %7708 = vmatpush1.bf16.msra.mxu0 0
    %7709 = vmatprep.subr.bf16.mxu0 0
    %7710 = vmatpush1.bf16.msra.mxu0 0
    %7711 = vmatprep.subr.bf16.mxu0 0
    %7712 = vmatpush1.bf16.msra.mxu0 0
    %7713 = vmatprep.subr.bf16.mxu0 0
    %7714 = vmatpush1.bf16.msra.mxu0 0
    %7715 = vmatprep.mubr.bf16.mxu0 0
    %7716 = vmatmul.mubr.bf16.gmra.mrb[0].mxu0 %v7681
    %v7717 = vpop.f32.mrb[0].mxu0
    %v7718 = vadd.f32 %v7664, %v7717
    %v7719 = vpop.f32.mrb[0].mxu0
    %v7720 = vpop.f32.mrb[0].mxu0
    %v7721 = vpop.f32.mrb[0].mxu0
    %7722 = vdwg.mxu0
    %v7723 = vmax.f32 %v7718, 0.0
    %v7724 = vld [vmem:[%s105] sm:$0xf]
    %v7725 = vld [vmem:[%s105 + $0x4] sm:$0xf]
    %v7726 = vld [vmem:[%s105 + $0x8] sm:$0xf]
    %v7727 = vld [vmem:[%s105 + $0xc] sm:$0xf]
    %v7728 = vpack.c.bf16 %v7723, %v7723
    %v7729 = vld [vmem:[#allocation14] sm:$0x1]
    %v7734 = vunpack.c.l.b16 %v7724
    %v7735 = vunpack.c.l.b16 %v7725
    %v7736 = vunpack.c.l.b16 %v7726
    %v7737 = vunpack.c.l.b16 %v7727
    %v7738 = vpack.c.b16 %v7735, %v7734
    %v7739 = vpack.c.b16 %v7737, %v7736
    %v7743 = vsel %vm3007, %v7728, 0
    %7745 = vmatprep.subr.bf16.mxu0 0
    %7746 = vmatpush1.bf16.msra.mxu0 %v7738
    %7747 = vmatprep.subr.bf16.mxu0 0
    %7748 = vmatpush1.bf16.msra.mxu0 %v7739
    %7749 = vmatprep.subr.bf16.mxu0 0
    %7750 = vmatpush1.bf16.msra.mxu0 0
    %7751 = vmatprep.subr.bf16.mxu0 0
    %7752 = vmatpush1.bf16.msra.mxu0 0
    %7753 = vmatprep.subr.bf16.mxu0 0
    %7754 = vmatpush1.bf16.msra.mxu0 0
    %7755 = vmatprep.subr.bf16.mxu0 0
    %7756 = vmatpush1.bf16.msra.mxu0 0
    %7757 = vmatprep.subr.bf16.mxu0 0
    %7758 = vmatpush1.bf16.msra.mxu0 0
    %7759 = vmatprep.subr.bf16.mxu0 0
    %7760 = vmatpush1.bf16.msra.mxu0 0
    %7761 = vmatprep.subr.bf16.mxu0 0
    %7762 = vmatpush1.bf16.msra.mxu0 0
    %7763 = vmatprep.subr.bf16.mxu0 0
    %7764 = vmatpush1.bf16.msra.mxu0 0
    %7765 = vmatprep.subr.bf16.mxu0 0
    %7766 = vmatpush1.bf16.msra.mxu0 0
    %7767 = vmatprep.subr.bf16.mxu0 0
    %7768 = vmatpush1.bf16.msra.mxu0 0
    %7769 = vmatprep.subr.bf16.mxu0 0
    %7770 = vmatpush1.bf16.msra.mxu0 0
    %7771 = vmatprep.subr.bf16.mxu0 0
    %7772 = vmatpush1.bf16.msra.mxu0 0
    %7773 = vmatprep.subr.bf16.mxu0 0
    %7774 = vmatpush1.bf16.msra.mxu0 0
    %7775 = vmatprep.subr.bf16.mxu0 0
    %7776 = vmatpush1.bf16.msra.mxu0 0
    %7777 = vmatprep.mubr.bf16.mxu0 0
    %7778 = vmatmul.mubr.bf16.gmra.mrb[0].mxu0 %v7743
    %v7779 = vpop.f32.mrb[0].mxu0
    %v7780 = vadd.f32 %v7729, %v7779
    %v7781 = vpop.f32.mrb[0].mxu0
    %v7782 = vpop.f32.mrb[0].mxu0
    %v7783 = vpop.f32.mrb[0].mxu0
    %7784 = vdwg.mxu0
    %v7785 = vmax.f32 %v7780, 0.0
    %v7786 = vld [vmem:[%s109] sm:$0xf]
    %v7787 = vld [vmem:[%s109 + $0x4] sm:$0xf]
    %v7788 = vld [vmem:[%s109 + $0x8] sm:$0xf]
    %v7789 = vld [vmem:[%s109 + $0xc] sm:$0xf]
    %v7790 = vpack.c.bf16 %v7785, %v7785
    %v7791 = vld [vmem:[#allocation15] sm:$0x1]
    %v7796 = vunpack.c.l.b16 %v7786
    %v7797 = vunpack.c.l.b16 %v7787
    %v7798 = vunpack.c.l.b16 %v7788
    %v7799 = vunpack.c.l.b16 %v7789
    %v7800 = vpack.c.b16 %v7797, %v7796
    %v7801 = vpack.c.b16 %v7799, %v7798
    %v7805 = vsel %vm3007, %v7790, 0
    %7807 = vmatprep.subr.bf16.mxu0 0
    %7808 = vmatpush1.bf16.msra.mxu0 %v7800
    %7809 = vmatprep.subr.bf16.mxu0 0
    %7810 = vmatpush1.bf16.msra.mxu0 %v7801
    %7811 = vmatprep.subr.bf16.mxu0 0
    %7812 = vmatpush1.bf16.msra.mxu0 0
    %7813 = vmatprep.subr.bf16.mxu0 0
    %7814 = vmatpush1.bf16.msra.mxu0 0
    %7815 = vmatprep.subr.bf16.mxu0 0
    %7816 = vmatpush1.bf16.msra.mxu0 0
    %7817 = vmatprep.subr.bf16.mxu0 0
    %7818 = vmatpush1.bf16.msra.mxu0 0
    %7819 = vmatprep.subr.bf16.mxu0 0
    %7820 = vmatpush1.bf16.msra.mxu0 0
    %7821 = vmatprep.subr.bf16.mxu0 0
    %7822 = vmatpush1.bf16.msra.mxu0 0
    %7823 = vmatprep.subr.bf16.mxu0 0
    %7824 = vmatpush1.bf16.msra.mxu0 0
    %7825 = vmatprep.subr.bf16.mxu0 0
    %7826 = vmatpush1.bf16.msra.mxu0 0
    %7827 = vmatprep.subr.bf16.mxu0 0
    %7828 = vmatpush1.bf16.msra.mxu0 0
    %7829 = vmatprep.subr.bf16.mxu0 0
    %7830 = vmatpush1.bf16.msra.mxu0 0
    %7831 = vmatprep.subr.bf16.mxu0 0
    %7832 = vmatpush1.bf16.msra.mxu0 0
    %7833 = vmatprep.subr.bf16.mxu0 0
    %7834 = vmatpush1.bf16.msra.mxu0 0
    %7835 = vmatprep.subr.bf16.mxu0 0
    %7836 = vmatpush1.bf16.msra.mxu0 0
    %7837 = vmatprep.subr.bf16.mxu0 0
    %7838 = vmatpush1.bf16.msra.mxu0 0
    %7839 = vmatprep.mubr.bf16.mxu0 0
    %7840 = vmatmul.mubr.bf16.gmra.mrb[0].mxu0 %v7805
    %v7841 = vpop.f32.mrb[0].mxu0
    %v7842 = vadd.f32 %v7791, %v7841
    %v7843 = vpop.f32.mrb[0].mxu0
    %v7844 = vpop.f32.mrb[0].mxu0
    %v7845 = vpop.f32.mrb[0].mxu0
    %7846 = vdwg.mxu0
    %v7847 = vpack.c.bf16 %v7842, %v7842
    %v7848 = vpack.c.bf16 %v7628, %v7627
    %v7849 = vpack.c.bf16 %v7630, %v7629
    %v7850 = vpack.c.bf16 %v7632, %v7631
    %v7851 = vpack.c.bf16 %v7634, %v7633
    %v7852 = vpack.c.bf16 %v7636, %v7635
    %v7853 = vpack.c.bf16 %v7638, %v7637
    %v7854 = vpack.c.bf16 %v7640, %v7639
    %v7855 = vpack.c.bf16 %v7642, %v7641
    %v7856 = vpack.c.bf16 %v7644, %v7643
    %v7857 = vpack.c.bf16 %v7646, %v7645
    %v7858 = vpack.c.bf16 %v7648, %v7647
    %v7859 = vpack.c.bf16 %v7650, %v7649
    %v7860 = vpack.c.bf16 %v7652, %v7651
    %v7861 = vpack.c.bf16 %v7654, %v7653
    %v7862 = vpack.c.bf16 %v7656, %v7655
    %v7863 = vpack.c.bf16 %v7658, %v7657
    %vm7864 = vcmask 31744
    %v7866 = vsel %vm7864, %v7847, 0
    %v7869 = vsel %vm7864, %v7848, 0
    %v7872 = vsel %vm7864, %v7849, 0
    %v7875 = vsel %vm7864, %v7850, 0
    %v7878 = vsel %vm7864, %v7851, 0
    %v7881 = vsel %vm7864, %v7852, 0
    %v7884 = vsel %vm7864, %v7853, 0
    %v7887 = vsel %vm7864, %v7854, 0
    %v7890 = vsel %vm7864, %v7855, 0
    %v7893 = vsel %vm7864, %v7856, 0
    %v7896 = vsel %vm7864, %v7857, 0
    %v7899 = vsel %vm7864, %v7858, 0
    %v7902 = vsel %vm7864, %v7859, 0
    %v7905 = vsel %vm7864, %v7860, 0
    %v7908 = vsel %vm7864, %v7861, 0
    %v7911 = vsel %vm7864, %v7862, 0
    %v7914 = vsel %vm7864, %v7863, 0
    %7916 = vmatprep.subr.bf16.mxu0 0
    %7917 = vmatpush1.bf16.xpose.msra.mxu0 %v7869
    %7918 = vmatprep.subr.bf16.mxu0 0
    %7919 = vmatpush1.bf16.xpose.msra.mxu0 %v7872
    %7920 = vmatprep.subr.bf16.mxu0 0
    %7921 = vmatpush1.bf16.xpose.msra.mxu0 %v7875
    %7922 = vmatprep.subr.bf16.mxu0 0
    %7923 = vmatpush1.bf16.xpose.msra.mxu0 %v7878
    %7924 = vmatprep.subr.bf16.mxu0 0
    %7925 = vmatpush1.bf16.xpose.msra.mxu0 %v7881
    %7926 = vmatprep.subr.bf16.mxu0 0
    %7927 = vmatpush1.bf16.xpose.msra.mxu0 %v7884
    %7928 = vmatprep.subr.bf16.mxu0 0
    %7929 = vmatpush1.bf16.xpose.msra.mxu0 %v7887
    %7930 = vmatprep.subr.bf16.mxu0 0
    %7931 = vmatpush1.bf16.xpose.msra.mxu0 %v7890
    %7932 = vmatprep.subr.bf16.mxu0 0
    %7933 = vmatpush1.bf16.xpose.msra.mxu0 %v7893
    %7934 = vmatprep.subr.bf16.mxu0 0
    %7935 = vmatpush1.bf16.xpose.msra.mxu0 %v7896
    %7936 = vmatprep.subr.bf16.mxu0 0
    %7937 = vmatpush1.bf16.xpose.msra.mxu0 %v7899
    %7938 = vmatprep.subr.bf16.mxu0 0
    %7939 = vmatpush1.bf16.xpose.msra.mxu0 %v7902
    %7940 = vmatprep.subr.bf16.mxu0 0
    %7941 = vmatpush1.bf16.xpose.msra.mxu0 %v7905
    %7942 = vmatprep.subr.bf16.mxu0 0
    %7943 = vmatpush1.bf16.xpose.msra.mxu0 %v7908
    %7944 = vmatprep.subr.bf16.mxu0 0
    %7945 = vmatpush1.bf16.xpose.msra.mxu0 %v7911
    %7946 = vmatprep.subr.bf16.mxu0 0
    %7947 = vmatpush1.bf16.xpose.msra.mxu0 %v7914
    %7948 = vmatprep.mubr.bf16.mxu0 0
    %7949 = vmatmul.mubr.bf16.gmra.mrb[0].mxu0 %v7866
    %v7950 = vpop.f32.mrb[0].mxu0
    %v7951 = vadd.f32 0.0, %v7950
    %v7952 = vpop.f32.mrb[0].mxu0
    %v7953 = vadd.f32 0.0, %v7952
    %v7954 = vpop.f32.mrb[0].mxu0
    %v7955 = vpop.f32.mrb[0].mxu0
    %7956 = vdwg.mxu0
    %s7957 = smul.u32 4, 32
    %s7958 = smul.u32 %s7957, 8
    %s7959 = sshll.u32 %s7958, 4
    %7960 = dma.done [#allocation3], %s7959
    %v7961 = vpack.c.bf16 %v7951, %v7951
    %v7962 = vpack.c.bf16 %v7953, %v7953
    %v7963 = vld [vmem:[#allocation2] sm:$0xff]
    %v7964 = vld [vmem:[#allocation2 + $0x8] sm:$0xff]
    %v7965 = vld [vmem:[#allocation2 + $0x10] sm:$0xff]
    %v7966 = vld [vmem:[#allocation2 + $0x18] sm:$0xff]
    %v7967 = vld [vmem:[#allocation2 + $0x20] sm:$0xff]
    %v7968 = vld [vmem:[#allocation2 + $0x28] sm:$0xff]
    %v7969 = vld [vmem:[#allocation2 + $0x30] sm:$0xff]
    %v7970 = vld [vmem:[#allocation2 + $0x38] sm:$0xff]
    %v7971 = vld [vmem:[#allocation2 + $0x40] sm:$0xff]
    %v7972 = vld [vmem:[#allocation2 + $0x48] sm:$0xff]
    %v7973 = vld [vmem:[#allocation2 + $0x50] sm:$0xff]
    %v7974 = vld [vmem:[#allocation2 + $0x58] sm:$0xff]
    %v7975 = vld [vmem:[#allocation2 + $0x60] sm:$0xff]
    %v7976 = vld [vmem:[#allocation2 + $0x68] sm:$0xff]
    %v7977 = vld [vmem:[#allocation2 + $0x70] sm:$0xff]
    %v7978 = vld [vmem:[#allocation2 + $0x78] sm:$0xff]
    %v7979 = vld [vmem:[#allocation2 + $0x80] sm:$0xff]
    %v7980 = vld [vmem:[#allocation2 + $0x88] sm:$0xff]
    %v7981 = vld [vmem:[#allocation2 + $0x90] sm:$0xff]
    %v7982 = vld [vmem:[#allocation2 + $0x98] sm:$0xff]
    %v7983 = vld [vmem:[#allocation2 + $0xa0] sm:$0xff]
    %v7984 = vld [vmem:[#allocation2 + $0xa8] sm:$0xff]
    %v7985 = vld [vmem:[#allocation2 + $0xb0] sm:$0xff]
    %v7986 = vld [vmem:[#allocation2 + $0xb8] sm:$0xff]
    %v7987 = vld [vmem:[#allocation2 + $0xc0] sm:$0xff]
    %v7988 = vld [vmem:[#allocation2 + $0xc8] sm:$0xff]
    %v7989 = vld [vmem:[#allocation2 + $0xd0] sm:$0xff]
    %v7990 = vld [vmem:[#allocation2 + $0xd8] sm:$0xff]
    %v7991 = vld [vmem:[#allocation2 + $0xe0] sm:$0xff]
    %v7992 = vld [vmem:[#allocation2 + $0xe8] sm:$0xff]
    %v7993 = vld [vmem:[#allocation2 + $0xf0] sm:$0xff]
    %v7994 = vld [vmem:[#allocation2 + $0xf8] sm:$0xff]
    %v7995 = vld [vmem:[#allocation2 + $0x100] sm:$0xff]
    %v7996 = vld [vmem:[#allocation2 + $0x108] sm:$0xff]
    %v7997 = vld [vmem:[#allocation2 + $0x110] sm:$0xff]
    %v7998 = vld [vmem:[#allocation2 + $0x118] sm:$0xff]
    %v7999 = vld [vmem:[#allocation2 + $0x120] sm:$0xff]
    %v8000 = vld [vmem:[#allocation2 + $0x128] sm:$0xff]
    %v8001 = vld [vmem:[#allocation2 + $0x130] sm:$0xff]
    %v8002 = vld [vmem:[#allocation2 + $0x138] sm:$0xff]
    %v8003 = vld [vmem:[#allocation2 + $0x140] sm:$0xff]
    %v8004 = vld [vmem:[#allocation2 + $0x148] sm:$0xff]
    %v8005 = vld [vmem:[#allocation2 + $0x150] sm:$0xff]
    %v8006 = vld [vmem:[#allocation2 + $0x158] sm:$0xff]
    %v8007 = vld [vmem:[#allocation2 + $0x160] sm:$0xff]
    %v8008 = vld [vmem:[#allocation2 + $0x168] sm:$0xff]
    %v8009 = vld [vmem:[#allocation2 + $0x170] sm:$0xff]
    %v8010 = vld [vmem:[#allocation2 + $0x178] sm:$0xff]
    %v8011 = vld [vmem:[#allocation2 + $0x180] sm:$0xff]
    %v8012 = vld [vmem:[#allocation2 + $0x188] sm:$0xff]
    %v8013 = vld [vmem:[#allocation2 + $0x190] sm:$0xff]
    %v8014 = vld [vmem:[#allocation2 + $0x198] sm:$0xff]
    %v8015 = vld [vmem:[#allocation2 + $0x1a0] sm:$0xff]
    %v8016 = vld [vmem:[#allocation2 + $0x1a8] sm:$0xff]
    %v8017 = vld [vmem:[#allocation2 + $0x1b0] sm:$0xff]
    %v8018 = vld [vmem:[#allocation2 + $0x1b8] sm:$0xff]
    %v8019 = vld [vmem:[#allocation2 + $0x1c0] sm:$0xff]
    %v8020 = vld [vmem:[#allocation2 + $0x1c8] sm:$0xff]
    %v8021 = vld [vmem:[#allocation2 + $0x1d0] sm:$0xff]
    %v8022 = vld [vmem:[#allocation2 + $0x1d8] sm:$0xff]
    %v8023 = vld [vmem:[#allocation2 + $0x1e0] sm:$0xff]
    %v8024 = vld [vmem:[#allocation2 + $0x1e8] sm:$0xff]
    %v8025 = vld [vmem:[#allocation2 + $0x1f0] sm:$0xff]
    %v8026 = vld [vmem:[#allocation2 + $0x1f8] sm:$0xff]
    %v8027 = vld [vmem:[#allocation2 + $0x200] sm:$0xff]
    %v8028 = vld [vmem:[#allocation2 + $0x208] sm:$0xff]
    %v8029 = vld [vmem:[#allocation2 + $0x210] sm:$0xff]
    %v8030 = vld [vmem:[#allocation2 + $0x218] sm:$0xff]
    %v8031 = vld [vmem:[#allocation2 + $0x220] sm:$0xff]
    %v8032 = vld [vmem:[#allocation2 + $0x228] sm:$0xff]
    %v8033 = vld [vmem:[#allocation2 + $0x230] sm:$0xff]
    %v8034 = vld [vmem:[#allocation2 + $0x238] sm:$0xff]
    %v8035 = vld [vmem:[#allocation2 + $0x240] sm:$0xff]
    %v8036 = vld [vmem:[#allocation2 + $0x248] sm:$0xff]
    %v8037 = vld [vmem:[#allocation2 + $0x250] sm:$0xff]
    %v8038 = vld [vmem:[#allocation2 + $0x258] sm:$0xff]
    %v8039 = vld [vmem:[#allocation2 + $0x260] sm:$0xff]
    %v8040 = vld [vmem:[#allocation2 + $0x268] sm:$0xff]
    %v8041 = vld [vmem:[#allocation2 + $0x270] sm:$0xff]
    %v8042 = vld [vmem:[#allocation2 + $0x278] sm:$0xff]
    %v8043 = vld [vmem:[#allocation2 + $0x280] sm:$0xff]
    %v8044 = vld [vmem:[#allocation2 + $0x288] sm:$0xff]
    %v8045 = vld [vmem:[#allocation2 + $0x290] sm:$0xff]
    %v8046 = vld [vmem:[#allocation2 + $0x298] sm:$0xff]
    %v8047 = vld [vmem:[#allocation2 + $0x2a0] sm:$0xff]
    %v8048 = vld [vmem:[#allocation2 + $0x2a8] sm:$0xff]
    %v8049 = vld [vmem:[#allocation2 + $0x2b0] sm:$0xff]
    %v8050 = vld [vmem:[#allocation2 + $0x2b8] sm:$0xff]
    %v8051 = vld [vmem:[#allocation2 + $0x2c0] sm:$0xff]
    %v8052 = vld [vmem:[#allocation2 + $0x2c8] sm:$0xff]
    %v8053 = vld [vmem:[#allocation2 + $0x2d0] sm:$0xff]
    %v8054 = vld [vmem:[#allocation2 + $0x2d8] sm:$0xff]
    %v8055 = vld [vmem:[#allocation2 + $0x2e0] sm:$0xff]
    %v8056 = vld [vmem:[#allocation2 + $0x2e8] sm:$0xff]
    %v8057 = vld [vmem:[#allocation2 + $0x2f0] sm:$0xff]
    %v8058 = vld [vmem:[#allocation2 + $0x2f8] sm:$0xff]
    %v8059 = vld [vmem:[#allocation2 + $0x300] sm:$0xff]
    %v8060 = vld [vmem:[#allocation2 + $0x308] sm:$0xff]
    %v8061 = vld [vmem:[#allocation2 + $0x310] sm:$0xff]
    %v8062 = vld [vmem:[#allocation2 + $0x318] sm:$0xff]
    %v8063 = vld [vmem:[#allocation2 + $0x320] sm:$0xff]
    %v8064 = vld [vmem:[#allocation2 + $0x328] sm:$0xff]
    %v8065 = vld [vmem:[#allocation2 + $0x330] sm:$0xff]
    %v8066 = vld [vmem:[#allocation2 + $0x338] sm:$0xff]
    %v8067 = vld [vmem:[#allocation2 + $0x340] sm:$0xff]
    %v8068 = vld [vmem:[#allocation2 + $0x348] sm:$0xff]
    %v8069 = vld [vmem:[#allocation2 + $0x350] sm:$0xff]
    %v8070 = vld [vmem:[#allocation2 + $0x358] sm:$0xff]
    %v8071 = vld [vmem:[#allocation2 + $0x360] sm:$0xff]
    %v8072 = vld [vmem:[#allocation2 + $0x368] sm:$0xff]
    %v8073 = vld [vmem:[#allocation2 + $0x370] sm:$0xff]
    %v8074 = vld [vmem:[#allocation2 + $0x378] sm:$0xff]
    %v8075 = vld [vmem:[#allocation2 + $0x380] sm:$0xff]
    %v8076 = vld [vmem:[#allocation2 + $0x388] sm:$0xff]
    %v8077 = vld [vmem:[#allocation2 + $0x390] sm:$0xff]
    %v8078 = vld [vmem:[#allocation2 + $0x398] sm:$0xff]
    %v8079 = vld [vmem:[#allocation2 + $0x3a0] sm:$0xff]
    %v8080 = vld [vmem:[#allocation2 + $0x3a8] sm:$0xff]
    %v8081 = vld [vmem:[#allocation2 + $0x3b0] sm:$0xff]
    %v8082 = vld [vmem:[#allocation2 + $0x3b8] sm:$0xff]
    %v8083 = vld [vmem:[#allocation2 + $0x3c0] sm:$0xff]
    %v8084 = vld [vmem:[#allocation2 + $0x3c8] sm:$0xff]
    %v8085 = vld [vmem:[#allocation2 + $0x3d0] sm:$0xff]
    %v8086 = vld [vmem:[#allocation2 + $0x3d8] sm:$0xff]
    %v8087 = vld [vmem:[#allocation2 + $0x3e0] sm:$0xff]
    %v8088 = vld [vmem:[#allocation2 + $0x3e8] sm:$0xff]
    %v8089 = vld [vmem:[#allocation2 + $0x3f0] sm:$0xff]
    %v8090 = vld [vmem:[#allocation2 + $0x3f8] sm:$0xff]
    %8091 = vmatprep.subr.bf16.mxu0 %v7964
    %8092 = vmatpush1.bf16.msra.mxu0 %v7963
    %8093 = vmatprep.subr.bf16.mxu0 %v7972
    %8094 = vmatpush1.bf16.msra.mxu0 %v7971
    %8095 = vmatprep.subr.bf16.mxu0 %v7980
    %8096 = vmatpush1.bf16.msra.mxu0 %v7979
    %8097 = vmatprep.subr.bf16.mxu0 %v7988
    %8098 = vmatpush1.bf16.msra.mxu0 %v7987
    %8099 = vmatprep.subr.bf16.mxu0 %v7996
    %8100 = vmatpush1.bf16.msra.mxu0 %v7995
    %8101 = vmatprep.subr.bf16.mxu0 %v8004
    %8102 = vmatpush1.bf16.msra.mxu0 %v8003
    %8103 = vmatprep.subr.bf16.mxu0 %v8012
    %8104 = vmatpush1.bf16.msra.mxu0 %v8011
    %8105 = vmatprep.subr.bf16.mxu0 %v8020
    %8106 = vmatpush1.bf16.msra.mxu0 %v8019
    %8107 = vmatprep.subr.bf16.mxu0 %v8028
    %8108 = vmatpush1.bf16.msra.mxu0 %v8027
    %8109 = vmatprep.subr.bf16.mxu0 %v8036
    %8110 = vmatpush1.bf16.msra.mxu0 %v8035
    %8111 = vmatprep.subr.bf16.mxu0 %v8044
    %8112 = vmatpush1.bf16.msra.mxu0 %v8043
    %8113 = vmatprep.subr.bf16.mxu0 %v8052
    %8114 = vmatpush1.bf16.msra.mxu0 %v8051
    %8115 = vmatprep.subr.bf16.mxu0 %v8060
    %8116 = vmatpush1.bf16.msra.mxu0 %v8059
    %8117 = vmatprep.subr.bf16.mxu0 %v8068
    %8118 = vmatpush1.bf16.msra.mxu0 %v8067
    %8119 = vmatprep.subr.bf16.mxu0 %v8076
    %8120 = vmatpush1.bf16.msra.mxu0 %v8075
    %8121 = vmatprep.subr.bf16.mxu0 %v8084
    %8122 = vmatpush1.bf16.msra.mxu0 %v8083
    %8123 = vmatprep.mubr.bf16.mxu0 %v7962
    %8124 = vmatmul.mubr.bf16.gmra.mrb[0].mxu0 %v7961
    %v8125 = vpop.f32.mrb[0].mxu0
    %v8126 = vadd.f32 0.0, %v8125
    %v8127 = vpop.f32.mrb[0].mxu0
    %v8128 = vadd.f32 0.0, %v8127
    %v8129 = vpop.f32.mrb[0].mxu0
    %v8130 = vpop.f32.mrb[0].mxu0
    %8131 = vdwg.mxu0
    %8132 = vmatprep.subr.bf16.mxu0 %v7966
    %8133 = vmatpush1.bf16.msra.mxu0 %v7965
    %8134 = vmatprep.subr.bf16.mxu0 %v7974
    %8135 = vmatpush1.bf16.msra.mxu0 %v7973
    %8136 = vmatprep.subr.bf16.mxu0 %v7982
    %8137 = vmatpush1.bf16.msra.mxu0 %v7981
    %8138 = vmatprep.subr.bf16.mxu0 %v7990
    %8139 = vmatpush1.bf16.msra.mxu0 %v7989
    %8140 = vmatprep.subr.bf16.mxu0 %v7998
    %8141 = vmatpush1.bf16.msra.mxu0 %v7997
    %8142 = vmatprep.subr.bf16.mxu0 %v8006
    %8143 = vmatpush1.bf16.msra.mxu0 %v8005
    %8144 = vmatprep.subr.bf16.mxu0 %v8014
    %8145 = vmatpush1.bf16.msra.mxu0 %v8013
    %8146 = vmatprep.subr.bf16.mxu0 %v8022
    %8147 = vmatpush1.bf16.msra.mxu0 %v8021
    %8148 = vmatprep.subr.bf16.mxu0 %v8030
    %8149 = vmatpush1.bf16.msra.mxu0 %v8029
    %8150 = vmatprep.subr.bf16.mxu0 %v8038
    %8151 = vmatpush1.bf16.msra.mxu0 %v8037
    %8152 = vmatprep.subr.bf16.mxu0 %v8046
    %8153 = vmatpush1.bf16.msra.mxu0 %v8045
    %8154 = vmatprep.subr.bf16.mxu0 %v8054
    %8155 = vmatpush1.bf16.msra.mxu0 %v8053
    %8156 = vmatprep.subr.bf16.mxu0 %v8062
    %8157 = vmatpush1.bf16.msra.mxu0 %v8061
    %8158 = vmatprep.subr.bf16.mxu0 %v8070
    %8159 = vmatpush1.bf16.msra.mxu0 %v8069
    %8160 = vmatprep.subr.bf16.mxu0 %v8078
    %8161 = vmatpush1.bf16.msra.mxu0 %v8077
    %8162 = vmatprep.subr.bf16.mxu0 %v8086
    %8163 = vmatpush1.bf16.msra.mxu0 %v8085
    %8164 = vmatprep.mubr.bf16.mxu0 %v7962
    %8165 = vmatmul.mubr.bf16.gmra.mrb[0].mxu0 %v7961
    %v8166 = vpop.f32.mrb[0].mxu0
    %v8167 = vadd.f32 0.0, %v8166
    %v8168 = vpop.f32.mrb[0].mxu0
    %v8169 = vadd.f32 0.0, %v8168
    %v8170 = vpop.f32.mrb[0].mxu0
    %v8171 = vpop.f32.mrb[0].mxu0
    %8172 = vdwg.mxu0
    %8173 = vmatprep.subr.bf16.mxu0 %v7968
    %8174 = vmatpush1.bf16.msra.mxu0 %v7967
    %8175 = vmatprep.subr.bf16.mxu0 %v7976
    %8176 = vmatpush1.bf16.msra.mxu0 %v7975
    %8177 = vmatprep.subr.bf16.mxu0 %v7984
    %8178 = vmatpush1.bf16.msra.mxu0 %v7983
    %8179 = vmatprep.subr.bf16.mxu0 %v7992
    %8180 = vmatpush1.bf16.msra.mxu0 %v7991
    %8181 = vmatprep.subr.bf16.mxu0 %v8000
    %8182 = vmatpush1.bf16.msra.mxu0 %v7999
    %8183 = vmatprep.subr.bf16.mxu0 %v8008
    %8184 = vmatpush1.bf16.msra.mxu0 %v8007
    %8185 = vmatprep.subr.bf16.mxu0 %v8016
    %8186 = vmatpush1.bf16.msra.mxu0 %v8015
    %8187 = vmatprep.subr.bf16.mxu0 %v8024
    %8188 = vmatpush1.bf16.msra.mxu0 %v8023
    %8189 = vmatprep.subr.bf16.mxu0 %v8032
    %8190 = vmatpush1.bf16.msra.mxu0 %v8031
    %8191 = vmatprep.subr.bf16.mxu0 %v8040
    %8192 = vmatpush1.bf16.msra.mxu0 %v8039
    %8193 = vmatprep.subr.bf16.mxu0 %v8048
    %8194 = vmatpush1.bf16.msra.mxu0 %v8047
    %8195 = vmatprep.subr.bf16.mxu0 %v8056
    %8196 = vmatpush1.bf16.msra.mxu0 %v8055
    %8197 = vmatprep.subr.bf16.mxu0 %v8064
    %8198 = vmatpush1.bf16.msra.mxu0 %v8063
    %8199 = vmatprep.subr.bf16.mxu0 %v8072
    %8200 = vmatpush1.bf16.msra.mxu0 %v8071
    %8201 = vmatprep.subr.bf16.mxu0 %v8080
    %8202 = vmatpush1.bf16.msra.mxu0 %v8079
    %8203 = vmatprep.subr.bf16.mxu0 %v8088
    %8204 = vmatpush1.bf16.msra.mxu0 %v8087
    %8205 = vmatprep.mubr.bf16.mxu0 %v7962
    %8206 = vmatmul.mubr.bf16.gmra.mrb[0].mxu0 %v7961
    %v8207 = vpop.f32.mrb[0].mxu0
    %v8208 = vadd.f32 0.0, %v8207
    %v8209 = vpop.f32.mrb[0].mxu0
    %v8210 = vadd.f32 0.0, %v8209
    %v8211 = vpop.f32.mrb[0].mxu0
    %v8212 = vpop.f32.mrb[0].mxu0
    %8213 = vdwg.mxu0
    %8214 = vmatprep.subr.bf16.mxu0 %v7970
    %8215 = vmatpush1.bf16.msra.mxu0 %v7969
    %8216 = vmatprep.subr.bf16.mxu0 %v7978
    %8217 = vmatpush1.bf16.msra.mxu0 %v7977
    %8218 = vmatprep.subr.bf16.mxu0 %v7986
    %8219 = vmatpush1.bf16.msra.mxu0 %v7985
    %8220 = vmatprep.subr.bf16.mxu0 %v7994
    %8221 = vmatpush1.bf16.msra.mxu0 %v7993
    %8222 = vmatprep.subr.bf16.mxu0 %v8002
    %8223 = vmatpush1.bf16.msra.mxu0 %v8001
    %8224 = vmatprep.subr.bf16.mxu0 %v8010
    %8225 = vmatpush1.bf16.msra.mxu0 %v8009
    %8226 = vmatprep.subr.bf16.mxu0 %v8018
    %8227 = vmatpush1.bf16.msra.mxu0 %v8017
    %8228 = vmatprep.subr.bf16.mxu0 %v8026
    %8229 = vmatpush1.bf16.msra.mxu0 %v8025
    %8230 = vmatprep.subr.bf16.mxu0 %v8034
    %8231 = vmatpush1.bf16.msra.mxu0 %v8033
    %8232 = vmatprep.subr.bf16.mxu0 %v8042
    %8233 = vmatpush1.bf16.msra.mxu0 %v8041
    %8234 = vmatprep.subr.bf16.mxu0 %v8050
    %8235 = vmatpush1.bf16.msra.mxu0 %v8049
    %8236 = vmatprep.subr.bf16.mxu0 %v8058
    %8237 = vmatpush1.bf16.msra.mxu0 %v8057
    %8238 = vmatprep.subr.bf16.mxu0 %v8066
    %8239 = vmatpush1.bf16.msra.mxu0 %v8065
    %8240 = vmatprep.subr.bf16.mxu0 %v8074
    %8241 = vmatpush1.bf16.msra.mxu0 %v8073
    %8242 = vmatprep.subr.bf16.mxu0 %v8082
    %8243 = vmatpush1.bf16.msra.mxu0 %v8081
    %8244 = vmatprep.subr.bf16.mxu0 %v8090
    %8245 = vmatpush1.bf16.msra.mxu0 %v8089
    %8246 = vmatprep.mubr.bf16.mxu0 %v7962
    %8247 = vmatmul.mubr.bf16.gmra.mrb[0].mxu0 %v7961
    %v8248 = vpop.f32.mrb[0].mxu0
    %v8249 = vadd.f32 0.0, %v8248
    %v8250 = vpop.f32.mrb[0].mxu0
    %v8251 = vadd.f32 0.0, %v8250
    %v8252 = vpop.f32.mrb[0].mxu0
    %v8253 = vpop.f32.mrb[0].mxu0
    %8254 = vdwg.mxu0
    %vm8255 = vcmp.gt.f32.partialorder %v8126, 0.0
    %vm8256 = vcmp.gt.f32.partialorder %v8128, 0.0
    %vm8257 = vcmp.gt.f32.partialorder %v8167, 0.0
    %vm8258 = vcmp.gt.f32.partialorder %v8169, 0.0
    %vm8259 = vcmp.gt.f32.partialorder %v8208, 0.0
    %vm8260 = vcmp.gt.f32.partialorder %v8210, 0.0
    %vm8261 = vcmp.gt.f32.partialorder %v8249, 0.0
    %vm8262 = vcmp.gt.f32.partialorder %v8251, 0.0
    %v8263 = vsel %vm8255, 1.0, 0.0
    %v8264 = vsel %vm8256, 1.0, 0.0
    %v8265 = vsel %vm8257, 1.0, 0.0
    %v8266 = vsel %vm8258, 1.0, 0.0
    %v8267 = vsel %vm8259, 1.0, 0.0
    %v8268 = vsel %vm8260, 1.0, 0.0
    %v8269 = vsel %vm8261, 1.0, 0.0
    %v8270 = vsel %vm8262, 1.0, 0.0
    %v8279 = vcombine.low %v8263, %v8264
    %v8280 = vcombine.low %v8265, %v8266
    %v8281 = vcombine.low %v8267, %v8268
    %v8282 = vcombine.low %v8269, %v8270
    %v8284 = vunpack.c.l.s4 1966171168
    %v8285 = vunpack.c.0.s8 %v8284
    %v8286 = vlaneseq
    %v8287 = vshrl.u32 %v8286, 7
    %v8288 = vsub.s32 %v8285, %v8287
    %v8289 = vrot.slane %v8279, %v8288
    %v8291 = vunpack.c.l.s4 1966171168
    %v8292 = vunpack.c.0.s8 %v8291
    %v8293 = vlaneseq
    %v8294 = vshrl.u32 %v8293, 7
    %v8295 = vsub.s32 %v8292, %v8294
    %v8296 = vrot.slane %v8280, %v8295
    %v8298 = vunpack.c.l.s4 1966171168
    %v8299 = vunpack.c.0.s8 %v8298
    %v8300 = vlaneseq
    %v8301 = vshrl.u32 %v8300, 7
    %v8302 = vsub.s32 %v8299, %v8301
    %v8303 = vrot.slane %v8281, %v8302
    %v8305 = vunpack.c.l.s4 1966171168
    %v8306 = vunpack.c.0.s8 %v8305
    %v8307 = vlaneseq
    %v8308 = vshrl.u32 %v8307, 7
    %v8309 = vsub.s32 %v8306, %v8308
    %v8310 = vrot.slane %v8282, %v8309
    %v8311 = vcombine.low %v8289, %v8296
    %v8312 = vcombine.low %v8303, %v8310
    %v8314 = vunpack.c.l.s4 1966171168
    %v8315 = vunpack.c.0.s8 %v8314
    %v8316 = vlaneseq
    %v8317 = vshrl.u32 %v8316, 7
    %v8318 = vsub.s32 %v8315, %v8317
    %v8319 = vrot.slane %v8311, %v8318
    %v8321 = vunpack.c.l.s4 1966171168
    %v8322 = vunpack.c.0.s8 %v8321
    %v8323 = vlaneseq
    %v8324 = vshrl.u32 %v8323, 7
    %v8325 = vsub.s32 %v8322, %v8324
    %v8326 = vrot.slane %v8312, %v8325
    %v8327 = vcombine.low %v8319, %v8326
    %8329 = vst [vmem:[%s115] sm:$0xff] %v8327
    // Predicated region
    $region295: #{sam_forward.1} parent=1 // pred_check
      _
    $region296: #{sam_forward.1} parent=1 // pred_check_branch
      %8331 = sbr.rel (0) target = $region298
    $region297: #{sam_forward.1} parent=1 // pred_region
      _
    $region298: #{sam_forward.1} parent=1 // pred_fallthru
      _
    // Predicated region
    $region299: #{sam_forward.1} parent=1 // pred_check
      _
    $region300: #{sam_forward.1} parent=1 // pred_check_branch
      %8333 = sbr.rel (0) target = $region302
    $region301: #{sam_forward.1} parent=1 // pred_region
      _
    $region302: #{sam_forward.1} parent=1 // pred_fallthru
      _
    %8334 = vsyncpa [#allocation5], 1
    %8335 = vsyncpa [#allocation7], 1
    %8336 = vsyncpa [#allocation10], 1
    %8337 = vsyncpa [#allocation13], 1
    %8338 = vsyncpa [#allocation16], 1
  %8339 = vsyncmov [#allocation3]
  %s8340 = vpop.sfrf %8339
  %p8341 = scmp.eq.s32.totalorder %s8340, 0
  %p8342 = pneg %p8341
  %8344 = shalt.err (%p8342)

</llo_original>
